<compile_context>
chip_gen: v6e
topology: v6e:2x2x1
jax: 0.10.0
libtpu: 0.0.40
codegen_flags: <defaults>
</compile_context>

<pallas_src>
import jax
import jax.numpy as jnp
from jax import lax
from jax.experimental import pallas as pl
from jax.experimental.pallas import tpu as pltpu

H = W = 28            # input spatial size implied by xs.view(-1, 10*3*3)
C1 = 22               # conv1 output spatial (28 - 7 + 1)
P1 = 11               # pool1 output spatial
C2 = 7                # conv2 output spatial (11 - 5 + 1)
P2 = 3                # pool2 output spatial
NC1 = 8               # conv1 channels
NC2 = 10              # conv2 channels


def stn_kernel(x_ref,
               w1t_ref, b1_ref, re1_ref, ro1_ref, ce1_ref, co1_ref,
               w2t_ref, b2_ref, re2_ref, ro2_ref, ce2_ref, co2_ref,
               wfc1_ref, bfc1_ref, wfc2_ref, bfc2_ref,
               xg_ref, yg_ref, rowf_ref,
               y_ref, feat_ref, theta_ref):
    f32 = jnp.float32
    B = x_ref.shape[0]

    xgrid = xg_ref[...]        # (1, 784)  normalized x base coord per output pixel
    ygrid = yg_ref[...]        # (1, 784)  normalized y base coord per output pixel
    rowf = rowf_ref[...]       # (28, 784) rowf[r, p] = r  (row/col index grid)

    outs, feats, thetas = [], [], []
    for b in range(B):
        xb = x_ref[b]                                        # (28, 28), W on lanes

        # ---- localization conv1 (1->8, k7): 7 Toeplitz matmuls over columns ----
        r1 = jnp.dot(xb[0:C1, :], w1t_ref[0], preferred_element_type=f32)
        for ki in range(1, 7):
            r1 = r1 + jnp.dot(xb[ki:ki + C1, :], w1t_ref[ki],
                              preferred_element_type=f32)
        r1 = r1 + b1_ref[...]                                # (22, 176), lanes = co*22+j

        # ---- maxpool 2x2 + relu (row/col pair selection via MXU matmuls) ----
        rp = jnp.maximum(jnp.dot(re1_ref[...], r1, preferred_element_type=f32),
                         jnp.dot(ro1_ref[...], r1, preferred_element_type=f32))
        p1 = jnp.maximum(jnp.dot(rp, ce1_ref[...], preferred_element_type=f32),
                         jnp.dot(rp, co1_ref[...], preferred_element_type=f32))
        p1 = jnp.maximum(p1, 0.0)                            # (11, 88), lanes = ci*11+j

        # ---- conv2 (8->10, k5): 5 Toeplitz matmuls over (ci, col) lanes ----
        r2 = jnp.dot(p1[0:C2, :], w2t_ref[0], preferred_element_type=f32)
        for ki in range(1, 5):
            r2 = r2 + jnp.dot(p1[ki:ki + C2, :], w2t_ref[ki],
                              preferred_element_type=f32)
        r2 = r2 + b2_ref[...]                                # (7, 70), lanes = co*7+j

        # ---- maxpool 2x2 (floor: row/col 6 dropped) + relu ----
        rp2 = jnp.maximum(jnp.dot(re2_ref[...], r2, preferred_element_type=f32),
                          jnp.dot(ro2_ref[...], r2, preferred_element_type=f32))
        ft = jnp.maximum(jnp.dot(rp2, ce2_ref[...], preferred_element_type=f32),
                         jnp.dot(rp2, co2_ref[...], preferred_element_type=f32))
        ft = jnp.maximum(ft, 0.0)                            # (3, 30), lanes = co*3+q

        # ---- fc_loc: Linear(90,32)+ReLU, Linear(32,6) -- all MXU dots ----
        h = jnp.dot(ft[0:1, :], wfc1_ref[0], preferred_element_type=f32)
        h = h + jnp.dot(ft[1:2, :], wfc1_ref[1], preferred_element_type=f32)
        h = h + jnp.dot(ft[2:3, :], wfc1_ref[2], preferred_element_type=f32)
        h = jnp.maximum(h + bfc1_ref[...], 0.0)              # (1, 32)
        th = (jnp.dot(h, wfc2_ref[...], preferred_element_type=f32)
              + bfc2_ref[...])                               # (1, 6)

        # ---- affine_grid (align_corners=False) ----
        gx = th[:, 0:1] * xgrid + th[:, 1:2] * ygrid + th[:, 2:3]   # (1, 784)
        gy = th[:, 3:4] * xgrid + th[:, 4:5] * ygrid + th[:, 5:6]

        # ---- bilinear grid_sample (zeros padding), separable weight matrices ----
        ix = ((gx + 1.0) * float(W) - 1.0) * 0.5
        iy = ((gy + 1.0) * float(H) - 1.0) * 0.5
        ix0 = jnp.floor(ix)
        iy0 = jnp.floor(iy)
        wx1 = ix - ix0
        wy1 = iy - iy0
        wx0 = 1.0 - wx1
        wy0 = 1.0 - wy1
        # Wx[c, p]: bilinear column weights (OOB columns automatically get 0)
        wxm = (jnp.where(rowf == ix0, wx0, 0.0) +
               jnp.where(rowf == ix0 + 1.0, wx1, 0.0))       # (28, 784)
        hrow = jnp.dot(xb, wxm, preferred_element_type=f32)  # (28, 784), rows = r
        # Wy[r, p]: bilinear row weights
        wym = (jnp.where(rowf == iy0, wy0, 0.0) +
               jnp.where(rowf == iy0 + 1.0, wy1, 0.0))       # (28, 784)
        yb = jnp.sum(hrow * wym, axis=0, keepdims=True)      # (1, 784), lane-dense

        outs.append(yb)
        feats.append(ft.reshape(1, P2, NC2 * P2))
        thetas.append(th)

    # single lane-dense stores per block
    y_ref[...] = jnp.concatenate(outs, axis=0)               # (B, 784)
    feat_ref[...] = jnp.concatenate(feats, axis=0)           # (B, 3, 30)
    theta_ref[...] = jnp.concatenate(thetas, axis=0)         # (B, 6)


def _prep_weights(params):
    """Rearrange PyTorch-layout params into lane-contracting matmul operands."""
    w1, b1, w2, b2, wfc1, bfc1, wfc2, bfc2 = params
    f32 = jnp.float32

    # conv1 Toeplitz over image columns: W1T[ki, c, co*22+jo] = w1[co,0,ki,c-jo]
    c = jnp.arange(W)[:, None]
    jo = jnp.arange(C1)[None, :]
    k = c - jo
    valid = (k >= 0) & (k < 7)
    kc = jnp.clip(k, 0, 6)
    t1 = w1[:, 0, :, :][:, :, kc]                            # (8,7,28,22)
    t1 = jnp.where(valid[None, None], t1, 0.0)
    w1t = jnp.transpose(t1, (1, 2, 0, 3)).reshape(7, W, NC1 * C1)     # (7,28,176)
    b1l = jnp.repeat(b1, C1).reshape(1, NC1 * C1)

    # pool1 row / column selection matrices (exactly one 1 per selected elem)
    tt = jnp.arange(P1)
    re1 = (jnp.arange(C1)[None, :] == 2 * tt[:, None]).astype(f32)     # (11,22)
    ro1 = (jnp.arange(C1)[None, :] == 2 * tt[:, None] + 1).astype(f32)
    s = jnp.arange(NC1 * C1)
    d = jnp.arange(NC1 * P1)
    ce1 = (((s[:, None] // C1) == (d[None, :] // P1)) &
           ((s[:, None] % C1) == 2 * (d[None, :] % P1))).astype(f32)   # (176,88)
    co1 = (((s[:, None] // C1) == (d[None, :] // P1)) &
           ((s[:, None] % C1) == 2 * (d[None, :] % P1) + 1)).astype(f32)

    # conv2 Toeplitz over (ci, pooled col) lanes:
    # W2T[ki, ci*11+j, co*7+jo] = w2[co,ci,ki,j-jo]
    j = jnp.arange(P1)[:, None]
    jo2 = jnp.arange(C2)[None, :]
    k2 = j - jo2
    valid2 = (k2 >= 0) & (k2 < 5)
    k2c = jnp.clip(k2, 0, 4)
    t2 = w2[:, :, :, k2c]                                    # (10,8,5,11,7)
    t2 = jnp.where(valid2[None, None, None], t2, 0.0)
    w2t = jnp.transpose(t2, (2, 1, 3, 0, 4)).reshape(5, NC1 * P1, NC2 * C2)  # (5,88,70)
    b2l = jnp.repeat(b2, C2).reshape(1, NC2 * C2)

    # pool2 row / column selection (floor pooling: index 6 never selected)
    tt2 = jnp.arange(P2)
    re2 = (jnp.arange(C2)[None, :] == 2 * tt2[:, None]).astype(f32)    # (3,7)
    ro2 = (jnp.arange(C2)[None, :] == 2 * tt2[:, None] + 1).astype(f32)
    s2 = jnp.arange(NC2 * C2)
    d2 = jnp.arange(NC2 * P2)
    ce2 = (((s2[:, None] // C2) == (d2[None, :] // P2)) &
           ((s2[:, None] % C2) == 2 * (d2[None, :] % P2))).astype(f32)  # (70,30)
    co2 = (((s2[:, None] // C2) == (d2[None, :] // P2)) &
           ((s2[:, None] % C2) == 2 * (d2[None, :] % P2) + 1)).astype(f32)

    # fc_loc weights; xs.view(-1,90) flattens (co,p,q) -> co*9+p*3+q
    wfc1k = jnp.transpose(wfc1.reshape(32, NC2, P2, P2),
                          (2, 1, 3, 0)).reshape(P2, NC2 * P2, 32)       # (3,30,32)
    bfc1k = bfc1.reshape(1, 32)
    wfc2k = wfc2.T                                                       # (32,6)
    bfc2k = bfc2.reshape(1, 6)

    # affine-grid base coordinates (align_corners=False), p = i*28 + j on lanes
    jj = jnp.tile(jnp.arange(W, dtype=f32), H).reshape(1, H * W)
    ii = jnp.repeat(jnp.arange(H, dtype=f32), W).reshape(1, H * W)
    xg = (2.0 * jj + 1.0) / float(W) - 1.0
    yg = (2.0 * ii + 1.0) / float(H) - 1.0
    rowf = jnp.broadcast_to(jnp.arange(H, dtype=f32)[:, None], (H, H * W))

    return (w1t, b1l, re1, ro1, ce1, co1, w2t, b2l, re2, ro2, ce2, co2,
            wfc1k, bfc1k, wfc2k, bfc2k, xg, yg, rowf)


def stn_forward(x, params):
    """x: (N,1,28,28) float32 NCHW. Returns (transformed x, loc features, theta)."""
    N = x.shape[0]
    B = min(8, N)                              # images per grid step
    npad = ((N + B - 1) // B) * B
    xs = x.reshape(N, H, W).astype(jnp.float32)
    if npad != N:
        xs = jnp.concatenate([xs, jnp.zeros((npad - N, H, W), jnp.float32)], 0)

    weights = _prep_weights(params)

    def rep(a):
        nd = a.ndim
        return pl.BlockSpec(a.shape, lambda n, nd=nd: (0,) * nd)

    in_specs = [pl.BlockSpec((B, H, W), lambda n: (n, 0, 0))]
    in_specs += [rep(w) for w in weights]
    out_specs = [
        pl.BlockSpec((B, H * W), lambda n: (n, 0)),                   # lane-dense y
        pl.BlockSpec((B, P2, NC2 * P2), lambda n: (n, 0, 0)),
        pl.BlockSpec((B, 6), lambda n: (n, 0)),
    ]
    out_shape = (
        jax.ShapeDtypeStruct((npad, H * W), jnp.float32),
        jax.ShapeDtypeStruct((npad, P2, NC2 * P2), jnp.float32),
        jax.ShapeDtypeStruct((npad, 6), jnp.float32),
    )

    y_flat, feat_k, theta_k = pl.pallas_call(
        stn_kernel,
        out_shape=out_shape,
        grid_spec=pltpu.PrefetchScalarGridSpec(
            num_scalar_prefetch=0,
            grid=(npad // B,),
            in_specs=in_specs,
            out_specs=out_specs,
        ),
        compiler_params=pltpu.CompilerParams(
            dimension_semantics=("parallel",),        # batch blocks are independent
            vmem_limit_bytes=16 * 1024 * 1024,        # actual working set << 16 MiB
        ),
    )(xs, *weights)

    y = y_flat[:N].reshape(N, 1, H, W)
    feat = jnp.transpose(feat_k[:N].reshape(N, P2, NC2, P2), (0, 2, 1, 3))
    theta = theta_k[:N].reshape(N, 2, 3)
    return y, feat, theta


# ----------------------------- pure-JAX reference -----------------------------
def ref_forward(x, params):
    w1, b1, w2, b2, wfc1, bfc1, wfc2, bfc2 = params
    N = x.shape[0]
    dn = ("NCHW", "OIHW", "NCHW")
    c1 = lax.conv_general_dilated(x, w1, (1, 1), "VALID",
                                  dimension_numbers=dn) + b1[None, :, None, None]
    p1 = lax.reduce_window(c1, -jnp.inf, lax.max, (1, 1, 2, 2), (1, 1, 2, 2), "VALID")
    p1 = jnp.maximum(p1, 0.0)
    c2 = lax.conv_general_dilated(p1, w2, (1, 1), "VALID",
                                  dimension_numbers=dn) + b2[None, :, None, None]
    p2 = lax.reduce_window(c2, -jnp.inf, lax.max, (1, 1, 2, 2), (1, 1, 2, 2), "VALID")
    feat = jnp.maximum(p2, 0.0)                                  # (N,10,3,3)
    xs = feat.reshape(N, 90)
    hdn = jnp.maximum(xs @ wfc1.T + bfc1, 0.0)
    theta = (hdn @ wfc2.T + bfc2).reshape(N, 2, 3)

    xs1d = (2.0 * jnp.arange(W, dtype=jnp.float32) + 1.0) / W - 1.0
    ys1d = (2.0 * jnp.arange(H, dtype=jnp.float32) + 1.0) / H - 1.0
    xb = jnp.broadcast_to(xs1d[None, :], (H, W))
    yb = jnp.broadcast_to(ys1d[:, None], (H, W))
    gx = theta[:, 0, 0, None, None] * xb + theta[:, 0, 1, None, None] * yb + theta[:, 0, 2, None, None]
    gy = theta[:, 1, 0, None, None] * xb + theta[:, 1, 1, None, None] * yb + theta[:, 1, 2, None, None]
    ix = ((gx + 1.0) * W - 1.0) / 2.0
    iy = ((gy + 1.0) * H - 1.0) / 2.0
    ix0 = jnp.floor(ix)
    iy0 = jnp.floor(iy)
    wx1 = ix - ix0
    wx0 = 1.0 - wx1
    wy1 = iy - iy0
    wy0 = 1.0 - wy1

    def gather(yc, xc):
        valid = (yc >= 0) & (yc < H) & (xc >= 0) & (xc < W)
        ycc = jnp.clip(yc, 0, H - 1).astype(jnp.int32)
        xcc = jnp.clip(xc, 0, W - 1).astype(jnp.int32)
        nidx = jnp.arange(N)[:, None, None]
        v = x[nidx, 0, ycc, xcc]
        return jnp.where(valid, v, 0.0)

    out = (gather(iy0, ix0) * wy0 * wx0 + gather(iy0, ix0 + 1) * wy0 * wx1 +
           gather(iy0 + 1, ix0) * wy1 * wx0 + gather(iy0 + 1, ix0 + 1) * wy1 * wx1)
    return out[:, None, :, :], feat, theta


def init_params(key):
    ks = jax.random.split(key, 6)

    def uni(k, shape, fan_in):
        b = 1.0 / (fan_in ** 0.5)
        return jax.random.uniform(k, shape, jnp.float32, -b, b)

    w1 = uni(ks[0], (8, 1, 7, 7), 1 * 7 * 7)
    b1 = uni(ks[1], (8,), 1 * 7 * 7)
    w2 = uni(ks[2], (10, 8, 5, 5), 8 * 5 * 5)
    b2 = uni(ks[3], (10,), 8 * 5 * 5)
    wfc1 = uni(ks[4], (32, 90), 90)
    bfc1 = uni(ks[5], (32,), 90)
    wfc2 = jnp.zeros((6, 32), jnp.float32)                    # fc_loc[2].weight.zero_()
    bfc2 = jnp.array([1, 0, 0, 0, 1, 0], jnp.float32)         # identity affine bias
    return (w1, b1, w2, b2, wfc1, bfc1, wfc2, bfc2)


if __name__ == "__main__":
    key = jax.random.PRNGKey(0)
    kx, kp = jax.random.split(key)
    x = jax.random.normal(kx, (2, 1, 28, 28), dtype=jnp.float32)   # MNIST-like input
    params = init_params(kp)

    fwd = jax.jit(stn_forward)
    y, feat, theta = fwd(x, params)
    jax.block_until_ready(y)

    y_r, feat_r, theta_r = ref_forward(x, params)
    # tolerances allow for MXU f32 matmul rounding differences vs the XLA reference
    ok = (bool(jnp.allclose(y, y_r, atol=1e-2, rtol=1e-2)) and
          bool(jnp.allclose(feat, feat_r, atol=1e-2, rtol=1e-2)) and
          bool(jnp.allclose(theta, theta_r, atol=1e-4, rtol=1e-4)))
    if not ok:
        raise SystemExit("mismatch vs reference")
    print("KERNEL_OK")
</pallas_src>

<mosaic_0001>
module attributes {stable_mosaic.version = 11 : i64} {
  func.func @stn_kernel(%arg0: i32, %arg1: memref<2x28x28xf32, #tpu.memory_space<vmem>>, %arg2: memref<7x28x176xf32, #tpu.memory_space<vmem>>, %arg3: memref<1x176xf32, #tpu.memory_space<vmem>>, %arg4: memref<11x22xf32, #tpu.memory_space<vmem>>, %arg5: memref<11x22xf32, #tpu.memory_space<vmem>>, %arg6: memref<176x88xf32, #tpu.memory_space<vmem>>, %arg7: memref<176x88xf32, #tpu.memory_space<vmem>>, %arg8: memref<5x88x70xf32, #tpu.memory_space<vmem>>, %arg9: memref<1x70xf32, #tpu.memory_space<vmem>>, %arg10: memref<3x7xf32, #tpu.memory_space<vmem>>, %arg11: memref<3x7xf32, #tpu.memory_space<vmem>>, %arg12: memref<70x30xf32, #tpu.memory_space<vmem>>, %arg13: memref<70x30xf32, #tpu.memory_space<vmem>>, %arg14: memref<3x30x32xf32, #tpu.memory_space<vmem>>, %arg15: memref<1x32xf32, #tpu.memory_space<vmem>>, %arg16: memref<32x6xf32, #tpu.memory_space<vmem>>, %arg17: memref<1x6xf32, #tpu.memory_space<vmem>>, %arg18: memref<1x784xf32, #tpu.memory_space<vmem>>, %arg19: memref<1x784xf32, #tpu.memory_space<vmem>>, %arg20: memref<28x784xf32, #tpu.memory_space<vmem>>, %arg21: memref<2x784xf32, #tpu.memory_space<vmem>>, %arg22: memref<2x3x30xf32, #tpu.memory_space<vmem>>, %arg23: memref<2x6xf32, #tpu.memory_space<vmem>>) attributes {dimension_semantics = [#tpu.dimension_semantics<parallel>], iteration_bounds = array<i64: 1>, scalar_prefetch = 0 : i64, scratch_operands = 0 : i64, tpu.core_type = #tpu.core_type<tc>, window_params = [{transform_indices = @transform_0, window_bounds = array<i64: 2, 28, 28>}, {pipeline_mode = #tpu.pipeline_mode<synchronous>, transform_indices = @transform_1, window_bounds = array<i64: 7, 28, 176>}, {pipeline_mode = #tpu.pipeline_mode<synchronous>, transform_indices = @transform_2, window_bounds = array<i64: 1, 176>}, {pipeline_mode = #tpu.pipeline_mode<synchronous>, transform_indices = @transform_3, window_bounds = array<i64: 11, 22>}, {pipeline_mode = #tpu.pipeline_mode<synchronous>, transform_indices = @transform_4, window_bounds = array<i64: 11, 22>}, {pipeline_mode = #tpu.pipeline_mode<synchronous>, transform_indices = @transform_5, window_bounds = array<i64: 176, 88>}, {pipeline_mode = #tpu.pipeline_mode<synchronous>, transform_indices = @transform_6, window_bounds = array<i64: 176, 88>}, {pipeline_mode = #tpu.pipeline_mode<synchronous>, transform_indices = @transform_7, window_bounds = array<i64: 5, 88, 70>}, {pipeline_mode = #tpu.pipeline_mode<synchronous>, transform_indices = @transform_8, window_bounds = array<i64: 1, 70>}, {pipeline_mode = #tpu.pipeline_mode<synchronous>, transform_indices = @transform_9, window_bounds = array<i64: 3, 7>}, {pipeline_mode = #tpu.pipeline_mode<synchronous>, transform_indices = @transform_10, window_bounds = array<i64: 3, 7>}, {pipeline_mode = #tpu.pipeline_mode<synchronous>, transform_indices = @transform_11, window_bounds = array<i64: 70, 30>}, {pipeline_mode = #tpu.pipeline_mode<synchronous>, transform_indices = @transform_12, window_bounds = array<i64: 70, 30>}, {pipeline_mode = #tpu.pipeline_mode<synchronous>, transform_indices = @transform_13, window_bounds = array<i64: 3, 30, 32>}, {pipeline_mode = #tpu.pipeline_mode<synchronous>, transform_indices = @transform_14, window_bounds = array<i64: 1, 32>}, {pipeline_mode = #tpu.pipeline_mode<synchronous>, transform_indices = @transform_15, window_bounds = array<i64: 32, 6>}, {pipeline_mode = #tpu.pipeline_mode<synchronous>, transform_indices = @transform_16, window_bounds = array<i64: 1, 6>}, {pipeline_mode = #tpu.pipeline_mode<synchronous>, transform_indices = @transform_17, window_bounds = array<i64: 1, 784>}, {pipeline_mode = #tpu.pipeline_mode<synchronous>, transform_indices = @transform_18, window_bounds = array<i64: 1, 784>}, {pipeline_mode = #tpu.pipeline_mode<synchronous>, transform_indices = @transform_19, window_bounds = array<i64: 28, 784>}, {transform_indices = @transform_20, window_bounds = array<i64: 2, 784>}, {transform_indices = @transform_21, window_bounds = array<i64: 2, 3, 30>}, {transform_indices = @transform_22, window_bounds = array<i64: 2, 6>}]} {
    %c0 = arith.constant 0 : index
    %c0_0 = arith.constant 0 : index
    %0 = vector.load %arg18[%c0, %c0_0] : memref<1x784xf32, #tpu.memory_space<vmem>>, vector<1x784xf32>
    %c0_1 = arith.constant 0 : index
    %c0_2 = arith.constant 0 : index
    %1 = vector.load %arg19[%c0_1, %c0_2] : memref<1x784xf32, #tpu.memory_space<vmem>>, vector<1x784xf32>
    %c0_3 = arith.constant 0 : index
    %c0_4 = arith.constant 0 : index
    %2 = vector.load %arg20[%c0_3, %c0_4] : memref<28x784xf32, #tpu.memory_space<vmem>>, vector<28x784xf32>
    %c0_5 = arith.constant 0 : index
    %c0_6 = arith.constant 0 : index
    %c0_7 = arith.constant 0 : index
    %3 = vector.load %arg1[%c0_5, %c0_6, %c0_7] : memref<2x28x28xf32, #tpu.memory_space<vmem>>, vector<1x28x28xf32>
    %4 = vector.shape_cast %3 : vector<1x28x28xf32> to vector<28x28xf32>
    %5 = vector.extract_strided_slice %4 {offsets = [0, 0], sizes = [22, 28], strides = [1, 1]} : vector<28x28xf32> to vector<22x28xf32>
    %c0_8 = arith.constant 0 : index
    %c0_9 = arith.constant 0 : index
    %c0_10 = arith.constant 0 : index
    %6 = vector.load %arg2[%c0_8, %c0_9, %c0_10] : memref<7x28x176xf32, #tpu.memory_space<vmem>>, vector<1x28x176xf32>
    %7 = vector.shape_cast %6 : vector<1x28x176xf32> to vector<28x176xf32>
    %cst = arith.constant dense<0.000000e+00> : vector<22x176xf32>
    %8 = tpu.matmul %5, %7, %cst {dimension_numbers = #tpu.dot_dimension_numbers<[1], [0], [0], [1], [0, 0, 1, 1], [], []>} : vector<22x28xf32>, vector<28x176xf32>, vector<22x176xf32> -> vector<22x176xf32>
    %9 = vector.extract_strided_slice %4 {offsets = [1, 0], sizes = [22, 28], strides = [1, 1]} : vector<28x28xf32> to vector<22x28xf32>
    %c1 = arith.constant 1 : index
    %c0_11 = arith.constant 0 : index
    %c0_12 = arith.constant 0 : index
    %10 = vector.load %arg2[%c1, %c0_11, %c0_12] : memref<7x28x176xf32, #tpu.memory_space<vmem>>, vector<1x28x176xf32>
    %11 = vector.shape_cast %10 : vector<1x28x176xf32> to vector<28x176xf32>
    %cst_13 = arith.constant dense<0.000000e+00> : vector<22x176xf32>
    %12 = tpu.matmul %9, %11, %cst_13 {dimension_numbers = #tpu.dot_dimension_numbers<[1], [0], [0], [1], [0, 0, 1, 1], [], []>} : vector<22x28xf32>, vector<28x176xf32>, vector<22x176xf32> -> vector<22x176xf32>
    %13 = arith.addf %8, %12 : vector<22x176xf32>
    %14 = vector.extract_strided_slice %4 {offsets = [2, 0], sizes = [22, 28], strides = [1, 1]} : vector<28x28xf32> to vector<22x28xf32>
    %c2 = arith.constant 2 : index
    %c0_14 = arith.constant 0 : index
    %c0_15 = arith.constant 0 : index
    %15 = vector.load %arg2[%c2, %c0_14, %c0_15] : memref<7x28x176xf32, #tpu.memory_space<vmem>>, vector<1x28x176xf32>
    %16 = vector.shape_cast %15 : vector<1x28x176xf32> to vector<28x176xf32>
    %cst_16 = arith.constant dense<0.000000e+00> : vector<22x176xf32>
    %17 = tpu.matmul %14, %16, %cst_16 {dimension_numbers = #tpu.dot_dimension_numbers<[1], [0], [0], [1], [0, 0, 1, 1], [], []>} : vector<22x28xf32>, vector<28x176xf32>, vector<22x176xf32> -> vector<22x176xf32>
    %18 = arith.addf %13, %17 : vector<22x176xf32>
    %19 = vector.extract_strided_slice %4 {offsets = [3, 0], sizes = [22, 28], strides = [1, 1]} : vector<28x28xf32> to vector<22x28xf32>
    %c3 = arith.constant 3 : index
    %c0_17 = arith.constant 0 : index
    %c0_18 = arith.constant 0 : index
    %20 = vector.load %arg2[%c3, %c0_17, %c0_18] : memref<7x28x176xf32, #tpu.memory_space<vmem>>, vector<1x28x176xf32>
    %21 = vector.shape_cast %20 : vector<1x28x176xf32> to vector<28x176xf32>
    %cst_19 = arith.constant dense<0.000000e+00> : vector<22x176xf32>
    %22 = tpu.matmul %19, %21, %cst_19 {dimension_numbers = #tpu.dot_dimension_numbers<[1], [0], [0], [1], [0, 0, 1, 1], [], []>} : vector<22x28xf32>, vector<28x176xf32>, vector<22x176xf32> -> vector<22x176xf32>
    %23 = arith.addf %18, %22 : vector<22x176xf32>
    %24 = vector.extract_strided_slice %4 {offsets = [4, 0], sizes = [22, 28], strides = [1, 1]} : vector<28x28xf32> to vector<22x28xf32>
    %c4 = arith.constant 4 : index
    %c0_20 = arith.constant 0 : index
    %c0_21 = arith.constant 0 : index
    %25 = vector.load %arg2[%c4, %c0_20, %c0_21] : memref<7x28x176xf32, #tpu.memory_space<vmem>>, vector<1x28x176xf32>
    %26 = vector.shape_cast %25 : vector<1x28x176xf32> to vector<28x176xf32>
    %cst_22 = arith.constant dense<0.000000e+00> : vector<22x176xf32>
    %27 = tpu.matmul %24, %26, %cst_22 {dimension_numbers = #tpu.dot_dimension_numbers<[1], [0], [0], [1], [0, 0, 1, 1], [], []>} : vector<22x28xf32>, vector<28x176xf32>, vector<22x176xf32> -> vector<22x176xf32>
    %28 = arith.addf %23, %27 : vector<22x176xf32>
    %29 = vector.extract_strided_slice %4 {offsets = [5, 0], sizes = [22, 28], strides = [1, 1]} : vector<28x28xf32> to vector<22x28xf32>
    %c5 = arith.constant 5 : index
    %c0_23 = arith.constant 0 : index
    %c0_24 = arith.constant 0 : index
    %30 = vector.load %arg2[%c5, %c0_23, %c0_24] : memref<7x28x176xf32, #tpu.memory_space<vmem>>, vector<1x28x176xf32>
    %31 = vector.shape_cast %30 : vector<1x28x176xf32> to vector<28x176xf32>
    %cst_25 = arith.constant dense<0.000000e+00> : vector<22x176xf32>
    %32 = tpu.matmul %29, %31, %cst_25 {dimension_numbers = #tpu.dot_dimension_numbers<[1], [0], [0], [1], [0, 0, 1, 1], [], []>} : vector<22x28xf32>, vector<28x176xf32>, vector<22x176xf32> -> vector<22x176xf32>
    %33 = arith.addf %28, %32 : vector<22x176xf32>
    %34 = vector.extract_strided_slice %4 {offsets = [6, 0], sizes = [22, 28], strides = [1, 1]} : vector<28x28xf32> to vector<22x28xf32>
    %c6 = arith.constant 6 : index
    %c0_26 = arith.constant 0 : index
    %c0_27 = arith.constant 0 : index
    %35 = vector.load %arg2[%c6, %c0_26, %c0_27] : memref<7x28x176xf32, #tpu.memory_space<vmem>>, vector<1x28x176xf32>
    %36 = vector.shape_cast %35 : vector<1x28x176xf32> to vector<28x176xf32>
    %cst_28 = arith.constant dense<0.000000e+00> : vector<22x176xf32>
    %37 = tpu.matmul %34, %36, %cst_28 {dimension_numbers = #tpu.dot_dimension_numbers<[1], [0], [0], [1], [0, 0, 1, 1], [], []>} : vector<22x28xf32>, vector<28x176xf32>, vector<22x176xf32> -> vector<22x176xf32>
    %38 = arith.addf %33, %37 : vector<22x176xf32>
    %c0_29 = arith.constant 0 : index
    %c0_30 = arith.constant 0 : index
    %39 = vector.load %arg3[%c0_29, %c0_30] : memref<1x176xf32, #tpu.memory_space<vmem>>, vector<1x176xf32>
    %40 = vector.broadcast %39 : vector<1x176xf32> to vector<22x176xf32>
    %41 = arith.addf %38, %40 : vector<22x176xf32>
    %c0_31 = arith.constant 0 : index
    %c0_32 = arith.constant 0 : index
    %42 = vector.load %arg4[%c0_31, %c0_32] : memref<11x22xf32, #tpu.memory_space<vmem>>, vector<11x22xf32>
    %cst_33 = arith.constant dense<0.000000e+00> : vector<11x176xf32>
    %43 = tpu.matmul %42, %41, %cst_33 {dimension_numbers = #tpu.dot_dimension_numbers<[1], [0], [0], [1], [0, 0, 1, 1], [], []>} : vector<11x22xf32>, vector<22x176xf32>, vector<11x176xf32> -> vector<11x176xf32>
    %c0_34 = arith.constant 0 : index
    %c0_35 = arith.constant 0 : index
    %44 = vector.load %arg5[%c0_34, %c0_35] : memref<11x22xf32, #tpu.memory_space<vmem>>, vector<11x22xf32>
    %cst_36 = arith.constant dense<0.000000e+00> : vector<11x176xf32>
    %45 = tpu.matmul %44, %41, %cst_36 {dimension_numbers = #tpu.dot_dimension_numbers<[1], [0], [0], [1], [0, 0, 1, 1], [], []>} : vector<11x22xf32>, vector<22x176xf32>, vector<11x176xf32> -> vector<11x176xf32>
    %46 = arith.maximumf %43, %45 : vector<11x176xf32>
    %c0_37 = arith.constant 0 : index
    %c0_38 = arith.constant 0 : index
    %47 = vector.load %arg6[%c0_37, %c0_38] : memref<176x88xf32, #tpu.memory_space<vmem>>, vector<176x88xf32>
    %cst_39 = arith.constant dense<0.000000e+00> : vector<11x88xf32>
    %48 = tpu.matmul %46, %47, %cst_39 {dimension_numbers = #tpu.dot_dimension_numbers<[1], [0], [0], [1], [0, 0, 1, 1], [], []>} : vector<11x176xf32>, vector<176x88xf32>, vector<11x88xf32> -> vector<11x88xf32>
    %c0_40 = arith.constant 0 : index
    %c0_41 = arith.constant 0 : index
    %49 = vector.load %arg7[%c0_40, %c0_41] : memref<176x88xf32, #tpu.memory_space<vmem>>, vector<176x88xf32>
    %cst_42 = arith.constant dense<0.000000e+00> : vector<11x88xf32>
    %50 = tpu.matmul %46, %49, %cst_42 {dimension_numbers = #tpu.dot_dimension_numbers<[1], [0], [0], [1], [0, 0, 1, 1], [], []>} : vector<11x176xf32>, vector<176x88xf32>, vector<11x88xf32> -> vector<11x88xf32>
    %51 = arith.maximumf %48, %50 : vector<11x88xf32>
    %cst_43 = arith.constant 0.000000e+00 : f32
    %52 = vector.broadcast %cst_43 : f32 to vector<11x88xf32>
    %53 = arith.maximumf %51, %52 : vector<11x88xf32>
    %54 = vector.extract_strided_slice %53 {offsets = [0, 0], sizes = [7, 88], strides = [1, 1]} : vector<11x88xf32> to vector<7x88xf32>
    %c0_44 = arith.constant 0 : index
    %c0_45 = arith.constant 0 : index
    %c0_46 = arith.constant 0 : index
    %55 = vector.load %arg8[%c0_44, %c0_45, %c0_46] : memref<5x88x70xf32, #tpu.memory_space<vmem>>, vector<1x88x70xf32>
    %56 = vector.shape_cast %55 : vector<1x88x70xf32> to vector<88x70xf32>
    %cst_47 = arith.constant dense<0.000000e+00> : vector<7x70xf32>
    %57 = tpu.matmul %54, %56, %cst_47 {dimension_numbers = #tpu.dot_dimension_numbers<[1], [0], [0], [1], [0, 0, 1, 1], [], []>} : vector<7x88xf32>, vector<88x70xf32>, vector<7x70xf32> -> vector<7x70xf32>
    %58 = vector.extract_strided_slice %53 {offsets = [1, 0], sizes = [7, 88], strides = [1, 1]} : vector<11x88xf32> to vector<7x88xf32>
    %c1_48 = arith.constant 1 : index
    %c0_49 = arith.constant 0 : index
    %c0_50 = arith.constant 0 : index
    %59 = vector.load %arg8[%c1_48, %c0_49, %c0_50] : memref<5x88x70xf32, #tpu.memory_space<vmem>>, vector<1x88x70xf32>
    %60 = vector.shape_cast %59 : vector<1x88x70xf32> to vector<88x70xf32>
    %cst_51 = arith.constant dense<0.000000e+00> : vector<7x70xf32>
    %61 = tpu.matmul %58, %60, %cst_51 {dimension_numbers = #tpu.dot_dimension_numbers<[1], [0], [0], [1], [0, 0, 1, 1], [], []>} : vector<7x88xf32>, vector<88x70xf32>, vector<7x70xf32> -> vector<7x70xf32>
    %62 = arith.addf %57, %61 : vector<7x70xf32>
    %63 = vector.extract_strided_slice %53 {offsets = [2, 0], sizes = [7, 88], strides = [1, 1]} : vector<11x88xf32> to vector<7x88xf32>
    %c2_52 = arith.constant 2 : index
    %c0_53 = arith.constant 0 : index
    %c0_54 = arith.constant 0 : index
    %64 = vector.load %arg8[%c2_52, %c0_53, %c0_54] : memref<5x88x70xf32, #tpu.memory_space<vmem>>, vector<1x88x70xf32>
    %65 = vector.shape_cast %64 : vector<1x88x70xf32> to vector<88x70xf32>
    %cst_55 = arith.constant dense<0.000000e+00> : vector<7x70xf32>
    %66 = tpu.matmul %63, %65, %cst_55 {dimension_numbers = #tpu.dot_dimension_numbers<[1], [0], [0], [1], [0, 0, 1, 1], [], []>} : vector<7x88xf32>, vector<88x70xf32>, vector<7x70xf32> -> vector<7x70xf32>
    %67 = arith.addf %62, %66 : vector<7x70xf32>
    %68 = vector.extract_strided_slice %53 {offsets = [3, 0], sizes = [7, 88], strides = [1, 1]} : vector<11x88xf32> to vector<7x88xf32>
    %c3_56 = arith.constant 3 : index
    %c0_57 = arith.constant 0 : index
    %c0_58 = arith.constant 0 : index
    %69 = vector.load %arg8[%c3_56, %c0_57, %c0_58] : memref<5x88x70xf32, #tpu.memory_space<vmem>>, vector<1x88x70xf32>
    %70 = vector.shape_cast %69 : vector<1x88x70xf32> to vector<88x70xf32>
    %cst_59 = arith.constant dense<0.000000e+00> : vector<7x70xf32>
    %71 = tpu.matmul %68, %70, %cst_59 {dimension_numbers = #tpu.dot_dimension_numbers<[1], [0], [0], [1], [0, 0, 1, 1], [], []>} : vector<7x88xf32>, vector<88x70xf32>, vector<7x70xf32> -> vector<7x70xf32>
    %72 = arith.addf %67, %71 : vector<7x70xf32>
    %73 = vector.extract_strided_slice %53 {offsets = [4, 0], sizes = [7, 88], strides = [1, 1]} : vector<11x88xf32> to vector<7x88xf32>
    %c4_60 = arith.constant 4 : index
    %c0_61 = arith.constant 0 : index
    %c0_62 = arith.constant 0 : index
    %74 = vector.load %arg8[%c4_60, %c0_61, %c0_62] : memref<5x88x70xf32, #tpu.memory_space<vmem>>, vector<1x88x70xf32>
    %75 = vector.shape_cast %74 : vector<1x88x70xf32> to vector<88x70xf32>
    %cst_63 = arith.constant dense<0.000000e+00> : vector<7x70xf32>
    %76 = tpu.matmul %73, %75, %cst_63 {dimension_numbers = #tpu.dot_dimension_numbers<[1], [0], [0], [1], [0, 0, 1, 1], [], []>} : vector<7x88xf32>, vector<88x70xf32>, vector<7x70xf32> -> vector<7x70xf32>
    %77 = arith.addf %72, %76 : vector<7x70xf32>
    %c0_64 = arith.constant 0 : index
    %c0_65 = arith.constant 0 : index
    %78 = vector.load %arg9[%c0_64, %c0_65] : memref<1x70xf32, #tpu.memory_space<vmem>>, vector<1x70xf32>
    %79 = vector.broadcast %78 : vector<1x70xf32> to vector<7x70xf32>
    %80 = arith.addf %77, %79 : vector<7x70xf32>
    %c0_66 = arith.constant 0 : index
    %c0_67 = arith.constant 0 : index
    %81 = vector.load %arg10[%c0_66, %c0_67] : memref<3x7xf32, #tpu.memory_space<vmem>>, vector<3x7xf32>
    %cst_68 = arith.constant dense<0.000000e+00> : vector<3x70xf32>
    %82 = tpu.matmul %81, %80, %cst_68 {dimension_numbers = #tpu.dot_dimension_numbers<[1], [0], [0], [1], [0, 0, 1, 1], [], []>} : vector<3x7xf32>, vector<7x70xf32>, vector<3x70xf32> -> vector<3x70xf32>
    %c0_69 = arith.constant 0 : index
    %c0_70 = arith.constant 0 : index
    %83 = vector.load %arg11[%c0_69, %c0_70] : memref<3x7xf32, #tpu.memory_space<vmem>>, vector<3x7xf32>
    %cst_71 = arith.constant dense<0.000000e+00> : vector<3x70xf32>
    %84 = tpu.matmul %83, %80, %cst_71 {dimension_numbers = #tpu.dot_dimension_numbers<[1], [0], [0], [1], [0, 0, 1, 1], [], []>} : vector<3x7xf32>, vector<7x70xf32>, vector<3x70xf32> -> vector<3x70xf32>
    %85 = arith.maximumf %82, %84 : vector<3x70xf32>
    %c0_72 = arith.constant 0 : index
    %c0_73 = arith.constant 0 : index
    %86 = vector.load %arg12[%c0_72, %c0_73] : memref<70x30xf32, #tpu.memory_space<vmem>>, vector<70x30xf32>
    %cst_74 = arith.constant dense<0.000000e+00> : vector<3x30xf32>
    %87 = tpu.matmul %85, %86, %cst_74 {dimension_numbers = #tpu.dot_dimension_numbers<[1], [0], [0], [1], [0, 0, 1, 1], [], []>} : vector<3x70xf32>, vector<70x30xf32>, vector<3x30xf32> -> vector<3x30xf32>
    %c0_75 = arith.constant 0 : index
    %c0_76 = arith.constant 0 : index
    %88 = vector.load %arg13[%c0_75, %c0_76] : memref<70x30xf32, #tpu.memory_space<vmem>>, vector<70x30xf32>
    %cst_77 = arith.constant dense<0.000000e+00> : vector<3x30xf32>
    %89 = tpu.matmul %85, %88, %cst_77 {dimension_numbers = #tpu.dot_dimension_numbers<[1], [0], [0], [1], [0, 0, 1, 1], [], []>} : vector<3x70xf32>, vector<70x30xf32>, vector<3x30xf32> -> vector<3x30xf32>
    %90 = arith.maximumf %87, %89 : vector<3x30xf32>
    %cst_78 = arith.constant 0.000000e+00 : f32
    %91 = vector.broadcast %cst_78 : f32 to vector<3x30xf32>
    %92 = arith.maximumf %90, %91 : vector<3x30xf32>
    %93 = vector.extract_strided_slice %92 {offsets = [0, 0], sizes = [1, 30], strides = [1, 1]} : vector<3x30xf32> to vector<1x30xf32>
    %c0_79 = arith.constant 0 : index
    %c0_80 = arith.constant 0 : index
    %c0_81 = arith.constant 0 : index
    %94 = vector.load %arg14[%c0_79, %c0_80, %c0_81] : memref<3x30x32xf32, #tpu.memory_space<vmem>>, vector<1x30x32xf32>
    %95 = vector.shape_cast %94 : vector<1x30x32xf32> to vector<30x32xf32>
    %cst_82 = arith.constant dense<0.000000e+00> : vector<1x32xf32>
    %96 = tpu.matmul %93, %95, %cst_82 {dimension_numbers = #tpu.dot_dimension_numbers<[1], [0], [0], [1], [0, 0, 1, 1], [], []>} : vector<1x30xf32>, vector<30x32xf32>, vector<1x32xf32> -> vector<1x32xf32>
    %97 = vector.extract_strided_slice %92 {offsets = [1, 0], sizes = [1, 30], strides = [1, 1]} : vector<3x30xf32> to vector<1x30xf32>
    %c1_83 = arith.constant 1 : index
    %c0_84 = arith.constant 0 : index
    %c0_85 = arith.constant 0 : index
    %98 = vector.load %arg14[%c1_83, %c0_84, %c0_85] : memref<3x30x32xf32, #tpu.memory_space<vmem>>, vector<1x30x32xf32>
    %99 = vector.shape_cast %98 : vector<1x30x32xf32> to vector<30x32xf32>
    %cst_86 = arith.constant dense<0.000000e+00> : vector<1x32xf32>
    %100 = tpu.matmul %97, %99, %cst_86 {dimension_numbers = #tpu.dot_dimension_numbers<[1], [0], [0], [1], [0, 0, 1, 1], [], []>} : vector<1x30xf32>, vector<30x32xf32>, vector<1x32xf32> -> vector<1x32xf32>
    %101 = arith.addf %96, %100 : vector<1x32xf32>
    %102 = vector.extract_strided_slice %92 {offsets = [2, 0], sizes = [1, 30], strides = [1, 1]} : vector<3x30xf32> to vector<1x30xf32>
    %c2_87 = arith.constant 2 : index
    %c0_88 = arith.constant 0 : index
    %c0_89 = arith.constant 0 : index
    %103 = vector.load %arg14[%c2_87, %c0_88, %c0_89] : memref<3x30x32xf32, #tpu.memory_space<vmem>>, vector<1x30x32xf32>
    %104 = vector.shape_cast %103 : vector<1x30x32xf32> to vector<30x32xf32>
    %cst_90 = arith.constant dense<0.000000e+00> : vector<1x32xf32>
    %105 = tpu.matmul %102, %104, %cst_90 {dimension_numbers = #tpu.dot_dimension_numbers<[1], [0], [0], [1], [0, 0, 1, 1], [], []>} : vector<1x30xf32>, vector<30x32xf32>, vector<1x32xf32> -> vector<1x32xf32>
    %106 = arith.addf %101, %105 : vector<1x32xf32>
    %c0_91 = arith.constant 0 : index
    %c0_92 = arith.constant 0 : index
    %107 = vector.load %arg15[%c0_91, %c0_92] : memref<1x32xf32, #tpu.memory_space<vmem>>, vector<1x32xf32>
    %108 = arith.addf %106, %107 : vector<1x32xf32>
    %cst_93 = arith.constant 0.000000e+00 : f32
    %109 = vector.broadcast %cst_93 : f32 to vector<1x32xf32>
    %110 = arith.maximumf %108, %109 : vector<1x32xf32>
    %c0_94 = arith.constant 0 : index
    %c0_95 = arith.constant 0 : index
    %111 = vector.load %arg16[%c0_94, %c0_95] : memref<32x6xf32, #tpu.memory_space<vmem>>, vector<32x6xf32>
    %cst_96 = arith.constant dense<0.000000e+00> : vector<1x6xf32>
    %112 = tpu.matmul %110, %111, %cst_96 {dimension_numbers = #tpu.dot_dimension_numbers<[1], [0], [0], [1], [0, 0, 1, 1], [], []>} : vector<1x32xf32>, vector<32x6xf32>, vector<1x6xf32> -> vector<1x6xf32>
    %c0_97 = arith.constant 0 : index
    %c0_98 = arith.constant 0 : index
    %113 = vector.load %arg17[%c0_97, %c0_98] : memref<1x6xf32, #tpu.memory_space<vmem>>, vector<1x6xf32>
    %114 = arith.addf %112, %113 : vector<1x6xf32>
    %115 = vector.extract_strided_slice %114 {offsets = [0, 0], sizes = [1, 1], strides = [1, 1]} : vector<1x6xf32> to vector<1x1xf32>
    %116 = vector.broadcast %115 : vector<1x1xf32> to vector<1x784xf32>
    %117 = arith.mulf %116, %0 : vector<1x784xf32>
    %118 = vector.extract_strided_slice %114 {offsets = [0, 1], sizes = [1, 1], strides = [1, 1]} : vector<1x6xf32> to vector<1x1xf32>
    %119 = vector.broadcast %118 : vector<1x1xf32> to vector<1x784xf32>
    %120 = arith.mulf %119, %1 : vector<1x784xf32>
    %121 = arith.addf %117, %120 : vector<1x784xf32>
    %122 = vector.extract_strided_slice %114 {offsets = [0, 2], sizes = [1, 1], strides = [1, 1]} : vector<1x6xf32> to vector<1x1xf32>
    %123 = vector.broadcast %122 : vector<1x1xf32> to vector<1x784xf32>
    %124 = arith.addf %121, %123 : vector<1x784xf32>
    %125 = vector.extract_strided_slice %114 {offsets = [0, 3], sizes = [1, 1], strides = [1, 1]} : vector<1x6xf32> to vector<1x1xf32>
    %126 = vector.broadcast %125 : vector<1x1xf32> to vector<1x784xf32>
    %127 = arith.mulf %126, %0 : vector<1x784xf32>
    %128 = vector.extract_strided_slice %114 {offsets = [0, 4], sizes = [1, 1], strides = [1, 1]} : vector<1x6xf32> to vector<1x1xf32>
    %129 = vector.broadcast %128 : vector<1x1xf32> to vector<1x784xf32>
    %130 = arith.mulf %129, %1 : vector<1x784xf32>
    %131 = arith.addf %127, %130 : vector<1x784xf32>
    %132 = vector.extract_strided_slice %114 {offsets = [0, 5], sizes = [1, 1], strides = [1, 1]} : vector<1x6xf32> to vector<1x1xf32>
    %133 = vector.broadcast %132 : vector<1x1xf32> to vector<1x784xf32>
    %134 = arith.addf %131, %133 : vector<1x784xf32>
    %cst_99 = arith.constant 1.000000e+00 : f32
    %135 = vector.broadcast %cst_99 : f32 to vector<1x784xf32>
    %136 = arith.addf %124, %135 : vector<1x784xf32>
    %cst_100 = arith.constant 2.800000e+01 : f32
    %137 = vector.broadcast %cst_100 : f32 to vector<1x784xf32>
    %138 = arith.mulf %136, %137 : vector<1x784xf32>
    %cst_101 = arith.constant 1.000000e+00 : f32
    %139 = vector.broadcast %cst_101 : f32 to vector<1x784xf32>
    %140 = arith.subf %138, %139 : vector<1x784xf32>
    %cst_102 = arith.constant 5.000000e-01 : f32
    %141 = vector.broadcast %cst_102 : f32 to vector<1x784xf32>
    %142 = arith.mulf %140, %141 : vector<1x784xf32>
    %cst_103 = arith.constant 1.000000e+00 : f32
    %143 = vector.broadcast %cst_103 : f32 to vector<1x784xf32>
    %144 = arith.addf %134, %143 : vector<1x784xf32>
    %cst_104 = arith.constant 2.800000e+01 : f32
    %145 = vector.broadcast %cst_104 : f32 to vector<1x784xf32>
    %146 = arith.mulf %144, %145 : vector<1x784xf32>
    %cst_105 = arith.constant 1.000000e+00 : f32
    %147 = vector.broadcast %cst_105 : f32 to vector<1x784xf32>
    %148 = arith.subf %146, %147 : vector<1x784xf32>
    %cst_106 = arith.constant 5.000000e-01 : f32
    %149 = vector.broadcast %cst_106 : f32 to vector<1x784xf32>
    %150 = arith.mulf %148, %149 : vector<1x784xf32>
    %151 = math.floor %142 : vector<1x784xf32>
    %152 = math.floor %150 : vector<1x784xf32>
    %153 = arith.subf %142, %151 : vector<1x784xf32>
    %154 = arith.subf %150, %152 : vector<1x784xf32>
    %cst_107 = arith.constant 1.000000e+00 : f32
    %155 = vector.broadcast %cst_107 : f32 to vector<1x784xf32>
    %156 = arith.subf %155, %153 : vector<1x784xf32>
    %cst_108 = arith.constant 1.000000e+00 : f32
    %157 = vector.broadcast %cst_108 : f32 to vector<1x784xf32>
    %158 = arith.subf %157, %154 : vector<1x784xf32>
    %159 = vector.broadcast %151 : vector<1x784xf32> to vector<28x784xf32>
    %160 = arith.cmpf oeq, %2, %159 : vector<28x784xf32>
    %cst_109 = arith.constant 0.000000e+00 : f32
    %161 = vector.shape_cast %156 : vector<1x784xf32> to vector<1x784xf32>
    %162 = vector.broadcast %161 : vector<1x784xf32> to vector<28x784xf32>
    %163 = vector.broadcast %cst_109 : f32 to vector<28x784xf32>
    %164 = arith.select %160, %162, %163 : vector<28x784xi1>, vector<28x784xf32>
    %cst_110 = arith.constant 1.000000e+00 : f32
    %165 = vector.broadcast %cst_110 : f32 to vector<1x784xf32>
    %166 = arith.addf %151, %165 : vector<1x784xf32>
    %167 = vector.broadcast %166 : vector<1x784xf32> to vector<28x784xf32>
    %168 = arith.cmpf oeq, %2, %167 : vector<28x784xf32>
    %cst_111 = arith.constant 0.000000e+00 : f32
    %169 = vector.shape_cast %153 : vector<1x784xf32> to vector<1x784xf32>
    %170 = vector.broadcast %169 : vector<1x784xf32> to vector<28x784xf32>
    %171 = vector.broadcast %cst_111 : f32 to vector<28x784xf32>
    %172 = arith.select %168, %170, %171 : vector<28x784xi1>, vector<28x784xf32>
    %173 = arith.addf %164, %172 : vector<28x784xf32>
    %cst_112 = arith.constant dense<0.000000e+00> : vector<28x784xf32>
    %174 = tpu.matmul %4, %173, %cst_112 {dimension_numbers = #tpu.dot_dimension_numbers<[1], [0], [0], [1], [0, 0, 1, 1], [], []>} : vector<28x28xf32>, vector<28x784xf32>, vector<28x784xf32> -> vector<28x784xf32>
    %175 = vector.broadcast %152 : vector<1x784xf32> to vector<28x784xf32>
    %176 = arith.cmpf oeq, %2, %175 : vector<28x784xf32>
    %cst_113 = arith.constant 0.000000e+00 : f32
    %177 = vector.shape_cast %158 : vector<1x784xf32> to vector<1x784xf32>
    %178 = vector.broadcast %177 : vector<1x784xf32> to vector<28x784xf32>
    %179 = vector.broadcast %cst_113 : f32 to vector<28x784xf32>
    %180 = arith.select %176, %178, %179 : vector<28x784xi1>, vector<28x784xf32>
    %cst_114 = arith.constant 1.000000e+00 : f32
    %181 = vector.broadcast %cst_114 : f32 to vector<1x784xf32>
    %182 = arith.addf %152, %181 : vector<1x784xf32>
    %183 = vector.broadcast %182 : vector<1x784xf32> to vector<28x784xf32>
    %184 = arith.cmpf oeq, %2, %183 : vector<28x784xf32>
    %cst_115 = arith.constant 0.000000e+00 : f32
    %185 = vector.shape_cast %154 : vector<1x784xf32> to vector<1x784xf32>
    %186 = vector.broadcast %185 : vector<1x784xf32> to vector<28x784xf32>
    %187 = vector.broadcast %cst_115 : f32 to vector<28x784xf32>
    %188 = arith.select %184, %186, %187 : vector<28x784xi1>, vector<28x784xf32>
    %189 = arith.addf %180, %188 : vector<28x784xf32>
    %190 = arith.mulf %174, %189 : vector<28x784xf32>
    %cst_116 = arith.constant dense<0.000000e+00> : vector<784xf32>
    %191 = vector.multi_reduction <add>, %190, %cst_116 [0] : vector<28x784xf32> to vector<784xf32>
    %192 = vector.shape_cast %191 : vector<784xf32> to vector<1x784xf32>
    %193 = vector.shape_cast %92 : vector<3x30xf32> to vector<1x3x30xf32>
    %c1_117 = arith.constant 1 : index
    %c0_118 = arith.constant 0 : index
    %c0_119 = arith.constant 0 : index
    %194 = vector.load %arg1[%c1_117, %c0_118, %c0_119] : memref<2x28x28xf32, #tpu.memory_space<vmem>>, vector<1x28x28xf32>
    %195 = vector.shape_cast %194 : vector<1x28x28xf32> to vector<28x28xf32>
    %196 = vector.extract_strided_slice %195 {offsets = [0, 0], sizes = [22, 28], strides = [1, 1]} : vector<28x28xf32> to vector<22x28xf32>
    %c0_120 = arith.constant 0 : index
    %c0_121 = arith.constant 0 : index
    %c0_122 = arith.constant 0 : index
    %197 = vector.load %arg2[%c0_120, %c0_121, %c0_122] : memref<7x28x176xf32, #tpu.memory_space<vmem>>, vector<1x28x176xf32>
    %198 = vector.shape_cast %197 : vector<1x28x176xf32> to vector<28x176xf32>
    %cst_123 = arith.constant dense<0.000000e+00> : vector<22x176xf32>
    %199 = tpu.matmul %196, %198, %cst_123 {dimension_numbers = #tpu.dot_dimension_numbers<[1], [0], [0], [1], [0, 0, 1, 1], [], []>} : vector<22x28xf32>, vector<28x176xf32>, vector<22x176xf32> -> vector<22x176xf32>
    %200 = vector.extract_strided_slice %195 {offsets = [1, 0], sizes = [22, 28], strides = [1, 1]} : vector<28x28xf32> to vector<22x28xf32>
    %c1_124 = arith.constant 1 : index
    %c0_125 = arith.constant 0 : index
    %c0_126 = arith.constant 0 : index
    %201 = vector.load %arg2[%c1_124, %c0_125, %c0_126] : memref<7x28x176xf32, #tpu.memory_space<vmem>>, vector<1x28x176xf32>
    %202 = vector.shape_cast %201 : vector<1x28x176xf32> to vector<28x176xf32>
    %cst_127 = arith.constant dense<0.000000e+00> : vector<22x176xf32>
    %203 = tpu.matmul %200, %202, %cst_127 {dimension_numbers = #tpu.dot_dimension_numbers<[1], [0], [0], [1], [0, 0, 1, 1], [], []>} : vector<22x28xf32>, vector<28x176xf32>, vector<22x176xf32> -> vector<22x176xf32>
    %204 = arith.addf %199, %203 : vector<22x176xf32>
    %205 = vector.extract_strided_slice %195 {offsets = [2, 0], sizes = [22, 28], strides = [1, 1]} : vector<28x28xf32> to vector<22x28xf32>
    %c2_128 = arith.constant 2 : index
    %c0_129 = arith.constant 0 : index
    %c0_130 = arith.constant 0 : index
    %206 = vector.load %arg2[%c2_128, %c0_129, %c0_130] : memref<7x28x176xf32, #tpu.memory_space<vmem>>, vector<1x28x176xf32>
    %207 = vector.shape_cast %206 : vector<1x28x176xf32> to vector<28x176xf32>
    %cst_131 = arith.constant dense<0.000000e+00> : vector<22x176xf32>
    %208 = tpu.matmul %205, %207, %cst_131 {dimension_numbers = #tpu.dot_dimension_numbers<[1], [0], [0], [1], [0, 0, 1, 1], [], []>} : vector<22x28xf32>, vector<28x176xf32>, vector<22x176xf32> -> vector<22x176xf32>
    %209 = arith.addf %204, %208 : vector<22x176xf32>
    %210 = vector.extract_strided_slice %195 {offsets = [3, 0], sizes = [22, 28], strides = [1, 1]} : vector<28x28xf32> to vector<22x28xf32>
    %c3_132 = arith.constant 3 : index
    %c0_133 = arith.constant 0 : index
    %c0_134 = arith.constant 0 : index
    %211 = vector.load %arg2[%c3_132, %c0_133, %c0_134] : memref<7x28x176xf32, #tpu.memory_space<vmem>>, vector<1x28x176xf32>
    %212 = vector.shape_cast %211 : vector<1x28x176xf32> to vector<28x176xf32>
    %cst_135 = arith.constant dense<0.000000e+00> : vector<22x176xf32>
    %213 = tpu.matmul %210, %212, %cst_135 {dimension_numbers = #tpu.dot_dimension_numbers<[1], [0], [0], [1], [0, 0, 1, 1], [], []>} : vector<22x28xf32>, vector<28x176xf32>, vector<22x176xf32> -> vector<22x176xf32>
    %214 = arith.addf %209, %213 : vector<22x176xf32>
    %215 = vector.extract_strided_slice %195 {offsets = [4, 0], sizes = [22, 28], strides = [1, 1]} : vector<28x28xf32> to vector<22x28xf32>
    %c4_136 = arith.constant 4 : index
    %c0_137 = arith.constant 0 : index
    %c0_138 = arith.constant 0 : index
    %216 = vector.load %arg2[%c4_136, %c0_137, %c0_138] : memref<7x28x176xf32, #tpu.memory_space<vmem>>, vector<1x28x176xf32>
    %217 = vector.shape_cast %216 : vector<1x28x176xf32> to vector<28x176xf32>
    %cst_139 = arith.constant dense<0.000000e+00> : vector<22x176xf32>
    %218 = tpu.matmul %215, %217, %cst_139 {dimension_numbers = #tpu.dot_dimension_numbers<[1], [0], [0], [1], [0, 0, 1, 1], [], []>} : vector<22x28xf32>, vector<28x176xf32>, vector<22x176xf32> -> vector<22x176xf32>
    %219 = arith.addf %214, %218 : vector<22x176xf32>
    %220 = vector.extract_strided_slice %195 {offsets = [5, 0], sizes = [22, 28], strides = [1, 1]} : vector<28x28xf32> to vector<22x28xf32>
    %c5_140 = arith.constant 5 : index
    %c0_141 = arith.constant 0 : index
    %c0_142 = arith.constant 0 : index
    %221 = vector.load %arg2[%c5_140, %c0_141, %c0_142] : memref<7x28x176xf32, #tpu.memory_space<vmem>>, vector<1x28x176xf32>
    %222 = vector.shape_cast %221 : vector<1x28x176xf32> to vector<28x176xf32>
    %cst_143 = arith.constant dense<0.000000e+00> : vector<22x176xf32>
    %223 = tpu.matmul %220, %222, %cst_143 {dimension_numbers = #tpu.dot_dimension_numbers<[1], [0], [0], [1], [0, 0, 1, 1], [], []>} : vector<22x28xf32>, vector<28x176xf32>, vector<22x176xf32> -> vector<22x176xf32>
    %224 = arith.addf %219, %223 : vector<22x176xf32>
    %225 = vector.extract_strided_slice %195 {offsets = [6, 0], sizes = [22, 28], strides = [1, 1]} : vector<28x28xf32> to vector<22x28xf32>
    %c6_144 = arith.constant 6 : index
    %c0_145 = arith.constant 0 : index
    %c0_146 = arith.constant 0 : index
    %226 = vector.load %arg2[%c6_144, %c0_145, %c0_146] : memref<7x28x176xf32, #tpu.memory_space<vmem>>, vector<1x28x176xf32>
    %227 = vector.shape_cast %226 : vector<1x28x176xf32> to vector<28x176xf32>
    %cst_147 = arith.constant dense<0.000000e+00> : vector<22x176xf32>
    %228 = tpu.matmul %225, %227, %cst_147 {dimension_numbers = #tpu.dot_dimension_numbers<[1], [0], [0], [1], [0, 0, 1, 1], [], []>} : vector<22x28xf32>, vector<28x176xf32>, vector<22x176xf32> -> vector<22x176xf32>
    %229 = arith.addf %224, %228 : vector<22x176xf32>
    %c0_148 = arith.constant 0 : index
    %c0_149 = arith.constant 0 : index
    %230 = vector.load %arg3[%c0_148, %c0_149] : memref<1x176xf32, #tpu.memory_space<vmem>>, vector<1x176xf32>
    %231 = vector.broadcast %230 : vector<1x176xf32> to vector<22x176xf32>
    %232 = arith.addf %229, %231 : vector<22x176xf32>
    %c0_150 = arith.constant 0 : index
    %c0_151 = arith.constant 0 : index
    %233 = vector.load %arg4[%c0_150, %c0_151] : memref<11x22xf32, #tpu.memory_space<vmem>>, vector<11x22xf32>
    %cst_152 = arith.constant dense<0.000000e+00> : vector<11x176xf32>
    %234 = tpu.matmul %233, %232, %cst_152 {dimension_numbers = #tpu.dot_dimension_numbers<[1], [0], [0], [1], [0, 0, 1, 1], [], []>} : vector<11x22xf32>, vector<22x176xf32>, vector<11x176xf32> -> vector<11x176xf32>
    %c0_153 = arith.constant 0 : index
    %c0_154 = arith.constant 0 : index
    %235 = vector.load %arg5[%c0_153, %c0_154] : memref<11x22xf32, #tpu.memory_space<vmem>>, vector<11x22xf32>
    %cst_155 = arith.constant dense<0.000000e+00> : vector<11x176xf32>
    %236 = tpu.matmul %235, %232, %cst_155 {dimension_numbers = #tpu.dot_dimension_numbers<[1], [0], [0], [1], [0, 0, 1, 1], [], []>} : vector<11x22xf32>, vector<22x176xf32>, vector<11x176xf32> -> vector<11x176xf32>
    %237 = arith.maximumf %234, %236 : vector<11x176xf32>
    %c0_156 = arith.constant 0 : index
    %c0_157 = arith.constant 0 : index
    %238 = vector.load %arg6[%c0_156, %c0_157] : memref<176x88xf32, #tpu.memory_space<vmem>>, vector<176x88xf32>
    %cst_158 = arith.constant dense<0.000000e+00> : vector<11x88xf32>
    %239 = tpu.matmul %237, %238, %cst_158 {dimension_numbers = #tpu.dot_dimension_numbers<[1], [0], [0], [1], [0, 0, 1, 1], [], []>} : vector<11x176xf32>, vector<176x88xf32>, vector<11x88xf32> -> vector<11x88xf32>
    %c0_159 = arith.constant 0 : index
    %c0_160 = arith.constant 0 : index
    %240 = vector.load %arg7[%c0_159, %c0_160] : memref<176x88xf32, #tpu.memory_space<vmem>>, vector<176x88xf32>
    %cst_161 = arith.constant dense<0.000000e+00> : vector<11x88xf32>
    %241 = tpu.matmul %237, %240, %cst_161 {dimension_numbers = #tpu.dot_dimension_numbers<[1], [0], [0], [1], [0, 0, 1, 1], [], []>} : vector<11x176xf32>, vector<176x88xf32>, vector<11x88xf32> -> vector<11x88xf32>
    %242 = arith.maximumf %239, %241 : vector<11x88xf32>
    %cst_162 = arith.constant 0.000000e+00 : f32
    %243 = vector.broadcast %cst_162 : f32 to vector<11x88xf32>
    %244 = arith.maximumf %242, %243 : vector<11x88xf32>
    %245 = vector.extract_strided_slice %244 {offsets = [0, 0], sizes = [7, 88], strides = [1, 1]} : vector<11x88xf32> to vector<7x88xf32>
    %c0_163 = arith.constant 0 : index
    %c0_164 = arith.constant 0 : index
    %c0_165 = arith.constant 0 : index
    %246 = vector.load %arg8[%c0_163, %c0_164, %c0_165] : memref<5x88x70xf32, #tpu.memory_space<vmem>>, vector<1x88x70xf32>
    %247 = vector.shape_cast %246 : vector<1x88x70xf32> to vector<88x70xf32>
    %cst_166 = arith.constant dense<0.000000e+00> : vector<7x70xf32>
    %248 = tpu.matmul %245, %247, %cst_166 {dimension_numbers = #tpu.dot_dimension_numbers<[1], [0], [0], [1], [0, 0, 1, 1], [], []>} : vector<7x88xf32>, vector<88x70xf32>, vector<7x70xf32> -> vector<7x70xf32>
    %249 = vector.extract_strided_slice %244 {offsets = [1, 0], sizes = [7, 88], strides = [1, 1]} : vector<11x88xf32> to vector<7x88xf32>
    %c1_167 = arith.constant 1 : index
    %c0_168 = arith.constant 0 : index
    %c0_169 = arith.constant 0 : index
    %250 = vector.load %arg8[%c1_167, %c0_168, %c0_169] : memref<5x88x70xf32, #tpu.memory_space<vmem>>, vector<1x88x70xf32>
    %251 = vector.shape_cast %250 : vector<1x88x70xf32> to vector<88x70xf32>
    %cst_170 = arith.constant dense<0.000000e+00> : vector<7x70xf32>
    %252 = tpu.matmul %249, %251, %cst_170 {dimension_numbers = #tpu.dot_dimension_numbers<[1], [0], [0], [1], [0, 0, 1, 1], [], []>} : vector<7x88xf32>, vector<88x70xf32>, vector<7x70xf32> -> vector<7x70xf32>
    %253 = arith.addf %248, %252 : vector<7x70xf32>
    %254 = vector.extract_strided_slice %244 {offsets = [2, 0], sizes = [7, 88], strides = [1, 1]} : vector<11x88xf32> to vector<7x88xf32>
    %c2_171 = arith.constant 2 : index
    %c0_172 = arith.constant 0 : index
    %c0_173 = arith.constant 0 : index
    %255 = vector.load %arg8[%c2_171, %c0_172, %c0_173] : memref<5x88x70xf32, #tpu.memory_space<vmem>>, vector<1x88x70xf32>
    %256 = vector.shape_cast %255 : vector<1x88x70xf32> to vector<88x70xf32>
    %cst_174 = arith.constant dense<0.000000e+00> : vector<7x70xf32>
    %257 = tpu.matmul %254, %256, %cst_174 {dimension_numbers = #tpu.dot_dimension_numbers<[1], [0], [0], [1], [0, 0, 1, 1], [], []>} : vector<7x88xf32>, vector<88x70xf32>, vector<7x70xf32> -> vector<7x70xf32>
    %258 = arith.addf %253, %257 : vector<7x70xf32>
    %259 = vector.extract_strided_slice %244 {offsets = [3, 0], sizes = [7, 88], strides = [1, 1]} : vector<11x88xf32> to vector<7x88xf32>
    %c3_175 = arith.constant 3 : index
    %c0_176 = arith.constant 0 : index
    %c0_177 = arith.constant 0 : index
    %260 = vector.load %arg8[%c3_175, %c0_176, %c0_177] : memref<5x88x70xf32, #tpu.memory_space<vmem>>, vector<1x88x70xf32>
    %261 = vector.shape_cast %260 : vector<1x88x70xf32> to vector<88x70xf32>
    %cst_178 = arith.constant dense<0.000000e+00> : vector<7x70xf32>
    %262 = tpu.matmul %259, %261, %cst_178 {dimension_numbers = #tpu.dot_dimension_numbers<[1], [0], [0], [1], [0, 0, 1, 1], [], []>} : vector<7x88xf32>, vector<88x70xf32>, vector<7x70xf32> -> vector<7x70xf32>
    %263 = arith.addf %258, %262 : vector<7x70xf32>
    %264 = vector.extract_strided_slice %244 {offsets = [4, 0], sizes = [7, 88], strides = [1, 1]} : vector<11x88xf32> to vector<7x88xf32>
    %c4_179 = arith.constant 4 : index
    %c0_180 = arith.constant 0 : index
    %c0_181 = arith.constant 0 : index
    %265 = vector.load %arg8[%c4_179, %c0_180, %c0_181] : memref<5x88x70xf32, #tpu.memory_space<vmem>>, vector<1x88x70xf32>
    %266 = vector.shape_cast %265 : vector<1x88x70xf32> to vector<88x70xf32>
    %cst_182 = arith.constant dense<0.000000e+00> : vector<7x70xf32>
    %267 = tpu.matmul %264, %266, %cst_182 {dimension_numbers = #tpu.dot_dimension_numbers<[1], [0], [0], [1], [0, 0, 1, 1], [], []>} : vector<7x88xf32>, vector<88x70xf32>, vector<7x70xf32> -> vector<7x70xf32>
    %268 = arith.addf %263, %267 : vector<7x70xf32>
    %c0_183 = arith.constant 0 : index
    %c0_184 = arith.constant 0 : index
    %269 = vector.load %arg9[%c0_183, %c0_184] : memref<1x70xf32, #tpu.memory_space<vmem>>, vector<1x70xf32>
    %270 = vector.broadcast %269 : vector<1x70xf32> to vector<7x70xf32>
    %271 = arith.addf %268, %270 : vector<7x70xf32>
    %c0_185 = arith.constant 0 : index
    %c0_186 = arith.constant 0 : index
    %272 = vector.load %arg10[%c0_185, %c0_186] : memref<3x7xf32, #tpu.memory_space<vmem>>, vector<3x7xf32>
    %cst_187 = arith.constant dense<0.000000e+00> : vector<3x70xf32>
    %273 = tpu.matmul %272, %271, %cst_187 {dimension_numbers = #tpu.dot_dimension_numbers<[1], [0], [0], [1], [0, 0, 1, 1], [], []>} : vector<3x7xf32>, vector<7x70xf32>, vector<3x70xf32> -> vector<3x70xf32>
    %c0_188 = arith.constant 0 : index
    %c0_189 = arith.constant 0 : index
    %274 = vector.load %arg11[%c0_188, %c0_189] : memref<3x7xf32, #tpu.memory_space<vmem>>, vector<3x7xf32>
    %cst_190 = arith.constant dense<0.000000e+00> : vector<3x70xf32>
    %275 = tpu.matmul %274, %271, %cst_190 {dimension_numbers = #tpu.dot_dimension_numbers<[1], [0], [0], [1], [0, 0, 1, 1], [], []>} : vector<3x7xf32>, vector<7x70xf32>, vector<3x70xf32> -> vector<3x70xf32>
    %276 = arith.maximumf %273, %275 : vector<3x70xf32>
    %c0_191 = arith.constant 0 : index
    %c0_192 = arith.constant 0 : index
    %277 = vector.load %arg12[%c0_191, %c0_192] : memref<70x30xf32, #tpu.memory_space<vmem>>, vector<70x30xf32>
    %cst_193 = arith.constant dense<0.000000e+00> : vector<3x30xf32>
    %278 = tpu.matmul %276, %277, %cst_193 {dimension_numbers = #tpu.dot_dimension_numbers<[1], [0], [0], [1], [0, 0, 1, 1], [], []>} : vector<3x70xf32>, vector<70x30xf32>, vector<3x30xf32> -> vector<3x30xf32>
    %c0_194 = arith.constant 0 : index
    %c0_195 = arith.constant 0 : index
    %279 = vector.load %arg13[%c0_194, %c0_195] : memref<70x30xf32, #tpu.memory_space<vmem>>, vector<70x30xf32>
    %cst_196 = arith.constant dense<0.000000e+00> : vector<3x30xf32>
    %280 = tpu.matmul %276, %279, %cst_196 {dimension_numbers = #tpu.dot_dimension_numbers<[1], [0], [0], [1], [0, 0, 1, 1], [], []>} : vector<3x70xf32>, vector<70x30xf32>, vector<3x30xf32> -> vector<3x30xf32>
    %281 = arith.maximumf %278, %280 : vector<3x30xf32>
    %cst_197 = arith.constant 0.000000e+00 : f32
    %282 = vector.broadcast %cst_197 : f32 to vector<3x30xf32>
    %283 = arith.maximumf %281, %282 : vector<3x30xf32>
    %284 = vector.extract_strided_slice %283 {offsets = [0, 0], sizes = [1, 30], strides = [1, 1]} : vector<3x30xf32> to vector<1x30xf32>
    %c0_198 = arith.constant 0 : index
    %c0_199 = arith.constant 0 : index
    %c0_200 = arith.constant 0 : index
    %285 = vector.load %arg14[%c0_198, %c0_199, %c0_200] : memref<3x30x32xf32, #tpu.memory_space<vmem>>, vector<1x30x32xf32>
    %286 = vector.shape_cast %285 : vector<1x30x32xf32> to vector<30x32xf32>
    %cst_201 = arith.constant dense<0.000000e+00> : vector<1x32xf32>
    %287 = tpu.matmul %284, %286, %cst_201 {dimension_numbers = #tpu.dot_dimension_numbers<[1], [0], [0], [1], [0, 0, 1, 1], [], []>} : vector<1x30xf32>, vector<30x32xf32>, vector<1x32xf32> -> vector<1x32xf32>
    %288 = vector.extract_strided_slice %283 {offsets = [1, 0], sizes = [1, 30], strides = [1, 1]} : vector<3x30xf32> to vector<1x30xf32>
    %c1_202 = arith.constant 1 : index
    %c0_203 = arith.constant 0 : index
    %c0_204 = arith.constant 0 : index
    %289 = vector.load %arg14[%c1_202, %c0_203, %c0_204] : memref<3x30x32xf32, #tpu.memory_space<vmem>>, vector<1x30x32xf32>
    %290 = vector.shape_cast %289 : vector<1x30x32xf32> to vector<30x32xf32>
    %cst_205 = arith.constant dense<0.000000e+00> : vector<1x32xf32>
    %291 = tpu.matmul %288, %290, %cst_205 {dimension_numbers = #tpu.dot_dimension_numbers<[1], [0], [0], [1], [0, 0, 1, 1], [], []>} : vector<1x30xf32>, vector<30x32xf32>, vector<1x32xf32> -> vector<1x32xf32>
    %292 = arith.addf %287, %291 : vector<1x32xf32>
    %293 = vector.extract_strided_slice %283 {offsets = [2, 0], sizes = [1, 30], strides = [1, 1]} : vector<3x30xf32> to vector<1x30xf32>
    %c2_206 = arith.constant 2 : index
    %c0_207 = arith.constant 0 : index
    %c0_208 = arith.constant 0 : index
    %294 = vector.load %arg14[%c2_206, %c0_207, %c0_208] : memref<3x30x32xf32, #tpu.memory_space<vmem>>, vector<1x30x32xf32>
    %295 = vector.shape_cast %294 : vector<1x30x32xf32> to vector<30x32xf32>
    %cst_209 = arith.constant dense<0.000000e+00> : vector<1x32xf32>
    %296 = tpu.matmul %293, %295, %cst_209 {dimension_numbers = #tpu.dot_dimension_numbers<[1], [0], [0], [1], [0, 0, 1, 1], [], []>} : vector<1x30xf32>, vector<30x32xf32>, vector<1x32xf32> -> vector<1x32xf32>
    %297 = arith.addf %292, %296 : vector<1x32xf32>
    %c0_210 = arith.constant 0 : index
    %c0_211 = arith.constant 0 : index
    %298 = vector.load %arg15[%c0_210, %c0_211] : memref<1x32xf32, #tpu.memory_space<vmem>>, vector<1x32xf32>
    %299 = arith.addf %297, %298 : vector<1x32xf32>
    %cst_212 = arith.constant 0.000000e+00 : f32
    %300 = vector.broadcast %cst_212 : f32 to vector<1x32xf32>
    %301 = arith.maximumf %299, %300 : vector<1x32xf32>
    %c0_213 = arith.constant 0 : index
    %c0_214 = arith.constant 0 : index
    %302 = vector.load %arg16[%c0_213, %c0_214] : memref<32x6xf32, #tpu.memory_space<vmem>>, vector<32x6xf32>
    %cst_215 = arith.constant dense<0.000000e+00> : vector<1x6xf32>
    %303 = tpu.matmul %301, %302, %cst_215 {dimension_numbers = #tpu.dot_dimension_numbers<[1], [0], [0], [1], [0, 0, 1, 1], [], []>} : vector<1x32xf32>, vector<32x6xf32>, vector<1x6xf32> -> vector<1x6xf32>
    %c0_216 = arith.constant 0 : index
    %c0_217 = arith.constant 0 : index
    %304 = vector.load %arg17[%c0_216, %c0_217] : memref<1x6xf32, #tpu.memory_space<vmem>>, vector<1x6xf32>
    %305 = arith.addf %303, %304 : vector<1x6xf32>
    %306 = vector.extract_strided_slice %305 {offsets = [0, 0], sizes = [1, 1], strides = [1, 1]} : vector<1x6xf32> to vector<1x1xf32>
    %307 = vector.broadcast %306 : vector<1x1xf32> to vector<1x784xf32>
    %308 = arith.mulf %307, %0 : vector<1x784xf32>
    %309 = vector.extract_strided_slice %305 {offsets = [0, 1], sizes = [1, 1], strides = [1, 1]} : vector<1x6xf32> to vector<1x1xf32>
    %310 = vector.broadcast %309 : vector<1x1xf32> to vector<1x784xf32>
    %311 = arith.mulf %310, %1 : vector<1x784xf32>
    %312 = arith.addf %308, %311 : vector<1x784xf32>
    %313 = vector.extract_strided_slice %305 {offsets = [0, 2], sizes = [1, 1], strides = [1, 1]} : vector<1x6xf32> to vector<1x1xf32>
    %314 = vector.broadcast %313 : vector<1x1xf32> to vector<1x784xf32>
    %315 = arith.addf %312, %314 : vector<1x784xf32>
    %316 = vector.extract_strided_slice %305 {offsets = [0, 3], sizes = [1, 1], strides = [1, 1]} : vector<1x6xf32> to vector<1x1xf32>
    %317 = vector.broadcast %316 : vector<1x1xf32> to vector<1x784xf32>
    %318 = arith.mulf %317, %0 : vector<1x784xf32>
    %319 = vector.extract_strided_slice %305 {offsets = [0, 4], sizes = [1, 1], strides = [1, 1]} : vector<1x6xf32> to vector<1x1xf32>
    %320 = vector.broadcast %319 : vector<1x1xf32> to vector<1x784xf32>
    %321 = arith.mulf %320, %1 : vector<1x784xf32>
    %322 = arith.addf %318, %321 : vector<1x784xf32>
    %323 = vector.extract_strided_slice %305 {offsets = [0, 5], sizes = [1, 1], strides = [1, 1]} : vector<1x6xf32> to vector<1x1xf32>
    %324 = vector.broadcast %323 : vector<1x1xf32> to vector<1x784xf32>
    %325 = arith.addf %322, %324 : vector<1x784xf32>
    %cst_218 = arith.constant 1.000000e+00 : f32
    %326 = vector.broadcast %cst_218 : f32 to vector<1x784xf32>
    %327 = arith.addf %315, %326 : vector<1x784xf32>
    %cst_219 = arith.constant 2.800000e+01 : f32
    %328 = vector.broadcast %cst_219 : f32 to vector<1x784xf32>
    %329 = arith.mulf %327, %328 : vector<1x784xf32>
    %cst_220 = arith.constant 1.000000e+00 : f32
    %330 = vector.broadcast %cst_220 : f32 to vector<1x784xf32>
    %331 = arith.subf %329, %330 : vector<1x784xf32>
    %cst_221 = arith.constant 5.000000e-01 : f32
    %332 = vector.broadcast %cst_221 : f32 to vector<1x784xf32>
    %333 = arith.mulf %331, %332 : vector<1x784xf32>
    %cst_222 = arith.constant 1.000000e+00 : f32
    %334 = vector.broadcast %cst_222 : f32 to vector<1x784xf32>
    %335 = arith.addf %325, %334 : vector<1x784xf32>
    %cst_223 = arith.constant 2.800000e+01 : f32
    %336 = vector.broadcast %cst_223 : f32 to vector<1x784xf32>
    %337 = arith.mulf %335, %336 : vector<1x784xf32>
    %cst_224 = arith.constant 1.000000e+00 : f32
    %338 = vector.broadcast %cst_224 : f32 to vector<1x784xf32>
    %339 = arith.subf %337, %338 : vector<1x784xf32>
    %cst_225 = arith.constant 5.000000e-01 : f32
    %340 = vector.broadcast %cst_225 : f32 to vector<1x784xf32>
    %341 = arith.mulf %339, %340 : vector<1x784xf32>
    %342 = math.floor %333 : vector<1x784xf32>
    %343 = math.floor %341 : vector<1x784xf32>
    %344 = arith.subf %333, %342 : vector<1x784xf32>
    %345 = arith.subf %341, %343 : vector<1x784xf32>
    %cst_226 = arith.constant 1.000000e+00 : f32
    %346 = vector.broadcast %cst_226 : f32 to vector<1x784xf32>
    %347 = arith.subf %346, %344 : vector<1x784xf32>
    %cst_227 = arith.constant 1.000000e+00 : f32
    %348 = vector.broadcast %cst_227 : f32 to vector<1x784xf32>
    %349 = arith.subf %348, %345 : vector<1x784xf32>
    %350 = vector.broadcast %342 : vector<1x784xf32> to vector<28x784xf32>
    %351 = arith.cmpf oeq, %2, %350 : vector<28x784xf32>
    %cst_228 = arith.constant 0.000000e+00 : f32
    %352 = vector.shape_cast %347 : vector<1x784xf32> to vector<1x784xf32>
    %353 = vector.broadcast %352 : vector<1x784xf32> to vector<28x784xf32>
    %354 = vector.broadcast %cst_228 : f32 to vector<28x784xf32>
    %355 = arith.select %351, %353, %354 : vector<28x784xi1>, vector<28x784xf32>
    %cst_229 = arith.constant 1.000000e+00 : f32
    %356 = vector.broadcast %cst_229 : f32 to vector<1x784xf32>
    %357 = arith.addf %342, %356 : vector<1x784xf32>
    %358 = vector.broadcast %357 : vector<1x784xf32> to vector<28x784xf32>
    %359 = arith.cmpf oeq, %2, %358 : vector<28x784xf32>
    %cst_230 = arith.constant 0.000000e+00 : f32
    %360 = vector.shape_cast %344 : vector<1x784xf32> to vector<1x784xf32>
    %361 = vector.broadcast %360 : vector<1x784xf32> to vector<28x784xf32>
    %362 = vector.broadcast %cst_230 : f32 to vector<28x784xf32>
    %363 = arith.select %359, %361, %362 : vector<28x784xi1>, vector<28x784xf32>
    %364 = arith.addf %355, %363 : vector<28x784xf32>
    %cst_231 = arith.constant dense<0.000000e+00> : vector<28x784xf32>
    %365 = tpu.matmul %195, %364, %cst_231 {dimension_numbers = #tpu.dot_dimension_numbers<[1], [0], [0], [1], [0, 0, 1, 1], [], []>} : vector<28x28xf32>, vector<28x784xf32>, vector<28x784xf32> -> vector<28x784xf32>
    %366 = vector.broadcast %343 : vector<1x784xf32> to vector<28x784xf32>
    %367 = arith.cmpf oeq, %2, %366 : vector<28x784xf32>
    %cst_232 = arith.constant 0.000000e+00 : f32
    %368 = vector.shape_cast %349 : vector<1x784xf32> to vector<1x784xf32>
    %369 = vector.broadcast %368 : vector<1x784xf32> to vector<28x784xf32>
    %370 = vector.broadcast %cst_232 : f32 to vector<28x784xf32>
    %371 = arith.select %367, %369, %370 : vector<28x784xi1>, vector<28x784xf32>
    %cst_233 = arith.constant 1.000000e+00 : f32
    %372 = vector.broadcast %cst_233 : f32 to vector<1x784xf32>
    %373 = arith.addf %343, %372 : vector<1x784xf32>
    %374 = vector.broadcast %373 : vector<1x784xf32> to vector<28x784xf32>
    %375 = arith.cmpf oeq, %2, %374 : vector<28x784xf32>
    %cst_234 = arith.constant 0.000000e+00 : f32
    %376 = vector.shape_cast %345 : vector<1x784xf32> to vector<1x784xf32>
    %377 = vector.broadcast %376 : vector<1x784xf32> to vector<28x784xf32>
    %378 = vector.broadcast %cst_234 : f32 to vector<28x784xf32>
    %379 = arith.select %375, %377, %378 : vector<28x784xi1>, vector<28x784xf32>
    %380 = arith.addf %371, %379 : vector<28x784xf32>
    %381 = arith.mulf %365, %380 : vector<28x784xf32>
    %cst_235 = arith.constant dense<0.000000e+00> : vector<784xf32>
    %382 = vector.multi_reduction <add>, %381, %cst_235 [0] : vector<28x784xf32> to vector<784xf32>
    %383 = vector.shape_cast %382 : vector<784xf32> to vector<1x784xf32>
    %384 = vector.shape_cast %283 : vector<3x30xf32> to vector<1x3x30xf32>
    %385 = tpu.concatenate %192, %383 in 0 : vector<1x784xf32>, vector<1x784xf32> -> vector<2x784xf32>
    %c0_236 = arith.constant 0 : index
    %c0_237 = arith.constant 0 : index
    %386 = vector.load %arg21[%c0_236, %c0_237] : memref<2x784xf32, #tpu.memory_space<vmem>>, vector<2x784xf32>
    tpu.vector_store %arg21[%c0_236, %c0_237], %385 {strides = array<i32>} : memref<2x784xf32, #tpu.memory_space<vmem>>, vector<2x784xf32>,
    %387 = tpu.concatenate %193, %384 in 0 : vector<1x3x30xf32>, vector<1x3x30xf32> -> vector<2x3x30xf32>
    %c0_238 = arith.constant 0 : index
    %c0_239 = arith.constant 0 : index
    %c0_240 = arith.constant 0 : index
    %388 = vector.load %arg22[%c0_238, %c0_239, %c0_240] : memref<2x3x30xf32, #tpu.memory_space<vmem>>, vector<2x3x30xf32>
    tpu.vector_store %arg22[%c0_238, %c0_239, %c0_240], %387 {strides = array<i32>} : memref<2x3x30xf32, #tpu.memory_space<vmem>>, vector<2x3x30xf32>,
    %389 = tpu.concatenate %114, %305 in 0 : vector<1x6xf32>, vector<1x6xf32> -> vector<2x6xf32>
    %c0_241 = arith.constant 0 : index
    %c0_242 = arith.constant 0 : index
    %390 = vector.load %arg23[%c0_241, %c0_242] : memref<2x6xf32, #tpu.memory_space<vmem>>, vector<2x6xf32>
    tpu.vector_store %arg23[%c0_241, %c0_242], %389 {strides = array<i32>} : memref<2x6xf32, #tpu.memory_space<vmem>>, vector<2x6xf32>,
    return
  }
  func.func @transform_0(%arg0: i32) -> (i32, i32, i32) {
    %c0_i32 = arith.constant 0 : i32
    %c0_i32_0 = arith.constant 0 : i32
    %c0_i32_1 = arith.constant 0 : i32
    return %arg0, %c0_i32, %c0_i32_0 : i32, i32, i32
  }
  func.func @transform_1(%arg0: i32) -> (i32, i32, i32) {
    %c0_i32 = arith.constant 0 : i32
    %c0_i32_0 = arith.constant 0 : i32
    %c0_i32_1 = arith.constant 0 : i32
    %c0_i32_2 = arith.constant 0 : i32
    return %c0_i32, %c0_i32_0, %c0_i32_1 : i32, i32, i32
  }
  func.func @transform_2(%arg0: i32) -> (i32, i32) {
    %c0_i32 = arith.constant 0 : i32
    %c0_i32_0 = arith.constant 0 : i32
    %c0_i32_1 = arith.constant 0 : i32
    return %c0_i32, %c0_i32_0 : i32, i32
  }
  func.func @transform_3(%arg0: i32) -> (i32, i32) {
    %c0_i32 = arith.constant 0 : i32
    %c0_i32_0 = arith.constant 0 : i32
    %c0_i32_1 = arith.constant 0 : i32
    return %c0_i32, %c0_i32_0 : i32, i32
  }
  func.func @transform_4(%arg0: i32) -> (i32, i32) {
    %c0_i32 = arith.constant 0 : i32
    %c0_i32_0 = arith.constant 0 : i32
    %c0_i32_1 = arith.constant 0 : i32
    return %c0_i32, %c0_i32_0 : i32, i32
  }
  func.func @transform_5(%arg0: i32) -> (i32, i32) {
    %c0_i32 = arith.constant 0 : i32
    %c0_i32_0 = arith.constant 0 : i32
    %c0_i32_1 = arith.constant 0 : i32
    return %c0_i32, %c0_i32_0 : i32, i32
  }
  func.func @transform_6(%arg0: i32) -> (i32, i32) {
    %c0_i32 = arith.constant 0 : i32
    %c0_i32_0 = arith.constant 0 : i32
    %c0_i32_1 = arith.constant 0 : i32
    return %c0_i32, %c0_i32_0 : i32, i32
  }
  func.func @transform_7(%arg0: i32) -> (i32, i32, i32) {
    %c0_i32 = arith.constant 0 : i32
    %c0_i32_0 = arith.constant 0 : i32
    %c0_i32_1 = arith.constant 0 : i32
    %c0_i32_2 = arith.constant 0 : i32
    return %c0_i32, %c0_i32_0, %c0_i32_1 : i32, i32, i32
  }
  func.func @transform_8(%arg0: i32) -> (i32, i32) {
    %c0_i32 = arith.constant 0 : i32
    %c0_i32_0 = arith.constant 0 : i32
    %c0_i32_1 = arith.constant 0 : i32
    return %c0_i32, %c0_i32_0 : i32, i32
  }
  func.func @transform_9(%arg0: i32) -> (i32, i32) {
    %c0_i32 = arith.constant 0 : i32
    %c0_i32_0 = arith.constant 0 : i32
    %c0_i32_1 = arith.constant 0 : i32
    return %c0_i32, %c0_i32_0 : i32, i32
  }
  func.func @transform_10(%arg0: i32) -> (i32, i32) {
    %c0_i32 = arith.constant 0 : i32
    %c0_i32_0 = arith.constant 0 : i32
    %c0_i32_1 = arith.constant 0 : i32
    return %c0_i32, %c0_i32_0 : i32, i32
  }
  func.func @transform_11(%arg0: i32) -> (i32, i32) {
    %c0_i32 = arith.constant 0 : i32
    %c0_i32_0 = arith.constant 0 : i32
    %c0_i32_1 = arith.constant 0 : i32
    return %c0_i32, %c0_i32_0 : i32, i32
  }
  func.func @transform_12(%arg0: i32) -> (i32, i32) {
    %c0_i32 = arith.constant 0 : i32
    %c0_i32_0 = arith.constant 0 : i32
    %c0_i32_1 = arith.constant 0 : i32
    return %c0_i32, %c0_i32_0 : i32, i32
  }
  func.func @transform_13(%arg0: i32) -> (i32, i32, i32) {
    %c0_i32 = arith.constant 0 : i32
    %c0_i32_0 = arith.constant 0 : i32
    %c0_i32_1 = arith.constant 0 : i32
    %c0_i32_2 = arith.constant 0 : i32
    return %c0_i32, %c0_i32_0, %c0_i32_1 : i32, i32, i32
  }
  func.func @transform_14(%arg0: i32) -> (i32, i32) {
    %c0_i32 = arith.constant 0 : i32
    %c0_i32_0 = arith.constant 0 : i32
    %c0_i32_1 = arith.constant 0 : i32
    return %c0_i32, %c0_i32_0 : i32, i32
  }
  func.func @transform_15(%arg0: i32) -> (i32, i32) {
    %c0_i32 = arith.constant 0 : i32
    %c0_i32_0 = arith.constant 0 : i32
    %c0_i32_1 = arith.constant 0 : i32
    return %c0_i32, %c0_i32_0 : i32, i32
  }
  func.func @transform_16(%arg0: i32) -> (i32, i32) {
    %c0_i32 = arith.constant 0 : i32
    %c0_i32_0 = arith.constant 0 : i32
    %c0_i32_1 = arith.constant 0 : i32
    return %c0_i32, %c0_i32_0 : i32, i32
  }
  func.func @transform_17(%arg0: i32) -> (i32, i32) {
    %c0_i32 = arith.constant 0 : i32
    %c0_i32_0 = arith.constant 0 : i32
    %c0_i32_1 = arith.constant 0 : i32
    return %c0_i32, %c0_i32_0 : i32, i32
  }
  func.func @transform_18(%arg0: i32) -> (i32, i32) {
    %c0_i32 = arith.constant 0 : i32
    %c0_i32_0 = arith.constant 0 : i32
    %c0_i32_1 = arith.constant 0 : i32
    return %c0_i32, %c0_i32_0 : i32, i32
  }
  func.func @transform_19(%arg0: i32) -> (i32, i32) {
    %c0_i32 = arith.constant 0 : i32
    %c0_i32_0 = arith.constant 0 : i32
    %c0_i32_1 = arith.constant 0 : i32
    return %c0_i32, %c0_i32_0 : i32, i32
  }
  func.func @transform_20(%arg0: i32) -> (i32, i32) {
    %c0_i32 = arith.constant 0 : i32
    %c0_i32_0 = arith.constant 0 : i32
    return %arg0, %c0_i32 : i32, i32
  }
  func.func @transform_21(%arg0: i32) -> (i32, i32, i32) {
    %c0_i32 = arith.constant 0 : i32
    %c0_i32_0 = arith.constant 0 : i32
    %c0_i32_1 = arith.constant 0 : i32
    return %arg0, %c0_i32, %c0_i32_0 : i32, i32, i32
  }
  func.func @transform_22(%arg0: i32) -> (i32, i32) {
    %c0_i32 = arith.constant 0 : i32
    %c0_i32_0 = arith.constant 0 : i32
    return %arg0, %c0_i32 : i32, i32
  }
}

</mosaic_0001>

<llo_original>
// kernel: stn_forward.1
$region0: #{stn_forward.1}
  #allocation0 [shape = 'u32[]', space=smem, size = 0x4, offset = 0x4, fixed_abs, tag = 'smem constant byte address 0x4 - core index']
  #allocation1 [shape = 'u32[144,128]{1,0:T(1,128)}', space=vmem, size = 0x12000, scoped, tag = 'internal scratch']
  %s0 = inlined_call_operand.vmem [shape: f32[2,28,28], index: 0, kind: input, shape index: {}]
  %s1 = inlined_call_operand.vmem [shape: f32[7,28,176], index: 1, kind: input, shape index: {}]
  %s2 = inlined_call_operand.vmem [shape: f32[1,176], index: 2, kind: input, shape index: {}]
  %s3 = inlined_call_operand.vmem [shape: f32[11,22], index: 3, kind: input, shape index: {}]
  %s4 = inlined_call_operand.vmem [shape: f32[11,22], index: 4, kind: input, shape index: {}]
  %s5 = inlined_call_operand.vmem [shape: f32[176,88], index: 5, kind: input, shape index: {}]
  %s6 = inlined_call_operand.vmem [shape: f32[176,88], index: 6, kind: input, shape index: {}]
  %s7 = inlined_call_operand.vmem [shape: f32[5,88,70], index: 7, kind: input, shape index: {}]
  %s8 = inlined_call_operand.vmem [shape: f32[1,70], index: 8, kind: input, shape index: {}]
  %s9 = inlined_call_operand.vmem [shape: f32[3,7], index: 9, kind: input, shape index: {}]
  %s10 = inlined_call_operand.vmem [shape: f32[3,7], index: 10, kind: input, shape index: {}]
  %s11 = inlined_call_operand.vmem [shape: f32[70,30], index: 11, kind: input, shape index: {}]
  %s12 = inlined_call_operand.vmem [shape: f32[70,30], index: 12, kind: input, shape index: {}]
  %s13 = inlined_call_operand.vmem [shape: f32[3,30,32], index: 13, kind: input, shape index: {}]
  %s14 = inlined_call_operand.vmem [shape: f32[1,32], index: 14, kind: input, shape index: {}]
  %s15 = inlined_call_operand.vmem [shape: f32[32,6], index: 15, kind: input, shape index: {}]
  %s16 = inlined_call_operand.vmem [shape: f32[1,6], index: 16, kind: input, shape index: {}]
  %s17 = inlined_call_operand.vmem [shape: f32[1,784], index: 17, kind: input, shape index: {}]
  %s18 = inlined_call_operand.vmem [shape: f32[1,784], index: 18, kind: input, shape index: {}]
  %s19 = inlined_call_operand.vmem [shape: f32[28,784], index: 19, kind: input, shape index: {}]
  %s20 = inlined_call_operand.vmem [shape: f32[2,784], index: 20, kind: output, shape index: {0}]
  %s21 = inlined_call_operand.vmem [shape: f32[2,3,30], index: 21, kind: output, shape index: {1}]
  %s22 = inlined_call_operand.vmem [shape: f32[2,6], index: 22, kind: output, shape index: {2}]
  %23 = xla_tuple %s20, %s21, %s22
  %s24 = sld [smem:[#allocation0]]
  $region106: #{stn_forward.1} parent=0
    _
  %s26 = ssub.s32 1, %s24
  %s27 = scalar_select 0, %s26, %s24
  // Predicated region
  $region2: #{stn_forward.1} parent=0 // pred_check
    _
  $region3: #{stn_forward.1} parent=0 // pred_check_branch
    %29 = sbr.rel (0) target = $region5
  $region4: #{stn_forward.1} parent=0 // pred_region
    _
  $region5: #{stn_forward.1} parent=0 // pred_fallthru
    _
  // Predicated region
  $region6: #{stn_forward.1} parent=0 // pred_check
    _
  $region7: #{stn_forward.1} parent=0 // pred_check_branch
    %31 = sbr.rel (0) target = $region9
  $region8: #{stn_forward.1} parent=0 // pred_region
    _
  $region9: #{stn_forward.1} parent=0 // pred_fallthru
    _
  // Predicated region
  $region10: #{stn_forward.1} parent=0 // pred_check
    _
  $region11: #{stn_forward.1} parent=0 // pred_check_branch
    %33 = sbr.rel (0) target = $region13
  $region12: #{stn_forward.1} parent=0 // pred_region
    _
  $region13: #{stn_forward.1} parent=0 // pred_fallthru
    _
  // Predicated region
  $region14: #{stn_forward.1} parent=0 // pred_check
    _
  $region15: #{stn_forward.1} parent=0 // pred_check_branch
    %35 = sbr.rel (0) target = $region17
  $region16: #{stn_forward.1} parent=0 // pred_region
    _
  $region17: #{stn_forward.1} parent=0 // pred_fallthru
    _
  // Predicated region
  $region18: #{stn_forward.1} parent=0 // pred_check
    _
  $region19: #{stn_forward.1} parent=0 // pred_check_branch
    %37 = sbr.rel (0) target = $region21
  $region20: #{stn_forward.1} parent=0 // pred_region
    _
  $region21: #{stn_forward.1} parent=0 // pred_fallthru
    _
  // Predicated region
  $region22: #{stn_forward.1} parent=0 // pred_check
    _
  $region23: #{stn_forward.1} parent=0 // pred_check_branch
    %39 = sbr.rel (0) target = $region25
  $region24: #{stn_forward.1} parent=0 // pred_region
    _
  $region25: #{stn_forward.1} parent=0 // pred_fallthru
    _
  // Predicated region
  $region26: #{stn_forward.1} parent=0 // pred_check
    _
  $region27: #{stn_forward.1} parent=0 // pred_check_branch
    %41 = sbr.rel (0) target = $region29
  $region28: #{stn_forward.1} parent=0 // pred_region
    _
  $region29: #{stn_forward.1} parent=0 // pred_fallthru
    _
  // Predicated region
  $region30: #{stn_forward.1} parent=0 // pred_check
    _
  $region31: #{stn_forward.1} parent=0 // pred_check_branch
    %43 = sbr.rel (0) target = $region33
  $region32: #{stn_forward.1} parent=0 // pred_region
    _
  $region33: #{stn_forward.1} parent=0 // pred_fallthru
    _
  // Predicated region
  $region34: #{stn_forward.1} parent=0 // pred_check
    _
  $region35: #{stn_forward.1} parent=0 // pred_check_branch
    %45 = sbr.rel (0) target = $region37
  $region36: #{stn_forward.1} parent=0 // pred_region
    _
  $region37: #{stn_forward.1} parent=0 // pred_fallthru
    _
  // Predicated region
  $region38: #{stn_forward.1} parent=0 // pred_check
    _
  $region39: #{stn_forward.1} parent=0 // pred_check_branch
    %47 = sbr.rel (0) target = $region41
  $region40: #{stn_forward.1} parent=0 // pred_region
    _
  $region41: #{stn_forward.1} parent=0 // pred_fallthru
    _
  // Predicated region
  $region42: #{stn_forward.1} parent=0 // pred_check
    _
  $region43: #{stn_forward.1} parent=0 // pred_check_branch
    %49 = sbr.rel (0) target = $region45
  $region44: #{stn_forward.1} parent=0 // pred_region
    _
  $region45: #{stn_forward.1} parent=0 // pred_fallthru
    _
  // Predicated region
  $region46: #{stn_forward.1} parent=0 // pred_check
    _
  $region47: #{stn_forward.1} parent=0 // pred_check_branch
    %51 = sbr.rel (0) target = $region49
  $region48: #{stn_forward.1} parent=0 // pred_region
    _
  $region49: #{stn_forward.1} parent=0 // pred_fallthru
    _
  // Predicated region
  $region50: #{stn_forward.1} parent=0 // pred_check
    _
  $region51: #{stn_forward.1} parent=0 // pred_check_branch
    %53 = sbr.rel (0) target = $region53
  $region52: #{stn_forward.1} parent=0 // pred_region
    _
  $region53: #{stn_forward.1} parent=0 // pred_fallthru
    _
  // Predicated region
  $region54: #{stn_forward.1} parent=0 // pred_check
    _
  $region55: #{stn_forward.1} parent=0 // pred_check_branch
    %55 = sbr.rel (0) target = $region57
  $region56: #{stn_forward.1} parent=0 // pred_region
    _
  $region57: #{stn_forward.1} parent=0 // pred_fallthru
    _
  // Predicated region
  $region58: #{stn_forward.1} parent=0 // pred_check
    _
  $region59: #{stn_forward.1} parent=0 // pred_check_branch
    %57 = sbr.rel (0) target = $region61
  $region60: #{stn_forward.1} parent=0 // pred_region
    _
  $region61: #{stn_forward.1} parent=0 // pred_fallthru
    _
  // Predicated region
  $region62: #{stn_forward.1} parent=0 // pred_check
    _
  $region63: #{stn_forward.1} parent=0 // pred_check_branch
    %59 = sbr.rel (0) target = $region65
  $region64: #{stn_forward.1} parent=0 // pred_region
    _
  $region65: #{stn_forward.1} parent=0 // pred_fallthru
    _
  // Predicated region
  $region66: #{stn_forward.1} parent=0 // pred_check
    _
  $region67: #{stn_forward.1} parent=0 // pred_check_branch
    %61 = sbr.rel (0) target = $region69
  $region68: #{stn_forward.1} parent=0 // pred_region
    _
  $region69: #{stn_forward.1} parent=0 // pred_fallthru
    _
  // Predicated region
  $region70: #{stn_forward.1} parent=0 // pred_check
    _
  $region71: #{stn_forward.1} parent=0 // pred_check_branch
    %63 = sbr.rel (0) target = $region73
  $region72: #{stn_forward.1} parent=0 // pred_region
    _
  $region73: #{stn_forward.1} parent=0 // pred_fallthru
    _
  // Predicated region
  $region74: #{stn_forward.1} parent=0 // pred_check
    _
  $region75: #{stn_forward.1} parent=0 // pred_check_branch
    %65 = sbr.rel (0) target = $region77
  $region76: #{stn_forward.1} parent=0 // pred_region
    _
  $region77: #{stn_forward.1} parent=0 // pred_fallthru
    _
  // Predicated region
  $region78: #{stn_forward.1} parent=0 // pred_check
    _
  $region79: #{stn_forward.1} parent=0 // pred_check_branch
    %67 = sbr.rel (0) target = $region81
  $region80: #{stn_forward.1} parent=0 // pred_region
    _
  $region81: #{stn_forward.1} parent=0 // pred_fallthru
    _
  %v68 = vld [vmem:[%s17] sm:$0x7f]
  %v69 = vld [vmem:[%s18] sm:$0x7f]
  %v70 = vld [vmem:[%s19] sm:$0xff]
  %v71 = vld [vmem:[%s19 + $0x8] sm:$0xff]
  %v72 = vld [vmem:[%s19 + $0x10] sm:$0xff]
  %v73 = vld [vmem:[%s19 + $0x18] sm:$0xff]
  %v74 = vld [vmem:[%s19 + $0x20] sm:$0xff]
  %v75 = vld [vmem:[%s19 + $0x28] sm:$0xff]
  %v76 = vld [vmem:[%s19 + $0x30] sm:$0xff]
  %v77 = vld [vmem:[%s19 + $0x38] sm:$0xff]
  %v78 = vld [vmem:[%s19 + $0x40] sm:$0xff]
  %v79 = vld [vmem:[%s19 + $0x48] sm:$0xff]
  %v80 = vld [vmem:[%s19 + $0x50] sm:$0xff]
  %v81 = vld [vmem:[%s19 + $0x58] sm:$0xff]
  %v82 = vld [vmem:[%s19 + $0x60] sm:$0xff]
  %v83 = vld [vmem:[%s19 + $0x68] sm:$0xff]
  %v84 = vld [vmem:[%s19 + $0x70] sm:$0xff]
  %v85 = vld [vmem:[%s19 + $0x78] sm:$0xff]
  %v86 = vld [vmem:[%s19 + $0x80] sm:$0xff]
  %v87 = vld [vmem:[%s19 + $0x88] sm:$0xff]
  %v88 = vld [vmem:[%s19 + $0x90] sm:$0xff]
  %v89 = vld [vmem:[%s19 + $0x98] sm:$0xff]
  %v90 = vld [vmem:[%s19 + $0xa0] sm:$0xff]
  %v91 = vld [vmem:[%s19 + $0xa8] sm:$0xf]
  %v92 = vld [vmem:[%s19 + $0xb0] sm:$0xf]
  %v93 = vld [vmem:[%s19 + $0xb8] sm:$0xf]
  %v94 = vld [vmem:[%s19 + $0xc0] sm:$0xf]
  %v95 = vld [vmem:[%s19 + $0xc8] sm:$0xf]
  %v96 = vld [vmem:[%s19 + $0xd0] sm:$0xf]
  %v97 = vld [vmem:[%s19 + $0xd8] sm:$0xf]
  %v98 = vld [vmem:[%s0] sm:$0xff]
  %v99 = vld [vmem:[%s0 + $0x8] sm:$0xff]
  %v100 = vld [vmem:[%s0 + $0x10] sm:$0xff]
  %v101 = vld [vmem:[%s0 + $0x18] sm:$0xf]
  %v102 = vld [vmem:[%s1] sm:$0xff]
  %v103 = vld [vmem:[%s1 + $0x8] sm:$0xff]
  %v104 = vld [vmem:[%s1 + $0x10] sm:$0xff]
  %v105 = vld [vmem:[%s1 + $0x18] sm:$0xff]
  %v106 = vld [vmem:[%s1 + $0x20] sm:$0xff]
  %v107 = vld [vmem:[%s1 + $0x28] sm:$0xff]
  %v108 = vld [vmem:[%s1 + $0x30] sm:$0xf]
  %v109 = vld [vmem:[%s1 + $0x38] sm:$0xf]
  %s110 = scalar_lea.vmem %s1, 64
  %v111 = vld [vmem:[%s110] sm:$0xff]
  %v112 = vld [vmem:[%s110 + $0x8] sm:$0xff]
  %v113 = vld [vmem:[%s110 + $0x10] sm:$0xff]
  %v114 = vld [vmem:[%s110 + $0x18] sm:$0xff]
  %v115 = vld [vmem:[%s110 + $0x20] sm:$0xff]
  %v116 = vld [vmem:[%s110 + $0x28] sm:$0xff]
  %v117 = vld [vmem:[%s110 + $0x30] sm:$0xf]
  %v118 = vld [vmem:[%s110 + $0x38] sm:$0xf]
  %vm122 = vcmask 1046528
  %v123 = vrot.slane %v98, 1
  %v124 = vrot.slane %v99, 1
  %v125 = vsel %vm122, %v123, %v124
  %v126 = vrot.slane %v100, 1
  %v127 = vsel %vm122, %v124, %v126
  %vm128 = vcmask 228352
  %v129 = vsel %vm128, %v125, 0
  %v131 = vsel %vm128, %v127, 0
  %v133 = vsel %vm128, %v126, 0
  %vm135 = vcmask 1043456
  %v137 = vsel %vm135, %v117, 0
  %v140 = vsel %vm135, %v118, 0
  %142 = vmatprep.subr.mxu0 0.0
  %143 = vmatpush1.msra.mxu0 0.0
  %144 = vmatprep.subr.mxu0 0.0
  %145 = vmatpush1.msra.mxu0 0.0
  %146 = vmatprep.subr.mxu0 0.0
  %147 = vmatpush1.msra.mxu0 0.0
  %148 = vmatprep.subr.mxu0 0.0
  %149 = vmatpush1.msra.mxu0 0.0
  %150 = vmatprep.subr.mxu0 0.0
  %151 = vmatpush1.msra.mxu0 0.0
  %152 = vmatprep.subr.mxu0 0.0
  %153 = vmatpush1.msra.mxu0 0.0
  %154 = vmatprep.subr.mxu0 0.0
  %155 = vmatpush1.msra.mxu0 0.0
  %156 = vmatprep.subr.mxu0 0.0
  %157 = vmatpush1.msra.mxu0 0.0
  %158 = vmatprep.subr.mxu0 0.0
  %159 = vmatpush1.msra.mxu0 0.0
  %160 = vmatprep.subr.mxu0 0.0
  %161 = vmatpush1.msra.mxu0 0.0
  %162 = vmatprep.subr.mxu0 0.0
  %163 = vmatpush1.msra.mxu0 0.0
  %164 = vmatprep.subr.mxu0 0.0
  %165 = vmatpush1.msra.mxu0 0.0
  %166 = vmatprep.subr.mxu0 %v140
  %167 = vmatpush1.msra.mxu0 %v137
  %168 = vmatprep.subr.mxu0 %v116
  %169 = vmatpush1.msra.mxu0 %v115
  %170 = vmatprep.subr.mxu0 %v114
  %171 = vmatpush1.msra.mxu0 %v113
  %172 = vmatprep.subr.mxu0 %v112
  %173 = vmatpush1.msra.mxu0 %v111
  %174 = vmatprep.subr.mxu0 0.0
  %175 = vmatpush2.msra.mxu0 0.0
  %176 = vmatprep.subr.mxu0 0.0
  %177 = vmatpush2.msra.mxu0 0.0
  %178 = vmatprep.subr.mxu0 0.0
  %179 = vmatpush2.msra.mxu0 0.0
  %180 = vmatprep.subr.mxu0 0.0
  %181 = vmatpush2.msra.mxu0 0.0
  %182 = vmatprep.subr.mxu0 0.0
  %183 = vmatpush2.msra.mxu0 0.0
  %184 = vmatprep.subr.mxu0 0.0
  %185 = vmatpush2.msra.mxu0 0.0
  %186 = vmatprep.subr.mxu0 0.0
  %187 = vmatpush2.msra.mxu0 0.0
  %188 = vmatprep.subr.mxu0 0.0
  %189 = vmatpush2.msra.mxu0 0.0
  %190 = vmatprep.subr.mxu0 0.0
  %191 = vmatpush2.msra.mxu0 0.0
  %192 = vmatprep.subr.mxu0 0.0
  %193 = vmatpush2.msra.mxu0 0.0
  %194 = vmatprep.subr.mxu0 0.0
  %195 = vmatpush2.msra.mxu0 0.0
  %196 = vmatprep.subr.mxu0 0.0
  %197 = vmatpush2.msra.mxu0 0.0
  %198 = vmatprep.subr.mxu0 0.0
  %199 = vmatpush2.msra.mxu0 0.0
  %200 = vmatprep.subr.mxu0 0.0
  %201 = vmatpush2.msra.mxu0 0.0
  %202 = vmatprep.subr.mxu0 0.0
  %203 = vmatpush2.msra.mxu0 0.0
  %204 = vmatprep.subr.mxu0 0.0
  %205 = vmatpush2.msra.mxu0 0.0
  %206 = vmatprep.mubr.f32.mxu0 0.0
  %207 = vmatmul.mubr.f32.gmra.mxu0 %v129
  %v208 = vpop.f32.mrf.mxu0
  %v209 = vadd.f32 0.0, %v208
  %v210 = vpop.f32.mrf.mxu0
  %v211 = vadd.f32 0.0, %v210
  %212 = vmatprep.mubr.f32.mxu0 0.0
  %213 = vmatmul.mubr.f32.gmra.mxu0 %v131
  %v214 = vpop.f32.mrf.mxu0
  %v215 = vadd.f32 0.0, %v214
  %v216 = vpop.f32.mrf.mxu0
  %v217 = vadd.f32 0.0, %v216
  %218 = vmatprep.mubr.f32.mxu0 0.0
  %219 = vmatmul.mubr.f32.gmra.mxu0 %v133
  %v220 = vpop.f32.mrf.mxu0
  %v221 = vadd.f32 0.0, %v220
  %v222 = vpop.f32.mrf.mxu0
  %v223 = vadd.f32 0.0, %v222
  %224 = vdwg.mxu0
  %v225 = vsel %vm128, %v98, 0
  %v227 = vsel %vm128, %v99, 0
  %v229 = vsel %vm128, %v100, 0
  %v232 = vsel %vm135, %v108, 0
  %v235 = vsel %vm135, %v109, 0
  %237 = vmatprep.subr.mxu0 0.0
  %238 = vmatpush1.msra.mxu0 0.0
  %239 = vmatprep.subr.mxu0 0.0
  %240 = vmatpush1.msra.mxu0 0.0
  %241 = vmatprep.subr.mxu0 0.0
  %242 = vmatpush1.msra.mxu0 0.0
  %243 = vmatprep.subr.mxu0 0.0
  %244 = vmatpush1.msra.mxu0 0.0
  %245 = vmatprep.subr.mxu0 0.0
  %246 = vmatpush1.msra.mxu0 0.0
  %247 = vmatprep.subr.mxu0 0.0
  %248 = vmatpush1.msra.mxu0 0.0
  %249 = vmatprep.subr.mxu0 0.0
  %250 = vmatpush1.msra.mxu0 0.0
  %251 = vmatprep.subr.mxu0 0.0
  %252 = vmatpush1.msra.mxu0 0.0
  %253 = vmatprep.subr.mxu0 0.0
  %254 = vmatpush1.msra.mxu0 0.0
  %255 = vmatprep.subr.mxu0 0.0
  %256 = vmatpush1.msra.mxu0 0.0
  %257 = vmatprep.subr.mxu0 0.0
  %258 = vmatpush1.msra.mxu0 0.0
  %259 = vmatprep.subr.mxu0 0.0
  %260 = vmatpush1.msra.mxu0 0.0
  %261 = vmatprep.subr.mxu0 %v235
  %262 = vmatpush1.msra.mxu0 %v232
  %263 = vmatprep.subr.mxu0 %v107
  %264 = vmatpush1.msra.mxu0 %v106
  %265 = vmatprep.subr.mxu0 %v105
  %266 = vmatpush1.msra.mxu0 %v104
  %267 = vmatprep.subr.mxu0 %v103
  %268 = vmatpush1.msra.mxu0 %v102
  %269 = vmatprep.subr.mxu0 0.0
  %270 = vmatpush2.msra.mxu0 0.0
  %271 = vmatprep.subr.mxu0 0.0
  %272 = vmatpush2.msra.mxu0 0.0
  %273 = vmatprep.subr.mxu0 0.0
  %274 = vmatpush2.msra.mxu0 0.0
  %275 = vmatprep.subr.mxu0 0.0
  %276 = vmatpush2.msra.mxu0 0.0
  %277 = vmatprep.subr.mxu0 0.0
  %278 = vmatpush2.msra.mxu0 0.0
  %279 = vmatprep.subr.mxu0 0.0
  %280 = vmatpush2.msra.mxu0 0.0
  %281 = vmatprep.subr.mxu0 0.0
  %282 = vmatpush2.msra.mxu0 0.0
  %283 = vmatprep.subr.mxu0 0.0
  %284 = vmatpush2.msra.mxu0 0.0
  %285 = vmatprep.subr.mxu0 0.0
  %286 = vmatpush2.msra.mxu0 0.0
  %287 = vmatprep.subr.mxu0 0.0
  %288 = vmatpush2.msra.mxu0 0.0
  %289 = vmatprep.subr.mxu0 0.0
  %290 = vmatpush2.msra.mxu0 0.0
  %291 = vmatprep.subr.mxu0 0.0
  %292 = vmatpush2.msra.mxu0 0.0
  %293 = vmatprep.subr.mxu0 0.0
  %294 = vmatpush2.msra.mxu0 0.0
  %295 = vmatprep.subr.mxu0 0.0
  %296 = vmatpush2.msra.mxu0 0.0
  %297 = vmatprep.subr.mxu0 0.0
  %298 = vmatpush2.msra.mxu0 0.0
  %299 = vmatprep.subr.mxu0 0.0
  %300 = vmatpush2.msra.mxu0 0.0
  %301 = vmatprep.mubr.f32.mxu0 0.0
  %302 = vmatmul.mubr.f32.gmra.mxu0 %v225
  %v303 = vpop.f32.mrf.mxu0
  %v304 = vadd.f32 %v209, %v303
  %v305 = vpop.f32.mrf.mxu0
  %v306 = vadd.f32 %v211, %v305
  %307 = vmatprep.mubr.f32.mxu0 0.0
  %308 = vmatmul.mubr.f32.gmra.mxu0 %v227
  %v309 = vpop.f32.mrf.mxu0
  %v310 = vadd.f32 %v215, %v309
  %v311 = vpop.f32.mrf.mxu0
  %v312 = vadd.f32 %v217, %v311
  %313 = vmatprep.mubr.f32.mxu0 0.0
  %314 = vmatmul.mubr.f32.gmra.mxu0 %v229
  %v315 = vpop.f32.mrf.mxu0
  %v316 = vadd.f32 %v221, %v315
  %v317 = vpop.f32.mrf.mxu0
  %v318 = vadd.f32 %v223, %v317
  %319 = vdwg.mxu0
  %s320 = scalar_lea.vmem %s1, 128
  %v321 = vld [vmem:[%s320] sm:$0xff]
  %v322 = vld [vmem:[%s320 + $0x8] sm:$0xff]
  %v323 = vld [vmem:[%s320 + $0x10] sm:$0xff]
  %v324 = vld [vmem:[%s320 + $0x18] sm:$0xff]
  %v325 = vld [vmem:[%s320 + $0x20] sm:$0xff]
  %v326 = vld [vmem:[%s320 + $0x28] sm:$0xff]
  %v327 = vld [vmem:[%s320 + $0x30] sm:$0xf]
  %v328 = vld [vmem:[%s320 + $0x38] sm:$0xf]
  %vm329 = vcmask 1045504
  %v330 = vrot.slane %v98, 2
  %v331 = vrot.slane %v99, 2
  %v332 = vsel %vm329, %v330, %v331
  %v333 = vrot.slane %v100, 2
  %v334 = vsel %vm329, %v331, %v333
  %v335 = vsel %vm128, %v332, 0
  %v337 = vsel %vm128, %v334, 0
  %v339 = vsel %vm128, %v333, 0
  %v342 = vsel %vm135, %v327, 0
  %v345 = vsel %vm135, %v328, 0
  %347 = vmatprep.subr.mxu0 0.0
  %348 = vmatpush1.msra.mxu0 0.0
  %349 = vmatprep.subr.mxu0 0.0
  %350 = vmatpush1.msra.mxu0 0.0
  %351 = vmatprep.subr.mxu0 0.0
  %352 = vmatpush1.msra.mxu0 0.0
  %353 = vmatprep.subr.mxu0 0.0
  %354 = vmatpush1.msra.mxu0 0.0
  %355 = vmatprep.subr.mxu0 0.0
  %356 = vmatpush1.msra.mxu0 0.0
  %357 = vmatprep.subr.mxu0 0.0
  %358 = vmatpush1.msra.mxu0 0.0
  %359 = vmatprep.subr.mxu0 0.0
  %360 = vmatpush1.msra.mxu0 0.0
  %361 = vmatprep.subr.mxu0 0.0
  %362 = vmatpush1.msra.mxu0 0.0
  %363 = vmatprep.subr.mxu0 0.0
  %364 = vmatpush1.msra.mxu0 0.0
  %365 = vmatprep.subr.mxu0 0.0
  %366 = vmatpush1.msra.mxu0 0.0
  %367 = vmatprep.subr.mxu0 0.0
  %368 = vmatpush1.msra.mxu0 0.0
  %369 = vmatprep.subr.mxu0 0.0
  %370 = vmatpush1.msra.mxu0 0.0
  %371 = vmatprep.subr.mxu0 %v345
  %372 = vmatpush1.msra.mxu0 %v342
  %373 = vmatprep.subr.mxu0 %v326
  %374 = vmatpush1.msra.mxu0 %v325
  %375 = vmatprep.subr.mxu0 %v324
  %376 = vmatpush1.msra.mxu0 %v323
  %377 = vmatprep.subr.mxu0 %v322
  %378 = vmatpush1.msra.mxu0 %v321
  %379 = vmatprep.subr.mxu0 0.0
  %380 = vmatpush2.msra.mxu0 0.0
  %381 = vmatprep.subr.mxu0 0.0
  %382 = vmatpush2.msra.mxu0 0.0
  %383 = vmatprep.subr.mxu0 0.0
  %384 = vmatpush2.msra.mxu0 0.0
  %385 = vmatprep.subr.mxu0 0.0
  %386 = vmatpush2.msra.mxu0 0.0
  %387 = vmatprep.subr.mxu0 0.0
  %388 = vmatpush2.msra.mxu0 0.0
  %389 = vmatprep.subr.mxu0 0.0
  %390 = vmatpush2.msra.mxu0 0.0
  %391 = vmatprep.subr.mxu0 0.0
  %392 = vmatpush2.msra.mxu0 0.0
  %393 = vmatprep.subr.mxu0 0.0
  %394 = vmatpush2.msra.mxu0 0.0
  %395 = vmatprep.subr.mxu0 0.0
  %396 = vmatpush2.msra.mxu0 0.0
  %397 = vmatprep.subr.mxu0 0.0
  %398 = vmatpush2.msra.mxu0 0.0
  %399 = vmatprep.subr.mxu0 0.0
  %400 = vmatpush2.msra.mxu0 0.0
  %401 = vmatprep.subr.mxu0 0.0
  %402 = vmatpush2.msra.mxu0 0.0
  %403 = vmatprep.subr.mxu0 0.0
  %404 = vmatpush2.msra.mxu0 0.0
  %405 = vmatprep.subr.mxu0 0.0
  %406 = vmatpush2.msra.mxu0 0.0
  %407 = vmatprep.subr.mxu0 0.0
  %408 = vmatpush2.msra.mxu0 0.0
  %409 = vmatprep.subr.mxu0 0.0
  %410 = vmatpush2.msra.mxu0 0.0
  %411 = vmatprep.mubr.f32.mxu0 0.0
  %412 = vmatmul.mubr.f32.gmra.mxu0 %v335
  %v413 = vpop.f32.mrf.mxu0
  %v414 = vadd.f32 0.0, %v413
  %v415 = vpop.f32.mrf.mxu0
  %v416 = vadd.f32 0.0, %v415
  %417 = vmatprep.mubr.f32.mxu0 0.0
  %418 = vmatmul.mubr.f32.gmra.mxu0 %v337
  %v419 = vpop.f32.mrf.mxu0
  %v420 = vadd.f32 0.0, %v419
  %v421 = vpop.f32.mrf.mxu0
  %v422 = vadd.f32 0.0, %v421
  %423 = vmatprep.mubr.f32.mxu0 0.0
  %424 = vmatmul.mubr.f32.gmra.mxu0 %v339
  %v425 = vpop.f32.mrf.mxu0
  %v426 = vadd.f32 0.0, %v425
  %v427 = vpop.f32.mrf.mxu0
  %v428 = vadd.f32 0.0, %v427
  %429 = vdwg.mxu0
  %v430 = vadd.f32 %v304, %v414
  %v431 = vadd.f32 %v306, %v416
  %v432 = vadd.f32 %v310, %v420
  %v433 = vadd.f32 %v312, %v422
  %v434 = vadd.f32 %v316, %v426
  %v435 = vadd.f32 %v318, %v428
  %s436 = scalar_lea.vmem %s1, 192
  %v437 = vld [vmem:[%s436] sm:$0xff]
  %v438 = vld [vmem:[%s436 + $0x8] sm:$0xff]
  %v439 = vld [vmem:[%s436 + $0x10] sm:$0xff]
  %v440 = vld [vmem:[%s436 + $0x18] sm:$0xff]
  %v441 = vld [vmem:[%s436 + $0x20] sm:$0xff]
  %v442 = vld [vmem:[%s436 + $0x28] sm:$0xff]
  %v443 = vld [vmem:[%s436 + $0x30] sm:$0xf]
  %v444 = vld [vmem:[%s436 + $0x38] sm:$0xf]
  %vm446 = vcmask 1044480
  %v447 = vrot.slane %v98, 3
  %v448 = vrot.slane %v99, 3
  %v449 = vsel %vm446, %v447, %v448
  %v450 = vrot.slane %v100, 3
  %v451 = vsel %vm446, %v448, %v450
  %v452 = vrot.slane %v101, 3
  %v453 = vsel %vm446, %v450, %v452
  %v454 = vsel %vm128, %v449, 0
  %v456 = vsel %vm128, %v451, 0
  %v458 = vsel %vm128, %v453, 0
  %v461 = vsel %vm135, %v443, 0
  %v464 = vsel %vm135, %v444, 0
  %466 = vmatprep.subr.mxu0 0.0
  %467 = vmatpush1.msra.mxu0 0.0
  %468 = vmatprep.subr.mxu0 0.0
  %469 = vmatpush1.msra.mxu0 0.0
  %470 = vmatprep.subr.mxu0 0.0
  %471 = vmatpush1.msra.mxu0 0.0
  %472 = vmatprep.subr.mxu0 0.0
  %473 = vmatpush1.msra.mxu0 0.0
  %474 = vmatprep.subr.mxu0 0.0
  %475 = vmatpush1.msra.mxu0 0.0
  %476 = vmatprep.subr.mxu0 0.0
  %477 = vmatpush1.msra.mxu0 0.0
  %478 = vmatprep.subr.mxu0 0.0
  %479 = vmatpush1.msra.mxu0 0.0
  %480 = vmatprep.subr.mxu0 0.0
  %481 = vmatpush1.msra.mxu0 0.0
  %482 = vmatprep.subr.mxu0 0.0
  %483 = vmatpush1.msra.mxu0 0.0
  %484 = vmatprep.subr.mxu0 0.0
  %485 = vmatpush1.msra.mxu0 0.0
  %486 = vmatprep.subr.mxu0 0.0
  %487 = vmatpush1.msra.mxu0 0.0
  %488 = vmatprep.subr.mxu0 0.0
  %489 = vmatpush1.msra.mxu0 0.0
  %490 = vmatprep.subr.mxu0 %v464
  %491 = vmatpush1.msra.mxu0 %v461
  %492 = vmatprep.subr.mxu0 %v442
  %493 = vmatpush1.msra.mxu0 %v441
  %494 = vmatprep.subr.mxu0 %v440
  %495 = vmatpush1.msra.mxu0 %v439
  %496 = vmatprep.subr.mxu0 %v438
  %497 = vmatpush1.msra.mxu0 %v437
  %498 = vmatprep.subr.mxu0 0.0
  %499 = vmatpush2.msra.mxu0 0.0
  %500 = vmatprep.subr.mxu0 0.0
  %501 = vmatpush2.msra.mxu0 0.0
  %502 = vmatprep.subr.mxu0 0.0
  %503 = vmatpush2.msra.mxu0 0.0
  %504 = vmatprep.subr.mxu0 0.0
  %505 = vmatpush2.msra.mxu0 0.0
  %506 = vmatprep.subr.mxu0 0.0
  %507 = vmatpush2.msra.mxu0 0.0
  %508 = vmatprep.subr.mxu0 0.0
  %509 = vmatpush2.msra.mxu0 0.0
  %510 = vmatprep.subr.mxu0 0.0
  %511 = vmatpush2.msra.mxu0 0.0
  %512 = vmatprep.subr.mxu0 0.0
  %513 = vmatpush2.msra.mxu0 0.0
  %514 = vmatprep.subr.mxu0 0.0
  %515 = vmatpush2.msra.mxu0 0.0
  %516 = vmatprep.subr.mxu0 0.0
  %517 = vmatpush2.msra.mxu0 0.0
  %518 = vmatprep.subr.mxu0 0.0
  %519 = vmatpush2.msra.mxu0 0.0
  %520 = vmatprep.subr.mxu0 0.0
  %521 = vmatpush2.msra.mxu0 0.0
  %522 = vmatprep.subr.mxu0 0.0
  %523 = vmatpush2.msra.mxu0 0.0
  %524 = vmatprep.subr.mxu0 0.0
  %525 = vmatpush2.msra.mxu0 0.0
  %526 = vmatprep.subr.mxu0 0.0
  %527 = vmatpush2.msra.mxu0 0.0
  %528 = vmatprep.subr.mxu0 0.0
  %529 = vmatpush2.msra.mxu0 0.0
  %530 = vmatprep.mubr.f32.mxu0 0.0
  %531 = vmatmul.mubr.f32.gmra.mxu0 %v454
  %v532 = vpop.f32.mrf.mxu0
  %v533 = vadd.f32 0.0, %v532
  %v534 = vpop.f32.mrf.mxu0
  %v535 = vadd.f32 0.0, %v534
  %536 = vmatprep.mubr.f32.mxu0 0.0
  %537 = vmatmul.mubr.f32.gmra.mxu0 %v456
  %v538 = vpop.f32.mrf.mxu0
  %v539 = vadd.f32 0.0, %v538
  %v540 = vpop.f32.mrf.mxu0
  %v541 = vadd.f32 0.0, %v540
  %542 = vmatprep.mubr.f32.mxu0 0.0
  %543 = vmatmul.mubr.f32.gmra.mxu0 %v458
  %v544 = vpop.f32.mrf.mxu0
  %v545 = vadd.f32 0.0, %v544
  %v546 = vpop.f32.mrf.mxu0
  %v547 = vadd.f32 0.0, %v546
  %548 = vdwg.mxu0
  %v549 = vadd.f32 %v430, %v533
  %v550 = vadd.f32 %v431, %v535
  %v551 = vadd.f32 %v432, %v539
  %v552 = vadd.f32 %v433, %v541
  %v553 = vadd.f32 %v434, %v545
  %v554 = vadd.f32 %v435, %v547
  %s555 = scalar_lea.vmem %s1, 256
  %v556 = vld [vmem:[%s555] sm:$0xff]
  %v557 = vld [vmem:[%s555 + $0x8] sm:$0xff]
  %v558 = vld [vmem:[%s555 + $0x10] sm:$0xff]
  %v559 = vld [vmem:[%s555 + $0x18] sm:$0xff]
  %v560 = vld [vmem:[%s555 + $0x20] sm:$0xff]
  %v561 = vld [vmem:[%s555 + $0x28] sm:$0xff]
  %v562 = vld [vmem:[%s555 + $0x30] sm:$0xf]
  %v563 = vld [vmem:[%s555 + $0x38] sm:$0xf]
  %v564 = vrot.slane %v98, 4
  %v565 = vrot.slane %v99, 4
  %v566 = vsel %vm135, %v564, %v565
  %v567 = vrot.slane %v100, 4
  %v568 = vsel %vm135, %v565, %v567
  %v569 = vrot.slane %v101, 4
  %v570 = vsel %vm135, %v567, %v569
  %v571 = vsel %vm128, %v566, 0
  %v573 = vsel %vm128, %v568, 0
  %v575 = vsel %vm128, %v570, 0
  %v578 = vsel %vm135, %v562, 0
  %v581 = vsel %vm135, %v563, 0
  %583 = vmatprep.subr.mxu0 0.0
  %584 = vmatpush1.msra.mxu0 0.0
  %585 = vmatprep.subr.mxu0 0.0
  %586 = vmatpush1.msra.mxu0 0.0
  %587 = vmatprep.subr.mxu0 0.0
  %588 = vmatpush1.msra.mxu0 0.0
  %589 = vmatprep.subr.mxu0 0.0
  %590 = vmatpush1.msra.mxu0 0.0
  %591 = vmatprep.subr.mxu0 0.0
  %592 = vmatpush1.msra.mxu0 0.0
  %593 = vmatprep.subr.mxu0 0.0
  %594 = vmatpush1.msra.mxu0 0.0
  %595 = vmatprep.subr.mxu0 0.0
  %596 = vmatpush1.msra.mxu0 0.0
  %597 = vmatprep.subr.mxu0 0.0
  %598 = vmatpush1.msra.mxu0 0.0
  %599 = vmatprep.subr.mxu0 0.0
  %600 = vmatpush1.msra.mxu0 0.0
  %601 = vmatprep.subr.mxu0 0.0
  %602 = vmatpush1.msra.mxu0 0.0
  %603 = vmatprep.subr.mxu0 0.0
  %604 = vmatpush1.msra.mxu0 0.0
  %605 = vmatprep.subr.mxu0 0.0
  %606 = vmatpush1.msra.mxu0 0.0
  %607 = vmatprep.subr.mxu0 %v581
  %608 = vmatpush1.msra.mxu0 %v578
  %609 = vmatprep.subr.mxu0 %v561
  %610 = vmatpush1.msra.mxu0 %v560
  %611 = vmatprep.subr.mxu0 %v559
  %612 = vmatpush1.msra.mxu0 %v558
  %613 = vmatprep.subr.mxu0 %v557
  %614 = vmatpush1.msra.mxu0 %v556
  %615 = vmatprep.subr.mxu0 0.0
  %616 = vmatpush2.msra.mxu0 0.0
  %617 = vmatprep.subr.mxu0 0.0
  %618 = vmatpush2.msra.mxu0 0.0
  %619 = vmatprep.subr.mxu0 0.0
  %620 = vmatpush2.msra.mxu0 0.0
  %621 = vmatprep.subr.mxu0 0.0
  %622 = vmatpush2.msra.mxu0 0.0
  %623 = vmatprep.subr.mxu0 0.0
  %624 = vmatpush2.msra.mxu0 0.0
  %625 = vmatprep.subr.mxu0 0.0
  %626 = vmatpush2.msra.mxu0 0.0
  %627 = vmatprep.subr.mxu0 0.0
  %628 = vmatpush2.msra.mxu0 0.0
  %629 = vmatprep.subr.mxu0 0.0
  %630 = vmatpush2.msra.mxu0 0.0
  %631 = vmatprep.subr.mxu0 0.0
  %632 = vmatpush2.msra.mxu0 0.0
  %633 = vmatprep.subr.mxu0 0.0
  %634 = vmatpush2.msra.mxu0 0.0
  %635 = vmatprep.subr.mxu0 0.0
  %636 = vmatpush2.msra.mxu0 0.0
  %637 = vmatprep.subr.mxu0 0.0
  %638 = vmatpush2.msra.mxu0 0.0
  %639 = vmatprep.subr.mxu0 0.0
  %640 = vmatpush2.msra.mxu0 0.0
  %641 = vmatprep.subr.mxu0 0.0
  %642 = vmatpush2.msra.mxu0 0.0
  %643 = vmatprep.subr.mxu0 0.0
  %644 = vmatpush2.msra.mxu0 0.0
  %645 = vmatprep.subr.mxu0 0.0
  %646 = vmatpush2.msra.mxu0 0.0
  %647 = vmatprep.mubr.f32.mxu0 0.0
  %648 = vmatmul.mubr.f32.gmra.mxu0 %v571
  %v649 = vpop.f32.mrf.mxu0
  %v650 = vadd.f32 0.0, %v649
  %v651 = vpop.f32.mrf.mxu0
  %v652 = vadd.f32 0.0, %v651
  %653 = vmatprep.mubr.f32.mxu0 0.0
  %654 = vmatmul.mubr.f32.gmra.mxu0 %v573
  %v655 = vpop.f32.mrf.mxu0
  %v656 = vadd.f32 0.0, %v655
  %v657 = vpop.f32.mrf.mxu0
  %v658 = vadd.f32 0.0, %v657
  %659 = vmatprep.mubr.f32.mxu0 0.0
  %660 = vmatmul.mubr.f32.gmra.mxu0 %v575
  %v661 = vpop.f32.mrf.mxu0
  %v662 = vadd.f32 0.0, %v661
  %v663 = vpop.f32.mrf.mxu0
  %v664 = vadd.f32 0.0, %v663
  %665 = vdwg.mxu0
  %v666 = vadd.f32 %v549, %v650
  %v667 = vadd.f32 %v550, %v652
  %v668 = vadd.f32 %v551, %v656
  %v669 = vadd.f32 %v552, %v658
  %v670 = vadd.f32 %v553, %v662
  %v671 = vadd.f32 %v554, %v664
  %s672 = scalar_lea.vmem %s1, 320
  %v673 = vld [vmem:[%s672] sm:$0xff]
  %v674 = vld [vmem:[%s672 + $0x8] sm:$0xff]
  %v675 = vld [vmem:[%s672 + $0x10] sm:$0xff]
  %v676 = vld [vmem:[%s672 + $0x18] sm:$0xff]
  %v677 = vld [vmem:[%s672 + $0x20] sm:$0xff]
  %v678 = vld [vmem:[%s672 + $0x28] sm:$0xff]
  %v679 = vld [vmem:[%s672 + $0x30] sm:$0xf]
  %v680 = vld [vmem:[%s672 + $0x38] sm:$0xf]
  %vm681 = vcmask 1042432
  %v682 = vrot.slane %v98, 5
  %v683 = vrot.slane %v99, 5
  %v684 = vsel %vm681, %v682, %v683
  %v685 = vrot.slane %v100, 5
  %v686 = vsel %vm681, %v683, %v685
  %v687 = vrot.slane %v101, 5
  %v688 = vsel %vm681, %v685, %v687
  %v689 = vsel %vm128, %v684, 0
  %v691 = vsel %vm128, %v686, 0
  %v693 = vsel %vm128, %v688, 0
  %v696 = vsel %vm135, %v679, 0
  %v699 = vsel %vm135, %v680, 0
  %701 = vmatprep.subr.mxu0 0.0
  %702 = vmatpush1.msra.mxu0 0.0
  %703 = vmatprep.subr.mxu0 0.0
  %704 = vmatpush1.msra.mxu0 0.0
  %705 = vmatprep.subr.mxu0 0.0
  %706 = vmatpush1.msra.mxu0 0.0
  %707 = vmatprep.subr.mxu0 0.0
  %708 = vmatpush1.msra.mxu0 0.0
  %709 = vmatprep.subr.mxu0 0.0
  %710 = vmatpush1.msra.mxu0 0.0
  %711 = vmatprep.subr.mxu0 0.0
  %712 = vmatpush1.msra.mxu0 0.0
  %713 = vmatprep.subr.mxu0 0.0
  %714 = vmatpush1.msra.mxu0 0.0
  %715 = vmatprep.subr.mxu0 0.0
  %716 = vmatpush1.msra.mxu0 0.0
  %717 = vmatprep.subr.mxu0 0.0
  %718 = vmatpush1.msra.mxu0 0.0
  %719 = vmatprep.subr.mxu0 0.0
  %720 = vmatpush1.msra.mxu0 0.0
  %721 = vmatprep.subr.mxu0 0.0
  %722 = vmatpush1.msra.mxu0 0.0
  %723 = vmatprep.subr.mxu0 0.0
  %724 = vmatpush1.msra.mxu0 0.0
  %725 = vmatprep.subr.mxu0 %v699
  %726 = vmatpush1.msra.mxu0 %v696
  %727 = vmatprep.subr.mxu0 %v678
  %728 = vmatpush1.msra.mxu0 %v677
  %729 = vmatprep.subr.mxu0 %v676
  %730 = vmatpush1.msra.mxu0 %v675
  %731 = vmatprep.subr.mxu0 %v674
  %732 = vmatpush1.msra.mxu0 %v673
  %733 = vmatprep.subr.mxu0 0.0
  %734 = vmatpush2.msra.mxu0 0.0
  %735 = vmatprep.subr.mxu0 0.0
  %736 = vmatpush2.msra.mxu0 0.0
  %737 = vmatprep.subr.mxu0 0.0
  %738 = vmatpush2.msra.mxu0 0.0
  %739 = vmatprep.subr.mxu0 0.0
  %740 = vmatpush2.msra.mxu0 0.0
  %741 = vmatprep.subr.mxu0 0.0
  %742 = vmatpush2.msra.mxu0 0.0
  %743 = vmatprep.subr.mxu0 0.0
  %744 = vmatpush2.msra.mxu0 0.0
  %745 = vmatprep.subr.mxu0 0.0
  %746 = vmatpush2.msra.mxu0 0.0
  %747 = vmatprep.subr.mxu0 0.0
  %748 = vmatpush2.msra.mxu0 0.0
  %749 = vmatprep.subr.mxu0 0.0
  %750 = vmatpush2.msra.mxu0 0.0
  %751 = vmatprep.subr.mxu0 0.0
  %752 = vmatpush2.msra.mxu0 0.0
  %753 = vmatprep.subr.mxu0 0.0
  %754 = vmatpush2.msra.mxu0 0.0
  %755 = vmatprep.subr.mxu0 0.0
  %756 = vmatpush2.msra.mxu0 0.0
  %757 = vmatprep.subr.mxu0 0.0
  %758 = vmatpush2.msra.mxu0 0.0
  %759 = vmatprep.subr.mxu0 0.0
  %760 = vmatpush2.msra.mxu0 0.0
  %761 = vmatprep.subr.mxu0 0.0
  %762 = vmatpush2.msra.mxu0 0.0
  %763 = vmatprep.subr.mxu0 0.0
  %764 = vmatpush2.msra.mxu0 0.0
  %765 = vmatprep.mubr.f32.mxu0 0.0
  %766 = vmatmul.mubr.f32.gmra.mxu0 %v689
  %v767 = vpop.f32.mrf.mxu0
  %v768 = vadd.f32 0.0, %v767
  %v769 = vpop.f32.mrf.mxu0
  %v770 = vadd.f32 0.0, %v769
  %771 = vmatprep.mubr.f32.mxu0 0.0
  %772 = vmatmul.mubr.f32.gmra.mxu0 %v691
  %v773 = vpop.f32.mrf.mxu0
  %v774 = vadd.f32 0.0, %v773
  %v775 = vpop.f32.mrf.mxu0
  %v776 = vadd.f32 0.0, %v775
  %777 = vmatprep.mubr.f32.mxu0 0.0
  %778 = vmatmul.mubr.f32.gmra.mxu0 %v693
  %v779 = vpop.f32.mrf.mxu0
  %v780 = vadd.f32 0.0, %v779
  %v781 = vpop.f32.mrf.mxu0
  %v782 = vadd.f32 0.0, %v781
  %783 = vdwg.mxu0
  %v784 = vadd.f32 %v666, %v768
  %v785 = vadd.f32 %v667, %v770
  %v786 = vadd.f32 %v668, %v774
  %v787 = vadd.f32 %v669, %v776
  %v788 = vadd.f32 %v670, %v780
  %v789 = vadd.f32 %v671, %v782
  %s790 = scalar_lea.vmem %s1, 384
  %v791 = vld [vmem:[%s790] sm:$0xff]
  %v792 = vld [vmem:[%s790 + $0x8] sm:$0xff]
  %v793 = vld [vmem:[%s790 + $0x10] sm:$0xff]
  %v794 = vld [vmem:[%s790 + $0x18] sm:$0xff]
  %v795 = vld [vmem:[%s790 + $0x20] sm:$0xff]
  %v796 = vld [vmem:[%s790 + $0x28] sm:$0xff]
  %v797 = vld [vmem:[%s790 + $0x30] sm:$0xf]
  %v798 = vld [vmem:[%s790 + $0x38] sm:$0xf]
  %vm799 = vcmask 1041408
  %v800 = vrot.slane %v98, 6
  %v801 = vrot.slane %v99, 6
  %v802 = vsel %vm799, %v800, %v801
  %v803 = vrot.slane %v100, 6
  %v804 = vsel %vm799, %v801, %v803
  %v805 = vrot.slane %v101, 6
  %v806 = vsel %vm799, %v803, %v805
  %v807 = vsel %vm128, %v802, 0
  %v809 = vsel %vm128, %v804, 0
  %v811 = vsel %vm128, %v806, 0
  %v814 = vsel %vm135, %v797, 0
  %v817 = vsel %vm135, %v798, 0
  %819 = vmatprep.subr.mxu0 0.0
  %820 = vmatpush1.msra.mxu0 0.0
  %821 = vmatprep.subr.mxu0 0.0
  %822 = vmatpush1.msra.mxu0 0.0
  %823 = vmatprep.subr.mxu0 0.0
  %824 = vmatpush1.msra.mxu0 0.0
  %825 = vmatprep.subr.mxu0 0.0
  %826 = vmatpush1.msra.mxu0 0.0
  %827 = vmatprep.subr.mxu0 0.0
  %828 = vmatpush1.msra.mxu0 0.0
  %829 = vmatprep.subr.mxu0 0.0
  %830 = vmatpush1.msra.mxu0 0.0
  %831 = vmatprep.subr.mxu0 0.0
  %832 = vmatpush1.msra.mxu0 0.0
  %833 = vmatprep.subr.mxu0 0.0
  %834 = vmatpush1.msra.mxu0 0.0
  %835 = vmatprep.subr.mxu0 0.0
  %836 = vmatpush1.msra.mxu0 0.0
  %837 = vmatprep.subr.mxu0 0.0
  %838 = vmatpush1.msra.mxu0 0.0
  %839 = vmatprep.subr.mxu0 0.0
  %840 = vmatpush1.msra.mxu0 0.0
  %841 = vmatprep.subr.mxu0 0.0
  %842 = vmatpush1.msra.mxu0 0.0
  %843 = vmatprep.subr.mxu0 %v817
  %844 = vmatpush1.msra.mxu0 %v814
  %845 = vmatprep.subr.mxu0 %v796
  %846 = vmatpush1.msra.mxu0 %v795
  %847 = vmatprep.subr.mxu0 %v794
  %848 = vmatpush1.msra.mxu0 %v793
  %849 = vmatprep.subr.mxu0 %v792
  %850 = vmatpush1.msra.mxu0 %v791
  %851 = vmatprep.subr.mxu0 0.0
  %852 = vmatpush2.msra.mxu0 0.0
  %853 = vmatprep.subr.mxu0 0.0
  %854 = vmatpush2.msra.mxu0 0.0
  %855 = vmatprep.subr.mxu0 0.0
  %856 = vmatpush2.msra.mxu0 0.0
  %857 = vmatprep.subr.mxu0 0.0
  %858 = vmatpush2.msra.mxu0 0.0
  %859 = vmatprep.subr.mxu0 0.0
  %860 = vmatpush2.msra.mxu0 0.0
  %861 = vmatprep.subr.mxu0 0.0
  %862 = vmatpush2.msra.mxu0 0.0
  %863 = vmatprep.subr.mxu0 0.0
  %864 = vmatpush2.msra.mxu0 0.0
  %865 = vmatprep.subr.mxu0 0.0
  %866 = vmatpush2.msra.mxu0 0.0
  %867 = vmatprep.subr.mxu0 0.0
  %868 = vmatpush2.msra.mxu0 0.0
  %869 = vmatprep.subr.mxu0 0.0
  %870 = vmatpush2.msra.mxu0 0.0
  %871 = vmatprep.subr.mxu0 0.0
  %872 = vmatpush2.msra.mxu0 0.0
  %873 = vmatprep.subr.mxu0 0.0
  %874 = vmatpush2.msra.mxu0 0.0
  %875 = vmatprep.subr.mxu0 0.0
  %876 = vmatpush2.msra.mxu0 0.0
  %877 = vmatprep.subr.mxu0 0.0
  %878 = vmatpush2.msra.mxu0 0.0
  %879 = vmatprep.subr.mxu0 0.0
  %880 = vmatpush2.msra.mxu0 0.0
  %881 = vmatprep.subr.mxu0 0.0
  %882 = vmatpush2.msra.mxu0 0.0
  %883 = vmatprep.mubr.f32.mxu0 0.0
  %884 = vmatmul.mubr.f32.gmra.mxu0 %v807
  %v885 = vpop.f32.mrf.mxu0
  %v886 = vadd.f32 0.0, %v885
  %v887 = vpop.f32.mrf.mxu0
  %v888 = vadd.f32 0.0, %v887
  %889 = vmatprep.mubr.f32.mxu0 0.0
  %890 = vmatmul.mubr.f32.gmra.mxu0 %v809
  %v891 = vpop.f32.mrf.mxu0
  %v892 = vadd.f32 0.0, %v891
  %v893 = vpop.f32.mrf.mxu0
  %v894 = vadd.f32 0.0, %v893
  %895 = vmatprep.mubr.f32.mxu0 0.0
  %896 = vmatmul.mubr.f32.gmra.mxu0 %v811
  %v897 = vpop.f32.mrf.mxu0
  %v898 = vadd.f32 0.0, %v897
  %v899 = vpop.f32.mrf.mxu0
  %v900 = vadd.f32 0.0, %v899
  %901 = vdwg.mxu0
  %v902 = vadd.f32 %v784, %v886
  %v903 = vadd.f32 %v785, %v888
  %v904 = vadd.f32 %v786, %v892
  %v905 = vadd.f32 %v787, %v894
  %v906 = vadd.f32 %v788, %v898
  %v907 = vadd.f32 %v789, %v900
  %v908 = vld [vmem:[%s2] sm:$0x3]
  %v910 = vlaneseq
  %v911 = vshrl.u32 %v910, 7
  %v912 = vsub.s32 0, %v911
  %v913 = vrot.slane %v908, %v912
  %v914 = vlaneseq
  %v915 = vshrl.u32 %v914, 7
  %v916 = vsub.s32 1, %v915
  %v917 = vrot.slane %v908, %v916
  %v920 = vadd.f32 %v902, %v913
  %v921 = vadd.f32 %v903, %v917
  %v922 = vadd.f32 %v904, %v913
  %v923 = vadd.f32 %v905, %v917
  %v924 = vadd.f32 %v906, %v913
  %v925 = vadd.f32 %v907, %v917
  %v926 = vld [vmem:[%s3] sm:$0xff]
  %v927 = vld [vmem:[%s3 + $0x8] sm:$0x7]
  %vm928 = vcmask 179200
  %v930 = vsel %vm928, %v926, 0
  %v933 = vsel %vm928, %v927, 0
  %v936 = vsel %vm329, %v924, 0
  %v939 = vsel %vm329, %v925, 0
  %941 = vmatprep.subr.mxu0 0.0
  %942 = vmatpush1.msra.mxu0 0.0
  %943 = vmatprep.subr.mxu0 0.0
  %944 = vmatpush1.msra.mxu0 0.0
  %945 = vmatprep.subr.mxu0 0.0
  %946 = vmatpush1.msra.mxu0 0.0
  %947 = vmatprep.subr.mxu0 0.0
  %948 = vmatpush1.msra.mxu0 0.0
  %949 = vmatprep.subr.mxu0 0.0
  %950 = vmatpush1.msra.mxu0 0.0
  %951 = vmatprep.subr.mxu0 0.0
  %952 = vmatpush1.msra.mxu0 0.0
  %953 = vmatprep.subr.mxu0 0.0
  %954 = vmatpush1.msra.mxu0 0.0
  %955 = vmatprep.subr.mxu0 0.0
  %956 = vmatpush1.msra.mxu0 0.0
  %957 = vmatprep.subr.mxu0 0.0
  %958 = vmatpush1.msra.mxu0 0.0
  %959 = vmatprep.subr.mxu0 0.0
  %960 = vmatpush1.msra.mxu0 0.0
  %961 = vmatprep.subr.mxu0 0.0
  %962 = vmatpush1.msra.mxu0 0.0
  %963 = vmatprep.subr.mxu0 0.0
  %964 = vmatpush1.msra.mxu0 0.0
  %965 = vmatprep.subr.mxu0 0.0
  %966 = vmatpush1.msra.mxu0 0.0
  %967 = vmatprep.subr.mxu0 %v939
  %968 = vmatpush1.msra.mxu0 %v936
  %969 = vmatprep.subr.mxu0 %v923
  %970 = vmatpush1.msra.mxu0 %v922
  %971 = vmatprep.subr.mxu0 %v921
  %972 = vmatpush1.msra.mxu0 %v920
  %973 = vmatprep.subr.mxu0 0.0
  %974 = vmatpush2.msra.mxu0 0.0
  %975 = vmatprep.subr.mxu0 0.0
  %976 = vmatpush2.msra.mxu0 0.0
  %977 = vmatprep.subr.mxu0 0.0
  %978 = vmatpush2.msra.mxu0 0.0
  %979 = vmatprep.subr.mxu0 0.0
  %980 = vmatpush2.msra.mxu0 0.0
  %981 = vmatprep.subr.mxu0 0.0
  %982 = vmatpush2.msra.mxu0 0.0
  %983 = vmatprep.subr.mxu0 0.0
  %984 = vmatpush2.msra.mxu0 0.0
  %985 = vmatprep.subr.mxu0 0.0
  %986 = vmatpush2.msra.mxu0 0.0
  %987 = vmatprep.subr.mxu0 0.0
  %988 = vmatpush2.msra.mxu0 0.0
  %989 = vmatprep.subr.mxu0 0.0
  %990 = vmatpush2.msra.mxu0 0.0
  %991 = vmatprep.subr.mxu0 0.0
  %992 = vmatpush2.msra.mxu0 0.0
  %993 = vmatprep.subr.mxu0 0.0
  %994 = vmatpush2.msra.mxu0 0.0
  %995 = vmatprep.subr.mxu0 0.0
  %996 = vmatpush2.msra.mxu0 0.0
  %997 = vmatprep.subr.mxu0 0.0
  %998 = vmatpush2.msra.mxu0 0.0
  %999 = vmatprep.subr.mxu0 0.0
  %1000 = vmatpush2.msra.mxu0 0.0
  %1001 = vmatprep.subr.mxu0 0.0
  %1002 = vmatpush2.msra.mxu0 0.0
  %1003 = vmatprep.subr.mxu0 0.0
  %1004 = vmatpush2.msra.mxu0 0.0
  %1005 = vmatprep.mubr.f32.mxu0 0.0
  %1006 = vmatmul.mubr.f32.gmra.mxu0 %v930
  %v1007 = vpop.f32.mrf.mxu0
  %v1008 = vadd.f32 0.0, %v1007
  %v1009 = vpop.f32.mrf.mxu0
  %v1010 = vadd.f32 0.0, %v1009
  %1011 = vmatprep.mubr.f32.mxu0 0.0
  %1012 = vmatmul.mubr.f32.gmra.mxu0 %v933
  %v1013 = vpop.f32.mrf.mxu0
  %v1014 = vadd.f32 0.0, %v1013
  %v1015 = vpop.f32.mrf.mxu0
  %v1016 = vadd.f32 0.0, %v1015
  %1017 = vdwg.mxu0
  %v1018 = vld [vmem:[%s4] sm:$0xff]
  %v1019 = vld [vmem:[%s4 + $0x8] sm:$0x7]
  %v1021 = vsel %vm928, %v1018, 0
  %v1024 = vsel %vm928, %v1019, 0
  %1026 = vmatprep.subr.mxu0 0.0
  %1027 = vmatpush1.msra.mxu0 0.0
  %1028 = vmatprep.subr.mxu0 0.0
  %1029 = vmatpush1.msra.mxu0 0.0
  %1030 = vmatprep.subr.mxu0 0.0
  %1031 = vmatpush1.msra.mxu0 0.0
  %1032 = vmatprep.subr.mxu0 0.0
  %1033 = vmatpush1.msra.mxu0 0.0
  %1034 = vmatprep.subr.mxu0 0.0
  %1035 = vmatpush1.msra.mxu0 0.0
  %1036 = vmatprep.subr.mxu0 0.0
  %1037 = vmatpush1.msra.mxu0 0.0
  %1038 = vmatprep.subr.mxu0 0.0
  %1039 = vmatpush1.msra.mxu0 0.0
  %1040 = vmatprep.subr.mxu0 0.0
  %1041 = vmatpush1.msra.mxu0 0.0
  %1042 = vmatprep.subr.mxu0 0.0
  %1043 = vmatpush1.msra.mxu0 0.0
  %1044 = vmatprep.subr.mxu0 0.0
  %1045 = vmatpush1.msra.mxu0 0.0
  %1046 = vmatprep.subr.mxu0 0.0
  %1047 = vmatpush1.msra.mxu0 0.0
  %1048 = vmatprep.subr.mxu0 0.0
  %1049 = vmatpush1.msra.mxu0 0.0
  %1050 = vmatprep.subr.mxu0 0.0
  %1051 = vmatpush1.msra.mxu0 0.0
  %1052 = vmatprep.subr.mxu0 %v939
  %1053 = vmatpush1.msra.mxu0 %v936
  %1054 = vmatprep.subr.mxu0 %v923
  %1055 = vmatpush1.msra.mxu0 %v922
  %1056 = vmatprep.subr.mxu0 %v921
  %1057 = vmatpush1.msra.mxu0 %v920
  %1058 = vmatprep.subr.mxu0 0.0
  %1059 = vmatpush2.msra.mxu0 0.0
  %1060 = vmatprep.subr.mxu0 0.0
  %1061 = vmatpush2.msra.mxu0 0.0
  %1062 = vmatprep.subr.mxu0 0.0
  %1063 = vmatpush2.msra.mxu0 0.0
  %1064 = vmatprep.subr.mxu0 0.0
  %1065 = vmatpush2.msra.mxu0 0.0
  %1066 = vmatprep.subr.mxu0 0.0
  %1067 = vmatpush2.msra.mxu0 0.0
  %1068 = vmatprep.subr.mxu0 0.0
  %1069 = vmatpush2.msra.mxu0 0.0
  %1070 = vmatprep.subr.mxu0 0.0
  %1071 = vmatpush2.msra.mxu0 0.0
  %1072 = vmatprep.subr.mxu0 0.0
  %1073 = vmatpush2.msra.mxu0 0.0
  %1074 = vmatprep.subr.mxu0 0.0
  %1075 = vmatpush2.msra.mxu0 0.0
  %1076 = vmatprep.subr.mxu0 0.0
  %1077 = vmatpush2.msra.mxu0 0.0
  %1078 = vmatprep.subr.mxu0 0.0
  %1079 = vmatpush2.msra.mxu0 0.0
  %1080 = vmatprep.subr.mxu0 0.0
  %1081 = vmatpush2.msra.mxu0 0.0
  %1082 = vmatprep.subr.mxu0 0.0
  %1083 = vmatpush2.msra.mxu0 0.0
  %1084 = vmatprep.subr.mxu0 0.0
  %1085 = vmatpush2.msra.mxu0 0.0
  %1086 = vmatprep.subr.mxu0 0.0
  %1087 = vmatpush2.msra.mxu0 0.0
  %1088 = vmatprep.subr.mxu0 0.0
  %1089 = vmatpush2.msra.mxu0 0.0
  %1090 = vmatprep.mubr.f32.mxu0 0.0
  %1091 = vmatmul.mubr.f32.gmra.mxu0 %v1021
  %v1092 = vpop.f32.mrf.mxu0
  %v1093 = vadd.f32 0.0, %v1092
  %v1094 = vpop.f32.mrf.mxu0
  %v1095 = vadd.f32 0.0, %v1094
  %1096 = vmatprep.mubr.f32.mxu0 0.0
  %1097 = vmatmul.mubr.f32.gmra.mxu0 %v1024
  %v1098 = vpop.f32.mrf.mxu0
  %v1099 = vadd.f32 0.0, %v1098
  %v1100 = vpop.f32.mrf.mxu0
  %v1101 = vadd.f32 0.0, %v1100
  %1102 = vdwg.mxu0
  %v1103 = vmax.f32 %v1008, %v1093
  %v1104 = vmax.f32 %v1010, %v1095
  %v1105 = vmax.f32 %v1014, %v1099
  %v1106 = vmax.f32 %v1016, %v1101
  %v1107 = vld [vmem:[%s5] sm:$0xff]
  %v1108 = vld [vmem:[%s5 + $0x8] sm:$0xff]
  %v1109 = vld [vmem:[%s5 + $0x10] sm:$0xff]
  %v1110 = vld [vmem:[%s5 + $0x18] sm:$0xff]
  %v1111 = vld [vmem:[%s5 + $0x20] sm:$0xff]
  %v1112 = vld [vmem:[%s5 + $0x28] sm:$0xff]
  %v1113 = vld [vmem:[%s5 + $0x30] sm:$0xff]
  %v1114 = vld [vmem:[%s5 + $0x38] sm:$0xff]
  %v1115 = vld [vmem:[%s5 + $0x40] sm:$0xff]
  %v1116 = vld [vmem:[%s5 + $0x48] sm:$0xff]
  %v1117 = vld [vmem:[%s5 + $0x50] sm:$0xff]
  %v1118 = vld [vmem:[%s5 + $0x58] sm:$0xff]
  %v1119 = vld [vmem:[%s5 + $0x60] sm:$0xff]
  %v1120 = vld [vmem:[%s5 + $0x68] sm:$0xff]
  %v1121 = vld [vmem:[%s5 + $0x70] sm:$0xff]
  %v1122 = vld [vmem:[%s5 + $0x78] sm:$0xff]
  %v1123 = vld [vmem:[%s5 + $0x80] sm:$0xff]
  %v1124 = vld [vmem:[%s5 + $0x88] sm:$0xff]
  %v1125 = vld [vmem:[%s5 + $0x90] sm:$0xff]
  %v1126 = vld [vmem:[%s5 + $0x98] sm:$0xff]
  %v1127 = vld [vmem:[%s5 + $0xa0] sm:$0xff]
  %v1128 = vld [vmem:[%s5 + $0xa8] sm:$0xff]
  %vm1129 = vcmask 392192
  %v1131 = vsel %vm1129, %v1104, 0
  %v1134 = vsel %vm1129, %v1106, 0
  %1136 = vmatprep.subr.mxu0 0.0
  %1137 = vmatpush1.msra.mxu0 %v1122
  %1138 = vmatprep.subr.mxu0 0.0
  %1139 = vmatpush1.msra.mxu0 %v1121
  %1140 = vmatprep.subr.mxu0 0.0
  %1141 = vmatpush1.msra.mxu0 %v1120
  %1142 = vmatprep.subr.mxu0 0.0
  %1143 = vmatpush1.msra.mxu0 %v1119
  %1144 = vmatprep.subr.mxu0 0.0
  %1145 = vmatpush1.msra.mxu0 %v1118
  %1146 = vmatprep.subr.mxu0 0.0
  %1147 = vmatpush1.msra.mxu0 %v1117
  %1148 = vmatprep.subr.mxu0 0.0
  %1149 = vmatpush1.msra.mxu0 %v1116
  %1150 = vmatprep.subr.mxu0 0.0
  %1151 = vmatpush1.msra.mxu0 %v1115
  %1152 = vmatprep.subr.mxu0 0.0
  %1153 = vmatpush1.msra.mxu0 %v1114
  %1154 = vmatprep.subr.mxu0 0.0
  %1155 = vmatpush1.msra.mxu0 %v1113
  %1156 = vmatprep.subr.mxu0 0.0
  %1157 = vmatpush1.msra.mxu0 %v1112
  %1158 = vmatprep.subr.mxu0 0.0
  %1159 = vmatpush1.msra.mxu0 %v1111
  %1160 = vmatprep.subr.mxu0 0.0
  %1161 = vmatpush1.msra.mxu0 %v1110
  %1162 = vmatprep.subr.mxu0 0.0
  %1163 = vmatpush1.msra.mxu0 %v1109
  %1164 = vmatprep.subr.mxu0 0.0
  %1165 = vmatpush1.msra.mxu0 %v1108
  %1166 = vmatprep.subr.mxu0 0.0
  %1167 = vmatpush1.msra.mxu0 %v1107
  %1168 = vmatprep.subr.mxu0 0.0
  %1169 = vmatpush2.msra.mxu0 0.0
  %1170 = vmatprep.subr.mxu0 0.0
  %1171 = vmatpush2.msra.mxu0 0.0
  %1172 = vmatprep.subr.mxu0 0.0
  %1173 = vmatpush2.msra.mxu0 0.0
  %1174 = vmatprep.subr.mxu0 0.0
  %1175 = vmatpush2.msra.mxu0 0.0
  %1176 = vmatprep.subr.mxu0 0.0
  %1177 = vmatpush2.msra.mxu0 0.0
  %1178 = vmatprep.subr.mxu0 0.0
  %1179 = vmatpush2.msra.mxu0 0.0
  %1180 = vmatprep.subr.mxu0 0.0
  %1181 = vmatpush2.msra.mxu0 0.0
  %1182 = vmatprep.subr.mxu0 0.0
  %1183 = vmatpush2.msra.mxu0 0.0
  %1184 = vmatprep.subr.mxu0 0.0
  %1185 = vmatpush2.msra.mxu0 0.0
  %1186 = vmatprep.subr.mxu0 0.0
  %1187 = vmatpush2.msra.mxu0 0.0
  %1188 = vmatprep.subr.mxu0 0.0
  %1189 = vmatpush2.msra.mxu0 %v1128
  %1190 = vmatprep.subr.mxu0 0.0
  %1191 = vmatpush2.msra.mxu0 %v1127
  %1192 = vmatprep.subr.mxu0 0.0
  %1193 = vmatpush2.msra.mxu0 %v1126
  %1194 = vmatprep.subr.mxu0 0.0
  %1195 = vmatpush2.msra.mxu0 %v1125
  %1196 = vmatprep.subr.mxu0 0.0
  %1197 = vmatpush2.msra.mxu0 %v1124
  %1198 = vmatprep.subr.mxu0 0.0
  %1199 = vmatpush2.msra.mxu0 %v1123
  %1200 = vmatprep.mubr.f32.mxu0 %v1131
  %1201 = vmatmul.mubr.f32.gmra.mxu0 %v1103
  %v1202 = vpop.f32.mrf.mxu0
  %v1203 = vadd.f32 0.0, %v1202
  %v1204 = vpop.f32.mrf.mxu0
  %1205 = vmatprep.mubr.f32.mxu0 %v1134
  %1206 = vmatmul.mubr.f32.gmra.mxu0 %v1105
  %v1207 = vpop.f32.mrf.mxu0
  %v1208 = vadd.f32 0.0, %v1207
  %v1209 = vpop.f32.mrf.mxu0
  %1210 = vdwg.mxu0
  %v1211 = vld [vmem:[%s6] sm:$0xff]
  %v1212 = vld [vmem:[%s6 + $0x8] sm:$0xff]
  %v1213 = vld [vmem:[%s6 + $0x10] sm:$0xff]
  %v1214 = vld [vmem:[%s6 + $0x18] sm:$0xff]
  %v1215 = vld [vmem:[%s6 + $0x20] sm:$0xff]
  %v1216 = vld [vmem:[%s6 + $0x28] sm:$0xff]
  %v1217 = vld [vmem:[%s6 + $0x30] sm:$0xff]
  %v1218 = vld [vmem:[%s6 + $0x38] sm:$0xff]
  %v1219 = vld [vmem:[%s6 + $0x40] sm:$0xff]
  %v1220 = vld [vmem:[%s6 + $0x48] sm:$0xff]
  %v1221 = vld [vmem:[%s6 + $0x50] sm:$0xff]
  %v1222 = vld [vmem:[%s6 + $0x58] sm:$0xff]
  %v1223 = vld [vmem:[%s6 + $0x60] sm:$0xff]
  %v1224 = vld [vmem:[%s6 + $0x68] sm:$0xff]
  %v1225 = vld [vmem:[%s6 + $0x70] sm:$0xff]
  %v1226 = vld [vmem:[%s6 + $0x78] sm:$0xff]
  %v1227 = vld [vmem:[%s6 + $0x80] sm:$0xff]
  %v1228 = vld [vmem:[%s6 + $0x88] sm:$0xff]
  %v1229 = vld [vmem:[%s6 + $0x90] sm:$0xff]
  %v1230 = vld [vmem:[%s6 + $0x98] sm:$0xff]
  %v1231 = vld [vmem:[%s6 + $0xa0] sm:$0xff]
  %v1232 = vld [vmem:[%s6 + $0xa8] sm:$0xff]
  %1233 = vmatprep.subr.mxu0 0.0
  %1234 = vmatpush1.msra.mxu0 %v1226
  %1235 = vmatprep.subr.mxu0 0.0
  %1236 = vmatpush1.msra.mxu0 %v1225
  %1237 = vmatprep.subr.mxu0 0.0
  %1238 = vmatpush1.msra.mxu0 %v1224
  %1239 = vmatprep.subr.mxu0 0.0
  %1240 = vmatpush1.msra.mxu0 %v1223
  %1241 = vmatprep.subr.mxu0 0.0
  %1242 = vmatpush1.msra.mxu0 %v1222
  %1243 = vmatprep.subr.mxu0 0.0
  %1244 = vmatpush1.msra.mxu0 %v1221
  %1245 = vmatprep.subr.mxu0 0.0
  %1246 = vmatpush1.msra.mxu0 %v1220
  %1247 = vmatprep.subr.mxu0 0.0
  %1248 = vmatpush1.msra.mxu0 %v1219
  %1249 = vmatprep.subr.mxu0 0.0
  %1250 = vmatpush1.msra.mxu0 %v1218
  %1251 = vmatprep.subr.mxu0 0.0
  %1252 = vmatpush1.msra.mxu0 %v1217
  %1253 = vmatprep.subr.mxu0 0.0
  %1254 = vmatpush1.msra.mxu0 %v1216
  %1255 = vmatprep.subr.mxu0 0.0
  %1256 = vmatpush1.msra.mxu0 %v1215
  %1257 = vmatprep.subr.mxu0 0.0
  %1258 = vmatpush1.msra.mxu0 %v1214
  %1259 = vmatprep.subr.mxu0 0.0
  %1260 = vmatpush1.msra.mxu0 %v1213
  %1261 = vmatprep.subr.mxu0 0.0
  %1262 = vmatpush1.msra.mxu0 %v1212
  %1263 = vmatprep.subr.mxu0 0.0
  %1264 = vmatpush1.msra.mxu0 %v1211
  %1265 = vmatprep.subr.mxu0 0.0
  %1266 = vmatpush2.msra.mxu0 0.0
  %1267 = vmatprep.subr.mxu0 0.0
  %1268 = vmatpush2.msra.mxu0 0.0
  %1269 = vmatprep.subr.mxu0 0.0
  %1270 = vmatpush2.msra.mxu0 0.0
  %1271 = vmatprep.subr.mxu0 0.0
  %1272 = vmatpush2.msra.mxu0 0.0
  %1273 = vmatprep.subr.mxu0 0.0
  %1274 = vmatpush2.msra.mxu0 0.0
  %1275 = vmatprep.subr.mxu0 0.0
  %1276 = vmatpush2.msra.mxu0 0.0
  %1277 = vmatprep.subr.mxu0 0.0
  %1278 = vmatpush2.msra.mxu0 0.0
  %1279 = vmatprep.subr.mxu0 0.0
  %1280 = vmatpush2.msra.mxu0 0.0
  %1281 = vmatprep.subr.mxu0 0.0
  %1282 = vmatpush2.msra.mxu0 0.0
  %1283 = vmatprep.subr.mxu0 0.0
  %1284 = vmatpush2.msra.mxu0 0.0
  %1285 = vmatprep.subr.mxu0 0.0
  %1286 = vmatpush2.msra.mxu0 %v1232
  %1287 = vmatprep.subr.mxu0 0.0
  %1288 = vmatpush2.msra.mxu0 %v1231
  %1289 = vmatprep.subr.mxu0 0.0
  %1290 = vmatpush2.msra.mxu0 %v1230
  %1291 = vmatprep.subr.mxu0 0.0
  %1292 = vmatpush2.msra.mxu0 %v1229
  %1293 = vmatprep.subr.mxu0 0.0
  %1294 = vmatpush2.msra.mxu0 %v1228
  %1295 = vmatprep.subr.mxu0 0.0
  %1296 = vmatpush2.msra.mxu0 %v1227
  %1297 = vmatprep.mubr.f32.mxu0 %v1131
  %1298 = vmatmul.mubr.f32.gmra.mxu0 %v1103
  %v1299 = vpop.f32.mrf.mxu0
  %v1300 = vadd.f32 0.0, %v1299
  %v1301 = vpop.f32.mrf.mxu0
  %1302 = vmatprep.mubr.f32.mxu0 %v1134
  %1303 = vmatmul.mubr.f32.gmra.mxu0 %v1105
  %v1304 = vpop.f32.mrf.mxu0
  %v1305 = vadd.f32 0.0, %v1304
  %v1306 = vpop.f32.mrf.mxu0
  %1307 = vdwg.mxu0
  %v1308 = vmax.f32 %v1203, %v1300
  %v1309 = vmax.f32 %v1208, %v1305
  %v1310 = vmax.f32 %v1308, 0.0
  %v1311 = vmax.f32 %v1309, 0.0
  %v1312 = vld [vmem:[%s7] sm:$0xff]
  %v1313 = vld [vmem:[%s7 + $0x8] sm:$0xff]
  %v1314 = vld [vmem:[%s7 + $0x10] sm:$0xff]
  %v1315 = vld [vmem:[%s7 + $0x18] sm:$0xff]
  %v1316 = vld [vmem:[%s7 + $0x20] sm:$0xff]
  %v1317 = vld [vmem:[%s7 + $0x28] sm:$0xff]
  %v1318 = vld [vmem:[%s7 + $0x30] sm:$0xff]
  %v1319 = vld [vmem:[%s7 + $0x38] sm:$0xff]
  %v1320 = vld [vmem:[%s7 + $0x40] sm:$0xff]
  %v1321 = vld [vmem:[%s7 + $0x48] sm:$0xff]
  %v1322 = vld [vmem:[%s7 + $0x50] sm:$0xff]
  %s1323 = scalar_lea.vmem %s7, 88
  %v1324 = vld [vmem:[%s1323] sm:$0xff]
  %v1325 = vld [vmem:[%s1323 + $0x8] sm:$0xff]
  %v1326 = vld [vmem:[%s1323 + $0x10] sm:$0xff]
  %v1327 = vld [vmem:[%s1323 + $0x18] sm:$0xff]
  %v1328 = vld [vmem:[%s1323 + $0x20] sm:$0xff]
  %v1329 = vld [vmem:[%s1323 + $0x28] sm:$0xff]
  %v1330 = vld [vmem:[%s1323 + $0x30] sm:$0xff]
  %v1331 = vld [vmem:[%s1323 + $0x38] sm:$0xff]
  %v1332 = vld [vmem:[%s1323 + $0x40] sm:$0xff]
  %v1333 = vld [vmem:[%s1323 + $0x48] sm:$0xff]
  %v1334 = vld [vmem:[%s1323 + $0x50] sm:$0xff]
  %v1336 = vrot.slane %v1310, 1
  %vm1337 = vcmask 719872
  %v1338 = vsel %vm1337, %v1336, 0
  %1340 = vmatprep.subr.mxu0 0.0
  %1341 = vmatpush1.msra.mxu0 0.0
  %1342 = vmatprep.subr.mxu0 0.0
  %1343 = vmatpush1.msra.mxu0 0.0
  %1344 = vmatprep.subr.mxu0 0.0
  %1345 = vmatpush1.msra.mxu0 0.0
  %1346 = vmatprep.subr.mxu0 0.0
  %1347 = vmatpush1.msra.mxu0 0.0
  %1348 = vmatprep.subr.mxu0 0.0
  %1349 = vmatpush1.msra.mxu0 0.0
  %1350 = vmatprep.subr.mxu0 0.0
  %1351 = vmatpush1.msra.mxu0 %v1334
  %1352 = vmatprep.subr.mxu0 0.0
  %1353 = vmatpush1.msra.mxu0 %v1333
  %1354 = vmatprep.subr.mxu0 0.0
  %1355 = vmatpush1.msra.mxu0 %v1332
  %1356 = vmatprep.subr.mxu0 0.0
  %1357 = vmatpush1.msra.mxu0 %v1331
  %1358 = vmatprep.subr.mxu0 0.0
  %1359 = vmatpush1.msra.mxu0 %v1330
  %1360 = vmatprep.subr.mxu0 0.0
  %1361 = vmatpush1.msra.mxu0 %v1329
  %1362 = vmatprep.subr.mxu0 0.0
  %1363 = vmatpush1.msra.mxu0 %v1328
  %1364 = vmatprep.subr.mxu0 0.0
  %1365 = vmatpush1.msra.mxu0 %v1327
  %1366 = vmatprep.subr.mxu0 0.0
  %1367 = vmatpush1.msra.mxu0 %v1326
  %1368 = vmatprep.subr.mxu0 0.0
  %1369 = vmatpush1.msra.mxu0 %v1325
  %1370 = vmatprep.subr.mxu0 0.0
  %1371 = vmatpush1.msra.mxu0 %v1324
  %1372 = vmatprep.subr.mxu0 0.0
  %1373 = vmatpush2.msra.mxu0 0.0
  %1374 = vmatprep.subr.mxu0 0.0
  %1375 = vmatpush2.msra.mxu0 0.0
  %1376 = vmatprep.subr.mxu0 0.0
  %1377 = vmatpush2.msra.mxu0 0.0
  %1378 = vmatprep.subr.mxu0 0.0
  %1379 = vmatpush2.msra.mxu0 0.0
  %1380 = vmatprep.subr.mxu0 0.0
  %1381 = vmatpush2.msra.mxu0 0.0
  %1382 = vmatprep.subr.mxu0 0.0
  %1383 = vmatpush2.msra.mxu0 0.0
  %1384 = vmatprep.subr.mxu0 0.0
  %1385 = vmatpush2.msra.mxu0 0.0
  %1386 = vmatprep.subr.mxu0 0.0
  %1387 = vmatpush2.msra.mxu0 0.0
  %1388 = vmatprep.subr.mxu0 0.0
  %1389 = vmatpush2.msra.mxu0 0.0
  %1390 = vmatprep.subr.mxu0 0.0
  %1391 = vmatpush2.msra.mxu0 0.0
  %1392 = vmatprep.subr.mxu0 0.0
  %1393 = vmatpush2.msra.mxu0 0.0
  %1394 = vmatprep.subr.mxu0 0.0
  %1395 = vmatpush2.msra.mxu0 0.0
  %1396 = vmatprep.subr.mxu0 0.0
  %1397 = vmatpush2.msra.mxu0 0.0
  %1398 = vmatprep.subr.mxu0 0.0
  %1399 = vmatpush2.msra.mxu0 0.0
  %1400 = vmatprep.subr.mxu0 0.0
  %1401 = vmatpush2.msra.mxu0 0.0
  %1402 = vmatprep.subr.mxu0 0.0
  %1403 = vmatpush2.msra.mxu0 0.0
  %1404 = vmatprep.mubr.f32.mxu0 0.0
  %1405 = vmatmul.mubr.f32.gmra.mxu0 %v1338
  %v1406 = vpop.f32.mrf.mxu0
  %v1407 = vadd.f32 0.0, %v1406
  %v1408 = vpop.f32.mrf.mxu0
  %1409 = vdwg.mxu0
  %v1410 = vsel %vm1337, %v1310, 0
  %1412 = vmatprep.subr.mxu0 0.0
  %1413 = vmatpush1.msra.mxu0 0.0
  %1414 = vmatprep.subr.mxu0 0.0
  %1415 = vmatpush1.msra.mxu0 0.0
  %1416 = vmatprep.subr.mxu0 0.0
  %1417 = vmatpush1.msra.mxu0 0.0
  %1418 = vmatprep.subr.mxu0 0.0
  %1419 = vmatpush1.msra.mxu0 0.0
  %1420 = vmatprep.subr.mxu0 0.0
  %1421 = vmatpush1.msra.mxu0 0.0
  %1422 = vmatprep.subr.mxu0 0.0
  %1423 = vmatpush1.msra.mxu0 %v1322
  %1424 = vmatprep.subr.mxu0 0.0
  %1425 = vmatpush1.msra.mxu0 %v1321
  %1426 = vmatprep.subr.mxu0 0.0
  %1427 = vmatpush1.msra.mxu0 %v1320
  %1428 = vmatprep.subr.mxu0 0.0
  %1429 = vmatpush1.msra.mxu0 %v1319
  %1430 = vmatprep.subr.mxu0 0.0
  %1431 = vmatpush1.msra.mxu0 %v1318
  %1432 = vmatprep.subr.mxu0 0.0
  %1433 = vmatpush1.msra.mxu0 %v1317
  %1434 = vmatprep.subr.mxu0 0.0
  %1435 = vmatpush1.msra.mxu0 %v1316
  %1436 = vmatprep.subr.mxu0 0.0
  %1437 = vmatpush1.msra.mxu0 %v1315
  %1438 = vmatprep.subr.mxu0 0.0
  %1439 = vmatpush1.msra.mxu0 %v1314
  %1440 = vmatprep.subr.mxu0 0.0
  %1441 = vmatpush1.msra.mxu0 %v1313
  %1442 = vmatprep.subr.mxu0 0.0
  %1443 = vmatpush1.msra.mxu0 %v1312
  %1444 = vmatprep.subr.mxu0 0.0
  %1445 = vmatpush2.msra.mxu0 0.0
  %1446 = vmatprep.subr.mxu0 0.0
  %1447 = vmatpush2.msra.mxu0 0.0
  %1448 = vmatprep.subr.mxu0 0.0
  %1449 = vmatpush2.msra.mxu0 0.0
  %1450 = vmatprep.subr.mxu0 0.0
  %1451 = vmatpush2.msra.mxu0 0.0
  %1452 = vmatprep.subr.mxu0 0.0
  %1453 = vmatpush2.msra.mxu0 0.0
  %1454 = vmatprep.subr.mxu0 0.0
  %1455 = vmatpush2.msra.mxu0 0.0
  %1456 = vmatprep.subr.mxu0 0.0
  %1457 = vmatpush2.msra.mxu0 0.0
  %1458 = vmatprep.subr.mxu0 0.0
  %1459 = vmatpush2.msra.mxu0 0.0
  %1460 = vmatprep.subr.mxu0 0.0
  %1461 = vmatpush2.msra.mxu0 0.0
  %1462 = vmatprep.subr.mxu0 0.0
  %1463 = vmatpush2.msra.mxu0 0.0
  %1464 = vmatprep.subr.mxu0 0.0
  %1465 = vmatpush2.msra.mxu0 0.0
  %1466 = vmatprep.subr.mxu0 0.0
  %1467 = vmatpush2.msra.mxu0 0.0
  %1468 = vmatprep.subr.mxu0 0.0
  %1469 = vmatpush2.msra.mxu0 0.0
  %1470 = vmatprep.subr.mxu0 0.0
  %1471 = vmatpush2.msra.mxu0 0.0
  %1472 = vmatprep.subr.mxu0 0.0
  %1473 = vmatpush2.msra.mxu0 0.0
  %1474 = vmatprep.subr.mxu0 0.0
  %1475 = vmatpush2.msra.mxu0 0.0
  %1476 = vmatprep.mubr.f32.mxu0 0.0
  %1477 = vmatmul.mubr.f32.gmra.mxu0 %v1410
  %v1478 = vpop.f32.mrf.mxu0
  %v1479 = vadd.f32 %v1407, %v1478
  %v1480 = vpop.f32.mrf.mxu0
  %1481 = vdwg.mxu0
  %s1482 = scalar_lea.vmem %s7, 176
  %v1483 = vld [vmem:[%s1482] sm:$0xff]
  %v1484 = vld [vmem:[%s1482 + $0x8] sm:$0xff]
  %v1485 = vld [vmem:[%s1482 + $0x10] sm:$0xff]
  %v1486 = vld [vmem:[%s1482 + $0x18] sm:$0xff]
  %v1487 = vld [vmem:[%s1482 + $0x20] sm:$0xff]
  %v1488 = vld [vmem:[%s1482 + $0x28] sm:$0xff]
  %v1489 = vld [vmem:[%s1482 + $0x30] sm:$0xff]
  %v1490 = vld [vmem:[%s1482 + $0x38] sm:$0xff]
  %v1491 = vld [vmem:[%s1482 + $0x40] sm:$0xff]
  %v1492 = vld [vmem:[%s1482 + $0x48] sm:$0xff]
  %v1493 = vld [vmem:[%s1482 + $0x50] sm:$0xff]
  %v1495 = vrot.slane %v1310, 2
  %v1496 = vrot.slane %v1311, 2
  %v1497 = vsel %vm329, %v1495, %v1496
  %v1498 = vsel %vm1337, %v1497, 0
  %1500 = vmatprep.subr.mxu0 0.0
  %1501 = vmatpush1.msra.mxu0 0.0
  %1502 = vmatprep.subr.mxu0 0.0
  %1503 = vmatpush1.msra.mxu0 0.0
  %1504 = vmatprep.subr.mxu0 0.0
  %1505 = vmatpush1.msra.mxu0 0.0
  %1506 = vmatprep.subr.mxu0 0.0
  %1507 = vmatpush1.msra.mxu0 0.0
  %1508 = vmatprep.subr.mxu0 0.0
  %1509 = vmatpush1.msra.mxu0 0.0
  %1510 = vmatprep.subr.mxu0 0.0
  %1511 = vmatpush1.msra.mxu0 %v1493
  %1512 = vmatprep.subr.mxu0 0.0
  %1513 = vmatpush1.msra.mxu0 %v1492
  %1514 = vmatprep.subr.mxu0 0.0
  %1515 = vmatpush1.msra.mxu0 %v1491
  %1516 = vmatprep.subr.mxu0 0.0
  %1517 = vmatpush1.msra.mxu0 %v1490
  %1518 = vmatprep.subr.mxu0 0.0
  %1519 = vmatpush1.msra.mxu0 %v1489
  %1520 = vmatprep.subr.mxu0 0.0
  %1521 = vmatpush1.msra.mxu0 %v1488
  %1522 = vmatprep.subr.mxu0 0.0
  %1523 = vmatpush1.msra.mxu0 %v1487
  %1524 = vmatprep.subr.mxu0 0.0
  %1525 = vmatpush1.msra.mxu0 %v1486
  %1526 = vmatprep.subr.mxu0 0.0
  %1527 = vmatpush1.msra.mxu0 %v1485
  %1528 = vmatprep.subr.mxu0 0.0
  %1529 = vmatpush1.msra.mxu0 %v1484
  %1530 = vmatprep.subr.mxu0 0.0
  %1531 = vmatpush1.msra.mxu0 %v1483
  %1532 = vmatprep.subr.mxu0 0.0
  %1533 = vmatpush2.msra.mxu0 0.0
  %1534 = vmatprep.subr.mxu0 0.0
  %1535 = vmatpush2.msra.mxu0 0.0
  %1536 = vmatprep.subr.mxu0 0.0
  %1537 = vmatpush2.msra.mxu0 0.0
  %1538 = vmatprep.subr.mxu0 0.0
  %1539 = vmatpush2.msra.mxu0 0.0
  %1540 = vmatprep.subr.mxu0 0.0
  %1541 = vmatpush2.msra.mxu0 0.0
  %1542 = vmatprep.subr.mxu0 0.0
  %1543 = vmatpush2.msra.mxu0 0.0
  %1544 = vmatprep.subr.mxu0 0.0
  %1545 = vmatpush2.msra.mxu0 0.0
  %1546 = vmatprep.subr.mxu0 0.0
  %1547 = vmatpush2.msra.mxu0 0.0
  %1548 = vmatprep.subr.mxu0 0.0
  %1549 = vmatpush2.msra.mxu0 0.0
  %1550 = vmatprep.subr.mxu0 0.0
  %1551 = vmatpush2.msra.mxu0 0.0
  %1552 = vmatprep.subr.mxu0 0.0
  %1553 = vmatpush2.msra.mxu0 0.0
  %1554 = vmatprep.subr.mxu0 0.0
  %1555 = vmatpush2.msra.mxu0 0.0
  %1556 = vmatprep.subr.mxu0 0.0
  %1557 = vmatpush2.msra.mxu0 0.0
  %1558 = vmatprep.subr.mxu0 0.0
  %1559 = vmatpush2.msra.mxu0 0.0
  %1560 = vmatprep.subr.mxu0 0.0
  %1561 = vmatpush2.msra.mxu0 0.0
  %1562 = vmatprep.subr.mxu0 0.0
  %1563 = vmatpush2.msra.mxu0 0.0
  %1564 = vmatprep.mubr.f32.mxu0 0.0
  %1565 = vmatmul.mubr.f32.gmra.mxu0 %v1498
  %v1566 = vpop.f32.mrf.mxu0
  %v1567 = vadd.f32 0.0, %v1566
  %v1568 = vpop.f32.mrf.mxu0
  %1569 = vdwg.mxu0
  %v1570 = vadd.f32 %v1479, %v1567
  %s1571 = scalar_lea.vmem %s7, 264
  %v1572 = vld [vmem:[%s1571] sm:$0xff]
  %v1573 = vld [vmem:[%s1571 + $0x8] sm:$0xff]
  %v1574 = vld [vmem:[%s1571 + $0x10] sm:$0xff]
  %v1575 = vld [vmem:[%s1571 + $0x18] sm:$0xff]
  %v1576 = vld [vmem:[%s1571 + $0x20] sm:$0xff]
  %v1577 = vld [vmem:[%s1571 + $0x28] sm:$0xff]
  %v1578 = vld [vmem:[%s1571 + $0x30] sm:$0xff]
  %v1579 = vld [vmem:[%s1571 + $0x38] sm:$0xff]
  %v1580 = vld [vmem:[%s1571 + $0x40] sm:$0xff]
  %v1581 = vld [vmem:[%s1571 + $0x48] sm:$0xff]
  %v1582 = vld [vmem:[%s1571 + $0x50] sm:$0xff]
  %v1583 = vrot.slane %v1310, 3
  %v1584 = vrot.slane %v1311, 3
  %v1585 = vsel %vm446, %v1583, %v1584
  %v1586 = vsel %vm1337, %v1585, 0
  %1588 = vmatprep.subr.mxu0 0.0
  %1589 = vmatpush1.msra.mxu0 0.0
  %1590 = vmatprep.subr.mxu0 0.0
  %1591 = vmatpush1.msra.mxu0 0.0
  %1592 = vmatprep.subr.mxu0 0.0
  %1593 = vmatpush1.msra.mxu0 0.0
  %1594 = vmatprep.subr.mxu0 0.0
  %1595 = vmatpush1.msra.mxu0 0.0
  %1596 = vmatprep.subr.mxu0 0.0
  %1597 = vmatpush1.msra.mxu0 0.0
  %1598 = vmatprep.subr.mxu0 0.0
  %1599 = vmatpush1.msra.mxu0 %v1582
  %1600 = vmatprep.subr.mxu0 0.0
  %1601 = vmatpush1.msra.mxu0 %v1581
  %1602 = vmatprep.subr.mxu0 0.0
  %1603 = vmatpush1.msra.mxu0 %v1580
  %1604 = vmatprep.subr.mxu0 0.0
  %1605 = vmatpush1.msra.mxu0 %v1579
  %1606 = vmatprep.subr.mxu0 0.0
  %1607 = vmatpush1.msra.mxu0 %v1578
  %1608 = vmatprep.subr.mxu0 0.0
  %1609 = vmatpush1.msra.mxu0 %v1577
  %1610 = vmatprep.subr.mxu0 0.0
  %1611 = vmatpush1.msra.mxu0 %v1576
  %1612 = vmatprep.subr.mxu0 0.0
  %1613 = vmatpush1.msra.mxu0 %v1575
  %1614 = vmatprep.subr.mxu0 0.0
  %1615 = vmatpush1.msra.mxu0 %v1574
  %1616 = vmatprep.subr.mxu0 0.0
  %1617 = vmatpush1.msra.mxu0 %v1573
  %1618 = vmatprep.subr.mxu0 0.0
  %1619 = vmatpush1.msra.mxu0 %v1572
  %1620 = vmatprep.subr.mxu0 0.0
  %1621 = vmatpush2.msra.mxu0 0.0
  %1622 = vmatprep.subr.mxu0 0.0
  %1623 = vmatpush2.msra.mxu0 0.0
  %1624 = vmatprep.subr.mxu0 0.0
  %1625 = vmatpush2.msra.mxu0 0.0
  %1626 = vmatprep.subr.mxu0 0.0
  %1627 = vmatpush2.msra.mxu0 0.0
  %1628 = vmatprep.subr.mxu0 0.0
  %1629 = vmatpush2.msra.mxu0 0.0
  %1630 = vmatprep.subr.mxu0 0.0
  %1631 = vmatpush2.msra.mxu0 0.0
  %1632 = vmatprep.subr.mxu0 0.0
  %1633 = vmatpush2.msra.mxu0 0.0
  %1634 = vmatprep.subr.mxu0 0.0
  %1635 = vmatpush2.msra.mxu0 0.0
  %1636 = vmatprep.subr.mxu0 0.0
  %1637 = vmatpush2.msra.mxu0 0.0
  %1638 = vmatprep.subr.mxu0 0.0
  %1639 = vmatpush2.msra.mxu0 0.0
  %1640 = vmatprep.subr.mxu0 0.0
  %1641 = vmatpush2.msra.mxu0 0.0
  %1642 = vmatprep.subr.mxu0 0.0
  %1643 = vmatpush2.msra.mxu0 0.0
  %1644 = vmatprep.subr.mxu0 0.0
  %1645 = vmatpush2.msra.mxu0 0.0
  %1646 = vmatprep.subr.mxu0 0.0
  %1647 = vmatpush2.msra.mxu0 0.0
  %1648 = vmatprep.subr.mxu0 0.0
  %1649 = vmatpush2.msra.mxu0 0.0
  %1650 = vmatprep.subr.mxu0 0.0
  %1651 = vmatpush2.msra.mxu0 0.0
  %1652 = vmatprep.mubr.f32.mxu0 0.0
  %1653 = vmatmul.mubr.f32.gmra.mxu0 %v1586
  %v1654 = vpop.f32.mrf.mxu0
  %v1655 = vadd.f32 0.0, %v1654
  %v1656 = vpop.f32.mrf.mxu0
  %1657 = vdwg.mxu0
  %v1658 = vadd.f32 %v1570, %v1655
  %s1659 = scalar_lea.vmem %s7, 352
  %v1660 = vld [vmem:[%s1659] sm:$0xff]
  %v1661 = vld [vmem:[%s1659 + $0x8] sm:$0xff]
  %v1662 = vld [vmem:[%s1659 + $0x10] sm:$0xff]
  %v1663 = vld [vmem:[%s1659 + $0x18] sm:$0xff]
  %v1664 = vld [vmem:[%s1659 + $0x20] sm:$0xff]
  %v1665 = vld [vmem:[%s1659 + $0x28] sm:$0xff]
  %v1666 = vld [vmem:[%s1659 + $0x30] sm:$0xff]
  %v1667 = vld [vmem:[%s1659 + $0x38] sm:$0xff]
  %v1668 = vld [vmem:[%s1659 + $0x40] sm:$0xff]
  %v1669 = vld [vmem:[%s1659 + $0x48] sm:$0xff]
  %v1670 = vld [vmem:[%s1659 + $0x50] sm:$0xff]
  %v1671 = vrot.slane %v1310, 4
  %v1672 = vrot.slane %v1311, 4
  %v1673 = vsel %vm135, %v1671, %v1672
  %v1674 = vsel %vm1337, %v1673, 0
  %1676 = vmatprep.subr.mxu0 0.0
  %1677 = vmatpush1.msra.mxu0 0.0
  %1678 = vmatprep.subr.mxu0 0.0
  %1679 = vmatpush1.msra.mxu0 0.0
  %1680 = vmatprep.subr.mxu0 0.0
  %1681 = vmatpush1.msra.mxu0 0.0
  %1682 = vmatprep.subr.mxu0 0.0
  %1683 = vmatpush1.msra.mxu0 0.0
  %1684 = vmatprep.subr.mxu0 0.0
  %1685 = vmatpush1.msra.mxu0 0.0
  %1686 = vmatprep.subr.mxu0 0.0
  %1687 = vmatpush1.msra.mxu0 %v1670
  %1688 = vmatprep.subr.mxu0 0.0
  %1689 = vmatpush1.msra.mxu0 %v1669
  %1690 = vmatprep.subr.mxu0 0.0
  %1691 = vmatpush1.msra.mxu0 %v1668
  %1692 = vmatprep.subr.mxu0 0.0
  %1693 = vmatpush1.msra.mxu0 %v1667
  %1694 = vmatprep.subr.mxu0 0.0
  %1695 = vmatpush1.msra.mxu0 %v1666
  %1696 = vmatprep.subr.mxu0 0.0
  %1697 = vmatpush1.msra.mxu0 %v1665
  %1698 = vmatprep.subr.mxu0 0.0
  %1699 = vmatpush1.msra.mxu0 %v1664
  %1700 = vmatprep.subr.mxu0 0.0
  %1701 = vmatpush1.msra.mxu0 %v1663
  %1702 = vmatprep.subr.mxu0 0.0
  %1703 = vmatpush1.msra.mxu0 %v1662
  %1704 = vmatprep.subr.mxu0 0.0
  %1705 = vmatpush1.msra.mxu0 %v1661
  %1706 = vmatprep.subr.mxu0 0.0
  %1707 = vmatpush1.msra.mxu0 %v1660
  %1708 = vmatprep.subr.mxu0 0.0
  %1709 = vmatpush2.msra.mxu0 0.0
  %1710 = vmatprep.subr.mxu0 0.0
  %1711 = vmatpush2.msra.mxu0 0.0
  %1712 = vmatprep.subr.mxu0 0.0
  %1713 = vmatpush2.msra.mxu0 0.0
  %1714 = vmatprep.subr.mxu0 0.0
  %1715 = vmatpush2.msra.mxu0 0.0
  %1716 = vmatprep.subr.mxu0 0.0
  %1717 = vmatpush2.msra.mxu0 0.0
  %1718 = vmatprep.subr.mxu0 0.0
  %1719 = vmatpush2.msra.mxu0 0.0
  %1720 = vmatprep.subr.mxu0 0.0
  %1721 = vmatpush2.msra.mxu0 0.0
  %1722 = vmatprep.subr.mxu0 0.0
  %1723 = vmatpush2.msra.mxu0 0.0
  %1724 = vmatprep.subr.mxu0 0.0
  %1725 = vmatpush2.msra.mxu0 0.0
  %1726 = vmatprep.subr.mxu0 0.0
  %1727 = vmatpush2.msra.mxu0 0.0
  %1728 = vmatprep.subr.mxu0 0.0
  %1729 = vmatpush2.msra.mxu0 0.0
  %1730 = vmatprep.subr.mxu0 0.0
  %1731 = vmatpush2.msra.mxu0 0.0
  %1732 = vmatprep.subr.mxu0 0.0
  %1733 = vmatpush2.msra.mxu0 0.0
  %1734 = vmatprep.subr.mxu0 0.0
  %1735 = vmatpush2.msra.mxu0 0.0
  %1736 = vmatprep.subr.mxu0 0.0
  %1737 = vmatpush2.msra.mxu0 0.0
  %1738 = vmatprep.subr.mxu0 0.0
  %1739 = vmatpush2.msra.mxu0 0.0
  %1740 = vmatprep.mubr.f32.mxu0 0.0
  %1741 = vmatmul.mubr.f32.gmra.mxu0 %v1674
  %v1742 = vpop.f32.mrf.mxu0
  %v1743 = vadd.f32 0.0, %v1742
  %v1744 = vpop.f32.mrf.mxu0
  %1745 = vdwg.mxu0
  %v1746 = vadd.f32 %v1658, %v1743
  %v1747 = vld [vmem:[%s8] sm:$0x1]
  %v1749 = vlaneseq
  %v1750 = vshrl.u32 %v1749, 7
  %v1751 = vsub.s32 0, %v1750
  %v1752 = vrot.slane %v1747, %v1751
  %v1754 = vadd.f32 %v1746, %v1752
  %v1755 = vld [vmem:[%s9] sm:$0x7]
  %vm1756 = vcmask 56320
  %v1758 = vsel %vm1756, %v1755, 0
  %v1761 = vsel %vm122, %v1754, 0
  %1763 = vmatprep.subr.mxu0 0.0
  %1764 = vmatpush1.msra.mxu0 0.0
  %1765 = vmatprep.subr.mxu0 0.0
  %1766 = vmatpush1.msra.mxu0 0.0
  %1767 = vmatprep.subr.mxu0 0.0
  %1768 = vmatpush1.msra.mxu0 0.0
  %1769 = vmatprep.subr.mxu0 0.0
  %1770 = vmatpush1.msra.mxu0 0.0
  %1771 = vmatprep.subr.mxu0 0.0
  %1772 = vmatpush1.msra.mxu0 0.0
  %1773 = vmatprep.subr.mxu0 0.0
  %1774 = vmatpush1.msra.mxu0 0.0
  %1775 = vmatprep.subr.mxu0 0.0
  %1776 = vmatpush1.msra.mxu0 0.0
  %1777 = vmatprep.subr.mxu0 0.0
  %1778 = vmatpush1.msra.mxu0 0.0
  %1779 = vmatprep.subr.mxu0 0.0
  %1780 = vmatpush1.msra.mxu0 0.0
  %1781 = vmatprep.subr.mxu0 0.0
  %1782 = vmatpush1.msra.mxu0 0.0
  %1783 = vmatprep.subr.mxu0 0.0
  %1784 = vmatpush1.msra.mxu0 0.0
  %1785 = vmatprep.subr.mxu0 0.0
  %1786 = vmatpush1.msra.mxu0 0.0
  %1787 = vmatprep.subr.mxu0 0.0
  %1788 = vmatpush1.msra.mxu0 0.0
  %1789 = vmatprep.subr.mxu0 0.0
  %1790 = vmatpush1.msra.mxu0 0.0
  %1791 = vmatprep.subr.mxu0 0.0
  %1792 = vmatpush1.msra.mxu0 0.0
  %1793 = vmatprep.subr.mxu0 0.0
  %1794 = vmatpush1.msra.mxu0 %v1761
  %1795 = vmatprep.subr.mxu0 0.0
  %1796 = vmatpush2.msra.mxu0 0.0
  %1797 = vmatprep.subr.mxu0 0.0
  %1798 = vmatpush2.msra.mxu0 0.0
  %1799 = vmatprep.subr.mxu0 0.0
  %1800 = vmatpush2.msra.mxu0 0.0
  %1801 = vmatprep.subr.mxu0 0.0
  %1802 = vmatpush2.msra.mxu0 0.0
  %1803 = vmatprep.subr.mxu0 0.0
  %1804 = vmatpush2.msra.mxu0 0.0
  %1805 = vmatprep.subr.mxu0 0.0
  %1806 = vmatpush2.msra.mxu0 0.0
  %1807 = vmatprep.subr.mxu0 0.0
  %1808 = vmatpush2.msra.mxu0 0.0
  %1809 = vmatprep.subr.mxu0 0.0
  %1810 = vmatpush2.msra.mxu0 0.0
  %1811 = vmatprep.subr.mxu0 0.0
  %1812 = vmatpush2.msra.mxu0 0.0
  %1813 = vmatprep.subr.mxu0 0.0
  %1814 = vmatpush2.msra.mxu0 0.0
  %1815 = vmatprep.subr.mxu0 0.0
  %1816 = vmatpush2.msra.mxu0 0.0
  %1817 = vmatprep.subr.mxu0 0.0
  %1818 = vmatpush2.msra.mxu0 0.0
  %1819 = vmatprep.subr.mxu0 0.0
  %1820 = vmatpush2.msra.mxu0 0.0
  %1821 = vmatprep.subr.mxu0 0.0
  %1822 = vmatpush2.msra.mxu0 0.0
  %1823 = vmatprep.subr.mxu0 0.0
  %1824 = vmatpush2.msra.mxu0 0.0
  %1825 = vmatprep.subr.mxu0 0.0
  %1826 = vmatpush2.msra.mxu0 0.0
  %1827 = vmatprep.mubr.f32.mxu0 0.0
  %1828 = vmatmul.mubr.f32.gmra.mxu0 %v1758
  %v1829 = vpop.f32.mrf.mxu0
  %v1830 = vadd.f32 0.0, %v1829
  %v1831 = vpop.f32.mrf.mxu0
  %1832 = vdwg.mxu0
  %v1833 = vld [vmem:[%s10] sm:$0x7]
  %v1835 = vsel %vm1756, %v1833, 0
  %1837 = vmatprep.subr.mxu0 0.0
  %1838 = vmatpush1.msra.mxu0 0.0
  %1839 = vmatprep.subr.mxu0 0.0
  %1840 = vmatpush1.msra.mxu0 0.0
  %1841 = vmatprep.subr.mxu0 0.0
  %1842 = vmatpush1.msra.mxu0 0.0
  %1843 = vmatprep.subr.mxu0 0.0
  %1844 = vmatpush1.msra.mxu0 0.0
  %1845 = vmatprep.subr.mxu0 0.0
  %1846 = vmatpush1.msra.mxu0 0.0
  %1847 = vmatprep.subr.mxu0 0.0
  %1848 = vmatpush1.msra.mxu0 0.0
  %1849 = vmatprep.subr.mxu0 0.0
  %1850 = vmatpush1.msra.mxu0 0.0
  %1851 = vmatprep.subr.mxu0 0.0
  %1852 = vmatpush1.msra.mxu0 0.0
  %1853 = vmatprep.subr.mxu0 0.0
  %1854 = vmatpush1.msra.mxu0 0.0
  %1855 = vmatprep.subr.mxu0 0.0
  %1856 = vmatpush1.msra.mxu0 0.0
  %1857 = vmatprep.subr.mxu0 0.0
  %1858 = vmatpush1.msra.mxu0 0.0
  %1859 = vmatprep.subr.mxu0 0.0
  %1860 = vmatpush1.msra.mxu0 0.0
  %1861 = vmatprep.subr.mxu0 0.0
  %1862 = vmatpush1.msra.mxu0 0.0
  %1863 = vmatprep.subr.mxu0 0.0
  %1864 = vmatpush1.msra.mxu0 0.0
  %1865 = vmatprep.subr.mxu0 0.0
  %1866 = vmatpush1.msra.mxu0 0.0
  %1867 = vmatprep.subr.mxu0 0.0
  %1868 = vmatpush1.msra.mxu0 %v1761
  %1869 = vmatprep.subr.mxu0 0.0
  %1870 = vmatpush2.msra.mxu0 0.0
  %1871 = vmatprep.subr.mxu0 0.0
  %1872 = vmatpush2.msra.mxu0 0.0
  %1873 = vmatprep.subr.mxu0 0.0
  %1874 = vmatpush2.msra.mxu0 0.0
  %1875 = vmatprep.subr.mxu0 0.0
  %1876 = vmatpush2.msra.mxu0 0.0
  %1877 = vmatprep.subr.mxu0 0.0
  %1878 = vmatpush2.msra.mxu0 0.0
  %1879 = vmatprep.subr.mxu0 0.0
  %1880 = vmatpush2.msra.mxu0 0.0
  %1881 = vmatprep.subr.mxu0 0.0
  %1882 = vmatpush2.msra.mxu0 0.0
  %1883 = vmatprep.subr.mxu0 0.0
  %1884 = vmatpush2.msra.mxu0 0.0
  %1885 = vmatprep.subr.mxu0 0.0
  %1886 = vmatpush2.msra.mxu0 0.0
  %1887 = vmatprep.subr.mxu0 0.0
  %1888 = vmatpush2.msra.mxu0 0.0
  %1889 = vmatprep.subr.mxu0 0.0
  %1890 = vmatpush2.msra.mxu0 0.0
  %1891 = vmatprep.subr.mxu0 0.0
  %1892 = vmatpush2.msra.mxu0 0.0
  %1893 = vmatprep.subr.mxu0 0.0
  %1894 = vmatpush2.msra.mxu0 0.0
  %1895 = vmatprep.subr.mxu0 0.0
  %1896 = vmatpush2.msra.mxu0 0.0
  %1897 = vmatprep.subr.mxu0 0.0
  %1898 = vmatpush2.msra.mxu0 0.0
  %1899 = vmatprep.subr.mxu0 0.0
  %1900 = vmatpush2.msra.mxu0 0.0
  %1901 = vmatprep.mubr.f32.mxu0 0.0
  %1902 = vmatmul.mubr.f32.gmra.mxu0 %v1835
  %v1903 = vpop.f32.mrf.mxu0
  %v1904 = vadd.f32 0.0, %v1903
  %v1905 = vpop.f32.mrf.mxu0
  %1906 = vdwg.mxu0
  %v1907 = vmax.f32 %v1830, %v1904
  %v1908 = vld [vmem:[%s11] sm:$0xff]
  %v1909 = vld [vmem:[%s11 + $0x8] sm:$0xff]
  %v1910 = vld [vmem:[%s11 + $0x10] sm:$0xff]
  %v1911 = vld [vmem:[%s11 + $0x18] sm:$0xff]
  %v1912 = vld [vmem:[%s11 + $0x20] sm:$0xff]
  %v1913 = vld [vmem:[%s11 + $0x28] sm:$0xff]
  %v1914 = vld [vmem:[%s11 + $0x30] sm:$0xff]
  %v1915 = vld [vmem:[%s11 + $0x38] sm:$0xff]
  %v1916 = vld [vmem:[%s11 + $0x40] sm:$0x3f]
  %vm1917 = vcmask 572416
  %v1919 = vsel %vm1917, %v1907, 0
  %v1922 = vsel %vm329, %v1916, 0
  %1924 = vmatprep.subr.mxu0 0.0
  %1925 = vmatpush1.msra.mxu0 0.0
  %1926 = vmatprep.subr.mxu0 0.0
  %1927 = vmatpush1.msra.mxu0 0.0
  %1928 = vmatprep.subr.mxu0 0.0
  %1929 = vmatpush1.msra.mxu0 0.0
  %1930 = vmatprep.subr.mxu0 0.0
  %1931 = vmatpush1.msra.mxu0 0.0
  %1932 = vmatprep.subr.mxu0 0.0
  %1933 = vmatpush1.msra.mxu0 0.0
  %1934 = vmatprep.subr.mxu0 0.0
  %1935 = vmatpush1.msra.mxu0 0.0
  %1936 = vmatprep.subr.mxu0 0.0
  %1937 = vmatpush1.msra.mxu0 0.0
  %1938 = vmatprep.subr.mxu0 0.0
  %1939 = vmatpush1.msra.mxu0 %v1922
  %1940 = vmatprep.subr.mxu0 0.0
  %1941 = vmatpush1.msra.mxu0 %v1915
  %1942 = vmatprep.subr.mxu0 0.0
  %1943 = vmatpush1.msra.mxu0 %v1914
  %1944 = vmatprep.subr.mxu0 0.0
  %1945 = vmatpush1.msra.mxu0 %v1913
  %1946 = vmatprep.subr.mxu0 0.0
  %1947 = vmatpush1.msra.mxu0 %v1912
  %1948 = vmatprep.subr.mxu0 0.0
  %1949 = vmatpush1.msra.mxu0 %v1911
  %1950 = vmatprep.subr.mxu0 0.0
  %1951 = vmatpush1.msra.mxu0 %v1910
  %1952 = vmatprep.subr.mxu0 0.0
  %1953 = vmatpush1.msra.mxu0 %v1909
  %1954 = vmatprep.subr.mxu0 0.0
  %1955 = vmatpush1.msra.mxu0 %v1908
  %1956 = vmatprep.subr.mxu0 0.0
  %1957 = vmatpush2.msra.mxu0 0.0
  %1958 = vmatprep.subr.mxu0 0.0
  %1959 = vmatpush2.msra.mxu0 0.0
  %1960 = vmatprep.subr.mxu0 0.0
  %1961 = vmatpush2.msra.mxu0 0.0
  %1962 = vmatprep.subr.mxu0 0.0
  %1963 = vmatpush2.msra.mxu0 0.0
  %1964 = vmatprep.subr.mxu0 0.0
  %1965 = vmatpush2.msra.mxu0 0.0
  %1966 = vmatprep.subr.mxu0 0.0
  %1967 = vmatpush2.msra.mxu0 0.0
  %1968 = vmatprep.subr.mxu0 0.0
  %1969 = vmatpush2.msra.mxu0 0.0
  %1970 = vmatprep.subr.mxu0 0.0
  %1971 = vmatpush2.msra.mxu0 0.0
  %1972 = vmatprep.subr.mxu0 0.0
  %1973 = vmatpush2.msra.mxu0 0.0
  %1974 = vmatprep.subr.mxu0 0.0
  %1975 = vmatpush2.msra.mxu0 0.0
  %1976 = vmatprep.subr.mxu0 0.0
  %1977 = vmatpush2.msra.mxu0 0.0
  %1978 = vmatprep.subr.mxu0 0.0
  %1979 = vmatpush2.msra.mxu0 0.0
  %1980 = vmatprep.subr.mxu0 0.0
  %1981 = vmatpush2.msra.mxu0 0.0
  %1982 = vmatprep.subr.mxu0 0.0
  %1983 = vmatpush2.msra.mxu0 0.0
  %1984 = vmatprep.subr.mxu0 0.0
  %1985 = vmatpush2.msra.mxu0 0.0
  %1986 = vmatprep.subr.mxu0 0.0
  %1987 = vmatpush2.msra.mxu0 0.0
  %1988 = vmatprep.mubr.f32.mxu0 0.0
  %1989 = vmatmul.mubr.f32.gmra.mxu0 %v1919
  %v1990 = vpop.f32.mrf.mxu0
  %v1991 = vadd.f32 0.0, %v1990
  %v1992 = vpop.f32.mrf.mxu0
  %1993 = vdwg.mxu0
  %v1994 = vld [vmem:[%s12] sm:$0xff]
  %v1995 = vld [vmem:[%s12 + $0x8] sm:$0xff]
  %v1996 = vld [vmem:[%s12 + $0x10] sm:$0xff]
  %v1997 = vld [vmem:[%s12 + $0x18] sm:$0xff]
  %v1998 = vld [vmem:[%s12 + $0x20] sm:$0xff]
  %v1999 = vld [vmem:[%s12 + $0x28] sm:$0xff]
  %v2000 = vld [vmem:[%s12 + $0x30] sm:$0xff]
  %v2001 = vld [vmem:[%s12 + $0x38] sm:$0xff]
  %v2002 = vld [vmem:[%s12 + $0x40] sm:$0x3f]
  %v2004 = vsel %vm329, %v2002, 0
  %2006 = vmatprep.subr.mxu0 0.0
  %2007 = vmatpush1.msra.mxu0 0.0
  %2008 = vmatprep.subr.mxu0 0.0
  %2009 = vmatpush1.msra.mxu0 0.0
  %2010 = vmatprep.subr.mxu0 0.0
  %2011 = vmatpush1.msra.mxu0 0.0
  %2012 = vmatprep.subr.mxu0 0.0
  %2013 = vmatpush1.msra.mxu0 0.0
  %2014 = vmatprep.subr.mxu0 0.0
  %2015 = vmatpush1.msra.mxu0 0.0
  %2016 = vmatprep.subr.mxu0 0.0
  %2017 = vmatpush1.msra.mxu0 0.0
  %2018 = vmatprep.subr.mxu0 0.0
  %2019 = vmatpush1.msra.mxu0 0.0
  %2020 = vmatprep.subr.mxu0 0.0
  %2021 = vmatpush1.msra.mxu0 %v2004
  %2022 = vmatprep.subr.mxu0 0.0
  %2023 = vmatpush1.msra.mxu0 %v2001
  %2024 = vmatprep.subr.mxu0 0.0
  %2025 = vmatpush1.msra.mxu0 %v2000
  %2026 = vmatprep.subr.mxu0 0.0
  %2027 = vmatpush1.msra.mxu0 %v1999
  %2028 = vmatprep.subr.mxu0 0.0
  %2029 = vmatpush1.msra.mxu0 %v1998
  %2030 = vmatprep.subr.mxu0 0.0
  %2031 = vmatpush1.msra.mxu0 %v1997
  %2032 = vmatprep.subr.mxu0 0.0
  %2033 = vmatpush1.msra.mxu0 %v1996
  %2034 = vmatprep.subr.mxu0 0.0
  %2035 = vmatpush1.msra.mxu0 %v1995
  %2036 = vmatprep.subr.mxu0 0.0
  %2037 = vmatpush1.msra.mxu0 %v1994
  %2038 = vmatprep.subr.mxu0 0.0
  %2039 = vmatpush2.msra.mxu0 0.0
  %2040 = vmatprep.subr.mxu0 0.0
  %2041 = vmatpush2.msra.mxu0 0.0
  %2042 = vmatprep.subr.mxu0 0.0
  %2043 = vmatpush2.msra.mxu0 0.0
  %2044 = vmatprep.subr.mxu0 0.0
  %2045 = vmatpush2.msra.mxu0 0.0
  %2046 = vmatprep.subr.mxu0 0.0
  %2047 = vmatpush2.msra.mxu0 0.0
  %2048 = vmatprep.subr.mxu0 0.0
  %2049 = vmatpush2.msra.mxu0 0.0
  %2050 = vmatprep.subr.mxu0 0.0
  %2051 = vmatpush2.msra.mxu0 0.0
  %2052 = vmatprep.subr.mxu0 0.0
  %2053 = vmatpush2.msra.mxu0 0.0
  %2054 = vmatprep.subr.mxu0 0.0
  %2055 = vmatpush2.msra.mxu0 0.0
  %2056 = vmatprep.subr.mxu0 0.0
  %2057 = vmatpush2.msra.mxu0 0.0
  %2058 = vmatprep.subr.mxu0 0.0
  %2059 = vmatpush2.msra.mxu0 0.0
  %2060 = vmatprep.subr.mxu0 0.0
  %2061 = vmatpush2.msra.mxu0 0.0
  %2062 = vmatprep.subr.mxu0 0.0
  %2063 = vmatpush2.msra.mxu0 0.0
  %2064 = vmatprep.subr.mxu0 0.0
  %2065 = vmatpush2.msra.mxu0 0.0
  %2066 = vmatprep.subr.mxu0 0.0
  %2067 = vmatpush2.msra.mxu0 0.0
  %2068 = vmatprep.subr.mxu0 0.0
  %2069 = vmatpush2.msra.mxu0 0.0
  %2070 = vmatprep.mubr.f32.mxu0 0.0
  %2071 = vmatmul.mubr.f32.gmra.mxu0 %v1919
  %v2072 = vpop.f32.mrf.mxu0
  %v2073 = vadd.f32 0.0, %v2072
  %v2074 = vpop.f32.mrf.mxu0
  %2075 = vdwg.mxu0
  %v2076 = vmax.f32 %v1991, %v2073
  %v2077 = vmax.f32 %v2076, 0.0
  %v2078 = vld [vmem:[%s13] sm:$0xff]
  %v2079 = vld [vmem:[%s13 + $0x8] sm:$0xff]
  %v2080 = vld [vmem:[%s13 + $0x10] sm:$0xff]
  %v2081 = vld [vmem:[%s13 + $0x18] sm:$0x3f]
  %s2082 = scalar_lea.vmem %s13, 32
  %v2083 = vld [vmem:[%s2082] sm:$0xff]
  %v2084 = vld [vmem:[%s2082 + $0x8] sm:$0xff]
  %v2085 = vld [vmem:[%s2082 + $0x10] sm:$0xff]
  %v2086 = vld [vmem:[%s2082 + $0x18] sm:$0x3f]
  %v2088 = vrot.slane %v2077, 1
  %vm2089 = vcmask 244736
  %v2090 = vsel %vm2089, %v2088, 0
  %v2093 = vsel %vm329, %v2086, 0
  %2095 = vmatprep.subr.mxu0 0.0
  %2096 = vmatpush1.msra.mxu0 0.0
  %2097 = vmatprep.subr.mxu0 0.0
  %2098 = vmatpush1.msra.mxu0 0.0
  %2099 = vmatprep.subr.mxu0 0.0
  %2100 = vmatpush1.msra.mxu0 0.0
  %2101 = vmatprep.subr.mxu0 0.0
  %2102 = vmatpush1.msra.mxu0 0.0
  %2103 = vmatprep.subr.mxu0 0.0
  %2104 = vmatpush1.msra.mxu0 0.0
  %2105 = vmatprep.subr.mxu0 0.0
  %2106 = vmatpush1.msra.mxu0 0.0
  %2107 = vmatprep.subr.mxu0 0.0
  %2108 = vmatpush1.msra.mxu0 0.0
  %2109 = vmatprep.subr.mxu0 0.0
  %2110 = vmatpush1.msra.mxu0 0.0
  %2111 = vmatprep.subr.mxu0 0.0
  %2112 = vmatpush1.msra.mxu0 0.0
  %2113 = vmatprep.subr.mxu0 0.0
  %2114 = vmatpush1.msra.mxu0 0.0
  %2115 = vmatprep.subr.mxu0 0.0
  %2116 = vmatpush1.msra.mxu0 0.0
  %2117 = vmatprep.subr.mxu0 0.0
  %2118 = vmatpush1.msra.mxu0 0.0
  %2119 = vmatprep.subr.mxu0 0.0
  %2120 = vmatpush1.msra.mxu0 %v2093
  %2121 = vmatprep.subr.mxu0 0.0
  %2122 = vmatpush1.msra.mxu0 %v2085
  %2123 = vmatprep.subr.mxu0 0.0
  %2124 = vmatpush1.msra.mxu0 %v2084
  %2125 = vmatprep.subr.mxu0 0.0
  %2126 = vmatpush1.msra.mxu0 %v2083
  %2127 = vmatprep.subr.mxu0 0.0
  %2128 = vmatpush2.msra.mxu0 0.0
  %2129 = vmatprep.subr.mxu0 0.0
  %2130 = vmatpush2.msra.mxu0 0.0
  %2131 = vmatprep.subr.mxu0 0.0
  %2132 = vmatpush2.msra.mxu0 0.0
  %2133 = vmatprep.subr.mxu0 0.0
  %2134 = vmatpush2.msra.mxu0 0.0
  %2135 = vmatprep.subr.mxu0 0.0
  %2136 = vmatpush2.msra.mxu0 0.0
  %2137 = vmatprep.subr.mxu0 0.0
  %2138 = vmatpush2.msra.mxu0 0.0
  %2139 = vmatprep.subr.mxu0 0.0
  %2140 = vmatpush2.msra.mxu0 0.0
  %2141 = vmatprep.subr.mxu0 0.0
  %2142 = vmatpush2.msra.mxu0 0.0
  %2143 = vmatprep.subr.mxu0 0.0
  %2144 = vmatpush2.msra.mxu0 0.0
  %2145 = vmatprep.subr.mxu0 0.0
  %2146 = vmatpush2.msra.mxu0 0.0
  %2147 = vmatprep.subr.mxu0 0.0
  %2148 = vmatpush2.msra.mxu0 0.0
  %2149 = vmatprep.subr.mxu0 0.0
  %2150 = vmatpush2.msra.mxu0 0.0
  %2151 = vmatprep.subr.mxu0 0.0
  %2152 = vmatpush2.msra.mxu0 0.0
  %2153 = vmatprep.subr.mxu0 0.0
  %2154 = vmatpush2.msra.mxu0 0.0
  %2155 = vmatprep.subr.mxu0 0.0
  %2156 = vmatpush2.msra.mxu0 0.0
  %2157 = vmatprep.subr.mxu0 0.0
  %2158 = vmatpush2.msra.mxu0 0.0
  %2159 = vmatprep.mubr.f32.mxu0 0.0
  %2160 = vmatmul.mubr.f32.gmra.mxu0 %v2090
  %v2161 = vpop.f32.mrf.mxu0
  %v2162 = vadd.f32 0.0, %v2161
  %v2163 = vpop.f32.mrf.mxu0
  %2164 = vdwg.mxu0
  %v2165 = vsel %vm2089, %v2077, 0
  %v2168 = vsel %vm329, %v2081, 0
  %2170 = vmatprep.subr.mxu0 0.0
  %2171 = vmatpush1.msra.mxu0 0.0
  %2172 = vmatprep.subr.mxu0 0.0
  %2173 = vmatpush1.msra.mxu0 0.0
  %2174 = vmatprep.subr.mxu0 0.0
  %2175 = vmatpush1.msra.mxu0 0.0
  %2176 = vmatprep.subr.mxu0 0.0
  %2177 = vmatpush1.msra.mxu0 0.0
  %2178 = vmatprep.subr.mxu0 0.0
  %2179 = vmatpush1.msra.mxu0 0.0
  %2180 = vmatprep.subr.mxu0 0.0
  %2181 = vmatpush1.msra.mxu0 0.0
  %2182 = vmatprep.subr.mxu0 0.0
  %2183 = vmatpush1.msra.mxu0 0.0
  %2184 = vmatprep.subr.mxu0 0.0
  %2185 = vmatpush1.msra.mxu0 0.0
  %2186 = vmatprep.subr.mxu0 0.0
  %2187 = vmatpush1.msra.mxu0 0.0
  %2188 = vmatprep.subr.mxu0 0.0
  %2189 = vmatpush1.msra.mxu0 0.0
  %2190 = vmatprep.subr.mxu0 0.0
  %2191 = vmatpush1.msra.mxu0 0.0
  %2192 = vmatprep.subr.mxu0 0.0
  %2193 = vmatpush1.msra.mxu0 0.0
  %2194 = vmatprep.subr.mxu0 0.0
  %2195 = vmatpush1.msra.mxu0 %v2168
  %2196 = vmatprep.subr.mxu0 0.0
  %2197 = vmatpush1.msra.mxu0 %v2080
  %2198 = vmatprep.subr.mxu0 0.0
  %2199 = vmatpush1.msra.mxu0 %v2079
  %2200 = vmatprep.subr.mxu0 0.0
  %2201 = vmatpush1.msra.mxu0 %v2078
  %2202 = vmatprep.subr.mxu0 0.0
  %2203 = vmatpush2.msra.mxu0 0.0
  %2204 = vmatprep.subr.mxu0 0.0
  %2205 = vmatpush2.msra.mxu0 0.0
  %2206 = vmatprep.subr.mxu0 0.0
  %2207 = vmatpush2.msra.mxu0 0.0
  %2208 = vmatprep.subr.mxu0 0.0
  %2209 = vmatpush2.msra.mxu0 0.0
  %2210 = vmatprep.subr.mxu0 0.0
  %2211 = vmatpush2.msra.mxu0 0.0
  %2212 = vmatprep.subr.mxu0 0.0
  %2213 = vmatpush2.msra.mxu0 0.0
  %2214 = vmatprep.subr.mxu0 0.0
  %2215 = vmatpush2.msra.mxu0 0.0
  %2216 = vmatprep.subr.mxu0 0.0
  %2217 = vmatpush2.msra.mxu0 0.0
  %2218 = vmatprep.subr.mxu0 0.0
  %2219 = vmatpush2.msra.mxu0 0.0
  %2220 = vmatprep.subr.mxu0 0.0
  %2221 = vmatpush2.msra.mxu0 0.0
  %2222 = vmatprep.subr.mxu0 0.0
  %2223 = vmatpush2.msra.mxu0 0.0
  %2224 = vmatprep.subr.mxu0 0.0
  %2225 = vmatpush2.msra.mxu0 0.0
  %2226 = vmatprep.subr.mxu0 0.0
  %2227 = vmatpush2.msra.mxu0 0.0
  %2228 = vmatprep.subr.mxu0 0.0
  %2229 = vmatpush2.msra.mxu0 0.0
  %2230 = vmatprep.subr.mxu0 0.0
  %2231 = vmatpush2.msra.mxu0 0.0
  %2232 = vmatprep.subr.mxu0 0.0
  %2233 = vmatpush2.msra.mxu0 0.0
  %2234 = vmatprep.mubr.f32.mxu0 0.0
  %2235 = vmatmul.mubr.f32.gmra.mxu0 %v2165
  %v2236 = vpop.f32.mrf.mxu0
  %v2237 = vadd.f32 %v2162, %v2236
  %v2238 = vpop.f32.mrf.mxu0
  %2239 = vdwg.mxu0
  %s2240 = scalar_lea.vmem %s13, 64
  %v2241 = vld [vmem:[%s2240] sm:$0xff]
  %v2242 = vld [vmem:[%s2240 + $0x8] sm:$0xff]
  %v2243 = vld [vmem:[%s2240 + $0x10] sm:$0xff]
  %v2244 = vld [vmem:[%s2240 + $0x18] sm:$0x3f]
  %v2245 = vrot.slane %v2077, 2
  %v2246 = vsel %vm2089, %v2245, 0
  %v2249 = vsel %vm329, %v2244, 0
  %2251 = vmatprep.subr.mxu0 0.0
  %2252 = vmatpush1.msra.mxu0 0.0
  %2253 = vmatprep.subr.mxu0 0.0
  %2254 = vmatpush1.msra.mxu0 0.0
  %2255 = vmatprep.subr.mxu0 0.0
  %2256 = vmatpush1.msra.mxu0 0.0
  %2257 = vmatprep.subr.mxu0 0.0
  %2258 = vmatpush1.msra.mxu0 0.0
  %2259 = vmatprep.subr.mxu0 0.0
  %2260 = vmatpush1.msra.mxu0 0.0
  %2261 = vmatprep.subr.mxu0 0.0
  %2262 = vmatpush1.msra.mxu0 0.0
  %2263 = vmatprep.subr.mxu0 0.0
  %2264 = vmatpush1.msra.mxu0 0.0
  %2265 = vmatprep.subr.mxu0 0.0
  %2266 = vmatpush1.msra.mxu0 0.0
  %2267 = vmatprep.subr.mxu0 0.0
  %2268 = vmatpush1.msra.mxu0 0.0
  %2269 = vmatprep.subr.mxu0 0.0
  %2270 = vmatpush1.msra.mxu0 0.0
  %2271 = vmatprep.subr.mxu0 0.0
  %2272 = vmatpush1.msra.mxu0 0.0
  %2273 = vmatprep.subr.mxu0 0.0
  %2274 = vmatpush1.msra.mxu0 0.0
  %2275 = vmatprep.subr.mxu0 0.0
  %2276 = vmatpush1.msra.mxu0 %v2249
  %2277 = vmatprep.subr.mxu0 0.0
  %2278 = vmatpush1.msra.mxu0 %v2243
  %2279 = vmatprep.subr.mxu0 0.0
  %2280 = vmatpush1.msra.mxu0 %v2242
  %2281 = vmatprep.subr.mxu0 0.0
  %2282 = vmatpush1.msra.mxu0 %v2241
  %2283 = vmatprep.subr.mxu0 0.0
  %2284 = vmatpush2.msra.mxu0 0.0
  %2285 = vmatprep.subr.mxu0 0.0
  %2286 = vmatpush2.msra.mxu0 0.0
  %2287 = vmatprep.subr.mxu0 0.0
  %2288 = vmatpush2.msra.mxu0 0.0
  %2289 = vmatprep.subr.mxu0 0.0
  %2290 = vmatpush2.msra.mxu0 0.0
  %2291 = vmatprep.subr.mxu0 0.0
  %2292 = vmatpush2.msra.mxu0 0.0
  %2293 = vmatprep.subr.mxu0 0.0
  %2294 = vmatpush2.msra.mxu0 0.0
  %2295 = vmatprep.subr.mxu0 0.0
  %2296 = vmatpush2.msra.mxu0 0.0
  %2297 = vmatprep.subr.mxu0 0.0
  %2298 = vmatpush2.msra.mxu0 0.0
  %2299 = vmatprep.subr.mxu0 0.0
  %2300 = vmatpush2.msra.mxu0 0.0
  %2301 = vmatprep.subr.mxu0 0.0
  %2302 = vmatpush2.msra.mxu0 0.0
  %2303 = vmatprep.subr.mxu0 0.0
  %2304 = vmatpush2.msra.mxu0 0.0
  %2305 = vmatprep.subr.mxu0 0.0
  %2306 = vmatpush2.msra.mxu0 0.0
  %2307 = vmatprep.subr.mxu0 0.0
  %2308 = vmatpush2.msra.mxu0 0.0
  %2309 = vmatprep.subr.mxu0 0.0
  %2310 = vmatpush2.msra.mxu0 0.0
  %2311 = vmatprep.subr.mxu0 0.0
  %2312 = vmatpush2.msra.mxu0 0.0
  %2313 = vmatprep.subr.mxu0 0.0
  %2314 = vmatpush2.msra.mxu0 0.0
  %2315 = vmatprep.mubr.f32.mxu0 0.0
  %2316 = vmatmul.mubr.f32.gmra.mxu0 %v2246
  %v2317 = vpop.f32.mrf.mxu0
  %v2318 = vadd.f32 0.0, %v2317
  %v2319 = vpop.f32.mrf.mxu0
  %2320 = vdwg.mxu0
  %v2321 = vadd.f32 %v2237, %v2318
  %v2322 = vld [vmem:[%s14] sm:$0x1]
  %v2323 = vadd.f32 %v2321, %v2322
  %v2324 = vmax.f32 %v2323, 0.0
  %v2325 = vld [vmem:[%s15] sm:$0xff]
  %v2326 = vld [vmem:[%s15 + $0x8] sm:$0xff]
  %v2327 = vld [vmem:[%s15 + $0x10] sm:$0xff]
  %v2328 = vld [vmem:[%s15 + $0x18] sm:$0xff]
  %v2329 = vld [vmem:[%s16] sm:$0x1]
  %vm2330 = vcmask 261120
  %v2332 = vsel %vm2330, %v2324, 0
  %2334 = vmatprep.subr.mxu0 0.0
  %2335 = vmatpush1.msra.mxu0 0.0
  %2336 = vmatprep.subr.mxu0 0.0
  %2337 = vmatpush1.msra.mxu0 0.0
  %2338 = vmatprep.subr.mxu0 0.0
  %2339 = vmatpush1.msra.mxu0 0.0
  %2340 = vmatprep.subr.mxu0 0.0
  %2341 = vmatpush1.msra.mxu0 0.0
  %2342 = vmatprep.subr.mxu0 0.0
  %2343 = vmatpush1.msra.mxu0 0.0
  %2344 = vmatprep.subr.mxu0 0.0
  %2345 = vmatpush1.msra.mxu0 0.0
  %2346 = vmatprep.subr.mxu0 0.0
  %2347 = vmatpush1.msra.mxu0 0.0
  %2348 = vmatprep.subr.mxu0 0.0
  %2349 = vmatpush1.msra.mxu0 0.0
  %2350 = vmatprep.subr.mxu0 0.0
  %2351 = vmatpush1.msra.mxu0 0.0
  %2352 = vmatprep.subr.mxu0 0.0
  %2353 = vmatpush1.msra.mxu0 0.0
  %2354 = vmatprep.subr.mxu0 0.0
  %2355 = vmatpush1.msra.mxu0 0.0
  %2356 = vmatprep.subr.mxu0 0.0
  %2357 = vmatpush1.msra.mxu0 0.0
  %2358 = vmatprep.subr.mxu0 0.0
  %2359 = vmatpush1.msra.mxu0 %v2328
  %2360 = vmatprep.subr.mxu0 0.0
  %2361 = vmatpush1.msra.mxu0 %v2327
  %2362 = vmatprep.subr.mxu0 0.0
  %2363 = vmatpush1.msra.mxu0 %v2326
  %2364 = vmatprep.subr.mxu0 0.0
  %2365 = vmatpush1.msra.mxu0 %v2325
  %2366 = vmatprep.subr.mxu0 0.0
  %2367 = vmatpush2.msra.mxu0 0.0
  %2368 = vmatprep.subr.mxu0 0.0
  %2369 = vmatpush2.msra.mxu0 0.0
  %2370 = vmatprep.subr.mxu0 0.0
  %2371 = vmatpush2.msra.mxu0 0.0
  %2372 = vmatprep.subr.mxu0 0.0
  %2373 = vmatpush2.msra.mxu0 0.0
  %2374 = vmatprep.subr.mxu0 0.0
  %2375 = vmatpush2.msra.mxu0 0.0
  %2376 = vmatprep.subr.mxu0 0.0
  %2377 = vmatpush2.msra.mxu0 0.0
  %2378 = vmatprep.subr.mxu0 0.0
  %2379 = vmatpush2.msra.mxu0 0.0
  %2380 = vmatprep.subr.mxu0 0.0
  %2381 = vmatpush2.msra.mxu0 0.0
  %2382 = vmatprep.subr.mxu0 0.0
  %2383 = vmatpush2.msra.mxu0 0.0
  %2384 = vmatprep.subr.mxu0 0.0
  %2385 = vmatpush2.msra.mxu0 0.0
  %2386 = vmatprep.subr.mxu0 0.0
  %2387 = vmatpush2.msra.mxu0 0.0
  %2388 = vmatprep.subr.mxu0 0.0
  %2389 = vmatpush2.msra.mxu0 0.0
  %2390 = vmatprep.subr.mxu0 0.0
  %2391 = vmatpush2.msra.mxu0 0.0
  %2392 = vmatprep.subr.mxu0 0.0
  %2393 = vmatpush2.msra.mxu0 0.0
  %2394 = vmatprep.subr.mxu0 0.0
  %2395 = vmatpush2.msra.mxu0 0.0
  %2396 = vmatprep.subr.mxu0 0.0
  %2397 = vmatpush2.msra.mxu0 0.0
  %2398 = vmatprep.mubr.f32.mxu0 0.0
  %2399 = vmatmul.mubr.f32.gmra.mxu0 %v2332
  %v2400 = vpop.f32.mrf.mxu0
  %v2401 = vadd.f32 %v2329, %v2400
  %v2402 = vpop.f32.mrf.mxu0
  %2403 = vdwg.mxu0
  %2405 = vset.pattern.permute.xlu0 0
  %2406 = vperm.xlu0 %2405, %v2401
  %v2407 = vpop.permute.xlu0 %2406
  %v2410 = vlaneseq
  %v2411 = vshrl.u32 %v2410, 7
  %v2412 = vsub.s32 0, %v2411
  %v2413 = vrot.slane %v68, %v2412
  %v2414 = vlaneseq
  %v2415 = vshrl.u32 %v2414, 7
  %v2416 = vsub.s32 1, %v2415
  %v2417 = vrot.slane %v68, %v2416
  %v2418 = vlaneseq
  %v2419 = vshrl.u32 %v2418, 7
  %v2420 = vsub.s32 2, %v2419
  %v2421 = vrot.slane %v68, %v2420
  %v2422 = vlaneseq
  %v2423 = vshrl.u32 %v2422, 7
  %v2424 = vsub.s32 3, %v2423
  %v2425 = vrot.slane %v68, %v2424
  %v2426 = vlaneseq
  %v2427 = vshrl.u32 %v2426, 7
  %v2428 = vsub.s32 4, %v2427
  %v2429 = vrot.slane %v68, %v2428
  %v2430 = vlaneseq
  %v2431 = vshrl.u32 %v2430, 7
  %v2432 = vsub.s32 5, %v2431
  %v2433 = vrot.slane %v68, %v2432
  %v2434 = vlaneseq
  %v2435 = vshrl.u32 %v2434, 7
  %v2436 = vsub.s32 6, %v2435
  %v2437 = vrot.slane %v68, %v2436
  %v2445 = vmul.f32 %v2407, %v2413
  %v2446 = vmul.f32 %v2407, %v2417
  %v2447 = vmul.f32 %v2407, %v2421
  %v2448 = vmul.f32 %v2407, %v2425
  %v2449 = vmul.f32 %v2407, %v2429
  %v2450 = vmul.f32 %v2407, %v2433
  %v2451 = vmul.f32 %v2407, %v2437
  %2452 = vset.pattern.permute.xlu0 1
  %2453 = vperm.xlu0 %2452, %v2401
  %v2454 = vpop.permute.xlu0 %2453
  %v2457 = vlaneseq
  %v2458 = vshrl.u32 %v2457, 7
  %v2459 = vsub.s32 0, %v2458
  %v2460 = vrot.slane %v69, %v2459
  %v2461 = vlaneseq
  %v2462 = vshrl.u32 %v2461, 7
  %v2463 = vsub.s32 1, %v2462
  %v2464 = vrot.slane %v69, %v2463
  %v2465 = vlaneseq
  %v2466 = vshrl.u32 %v2465, 7
  %v2467 = vsub.s32 2, %v2466
  %v2468 = vrot.slane %v69, %v2467
  %v2469 = vlaneseq
  %v2470 = vshrl.u32 %v2469, 7
  %v2471 = vsub.s32 3, %v2470
  %v2472 = vrot.slane %v69, %v2471
  %v2473 = vlaneseq
  %v2474 = vshrl.u32 %v2473, 7
  %v2475 = vsub.s32 4, %v2474
  %v2476 = vrot.slane %v69, %v2475
  %v2477 = vlaneseq
  %v2478 = vshrl.u32 %v2477, 7
  %v2479 = vsub.s32 5, %v2478
  %v2480 = vrot.slane %v69, %v2479
  %v2481 = vlaneseq
  %v2482 = vshrl.u32 %v2481, 7
  %v2483 = vsub.s32 6, %v2482
  %v2484 = vrot.slane %v69, %v2483
  %v2492 = vmul.f32 %v2454, %v2460
  %v2493 = vmul.f32 %v2454, %v2464
  %v2494 = vmul.f32 %v2454, %v2468
  %v2495 = vmul.f32 %v2454, %v2472
  %v2496 = vmul.f32 %v2454, %v2476
  %v2497 = vmul.f32 %v2454, %v2480
  %v2498 = vmul.f32 %v2454, %v2484
  %v2499 = vadd.f32 %v2445, %v2492
  %v2500 = vadd.f32 %v2446, %v2493
  %v2501 = vadd.f32 %v2447, %v2494
  %v2502 = vadd.f32 %v2448, %v2495
  %v2503 = vadd.f32 %v2449, %v2496
  %v2504 = vadd.f32 %v2450, %v2497
  %v2505 = vadd.f32 %v2451, %v2498
  %2506 = vset.pattern.permute.xlu0 2
  %2507 = vperm.xlu0 %2506, %v2401
  %v2508 = vpop.permute.xlu0 %2507
  %v2510 = vadd.f32 %v2499, %v2508
  %v2511 = vadd.f32 %v2500, %v2508
  %v2512 = vadd.f32 %v2501, %v2508
  %v2513 = vadd.f32 %v2502, %v2508
  %v2514 = vadd.f32 %v2503, %v2508
  %v2515 = vadd.f32 %v2504, %v2508
  %v2516 = vadd.f32 %v2505, %v2508
  %2517 = vset.pattern.permute.xlu0 3
  %2518 = vperm.xlu0 %2517, %v2401
  %v2519 = vpop.permute.xlu0 %2518
  %v2521 = vmul.f32 %v2519, %v2413
  %v2522 = vmul.f32 %v2519, %v2417
  %v2523 = vmul.f32 %v2519, %v2421
  %v2524 = vmul.f32 %v2519, %v2425
  %v2525 = vmul.f32 %v2519, %v2429
  %v2526 = vmul.f32 %v2519, %v2433
  %v2527 = vmul.f32 %v2519, %v2437
  %2528 = vset.pattern.permute.xlu0 4
  %2529 = vperm.xlu0 %2528, %v2401
  %v2530 = vpop.permute.xlu0 %2529
  %v2532 = vmul.f32 %v2530, %v2460
  %v2533 = vmul.f32 %v2530, %v2464
  %v2534 = vmul.f32 %v2530, %v2468
  %v2535 = vmul.f32 %v2530, %v2472
  %v2536 = vmul.f32 %v2530, %v2476
  %v2537 = vmul.f32 %v2530, %v2480
  %v2538 = vmul.f32 %v2530, %v2484
  %v2539 = vadd.f32 %v2521, %v2532
  %v2540 = vadd.f32 %v2522, %v2533
  %v2541 = vadd.f32 %v2523, %v2534
  %v2542 = vadd.f32 %v2524, %v2535
  %v2543 = vadd.f32 %v2525, %v2536
  %v2544 = vadd.f32 %v2526, %v2537
  %v2545 = vadd.f32 %v2527, %v2538
  %2546 = vset.pattern.permute.xlu0 5
  %2547 = vperm.xlu0 %2546, %v2401
  %v2548 = vpop.permute.xlu0 %2547
  %v2550 = vadd.f32 %v2539, %v2548
  %v2551 = vadd.f32 %v2540, %v2548
  %v2552 = vadd.f32 %v2541, %v2548
  %v2553 = vadd.f32 %v2542, %v2548
  %v2554 = vadd.f32 %v2543, %v2548
  %v2555 = vadd.f32 %v2544, %v2548
  %v2556 = vadd.f32 %v2545, %v2548
  %v2557 = vadd.f32 %v2510, 1.0
  %v2558 = vadd.f32 %v2511, 1.0
  %v2559 = vadd.f32 %v2512, 1.0
  %v2560 = vadd.f32 %v2513, 1.0
  %v2561 = vadd.f32 %v2514, 1.0
  %v2562 = vadd.f32 %v2515, 1.0
  %v2563 = vadd.f32 %v2516, 1.0
  %v2564 = vmul.f32 %v2557, 28.0
  %v2565 = vmul.f32 %v2558, 28.0
  %v2566 = vmul.f32 %v2559, 28.0
  %v2567 = vmul.f32 %v2560, 28.0
  %v2568 = vmul.f32 %v2561, 28.0
  %v2569 = vmul.f32 %v2562, 28.0
  %v2570 = vmul.f32 %v2563, 28.0
  %v2571 = vsub.f32 %v2564, 1.0
  %v2572 = vsub.f32 %v2565, 1.0
  %v2573 = vsub.f32 %v2566, 1.0
  %v2574 = vsub.f32 %v2567, 1.0
  %v2575 = vsub.f32 %v2568, 1.0
  %v2576 = vsub.f32 %v2569, 1.0
  %v2577 = vsub.f32 %v2570, 1.0
  %v2578 = vmul.f32 %v2571, 0.5
  %v2579 = vmul.f32 %v2572, 0.5
  %v2580 = vmul.f32 %v2573, 0.5
  %v2581 = vmul.f32 %v2574, 0.5
  %v2582 = vmul.f32 %v2575, 0.5
  %v2583 = vmul.f32 %v2576, 0.5
  %v2584 = vmul.f32 %v2577, 0.5
  %v2585 = vadd.f32 %v2550, 1.0
  %v2586 = vadd.f32 %v2551, 1.0
  %v2587 = vadd.f32 %v2552, 1.0
  %v2588 = vadd.f32 %v2553, 1.0
  %v2589 = vadd.f32 %v2554, 1.0
  %v2590 = vadd.f32 %v2555, 1.0
  %v2591 = vadd.f32 %v2556, 1.0
  %v2592 = vmul.f32 %v2585, 28.0
  %v2593 = vmul.f32 %v2586, 28.0
  %v2594 = vmul.f32 %v2587, 28.0
  %v2595 = vmul.f32 %v2588, 28.0
  %v2596 = vmul.f32 %v2589, 28.0
  %v2597 = vmul.f32 %v2590, 28.0
  %v2598 = vmul.f32 %v2591, 28.0
  %v2599 = vsub.f32 %v2592, 1.0
  %v2600 = vsub.f32 %v2593, 1.0
  %v2601 = vsub.f32 %v2594, 1.0
  %v2602 = vsub.f32 %v2595, 1.0
  %v2603 = vsub.f32 %v2596, 1.0
  %v2604 = vsub.f32 %v2597, 1.0
  %v2605 = vsub.f32 %v2598, 1.0
  %v2606 = vmul.f32 %v2599, 0.5
  %v2607 = vmul.f32 %v2600, 0.5
  %v2608 = vmul.f32 %v2601, 0.5
  %v2609 = vmul.f32 %v2602, 0.5
  %v2610 = vmul.f32 %v2603, 0.5
  %v2611 = vmul.f32 %v2604, 0.5
  %v2612 = vmul.f32 %v2605, 0.5
  %v2613 = vfloor.f32 %v2578
  %v2614 = vfloor.f32 %v2579
  %v2615 = vfloor.f32 %v2580
  %v2616 = vfloor.f32 %v2581
  %v2617 = vfloor.f32 %v2582
  %v2618 = vfloor.f32 %v2583
  %v2619 = vfloor.f32 %v2584
  %v2620 = vfloor.f32 %v2606
  %v2621 = vfloor.f32 %v2607
  %v2622 = vfloor.f32 %v2608
  %v2623 = vfloor.f32 %v2609
  %v2624 = vfloor.f32 %v2610
  %v2625 = vfloor.f32 %v2611
  %v2626 = vfloor.f32 %v2612
  %v2627 = vsub.f32 %v2578, %v2613
  %v2628 = vsub.f32 %v2579, %v2614
  %v2629 = vsub.f32 %v2580, %v2615
  %v2630 = vsub.f32 %v2581, %v2616
  %v2631 = vsub.f32 %v2582, %v2617
  %v2632 = vsub.f32 %v2583, %v2618
  %v2633 = vsub.f32 %v2584, %v2619
  %v2634 = vsub.f32 %v2606, %v2620
  %v2635 = vsub.f32 %v2607, %v2621
  %v2636 = vsub.f32 %v2608, %v2622
  %v2637 = vsub.f32 %v2609, %v2623
  %v2638 = vsub.f32 %v2610, %v2624
  %v2639 = vsub.f32 %v2611, %v2625
  %v2640 = vsub.f32 %v2612, %v2626
  %v2641 = vsub.f32 1.0, %v2627
  %v2642 = vsub.f32 1.0, %v2628
  %v2643 = vsub.f32 1.0, %v2629
  %v2644 = vsub.f32 1.0, %v2630
  %v2645 = vsub.f32 1.0, %v2631
  %v2646 = vsub.f32 1.0, %v2632
  %v2647 = vsub.f32 1.0, %v2633
  %v2648 = vsub.f32 1.0, %v2634
  %v2649 = vsub.f32 1.0, %v2635
  %v2650 = vsub.f32 1.0, %v2636
  %v2651 = vsub.f32 1.0, %v2637
  %v2652 = vsub.f32 1.0, %v2638
  %v2653 = vsub.f32 1.0, %v2639
  %v2654 = vsub.f32 1.0, %v2640
  %v2655 = vlaneseq
  %v2656 = vshrl.u32 %v2655, 7
  %v2657 = vsub.s32 0, %v2656
  %v2658 = vrot.slane %v2613, %v2657
  %v2659 = vlaneseq
  %v2660 = vshrl.u32 %v2659, 7
  %v2661 = vsub.s32 0, %v2660
  %v2662 = vrot.slane %v2614, %v2661
  %v2663 = vlaneseq
  %v2664 = vshrl.u32 %v2663, 7
  %v2665 = vsub.s32 0, %v2664
  %v2666 = vrot.slane %v2615, %v2665
  %v2667 = vlaneseq
  %v2668 = vshrl.u32 %v2667, 7
  %v2669 = vsub.s32 0, %v2668
  %v2670 = vrot.slane %v2616, %v2669
  %v2671 = vlaneseq
  %v2672 = vshrl.u32 %v2671, 7
  %v2673 = vsub.s32 0, %v2672
  %v2674 = vrot.slane %v2617, %v2673
  %v2675 = vlaneseq
  %v2676 = vshrl.u32 %v2675, 7
  %v2677 = vsub.s32 0, %v2676
  %v2678 = vrot.slane %v2618, %v2677
  %v2679 = vlaneseq
  %v2680 = vshrl.u32 %v2679, 7
  %v2681 = vsub.s32 0, %v2680
  %v2682 = vrot.slane %v2619, %v2681
  %vm2683 = vcmp.eq.f32.partialorder %v70, %v2658
  %vm2684 = vcmp.eq.f32.partialorder %v71, %v2662
  %vm2685 = vcmp.eq.f32.partialorder %v72, %v2666
  %vm2686 = vcmp.eq.f32.partialorder %v73, %v2670
  %vm2687 = vcmp.eq.f32.partialorder %v74, %v2674
  %vm2688 = vcmp.eq.f32.partialorder %v75, %v2678
  %vm2689 = vcmp.eq.f32.partialorder %v76, %v2682
  %vm2690 = vcmp.eq.f32.partialorder %v77, %v2658
  %vm2691 = vcmp.eq.f32.partialorder %v78, %v2662
  %vm2692 = vcmp.eq.f32.partialorder %v79, %v2666
  %vm2693 = vcmp.eq.f32.partialorder %v80, %v2670
  %vm2694 = vcmp.eq.f32.partialorder %v81, %v2674
  %vm2695 = vcmp.eq.f32.partialorder %v82, %v2678
  %vm2696 = vcmp.eq.f32.partialorder %v83, %v2682
  %vm2697 = vcmp.eq.f32.partialorder %v84, %v2658
  %vm2698 = vcmp.eq.f32.partialorder %v85, %v2662
  %vm2699 = vcmp.eq.f32.partialorder %v86, %v2666
  %vm2700 = vcmp.eq.f32.partialorder %v87, %v2670
  %vm2701 = vcmp.eq.f32.partialorder %v88, %v2674
  %vm2702 = vcmp.eq.f32.partialorder %v89, %v2678
  %vm2703 = vcmp.eq.f32.partialorder %v90, %v2682
  %vm2704 = vcmp.eq.f32.partialorder %v91, %v2658
  %vm2705 = vcmp.eq.f32.partialorder %v92, %v2662
  %vm2706 = vcmp.eq.f32.partialorder %v93, %v2666
  %vm2707 = vcmp.eq.f32.partialorder %v94, %v2670
  %vm2708 = vcmp.eq.f32.partialorder %v95, %v2674
  %vm2709 = vcmp.eq.f32.partialorder %v96, %v2678
  %vm2710 = vcmp.eq.f32.partialorder %v97, %v2682
  %v2711 = vlaneseq
  %v2712 = vshrl.u32 %v2711, 7
  %v2713 = vsub.s32 0, %v2712
  %v2714 = vrot.slane %v2641, %v2713
  %v2715 = vlaneseq
  %v2716 = vshrl.u32 %v2715, 7
  %v2717 = vsub.s32 0, %v2716
  %v2718 = vrot.slane %v2642, %v2717
  %v2719 = vlaneseq
  %v2720 = vshrl.u32 %v2719, 7
  %v2721 = vsub.s32 0, %v2720
  %v2722 = vrot.slane %v2643, %v2721
  %v2723 = vlaneseq
  %v2724 = vshrl.u32 %v2723, 7
  %v2725 = vsub.s32 0, %v2724
  %v2726 = vrot.slane %v2644, %v2725
  %v2727 = vlaneseq
  %v2728 = vshrl.u32 %v2727, 7
  %v2729 = vsub.s32 0, %v2728
  %v2730 = vrot.slane %v2645, %v2729
  %v2731 = vlaneseq
  %v2732 = vshrl.u32 %v2731, 7
  %v2733 = vsub.s32 0, %v2732
  %v2734 = vrot.slane %v2646, %v2733
  %v2735 = vlaneseq
  %v2736 = vshrl.u32 %v2735, 7
  %v2737 = vsub.s32 0, %v2736
  %v2738 = vrot.slane %v2647, %v2737
  %v2739 = vsel %vm2683, %v2714, 0.0
  %v2740 = vsel %vm2684, %v2718, 0.0
  %v2741 = vsel %vm2685, %v2722, 0.0
  %v2742 = vsel %vm2686, %v2726, 0.0
  %v2743 = vsel %vm2687, %v2730, 0.0
  %v2744 = vsel %vm2688, %v2734, 0.0
  %v2745 = vsel %vm2689, %v2738, 0.0
  %v2746 = vsel %vm2690, %v2714, 0.0
  %v2747 = vsel %vm2691, %v2718, 0.0
  %v2748 = vsel %vm2692, %v2722, 0.0
  %v2749 = vsel %vm2693, %v2726, 0.0
  %v2750 = vsel %vm2694, %v2730, 0.0
  %v2751 = vsel %vm2695, %v2734, 0.0
  %v2752 = vsel %vm2696, %v2738, 0.0
  %v2753 = vsel %vm2697, %v2714, 0.0
  %v2754 = vsel %vm2698, %v2718, 0.0
  %v2755 = vsel %vm2699, %v2722, 0.0
  %v2756 = vsel %vm2700, %v2726, 0.0
  %v2757 = vsel %vm2701, %v2730, 0.0
  %v2758 = vsel %vm2702, %v2734, 0.0
  %v2759 = vsel %vm2703, %v2738, 0.0
  %v2760 = vsel %vm2704, %v2714, 0.0
  %v2761 = vsel %vm2705, %v2718, 0.0
  %v2762 = vsel %vm2706, %v2722, 0.0
  %v2763 = vsel %vm2707, %v2726, 0.0
  %v2764 = vsel %vm2708, %v2730, 0.0
  %v2765 = vsel %vm2709, %v2734, 0.0
  %v2766 = vsel %vm2710, %v2738, 0.0
  %v2767 = vadd.f32 %v2613, 1.0
  %v2768 = vadd.f32 %v2614, 1.0
  %v2769 = vadd.f32 %v2615, 1.0
  %v2770 = vadd.f32 %v2616, 1.0
  %v2771 = vadd.f32 %v2617, 1.0
  %v2772 = vadd.f32 %v2618, 1.0
  %v2773 = vadd.f32 %v2619, 1.0
  %v2774 = vlaneseq
  %v2775 = vshrl.u32 %v2774, 7
  %v2776 = vsub.s32 0, %v2775
  %v2777 = vrot.slane %v2767, %v2776
  %v2778 = vlaneseq
  %v2779 = vshrl.u32 %v2778, 7
  %v2780 = vsub.s32 0, %v2779
  %v2781 = vrot.slane %v2768, %v2780
  %v2782 = vlaneseq
  %v2783 = vshrl.u32 %v2782, 7
  %v2784 = vsub.s32 0, %v2783
  %v2785 = vrot.slane %v2769, %v2784
  %v2786 = vlaneseq
  %v2787 = vshrl.u32 %v2786, 7
  %v2788 = vsub.s32 0, %v2787
  %v2789 = vrot.slane %v2770, %v2788
  %v2790 = vlaneseq
  %v2791 = vshrl.u32 %v2790, 7
  %v2792 = vsub.s32 0, %v2791
  %v2793 = vrot.slane %v2771, %v2792
  %v2794 = vlaneseq
  %v2795 = vshrl.u32 %v2794, 7
  %v2796 = vsub.s32 0, %v2795
  %v2797 = vrot.slane %v2772, %v2796
  %v2798 = vlaneseq
  %v2799 = vshrl.u32 %v2798, 7
  %v2800 = vsub.s32 0, %v2799
  %v2801 = vrot.slane %v2773, %v2800
  %vm2802 = vcmp.eq.f32.partialorder %v70, %v2777
  %vm2803 = vcmp.eq.f32.partialorder %v71, %v2781
  %vm2804 = vcmp.eq.f32.partialorder %v72, %v2785
  %vm2805 = vcmp.eq.f32.partialorder %v73, %v2789
  %vm2806 = vcmp.eq.f32.partialorder %v74, %v2793
  %vm2807 = vcmp.eq.f32.partialorder %v75, %v2797
  %vm2808 = vcmp.eq.f32.partialorder %v76, %v2801
  %vm2809 = vcmp.eq.f32.partialorder %v77, %v2777
  %vm2810 = vcmp.eq.f32.partialorder %v78, %v2781
  %vm2811 = vcmp.eq.f32.partialorder %v79, %v2785
  %vm2812 = vcmp.eq.f32.partialorder %v80, %v2789
  %vm2813 = vcmp.eq.f32.partialorder %v81, %v2793
  %vm2814 = vcmp.eq.f32.partialorder %v82, %v2797
  %vm2815 = vcmp.eq.f32.partialorder %v83, %v2801
  %vm2816 = vcmp.eq.f32.partialorder %v84, %v2777
  %vm2817 = vcmp.eq.f32.partialorder %v85, %v2781
  %vm2818 = vcmp.eq.f32.partialorder %v86, %v2785
  %vm2819 = vcmp.eq.f32.partialorder %v87, %v2789
  %vm2820 = vcmp.eq.f32.partialorder %v88, %v2793
  %vm2821 = vcmp.eq.f32.partialorder %v89, %v2797
  %vm2822 = vcmp.eq.f32.partialorder %v90, %v2801
  %vm2823 = vcmp.eq.f32.partialorder %v91, %v2777
  %vm2824 = vcmp.eq.f32.partialorder %v92, %v2781
  %vm2825 = vcmp.eq.f32.partialorder %v93, %v2785
  %vm2826 = vcmp.eq.f32.partialorder %v94, %v2789
  %vm2827 = vcmp.eq.f32.partialorder %v95, %v2793
  %vm2828 = vcmp.eq.f32.partialorder %v96, %v2797
  %vm2829 = vcmp.eq.f32.partialorder %v97, %v2801
  %v2830 = vlaneseq
  %v2831 = vshrl.u32 %v2830, 7
  %v2832 = vsub.s32 0, %v2831
  %v2833 = vrot.slane %v2627, %v2832
  %v2834 = vlaneseq
  %v2835 = vshrl.u32 %v2834, 7
  %v2836 = vsub.s32 0, %v2835
  %v2837 = vrot.slane %v2628, %v2836
  %v2838 = vlaneseq
  %v2839 = vshrl.u32 %v2838, 7
  %v2840 = vsub.s32 0, %v2839
  %v2841 = vrot.slane %v2629, %v2840
  %v2842 = vlaneseq
  %v2843 = vshrl.u32 %v2842, 7
  %v2844 = vsub.s32 0, %v2843
  %v2845 = vrot.slane %v2630, %v2844
  %v2846 = vlaneseq
  %v2847 = vshrl.u32 %v2846, 7
  %v2848 = vsub.s32 0, %v2847
  %v2849 = vrot.slane %v2631, %v2848
  %v2850 = vlaneseq
  %v2851 = vshrl.u32 %v2850, 7
  %v2852 = vsub.s32 0, %v2851
  %v2853 = vrot.slane %v2632, %v2852
  %v2854 = vlaneseq
  %v2855 = vshrl.u32 %v2854, 7
  %v2856 = vsub.s32 0, %v2855
  %v2857 = vrot.slane %v2633, %v2856
  %v2858 = vsel %vm2802, %v2833, 0.0
  %v2859 = vsel %vm2803, %v2837, 0.0
  %v2860 = vsel %vm2804, %v2841, 0.0
  %v2861 = vsel %vm2805, %v2845, 0.0
  %v2862 = vsel %vm2806, %v2849, 0.0
  %v2863 = vsel %vm2807, %v2853, 0.0
  %v2864 = vsel %vm2808, %v2857, 0.0
  %v2865 = vsel %vm2809, %v2833, 0.0
  %v2866 = vsel %vm2810, %v2837, 0.0
  %v2867 = vsel %vm2811, %v2841, 0.0
  %v2868 = vsel %vm2812, %v2845, 0.0
  %v2869 = vsel %vm2813, %v2849, 0.0
  %v2870 = vsel %vm2814, %v2853, 0.0
  %v2871 = vsel %vm2815, %v2857, 0.0
  %v2872 = vsel %vm2816, %v2833, 0.0
  %v2873 = vsel %vm2817, %v2837, 0.0
  %v2874 = vsel %vm2818, %v2841, 0.0
  %v2875 = vsel %vm2819, %v2845, 0.0
  %v2876 = vsel %vm2820, %v2849, 0.0
  %v2877 = vsel %vm2821, %v2853, 0.0
  %v2878 = vsel %vm2822, %v2857, 0.0
  %v2879 = vsel %vm2823, %v2833, 0.0
  %v2880 = vsel %vm2824, %v2837, 0.0
  %v2881 = vsel %vm2825, %v2841, 0.0
  %v2882 = vsel %vm2826, %v2845, 0.0
  %v2883 = vsel %vm2827, %v2849, 0.0
  %v2884 = vsel %vm2828, %v2853, 0.0
  %v2885 = vsel %vm2829, %v2857, 0.0
  %v2886 = vadd.f32 %v2739, %v2858
  %v2887 = vadd.f32 %v2740, %v2859
  %v2888 = vadd.f32 %v2741, %v2860
  %v2889 = vadd.f32 %v2742, %v2861
  %v2890 = vadd.f32 %v2743, %v2862
  %v2891 = vadd.f32 %v2744, %v2863
  %v2892 = vadd.f32 %v2745, %v2864
  %v2893 = vadd.f32 %v2746, %v2865
  %v2894 = vadd.f32 %v2747, %v2866
  %v2895 = vadd.f32 %v2748, %v2867
  %v2896 = vadd.f32 %v2749, %v2868
  %v2897 = vadd.f32 %v2750, %v2869
  %v2898 = vadd.f32 %v2751, %v2870
  %v2899 = vadd.f32 %v2752, %v2871
  %v2900 = vadd.f32 %v2753, %v2872
  %v2901 = vadd.f32 %v2754, %v2873
  %v2902 = vadd.f32 %v2755, %v2874
  %v2903 = vadd.f32 %v2756, %v2875
  %v2904 = vadd.f32 %v2757, %v2876
  %v2905 = vadd.f32 %v2758, %v2877
  %v2906 = vadd.f32 %v2759, %v2878
  %v2907 = vadd.f32 %v2760, %v2879
  %v2908 = vadd.f32 %v2761, %v2880
  %v2909 = vadd.f32 %v2762, %v2881
  %v2910 = vadd.f32 %v2763, %v2882
  %v2911 = vadd.f32 %v2764, %v2883
  %v2912 = vadd.f32 %v2765, %v2884
  %v2913 = vadd.f32 %v2766, %v2885
  %v2914 = vsel %vm128, %v101, 0
  %v2917 = vsel %vm135, %v2907, 0
  %v2920 = vsel %vm135, %v2908, 0
  %v2923 = vsel %vm135, %v2909, 0
  %v2926 = vsel %vm135, %v2910, 0
  %v2929 = vsel %vm135, %v2911, 0
  %v2932 = vsel %vm135, %v2912, 0
  %v2935 = vsel %vm135, %v2913, 0
  %2937 = vmatprep.subr.mxu0 0.0
  %2938 = vmatpush1.msra.mxu0 0.0
  %2939 = vmatprep.subr.mxu0 0.0
  %2940 = vmatpush1.msra.mxu0 0.0
  %2941 = vmatprep.subr.mxu0 0.0
  %2942 = vmatpush1.msra.mxu0 0.0
  %2943 = vmatprep.subr.mxu0 0.0
  %2944 = vmatpush1.msra.mxu0 0.0
  %2945 = vmatprep.subr.mxu0 0.0
  %2946 = vmatpush1.msra.mxu0 0.0
  %2947 = vmatprep.subr.mxu0 0.0
  %2948 = vmatpush1.msra.mxu0 0.0
  %2949 = vmatprep.subr.mxu0 0.0
  %2950 = vmatpush1.msra.mxu0 0.0
  %2951 = vmatprep.subr.mxu0 0.0
  %2952 = vmatpush1.msra.mxu0 0.0
  %2953 = vmatprep.subr.mxu0 0.0
  %2954 = vmatpush1.msra.mxu0 0.0
  %2955 = vmatprep.subr.mxu0 0.0
  %2956 = vmatpush1.msra.mxu0 0.0
  %2957 = vmatprep.subr.mxu0 0.0
  %2958 = vmatpush1.msra.mxu0 0.0
  %2959 = vmatprep.subr.mxu0 0.0
  %2960 = vmatpush1.msra.mxu0 0.0
  %2961 = vmatprep.subr.mxu0 %v2920
  %2962 = vmatpush1.msra.mxu0 %v2917
  %2963 = vmatprep.subr.mxu0 %v2901
  %2964 = vmatpush1.msra.mxu0 %v2900
  %2965 = vmatprep.subr.mxu0 %v2894
  %2966 = vmatpush1.msra.mxu0 %v2893
  %2967 = vmatprep.subr.mxu0 %v2887
  %2968 = vmatpush1.msra.mxu0 %v2886
  %2969 = vmatprep.subr.mxu0 0.0
  %2970 = vmatpush2.msra.mxu0 0.0
  %2971 = vmatprep.subr.mxu0 0.0
  %2972 = vmatpush2.msra.mxu0 0.0
  %2973 = vmatprep.subr.mxu0 0.0
  %2974 = vmatpush2.msra.mxu0 0.0
  %2975 = vmatprep.subr.mxu0 0.0
  %2976 = vmatpush2.msra.mxu0 0.0
  %2977 = vmatprep.subr.mxu0 0.0
  %2978 = vmatpush2.msra.mxu0 0.0
  %2979 = vmatprep.subr.mxu0 0.0
  %2980 = vmatpush2.msra.mxu0 0.0
  %2981 = vmatprep.subr.mxu0 0.0
  %2982 = vmatpush2.msra.mxu0 0.0
  %2983 = vmatprep.subr.mxu0 0.0
  %2984 = vmatpush2.msra.mxu0 0.0
  %2985 = vmatprep.subr.mxu0 0.0
  %2986 = vmatpush2.msra.mxu0 0.0
  %2987 = vmatprep.subr.mxu0 0.0
  %2988 = vmatpush2.msra.mxu0 0.0
  %2989 = vmatprep.subr.mxu0 0.0
  %2990 = vmatpush2.msra.mxu0 0.0
  %2991 = vmatprep.subr.mxu0 0.0
  %2992 = vmatpush2.msra.mxu0 0.0
  %2993 = vmatprep.subr.mxu0 0.0
  %2994 = vmatpush2.msra.mxu0 0.0
  %2995 = vmatprep.subr.mxu0 0.0
  %2996 = vmatpush2.msra.mxu0 0.0
  %2997 = vmatprep.subr.mxu0 0.0
  %2998 = vmatpush2.msra.mxu0 0.0
  %2999 = vmatprep.subr.mxu0 0.0
  %3000 = vmatpush2.msra.mxu0 0.0
  %3001 = vmatprep.mubr.f32.mxu0 0.0
  %3002 = vmatmul.mubr.f32.gmra.mxu0 %v225
  %v3003 = vpop.f32.mrf.mxu0
  %v3004 = vadd.f32 0.0, %v3003
  %v3005 = vpop.f32.mrf.mxu0
  %v3006 = vadd.f32 0.0, %v3005
  %3007 = vmatprep.mubr.f32.mxu0 0.0
  %3008 = vmatmul.mubr.f32.gmra.mxu0 %v227
  %v3009 = vpop.f32.mrf.mxu0
  %v3010 = vadd.f32 0.0, %v3009
  %v3011 = vpop.f32.mrf.mxu0
  %v3012 = vadd.f32 0.0, %v3011
  %3013 = vmatprep.mubr.f32.mxu0 0.0
  %3014 = vmatmul.mubr.f32.gmra.mxu0 %v229
  %v3015 = vpop.f32.mrf.mxu0
  %v3016 = vadd.f32 0.0, %v3015
  %v3017 = vpop.f32.mrf.mxu0
  %v3018 = vadd.f32 0.0, %v3017
  %3019 = vmatprep.mubr.f32.mxu0 0.0
  %3020 = vmatmul.mubr.f32.gmra.mxu0 %v2914
  %v3021 = vpop.f32.mrf.mxu0
  %v3022 = vadd.f32 0.0, %v3021
  %v3023 = vpop.f32.mrf.mxu0
  %v3024 = vadd.f32 0.0, %v3023
  %3025 = vdwg.mxu0
  %3026 = vmatprep.subr.mxu0 0.0
  %3027 = vmatpush1.msra.mxu0 0.0
  %3028 = vmatprep.subr.mxu0 0.0
  %3029 = vmatpush1.msra.mxu0 0.0
  %3030 = vmatprep.subr.mxu0 0.0
  %3031 = vmatpush1.msra.mxu0 0.0
  %3032 = vmatprep.subr.mxu0 0.0
  %3033 = vmatpush1.msra.mxu0 0.0
  %3034 = vmatprep.subr.mxu0 0.0
  %3035 = vmatpush1.msra.mxu0 0.0
  %3036 = vmatprep.subr.mxu0 0.0
  %3037 = vmatpush1.msra.mxu0 0.0
  %3038 = vmatprep.subr.mxu0 0.0
  %3039 = vmatpush1.msra.mxu0 0.0
  %3040 = vmatprep.subr.mxu0 0.0
  %3041 = vmatpush1.msra.mxu0 0.0
  %3042 = vmatprep.subr.mxu0 0.0
  %3043 = vmatpush1.msra.mxu0 0.0
  %3044 = vmatprep.subr.mxu0 0.0
  %3045 = vmatpush1.msra.mxu0 0.0
  %3046 = vmatprep.subr.mxu0 0.0
  %3047 = vmatpush1.msra.mxu0 0.0
  %3048 = vmatprep.subr.mxu0 0.0
  %3049 = vmatpush1.msra.mxu0 0.0
  %3050 = vmatprep.subr.mxu0 %v2926
  %3051 = vmatpush1.msra.mxu0 %v2923
  %3052 = vmatprep.subr.mxu0 %v2903
  %3053 = vmatpush1.msra.mxu0 %v2902
  %3054 = vmatprep.subr.mxu0 %v2896
  %3055 = vmatpush1.msra.mxu0 %v2895
  %3056 = vmatprep.subr.mxu0 %v2889
  %3057 = vmatpush1.msra.mxu0 %v2888
  %3058 = vmatprep.subr.mxu0 0.0
  %3059 = vmatpush2.msra.mxu0 0.0
  %3060 = vmatprep.subr.mxu0 0.0
  %3061 = vmatpush2.msra.mxu0 0.0
  %3062 = vmatprep.subr.mxu0 0.0
  %3063 = vmatpush2.msra.mxu0 0.0
  %3064 = vmatprep.subr.mxu0 0.0
  %3065 = vmatpush2.msra.mxu0 0.0
  %3066 = vmatprep.subr.mxu0 0.0
  %3067 = vmatpush2.msra.mxu0 0.0
  %3068 = vmatprep.subr.mxu0 0.0
  %3069 = vmatpush2.msra.mxu0 0.0
  %3070 = vmatprep.subr.mxu0 0.0
  %3071 = vmatpush2.msra.mxu0 0.0
  %3072 = vmatprep.subr.mxu0 0.0
  %3073 = vmatpush2.msra.mxu0 0.0
  %3074 = vmatprep.subr.mxu0 0.0
  %3075 = vmatpush2.msra.mxu0 0.0
  %3076 = vmatprep.subr.mxu0 0.0
  %3077 = vmatpush2.msra.mxu0 0.0
  %3078 = vmatprep.subr.mxu0 0.0
  %3079 = vmatpush2.msra.mxu0 0.0
  %3080 = vmatprep.subr.mxu0 0.0
  %3081 = vmatpush2.msra.mxu0 0.0
  %3082 = vmatprep.subr.mxu0 0.0
  %3083 = vmatpush2.msra.mxu0 0.0
  %3084 = vmatprep.subr.mxu0 0.0
  %3085 = vmatpush2.msra.mxu0 0.0
  %3086 = vmatprep.subr.mxu0 0.0
  %3087 = vmatpush2.msra.mxu0 0.0
  %3088 = vmatprep.subr.mxu0 0.0
  %3089 = vmatpush2.msra.mxu0 0.0
  %3090 = vmatprep.mubr.f32.mxu0 0.0
  %3091 = vmatmul.mubr.f32.gmra.mxu0 %v225
  %v3092 = vpop.f32.mrf.mxu0
  %v3093 = vadd.f32 0.0, %v3092
  %v3094 = vpop.f32.mrf.mxu0
  %v3095 = vadd.f32 0.0, %v3094
  %3096 = vmatprep.mubr.f32.mxu0 0.0
  %3097 = vmatmul.mubr.f32.gmra.mxu0 %v227
  %v3098 = vpop.f32.mrf.mxu0
  %v3099 = vadd.f32 0.0, %v3098
  %v3100 = vpop.f32.mrf.mxu0
  %v3101 = vadd.f32 0.0, %v3100
  %3102 = vmatprep.mubr.f32.mxu0 0.0
  %3103 = vmatmul.mubr.f32.gmra.mxu0 %v229
  %v3104 = vpop.f32.mrf.mxu0
  %v3105 = vadd.f32 0.0, %v3104
  %v3106 = vpop.f32.mrf.mxu0
  %v3107 = vadd.f32 0.0, %v3106
  %3108 = vmatprep.mubr.f32.mxu0 0.0
  %3109 = vmatmul.mubr.f32.gmra.mxu0 %v2914
  %v3110 = vpop.f32.mrf.mxu0
  %v3111 = vadd.f32 0.0, %v3110
  %v3112 = vpop.f32.mrf.mxu0
  %v3113 = vadd.f32 0.0, %v3112
  %3114 = vdwg.mxu0
  %3115 = vmatprep.subr.mxu0 0.0
  %3116 = vmatpush1.msra.mxu0 0.0
  %3117 = vmatprep.subr.mxu0 0.0
  %3118 = vmatpush1.msra.mxu0 0.0
  %3119 = vmatprep.subr.mxu0 0.0
  %3120 = vmatpush1.msra.mxu0 0.0
  %3121 = vmatprep.subr.mxu0 0.0
  %3122 = vmatpush1.msra.mxu0 0.0
  %3123 = vmatprep.subr.mxu0 0.0
  %3124 = vmatpush1.msra.mxu0 0.0
  %3125 = vmatprep.subr.mxu0 0.0
  %3126 = vmatpush1.msra.mxu0 0.0
  %3127 = vmatprep.subr.mxu0 0.0
  %3128 = vmatpush1.msra.mxu0 0.0
  %3129 = vmatprep.subr.mxu0 0.0
  %3130 = vmatpush1.msra.mxu0 0.0
  %3131 = vmatprep.subr.mxu0 0.0
  %3132 = vmatpush1.msra.mxu0 0.0
  %3133 = vmatprep.subr.mxu0 0.0
  %3134 = vmatpush1.msra.mxu0 0.0
  %3135 = vmatprep.subr.mxu0 0.0
  %3136 = vmatpush1.msra.mxu0 0.0
  %3137 = vmatprep.subr.mxu0 0.0
  %3138 = vmatpush1.msra.mxu0 0.0
  %3139 = vmatprep.subr.mxu0 %v2932
  %3140 = vmatpush1.msra.mxu0 %v2929
  %3141 = vmatprep.subr.mxu0 %v2905
  %3142 = vmatpush1.msra.mxu0 %v2904
  %3143 = vmatprep.subr.mxu0 %v2898
  %3144 = vmatpush1.msra.mxu0 %v2897
  %3145 = vmatprep.subr.mxu0 %v2891
  %3146 = vmatpush1.msra.mxu0 %v2890
  %3147 = vmatprep.subr.mxu0 0.0
  %3148 = vmatpush2.msra.mxu0 0.0
  %3149 = vmatprep.subr.mxu0 0.0
  %3150 = vmatpush2.msra.mxu0 0.0
  %3151 = vmatprep.subr.mxu0 0.0
  %3152 = vmatpush2.msra.mxu0 0.0
  %3153 = vmatprep.subr.mxu0 0.0
  %3154 = vmatpush2.msra.mxu0 0.0
  %3155 = vmatprep.subr.mxu0 0.0
  %3156 = vmatpush2.msra.mxu0 0.0
  %3157 = vmatprep.subr.mxu0 0.0
  %3158 = vmatpush2.msra.mxu0 0.0
  %3159 = vmatprep.subr.mxu0 0.0
  %3160 = vmatpush2.msra.mxu0 0.0
  %3161 = vmatprep.subr.mxu0 0.0
  %3162 = vmatpush2.msra.mxu0 0.0
  %3163 = vmatprep.subr.mxu0 0.0
  %3164 = vmatpush2.msra.mxu0 0.0
  %3165 = vmatprep.subr.mxu0 0.0
  %3166 = vmatpush2.msra.mxu0 0.0
  %3167 = vmatprep.subr.mxu0 0.0
  %3168 = vmatpush2.msra.mxu0 0.0
  %3169 = vmatprep.subr.mxu0 0.0
  %3170 = vmatpush2.msra.mxu0 0.0
  %3171 = vmatprep.subr.mxu0 0.0
  %3172 = vmatpush2.msra.mxu0 0.0
  %3173 = vmatprep.subr.mxu0 0.0
  %3174 = vmatpush2.msra.mxu0 0.0
  %3175 = vmatprep.subr.mxu0 0.0
  %3176 = vmatpush2.msra.mxu0 0.0
  %3177 = vmatprep.subr.mxu0 0.0
  %3178 = vmatpush2.msra.mxu0 0.0
  %3179 = vmatprep.mubr.f32.mxu0 0.0
  %3180 = vmatmul.mubr.f32.gmra.mxu0 %v225
  %v3181 = vpop.f32.mrf.mxu0
  %v3182 = vadd.f32 0.0, %v3181
  %v3183 = vpop.f32.mrf.mxu0
  %v3184 = vadd.f32 0.0, %v3183
  %3185 = vmatprep.mubr.f32.mxu0 0.0
  %3186 = vmatmul.mubr.f32.gmra.mxu0 %v227
  %v3187 = vpop.f32.mrf.mxu0
  %v3188 = vadd.f32 0.0, %v3187
  %v3189 = vpop.f32.mrf.mxu0
  %v3190 = vadd.f32 0.0, %v3189
  %3191 = vmatprep.mubr.f32.mxu0 0.0
  %3192 = vmatmul.mubr.f32.gmra.mxu0 %v229
  %v3193 = vpop.f32.mrf.mxu0
  %v3194 = vadd.f32 0.0, %v3193
  %v3195 = vpop.f32.mrf.mxu0
  %v3196 = vadd.f32 0.0, %v3195
  %3197 = vmatprep.mubr.f32.mxu0 0.0
  %3198 = vmatmul.mubr.f32.gmra.mxu0 %v2914
  %v3199 = vpop.f32.mrf.mxu0
  %v3200 = vadd.f32 0.0, %v3199
  %v3201 = vpop.f32.mrf.mxu0
  %v3202 = vadd.f32 0.0, %v3201
  %3203 = vdwg.mxu0
  %3204 = vmatprep.subr.mxu0 0.0
  %3205 = vmatpush1.msra.mxu0 0.0
  %3206 = vmatprep.subr.mxu0 0.0
  %3207 = vmatpush1.msra.mxu0 0.0
  %3208 = vmatprep.subr.mxu0 0.0
  %3209 = vmatpush1.msra.mxu0 0.0
  %3210 = vmatprep.subr.mxu0 0.0
  %3211 = vmatpush1.msra.mxu0 0.0
  %3212 = vmatprep.subr.mxu0 0.0
  %3213 = vmatpush1.msra.mxu0 0.0
  %3214 = vmatprep.subr.mxu0 0.0
  %3215 = vmatpush1.msra.mxu0 0.0
  %3216 = vmatprep.subr.mxu0 0.0
  %3217 = vmatpush1.msra.mxu0 0.0
  %3218 = vmatprep.subr.mxu0 0.0
  %3219 = vmatpush1.msra.mxu0 0.0
  %3220 = vmatprep.subr.mxu0 0.0
  %3221 = vmatpush1.msra.mxu0 0.0
  %3222 = vmatprep.subr.mxu0 0.0
  %3223 = vmatpush1.msra.mxu0 0.0
  %3224 = vmatprep.subr.mxu0 0.0
  %3225 = vmatpush1.msra.mxu0 0.0
  %3226 = vmatprep.subr.mxu0 0.0
  %3227 = vmatpush1.msra.mxu0 0.0
  %3228 = vmatprep.subr.mxu0 0.0
  %3229 = vmatpush1.msra.mxu0 %v2935
  %3230 = vmatprep.subr.mxu0 0.0
  %3231 = vmatpush1.msra.mxu0 %v2906
  %3232 = vmatprep.subr.mxu0 0.0
  %3233 = vmatpush1.msra.mxu0 %v2899
  %3234 = vmatprep.subr.mxu0 0.0
  %3235 = vmatpush1.msra.mxu0 %v2892
  %3236 = vmatprep.subr.mxu0 0.0
  %3237 = vmatpush2.msra.mxu0 0.0
  %3238 = vmatprep.subr.mxu0 0.0
  %3239 = vmatpush2.msra.mxu0 0.0
  %3240 = vmatprep.subr.mxu0 0.0
  %3241 = vmatpush2.msra.mxu0 0.0
  %3242 = vmatprep.subr.mxu0 0.0
  %3243 = vmatpush2.msra.mxu0 0.0
  %3244 = vmatprep.subr.mxu0 0.0
  %3245 = vmatpush2.msra.mxu0 0.0
  %3246 = vmatprep.subr.mxu0 0.0
  %3247 = vmatpush2.msra.mxu0 0.0
  %3248 = vmatprep.subr.mxu0 0.0
  %3249 = vmatpush2.msra.mxu0 0.0
  %3250 = vmatprep.subr.mxu0 0.0
  %3251 = vmatpush2.msra.mxu0 0.0
  %3252 = vmatprep.subr.mxu0 0.0
  %3253 = vmatpush2.msra.mxu0 0.0
  %3254 = vmatprep.subr.mxu0 0.0
  %3255 = vmatpush2.msra.mxu0 0.0
  %3256 = vmatprep.subr.mxu0 0.0
  %3257 = vmatpush2.msra.mxu0 0.0
  %3258 = vmatprep.subr.mxu0 0.0
  %3259 = vmatpush2.msra.mxu0 0.0
  %3260 = vmatprep.subr.mxu0 0.0
  %3261 = vmatpush2.msra.mxu0 0.0
  %3262 = vmatprep.subr.mxu0 0.0
  %3263 = vmatpush2.msra.mxu0 0.0
  %3264 = vmatprep.subr.mxu0 0.0
  %3265 = vmatpush2.msra.mxu0 0.0
  %3266 = vmatprep.subr.mxu0 0.0
  %3267 = vmatpush2.msra.mxu0 0.0
  %3268 = vmatprep.mubr.f32.mxu0 0.0
  %3269 = vmatmul.mubr.f32.gmra.mxu0 %v225
  %v3270 = vpop.f32.mrf.mxu0
  %v3271 = vadd.f32 0.0, %v3270
  %v3272 = vpop.f32.mrf.mxu0
  %3273 = vmatprep.mubr.f32.mxu0 0.0
  %3274 = vmatmul.mubr.f32.gmra.mxu0 %v227
  %v3275 = vpop.f32.mrf.mxu0
  %v3276 = vadd.f32 0.0, %v3275
  %v3277 = vpop.f32.mrf.mxu0
  %3278 = vmatprep.mubr.f32.mxu0 0.0
  %3279 = vmatmul.mubr.f32.gmra.mxu0 %v229
  %v3280 = vpop.f32.mrf.mxu0
  %v3281 = vadd.f32 0.0, %v3280
  %v3282 = vpop.f32.mrf.mxu0
  %3283 = vmatprep.mubr.f32.mxu0 0.0
  %3284 = vmatmul.mubr.f32.gmra.mxu0 %v2914
  %v3285 = vpop.f32.mrf.mxu0
  %v3286 = vadd.f32 0.0, %v3285
  %v3287 = vpop.f32.mrf.mxu0
  %3288 = vdwg.mxu0
  %v3289 = vlaneseq
  %v3290 = vshrl.u32 %v3289, 7
  %v3291 = vsub.s32 0, %v3290
  %v3292 = vrot.slane %v2620, %v3291
  %v3293 = vlaneseq
  %v3294 = vshrl.u32 %v3293, 7
  %v3295 = vsub.s32 0, %v3294
  %v3296 = vrot.slane %v2621, %v3295
  %v3297 = vlaneseq
  %v3298 = vshrl.u32 %v3297, 7
  %v3299 = vsub.s32 0, %v3298
  %v3300 = vrot.slane %v2622, %v3299
  %v3301 = vlaneseq
  %v3302 = vshrl.u32 %v3301, 7
  %v3303 = vsub.s32 0, %v3302
  %v3304 = vrot.slane %v2623, %v3303
  %v3305 = vlaneseq
  %v3306 = vshrl.u32 %v3305, 7
  %v3307 = vsub.s32 0, %v3306
  %v3308 = vrot.slane %v2624, %v3307
  %v3309 = vlaneseq
  %v3310 = vshrl.u32 %v3309, 7
  %v3311 = vsub.s32 0, %v3310
  %v3312 = vrot.slane %v2625, %v3311
  %v3313 = vlaneseq
  %v3314 = vshrl.u32 %v3313, 7
  %v3315 = vsub.s32 0, %v3314
  %v3316 = vrot.slane %v2626, %v3315
  %vm3317 = vcmp.eq.f32.partialorder %v70, %v3292
  %vm3318 = vcmp.eq.f32.partialorder %v71, %v3296
  %vm3319 = vcmp.eq.f32.partialorder %v72, %v3300
  %vm3320 = vcmp.eq.f32.partialorder %v73, %v3304
  %vm3321 = vcmp.eq.f32.partialorder %v74, %v3308
  %vm3322 = vcmp.eq.f32.partialorder %v75, %v3312
  %vm3323 = vcmp.eq.f32.partialorder %v76, %v3316
  %vm3324 = vcmp.eq.f32.partialorder %v77, %v3292
  %vm3325 = vcmp.eq.f32.partialorder %v78, %v3296
  %vm3326 = vcmp.eq.f32.partialorder %v79, %v3300
  %vm3327 = vcmp.eq.f32.partialorder %v80, %v3304
  %vm3328 = vcmp.eq.f32.partialorder %v81, %v3308
  %vm3329 = vcmp.eq.f32.partialorder %v82, %v3312
  %vm3330 = vcmp.eq.f32.partialorder %v83, %v3316
  %vm3331 = vcmp.eq.f32.partialorder %v84, %v3292
  %vm3332 = vcmp.eq.f32.partialorder %v85, %v3296
  %vm3333 = vcmp.eq.f32.partialorder %v86, %v3300
  %vm3334 = vcmp.eq.f32.partialorder %v87, %v3304
  %vm3335 = vcmp.eq.f32.partialorder %v88, %v3308
  %vm3336 = vcmp.eq.f32.partialorder %v89, %v3312
  %vm3337 = vcmp.eq.f32.partialorder %v90, %v3316
  %vm3338 = vcmp.eq.f32.partialorder %v91, %v3292
  %vm3339 = vcmp.eq.f32.partialorder %v92, %v3296
  %vm3340 = vcmp.eq.f32.partialorder %v93, %v3300
  %vm3341 = vcmp.eq.f32.partialorder %v94, %v3304
  %vm3342 = vcmp.eq.f32.partialorder %v95, %v3308
  %vm3343 = vcmp.eq.f32.partialorder %v96, %v3312
  %vm3344 = vcmp.eq.f32.partialorder %v97, %v3316
  %v3345 = vlaneseq
  %v3346 = vshrl.u32 %v3345, 7
  %v3347 = vsub.s32 0, %v3346
  %v3348 = vrot.slane %v2648, %v3347
  %v3349 = vlaneseq
  %v3350 = vshrl.u32 %v3349, 7
  %v3351 = vsub.s32 0, %v3350
  %v3352 = vrot.slane %v2649, %v3351
  %v3353 = vlaneseq
  %v3354 = vshrl.u32 %v3353, 7
  %v3355 = vsub.s32 0, %v3354
  %v3356 = vrot.slane %v2650, %v3355
  %v3357 = vlaneseq
  %v3358 = vshrl.u32 %v3357, 7
  %v3359 = vsub.s32 0, %v3358
  %v3360 = vrot.slane %v2651, %v3359
  %v3361 = vlaneseq
  %v3362 = vshrl.u32 %v3361, 7
  %v3363 = vsub.s32 0, %v3362
  %v3364 = vrot.slane %v2652, %v3363
  %v3365 = vlaneseq
  %v3366 = vshrl.u32 %v3365, 7
  %v3367 = vsub.s32 0, %v3366
  %v3368 = vrot.slane %v2653, %v3367
  %v3369 = vlaneseq
  %v3370 = vshrl.u32 %v3369, 7
  %v3371 = vsub.s32 0, %v3370
  %v3372 = vrot.slane %v2654, %v3371
  %v3373 = vsel %vm3317, %v3348, 0.0
  %v3374 = vsel %vm3318, %v3352, 0.0
  %v3375 = vsel %vm3319, %v3356, 0.0
  %v3376 = vsel %vm3320, %v3360, 0.0
  %v3377 = vsel %vm3321, %v3364, 0.0
  %v3378 = vsel %vm3322, %v3368, 0.0
  %v3379 = vsel %vm3323, %v3372, 0.0
  %v3380 = vsel %vm3324, %v3348, 0.0
  %v3381 = vsel %vm3325, %v3352, 0.0
  %v3382 = vsel %vm3326, %v3356, 0.0
  %v3383 = vsel %vm3327, %v3360, 0.0
  %v3384 = vsel %vm3328, %v3364, 0.0
  %v3385 = vsel %vm3329, %v3368, 0.0
  %v3386 = vsel %vm3330, %v3372, 0.0
  %v3387 = vsel %vm3331, %v3348, 0.0
  %v3388 = vsel %vm3332, %v3352, 0.0
  %v3389 = vsel %vm3333, %v3356, 0.0
  %v3390 = vsel %vm3334, %v3360, 0.0
  %v3391 = vsel %vm3335, %v3364, 0.0
  %v3392 = vsel %vm3336, %v3368, 0.0
  %v3393 = vsel %vm3337, %v3372, 0.0
  %v3394 = vsel %vm3338, %v3348, 0.0
  %v3395 = vsel %vm3339, %v3352, 0.0
  %v3396 = vsel %vm3340, %v3356, 0.0
  %v3397 = vsel %vm3341, %v3360, 0.0
  %v3398 = vsel %vm3342, %v3364, 0.0
  %v3399 = vsel %vm3343, %v3368, 0.0
  %v3400 = vsel %vm3344, %v3372, 0.0
  %v3401 = vadd.f32 %v2620, 1.0
  %v3402 = vadd.f32 %v2621, 1.0
  %v3403 = vadd.f32 %v2622, 1.0
  %v3404 = vadd.f32 %v2623, 1.0
  %v3405 = vadd.f32 %v2624, 1.0
  %v3406 = vadd.f32 %v2625, 1.0
  %v3407 = vadd.f32 %v2626, 1.0
  %v3408 = vlaneseq
  %v3409 = vshrl.u32 %v3408, 7
  %v3410 = vsub.s32 0, %v3409
  %v3411 = vrot.slane %v3401, %v3410
  %v3412 = vlaneseq
  %v3413 = vshrl.u32 %v3412, 7
  %v3414 = vsub.s32 0, %v3413
  %v3415 = vrot.slane %v3402, %v3414
  %v3416 = vlaneseq
  %v3417 = vshrl.u32 %v3416, 7
  %v3418 = vsub.s32 0, %v3417
  %v3419 = vrot.slane %v3403, %v3418
  %v3420 = vlaneseq
  %v3421 = vshrl.u32 %v3420, 7
  %v3422 = vsub.s32 0, %v3421
  %v3423 = vrot.slane %v3404, %v3422
  %v3424 = vlaneseq
  %v3425 = vshrl.u32 %v3424, 7
  %v3426 = vsub.s32 0, %v3425
  %v3427 = vrot.slane %v3405, %v3426
  %v3428 = vlaneseq
  %v3429 = vshrl.u32 %v3428, 7
  %v3430 = vsub.s32 0, %v3429
  %v3431 = vrot.slane %v3406, %v3430
  %v3432 = vlaneseq
  %v3433 = vshrl.u32 %v3432, 7
  %v3434 = vsub.s32 0, %v3433
  %v3435 = vrot.slane %v3407, %v3434
  %vm3436 = vcmp.eq.f32.partialorder %v70, %v3411
  %vm3437 = vcmp.eq.f32.partialorder %v71, %v3415
  %vm3438 = vcmp.eq.f32.partialorder %v72, %v3419
  %vm3439 = vcmp.eq.f32.partialorder %v73, %v3423
  %vm3440 = vcmp.eq.f32.partialorder %v74, %v3427
  %vm3441 = vcmp.eq.f32.partialorder %v75, %v3431
  %vm3442 = vcmp.eq.f32.partialorder %v76, %v3435
  %vm3443 = vcmp.eq.f32.partialorder %v77, %v3411
  %vm3444 = vcmp.eq.f32.partialorder %v78, %v3415
  %vm3445 = vcmp.eq.f32.partialorder %v79, %v3419
  %vm3446 = vcmp.eq.f32.partialorder %v80, %v3423
  %vm3447 = vcmp.eq.f32.partialorder %v81, %v3427
  %vm3448 = vcmp.eq.f32.partialorder %v82, %v3431
  %vm3449 = vcmp.eq.f32.partialorder %v83, %v3435
  %vm3450 = vcmp.eq.f32.partialorder %v84, %v3411
  %vm3451 = vcmp.eq.f32.partialorder %v85, %v3415
  %vm3452 = vcmp.eq.f32.partialorder %v86, %v3419
  %vm3453 = vcmp.eq.f32.partialorder %v87, %v3423
  %vm3454 = vcmp.eq.f32.partialorder %v88, %v3427
  %vm3455 = vcmp.eq.f32.partialorder %v89, %v3431
  %vm3456 = vcmp.eq.f32.partialorder %v90, %v3435
  %vm3457 = vcmp.eq.f32.partialorder %v91, %v3411
  %vm3458 = vcmp.eq.f32.partialorder %v92, %v3415
  %vm3459 = vcmp.eq.f32.partialorder %v93, %v3419
  %vm3460 = vcmp.eq.f32.partialorder %v94, %v3423
  %vm3461 = vcmp.eq.f32.partialorder %v95, %v3427
  %vm3462 = vcmp.eq.f32.partialorder %v96, %v3431
  %vm3463 = vcmp.eq.f32.partialorder %v97, %v3435
  %v3464 = vlaneseq
  %v3465 = vshrl.u32 %v3464, 7
  %v3466 = vsub.s32 0, %v3465
  %v3467 = vrot.slane %v2634, %v3466
  %v3468 = vlaneseq
  %v3469 = vshrl.u32 %v3468, 7
  %v3470 = vsub.s32 0, %v3469
  %v3471 = vrot.slane %v2635, %v3470
  %v3472 = vlaneseq
  %v3473 = vshrl.u32 %v3472, 7
  %v3474 = vsub.s32 0, %v3473
  %v3475 = vrot.slane %v2636, %v3474
  %v3476 = vlaneseq
  %v3477 = vshrl.u32 %v3476, 7
  %v3478 = vsub.s32 0, %v3477
  %v3479 = vrot.slane %v2637, %v3478
  %v3480 = vlaneseq
  %v3481 = vshrl.u32 %v3480, 7
  %v3482 = vsub.s32 0, %v3481
  %v3483 = vrot.slane %v2638, %v3482
  %v3484 = vlaneseq
  %v3485 = vshrl.u32 %v3484, 7
  %v3486 = vsub.s32 0, %v3485
  %v3487 = vrot.slane %v2639, %v3486
  %v3488 = vlaneseq
  %v3489 = vshrl.u32 %v3488, 7
  %v3490 = vsub.s32 0, %v3489
  %v3491 = vrot.slane %v2640, %v3490
  %v3492 = vsel %vm3436, %v3467, 0.0
  %v3493 = vsel %vm3437, %v3471, 0.0
  %v3494 = vsel %vm3438, %v3475, 0.0
  %v3495 = vsel %vm3439, %v3479, 0.0
  %v3496 = vsel %vm3440, %v3483, 0.0
  %v3497 = vsel %vm3441, %v3487, 0.0
  %v3498 = vsel %vm3442, %v3491, 0.0
  %v3499 = vsel %vm3443, %v3467, 0.0
  %v3500 = vsel %vm3444, %v3471, 0.0
  %v3501 = vsel %vm3445, %v3475, 0.0
  %v3502 = vsel %vm3446, %v3479, 0.0
  %v3503 = vsel %vm3447, %v3483, 0.0
  %v3504 = vsel %vm3448, %v3487, 0.0
  %v3505 = vsel %vm3449, %v3491, 0.0
  %v3506 = vsel %vm3450, %v3467, 0.0
  %v3507 = vsel %vm3451, %v3471, 0.0
  %v3508 = vsel %vm3452, %v3475, 0.0
  %v3509 = vsel %vm3453, %v3479, 0.0
  %v3510 = vsel %vm3454, %v3483, 0.0
  %v3511 = vsel %vm3455, %v3487, 0.0
  %v3512 = vsel %vm3456, %v3491, 0.0
  %v3513 = vsel %vm3457, %v3467, 0.0
  %v3514 = vsel %vm3458, %v3471, 0.0
  %v3515 = vsel %vm3459, %v3475, 0.0
  %v3516 = vsel %vm3460, %v3479, 0.0
  %v3517 = vsel %vm3461, %v3483, 0.0
  %v3518 = vsel %vm3462, %v3487, 0.0
  %v3519 = vsel %vm3463, %v3491, 0.0
  %v3520 = vadd.f32 %v3373, %v3492
  %v3521 = vadd.f32 %v3374, %v3493
  %v3522 = vadd.f32 %v3375, %v3494
  %v3523 = vadd.f32 %v3376, %v3495
  %v3524 = vadd.f32 %v3377, %v3496
  %v3525 = vadd.f32 %v3378, %v3497
  %v3526 = vadd.f32 %v3379, %v3498
  %v3527 = vadd.f32 %v3380, %v3499
  %v3528 = vadd.f32 %v3381, %v3500
  %v3529 = vadd.f32 %v3382, %v3501
  %v3530 = vadd.f32 %v3383, %v3502
  %v3531 = vadd.f32 %v3384, %v3503
  %v3532 = vadd.f32 %v3385, %v3504
  %v3533 = vadd.f32 %v3386, %v3505
  %v3534 = vadd.f32 %v3387, %v3506
  %v3535 = vadd.f32 %v3388, %v3507
  %v3536 = vadd.f32 %v3389, %v3508
  %v3537 = vadd.f32 %v3390, %v3509
  %v3538 = vadd.f32 %v3391, %v3510
  %v3539 = vadd.f32 %v3392, %v3511
  %v3540 = vadd.f32 %v3393, %v3512
  %v3541 = vadd.f32 %v3394, %v3513
  %v3542 = vadd.f32 %v3395, %v3514
  %v3543 = vadd.f32 %v3396, %v3515
  %v3544 = vadd.f32 %v3397, %v3516
  %v3545 = vadd.f32 %v3398, %v3517
  %v3546 = vadd.f32 %v3399, %v3518
  %v3547 = vadd.f32 %v3400, %v3519
  %v3548 = vmul.f32 %v3004, %v3520
  %v3549 = vmul.f32 %v3006, %v3521
  %v3550 = vmul.f32 %v3093, %v3522
  %v3551 = vmul.f32 %v3095, %v3523
  %v3552 = vmul.f32 %v3182, %v3524
  %v3553 = vmul.f32 %v3184, %v3525
  %v3554 = vmul.f32 %v3271, %v3526
  %v3555 = vmul.f32 %v3010, %v3527
  %v3556 = vmul.f32 %v3012, %v3528
  %v3557 = vmul.f32 %v3099, %v3529
  %v3558 = vmul.f32 %v3101, %v3530
  %v3559 = vmul.f32 %v3188, %v3531
  %v3560 = vmul.f32 %v3190, %v3532
  %v3561 = vmul.f32 %v3276, %v3533
  %v3562 = vmul.f32 %v3016, %v3534
  %v3563 = vmul.f32 %v3018, %v3535
  %v3564 = vmul.f32 %v3105, %v3536
  %v3565 = vmul.f32 %v3107, %v3537
  %v3566 = vmul.f32 %v3194, %v3538
  %v3567 = vmul.f32 %v3196, %v3539
  %v3568 = vmul.f32 %v3281, %v3540
  %v3569 = vmul.f32 %v3022, %v3541
  %v3570 = vmul.f32 %v3024, %v3542
  %v3571 = vmul.f32 %v3111, %v3543
  %v3572 = vmul.f32 %v3113, %v3544
  %v3573 = vmul.f32 %v3200, %v3545
  %v3574 = vmul.f32 %v3202, %v3546
  %v3575 = vmul.f32 %v3286, %v3547
  %v3576 = vadd.f32 %v3548, %v3555
  %v3577 = vadd.f32 %v3576, %v3562
  %v3578 = vsel %vm135, %v3569, 0.0
  %v3579 = vadd.f32 %v3577, %v3578
  %v3580 = vrot.slane %v3579, 4
  %v3581 = vadd.f32 %v3579, %v3580
  %v3582 = vrot.slane %v3581, 2
  %v3583 = vadd.f32 %v3581, %v3582
  %v3584 = vrot.slane %v3583, 1
  %v3585 = vadd.f32 %v3583, %v3584
  %v3586 = vadd.f32 %v3549, %v3556
  %v3587 = vadd.f32 %v3586, %v3563
  %v3588 = vsel %vm135, %v3570, 0.0
  %v3589 = vadd.f32 %v3587, %v3588
  %v3590 = vrot.slane %v3589, 4
  %v3591 = vadd.f32 %v3589, %v3590
  %v3592 = vrot.slane %v3591, 2
  %v3593 = vadd.f32 %v3591, %v3592
  %v3594 = vrot.slane %v3593, 1
  %v3595 = vadd.f32 %v3593, %v3594
  %v3596 = vadd.f32 %v3550, %v3557
  %v3597 = vadd.f32 %v3596, %v3564
  %v3598 = vsel %vm135, %v3571, 0.0
  %v3599 = vadd.f32 %v3597, %v3598
  %v3600 = vrot.slane %v3599, 4
  %v3601 = vadd.f32 %v3599, %v3600
  %v3602 = vrot.slane %v3601, 2
  %v3603 = vadd.f32 %v3601, %v3602
  %v3604 = vrot.slane %v3603, 1
  %v3605 = vadd.f32 %v3603, %v3604
  %v3606 = vadd.f32 %v3551, %v3558
  %v3607 = vadd.f32 %v3606, %v3565
  %v3608 = vsel %vm135, %v3572, 0.0
  %v3609 = vadd.f32 %v3607, %v3608
  %v3610 = vrot.slane %v3609, 4
  %v3611 = vadd.f32 %v3609, %v3610
  %v3612 = vrot.slane %v3611, 2
  %v3613 = vadd.f32 %v3611, %v3612
  %v3614 = vrot.slane %v3613, 1
  %v3615 = vadd.f32 %v3613, %v3614
  %v3616 = vadd.f32 %v3552, %v3559
  %v3617 = vadd.f32 %v3616, %v3566
  %v3618 = vsel %vm135, %v3573, 0.0
  %v3619 = vadd.f32 %v3617, %v3618
  %v3620 = vrot.slane %v3619, 4
  %v3621 = vadd.f32 %v3619, %v3620
  %v3622 = vrot.slane %v3621, 2
  %v3623 = vadd.f32 %v3621, %v3622
  %v3624 = vrot.slane %v3623, 1
  %v3625 = vadd.f32 %v3623, %v3624
  %v3626 = vadd.f32 %v3553, %v3560
  %v3627 = vadd.f32 %v3626, %v3567
  %v3628 = vsel %vm135, %v3574, 0.0
  %v3629 = vadd.f32 %v3627, %v3628
  %v3630 = vrot.slane %v3629, 4
  %v3631 = vadd.f32 %v3629, %v3630
  %v3632 = vrot.slane %v3631, 2
  %v3633 = vadd.f32 %v3631, %v3632
  %v3634 = vrot.slane %v3633, 1
  %v3635 = vadd.f32 %v3633, %v3634
  %vm3636 = vcmask 130048
  %v3637 = vsel %vm3636, %v3554, 0.0
  %v3638 = vsel %vm3636, %v3561, 0.0
  %v3639 = vadd.f32 %v3637, %v3638
  %v3640 = vsel %vm3636, %v3568, 0.0
  %v3641 = vadd.f32 %v3639, %v3640
  %vm3642 = vcmask 125952
  %v3643 = vsel %vm3642, %v3575, 0.0
  %v3644 = vadd.f32 %v3641, %v3643
  %v3645 = vrot.slane %v3644, 4
  %v3646 = vadd.f32 %v3644, %v3645
  %v3647 = vrot.slane %v3646, 2
  %v3648 = vadd.f32 %v3646, %v3647
  %v3649 = vrot.slane %v3648, 1
  %v3650 = vadd.f32 %v3648, %v3649
  %s3651 = scalar_lea.vmem %s0, 32
  %v3652 = vld [vmem:[%s3651] sm:$0xff]
  %v3653 = vld [vmem:[%s3651 + $0x8] sm:$0xff]
  %v3654 = vld [vmem:[%s3651 + $0x10] sm:$0xff]
  %v3655 = vld [vmem:[%s3651 + $0x18] sm:$0xf]
  %v3659 = vrot.slane %v3652, 1
  %v3660 = vrot.slane %v3653, 1
  %v3661 = vsel %vm122, %v3659, %v3660
  %v3662 = vrot.slane %v3654, 1
  %v3663 = vsel %vm122, %v3660, %v3662
  %v3664 = vsel %vm128, %v3661, 0
  %v3666 = vsel %vm128, %v3663, 0
  %v3668 = vsel %vm128, %v3662, 0
  %3670 = vmatprep.subr.mxu0 0.0
  %3671 = vmatpush1.msra.mxu0 0.0
  %3672 = vmatprep.subr.mxu0 0.0
  %3673 = vmatpush1.msra.mxu0 0.0
  %3674 = vmatprep.subr.mxu0 0.0
  %3675 = vmatpush1.msra.mxu0 0.0
  %3676 = vmatprep.subr.mxu0 0.0
  %3677 = vmatpush1.msra.mxu0 0.0
  %3678 = vmatprep.subr.mxu0 0.0
  %3679 = vmatpush1.msra.mxu0 0.0
  %3680 = vmatprep.subr.mxu0 0.0
  %3681 = vmatpush1.msra.mxu0 0.0
  %3682 = vmatprep.subr.mxu0 0.0
  %3683 = vmatpush1.msra.mxu0 0.0
  %3684 = vmatprep.subr.mxu0 0.0
  %3685 = vmatpush1.msra.mxu0 0.0
  %3686 = vmatprep.subr.mxu0 0.0
  %3687 = vmatpush1.msra.mxu0 0.0
  %3688 = vmatprep.subr.mxu0 0.0
  %3689 = vmatpush1.msra.mxu0 0.0
  %3690 = vmatprep.subr.mxu0 0.0
  %3691 = vmatpush1.msra.mxu0 0.0
  %3692 = vmatprep.subr.mxu0 0.0
  %3693 = vmatpush1.msra.mxu0 0.0
  %3694 = vmatprep.subr.mxu0 %v140
  %3695 = vmatpush1.msra.mxu0 %v137
  %3696 = vmatprep.subr.mxu0 %v116
  %3697 = vmatpush1.msra.mxu0 %v115
  %3698 = vmatprep.subr.mxu0 %v114
  %3699 = vmatpush1.msra.mxu0 %v113
  %3700 = vmatprep.subr.mxu0 %v112
  %3701 = vmatpush1.msra.mxu0 %v111
  %3702 = vmatprep.subr.mxu0 0.0
  %3703 = vmatpush2.msra.mxu0 0.0
  %3704 = vmatprep.subr.mxu0 0.0
  %3705 = vmatpush2.msra.mxu0 0.0
  %3706 = vmatprep.subr.mxu0 0.0
  %3707 = vmatpush2.msra.mxu0 0.0
  %3708 = vmatprep.subr.mxu0 0.0
  %3709 = vmatpush2.msra.mxu0 0.0
  %3710 = vmatprep.subr.mxu0 0.0
  %3711 = vmatpush2.msra.mxu0 0.0
  %3712 = vmatprep.subr.mxu0 0.0
  %3713 = vmatpush2.msra.mxu0 0.0
  %3714 = vmatprep.subr.mxu0 0.0
  %3715 = vmatpush2.msra.mxu0 0.0
  %3716 = vmatprep.subr.mxu0 0.0
  %3717 = vmatpush2.msra.mxu0 0.0
  %3718 = vmatprep.subr.mxu0 0.0
  %3719 = vmatpush2.msra.mxu0 0.0
  %3720 = vmatprep.subr.mxu0 0.0
  %3721 = vmatpush2.msra.mxu0 0.0
  %3722 = vmatprep.subr.mxu0 0.0
  %3723 = vmatpush2.msra.mxu0 0.0
  %3724 = vmatprep.subr.mxu0 0.0
  %3725 = vmatpush2.msra.mxu0 0.0
  %3726 = vmatprep.subr.mxu0 0.0
  %3727 = vmatpush2.msra.mxu0 0.0
  %3728 = vmatprep.subr.mxu0 0.0
  %3729 = vmatpush2.msra.mxu0 0.0
  %3730 = vmatprep.subr.mxu0 0.0
  %3731 = vmatpush2.msra.mxu0 0.0
  %3732 = vmatprep.subr.mxu0 0.0
  %3733 = vmatpush2.msra.mxu0 0.0
  %3734 = vmatprep.mubr.f32.mxu0 0.0
  %3735 = vmatmul.mubr.f32.gmra.mxu0 %v3664
  %v3736 = vpop.f32.mrf.mxu0
  %v3737 = vadd.f32 0.0, %v3736
  %v3738 = vpop.f32.mrf.mxu0
  %v3739 = vadd.f32 0.0, %v3738
  %3740 = vmatprep.mubr.f32.mxu0 0.0
  %3741 = vmatmul.mubr.f32.gmra.mxu0 %v3666
  %v3742 = vpop.f32.mrf.mxu0
  %v3743 = vadd.f32 0.0, %v3742
  %v3744 = vpop.f32.mrf.mxu0
  %v3745 = vadd.f32 0.0, %v3744
  %3746 = vmatprep.mubr.f32.mxu0 0.0
  %3747 = vmatmul.mubr.f32.gmra.mxu0 %v3668
  %v3748 = vpop.f32.mrf.mxu0
  %v3749 = vadd.f32 0.0, %v3748
  %v3750 = vpop.f32.mrf.mxu0
  %v3751 = vadd.f32 0.0, %v3750
  %3752 = vdwg.mxu0
  %v3753 = vsel %vm128, %v3652, 0
  %v3755 = vsel %vm128, %v3653, 0
  %v3757 = vsel %vm128, %v3654, 0
  %3759 = vmatprep.subr.mxu0 0.0
  %3760 = vmatpush1.msra.mxu0 0.0
  %3761 = vmatprep.subr.mxu0 0.0
  %3762 = vmatpush1.msra.mxu0 0.0
  %3763 = vmatprep.subr.mxu0 0.0
  %3764 = vmatpush1.msra.mxu0 0.0
  %3765 = vmatprep.subr.mxu0 0.0
  %3766 = vmatpush1.msra.mxu0 0.0
  %3767 = vmatprep.subr.mxu0 0.0
  %3768 = vmatpush1.msra.mxu0 0.0
  %3769 = vmatprep.subr.mxu0 0.0
  %3770 = vmatpush1.msra.mxu0 0.0
  %3771 = vmatprep.subr.mxu0 0.0
  %3772 = vmatpush1.msra.mxu0 0.0
  %3773 = vmatprep.subr.mxu0 0.0
  %3774 = vmatpush1.msra.mxu0 0.0
  %3775 = vmatprep.subr.mxu0 0.0
  %3776 = vmatpush1.msra.mxu0 0.0
  %3777 = vmatprep.subr.mxu0 0.0
  %3778 = vmatpush1.msra.mxu0 0.0
  %3779 = vmatprep.subr.mxu0 0.0
  %3780 = vmatpush1.msra.mxu0 0.0
  %3781 = vmatprep.subr.mxu0 0.0
  %3782 = vmatpush1.msra.mxu0 0.0
  %3783 = vmatprep.subr.mxu0 %v235
  %3784 = vmatpush1.msra.mxu0 %v232
  %3785 = vmatprep.subr.mxu0 %v107
  %3786 = vmatpush1.msra.mxu0 %v106
  %3787 = vmatprep.subr.mxu0 %v105
  %3788 = vmatpush1.msra.mxu0 %v104
  %3789 = vmatprep.subr.mxu0 %v103
  %3790 = vmatpush1.msra.mxu0 %v102
  %3791 = vmatprep.subr.mxu0 0.0
  %3792 = vmatpush2.msra.mxu0 0.0
  %3793 = vmatprep.subr.mxu0 0.0
  %3794 = vmatpush2.msra.mxu0 0.0
  %3795 = vmatprep.subr.mxu0 0.0
  %3796 = vmatpush2.msra.mxu0 0.0
  %3797 = vmatprep.subr.mxu0 0.0
  %3798 = vmatpush2.msra.mxu0 0.0
  %3799 = vmatprep.subr.mxu0 0.0
  %3800 = vmatpush2.msra.mxu0 0.0
  %3801 = vmatprep.subr.mxu0 0.0
  %3802 = vmatpush2.msra.mxu0 0.0
  %3803 = vmatprep.subr.mxu0 0.0
  %3804 = vmatpush2.msra.mxu0 0.0
  %3805 = vmatprep.subr.mxu0 0.0
  %3806 = vmatpush2.msra.mxu0 0.0
  %3807 = vmatprep.subr.mxu0 0.0
  %3808 = vmatpush2.msra.mxu0 0.0
  %3809 = vmatprep.subr.mxu0 0.0
  %3810 = vmatpush2.msra.mxu0 0.0
  %3811 = vmatprep.subr.mxu0 0.0
  %3812 = vmatpush2.msra.mxu0 0.0
  %3813 = vmatprep.subr.mxu0 0.0
  %3814 = vmatpush2.msra.mxu0 0.0
  %3815 = vmatprep.subr.mxu0 0.0
  %3816 = vmatpush2.msra.mxu0 0.0
  %3817 = vmatprep.subr.mxu0 0.0
  %3818 = vmatpush2.msra.mxu0 0.0
  %3819 = vmatprep.subr.mxu0 0.0
  %3820 = vmatpush2.msra.mxu0 0.0
  %3821 = vmatprep.subr.mxu0 0.0
  %3822 = vmatpush2.msra.mxu0 0.0
  %3823 = vmatprep.mubr.f32.mxu0 0.0
  %3824 = vmatmul.mubr.f32.gmra.mxu0 %v3753
  %v3825 = vpop.f32.mrf.mxu0
  %v3826 = vadd.f32 %v3737, %v3825
  %v3827 = vpop.f32.mrf.mxu0
  %v3828 = vadd.f32 %v3739, %v3827
  %3829 = vmatprep.mubr.f32.mxu0 0.0
  %3830 = vmatmul.mubr.f32.gmra.mxu0 %v3755
  %v3831 = vpop.f32.mrf.mxu0
  %v3832 = vadd.f32 %v3743, %v3831
  %v3833 = vpop.f32.mrf.mxu0
  %v3834 = vadd.f32 %v3745, %v3833
  %3835 = vmatprep.mubr.f32.mxu0 0.0
  %3836 = vmatmul.mubr.f32.gmra.mxu0 %v3757
  %v3837 = vpop.f32.mrf.mxu0
  %v3838 = vadd.f32 %v3749, %v3837
  %v3839 = vpop.f32.mrf.mxu0
  %v3840 = vadd.f32 %v3751, %v3839
  %3841 = vdwg.mxu0
  %v3842 = vrot.slane %v3652, 2
  %v3843 = vrot.slane %v3653, 2
  %v3844 = vsel %vm329, %v3842, %v3843
  %v3845 = vrot.slane %v3654, 2
  %v3846 = vsel %vm329, %v3843, %v3845
  %v3847 = vsel %vm128, %v3844, 0
  %v3849 = vsel %vm128, %v3846, 0
  %v3851 = vsel %vm128, %v3845, 0
  %3853 = vmatprep.subr.mxu0 0.0
  %3854 = vmatpush1.msra.mxu0 0.0
  %3855 = vmatprep.subr.mxu0 0.0
  %3856 = vmatpush1.msra.mxu0 0.0
  %3857 = vmatprep.subr.mxu0 0.0
  %3858 = vmatpush1.msra.mxu0 0.0
  %3859 = vmatprep.subr.mxu0 0.0
  %3860 = vmatpush1.msra.mxu0 0.0
  %3861 = vmatprep.subr.mxu0 0.0
  %3862 = vmatpush1.msra.mxu0 0.0
  %3863 = vmatprep.subr.mxu0 0.0
  %3864 = vmatpush1.msra.mxu0 0.0
  %3865 = vmatprep.subr.mxu0 0.0
  %3866 = vmatpush1.msra.mxu0 0.0
  %3867 = vmatprep.subr.mxu0 0.0
  %3868 = vmatpush1.msra.mxu0 0.0
  %3869 = vmatprep.subr.mxu0 0.0
  %3870 = vmatpush1.msra.mxu0 0.0
  %3871 = vmatprep.subr.mxu0 0.0
  %3872 = vmatpush1.msra.mxu0 0.0
  %3873 = vmatprep.subr.mxu0 0.0
  %3874 = vmatpush1.msra.mxu0 0.0
  %3875 = vmatprep.subr.mxu0 0.0
  %3876 = vmatpush1.msra.mxu0 0.0
  %3877 = vmatprep.subr.mxu0 %v345
  %3878 = vmatpush1.msra.mxu0 %v342
  %3879 = vmatprep.subr.mxu0 %v326
  %3880 = vmatpush1.msra.mxu0 %v325
  %3881 = vmatprep.subr.mxu0 %v324
  %3882 = vmatpush1.msra.mxu0 %v323
  %3883 = vmatprep.subr.mxu0 %v322
  %3884 = vmatpush1.msra.mxu0 %v321
  %3885 = vmatprep.subr.mxu0 0.0
  %3886 = vmatpush2.msra.mxu0 0.0
  %3887 = vmatprep.subr.mxu0 0.0
  %3888 = vmatpush2.msra.mxu0 0.0
  %3889 = vmatprep.subr.mxu0 0.0
  %3890 = vmatpush2.msra.mxu0 0.0
  %3891 = vmatprep.subr.mxu0 0.0
  %3892 = vmatpush2.msra.mxu0 0.0
  %3893 = vmatprep.subr.mxu0 0.0
  %3894 = vmatpush2.msra.mxu0 0.0
  %3895 = vmatprep.subr.mxu0 0.0
  %3896 = vmatpush2.msra.mxu0 0.0
  %3897 = vmatprep.subr.mxu0 0.0
  %3898 = vmatpush2.msra.mxu0 0.0
  %3899 = vmatprep.subr.mxu0 0.0
  %3900 = vmatpush2.msra.mxu0 0.0
  %3901 = vmatprep.subr.mxu0 0.0
  %3902 = vmatpush2.msra.mxu0 0.0
  %3903 = vmatprep.subr.mxu0 0.0
  %3904 = vmatpush2.msra.mxu0 0.0
  %3905 = vmatprep.subr.mxu0 0.0
  %3906 = vmatpush2.msra.mxu0 0.0
  %3907 = vmatprep.subr.mxu0 0.0
  %3908 = vmatpush2.msra.mxu0 0.0
  %3909 = vmatprep.subr.mxu0 0.0
  %3910 = vmatpush2.msra.mxu0 0.0
  %3911 = vmatprep.subr.mxu0 0.0
  %3912 = vmatpush2.msra.mxu0 0.0
  %3913 = vmatprep.subr.mxu0 0.0
  %3914 = vmatpush2.msra.mxu0 0.0
  %3915 = vmatprep.subr.mxu0 0.0
  %3916 = vmatpush2.msra.mxu0 0.0
  %3917 = vmatprep.mubr.f32.mxu0 0.0
  %3918 = vmatmul.mubr.f32.gmra.mxu0 %v3847
  %v3919 = vpop.f32.mrf.mxu0
  %v3920 = vadd.f32 0.0, %v3919
  %v3921 = vpop.f32.mrf.mxu0
  %v3922 = vadd.f32 0.0, %v3921
  %3923 = vmatprep.mubr.f32.mxu0 0.0
  %3924 = vmatmul.mubr.f32.gmra.mxu0 %v3849
  %v3925 = vpop.f32.mrf.mxu0
  %v3926 = vadd.f32 0.0, %v3925
  %v3927 = vpop.f32.mrf.mxu0
  %v3928 = vadd.f32 0.0, %v3927
  %3929 = vmatprep.mubr.f32.mxu0 0.0
  %3930 = vmatmul.mubr.f32.gmra.mxu0 %v3851
  %v3931 = vpop.f32.mrf.mxu0
  %v3932 = vadd.f32 0.0, %v3931
  %v3933 = vpop.f32.mrf.mxu0
  %v3934 = vadd.f32 0.0, %v3933
  %3935 = vdwg.mxu0
  %v3936 = vadd.f32 %v3826, %v3920
  %v3937 = vadd.f32 %v3828, %v3922
  %v3938 = vadd.f32 %v3832, %v3926
  %v3939 = vadd.f32 %v3834, %v3928
  %v3940 = vadd.f32 %v3838, %v3932
  %v3941 = vadd.f32 %v3840, %v3934
  %v3943 = vrot.slane %v3652, 3
  %v3944 = vrot.slane %v3653, 3
  %v3945 = vsel %vm446, %v3943, %v3944
  %v3946 = vrot.slane %v3654, 3
  %v3947 = vsel %vm446, %v3944, %v3946
  %v3948 = vrot.slane %v3655, 3
  %v3949 = vsel %vm446, %v3946, %v3948
  %v3950 = vsel %vm128, %v3945, 0
  %v3952 = vsel %vm128, %v3947, 0
  %v3954 = vsel %vm128, %v3949, 0
  %3956 = vmatprep.subr.mxu0 0.0
  %3957 = vmatpush1.msra.mxu0 0.0
  %3958 = vmatprep.subr.mxu0 0.0
  %3959 = vmatpush1.msra.mxu0 0.0
  %3960 = vmatprep.subr.mxu0 0.0
  %3961 = vmatpush1.msra.mxu0 0.0
  %3962 = vmatprep.subr.mxu0 0.0
  %3963 = vmatpush1.msra.mxu0 0.0
  %3964 = vmatprep.subr.mxu0 0.0
  %3965 = vmatpush1.msra.mxu0 0.0
  %3966 = vmatprep.subr.mxu0 0.0
  %3967 = vmatpush1.msra.mxu0 0.0
  %3968 = vmatprep.subr.mxu0 0.0
  %3969 = vmatpush1.msra.mxu0 0.0
  %3970 = vmatprep.subr.mxu0 0.0
  %3971 = vmatpush1.msra.mxu0 0.0
  %3972 = vmatprep.subr.mxu0 0.0
  %3973 = vmatpush1.msra.mxu0 0.0
  %3974 = vmatprep.subr.mxu0 0.0
  %3975 = vmatpush1.msra.mxu0 0.0
  %3976 = vmatprep.subr.mxu0 0.0
  %3977 = vmatpush1.msra.mxu0 0.0
  %3978 = vmatprep.subr.mxu0 0.0
  %3979 = vmatpush1.msra.mxu0 0.0
  %3980 = vmatprep.subr.mxu0 %v464
  %3981 = vmatpush1.msra.mxu0 %v461
  %3982 = vmatprep.subr.mxu0 %v442
  %3983 = vmatpush1.msra.mxu0 %v441
  %3984 = vmatprep.subr.mxu0 %v440
  %3985 = vmatpush1.msra.mxu0 %v439
  %3986 = vmatprep.subr.mxu0 %v438
  %3987 = vmatpush1.msra.mxu0 %v437
  %3988 = vmatprep.subr.mxu0 0.0
  %3989 = vmatpush2.msra.mxu0 0.0
  %3990 = vmatprep.subr.mxu0 0.0
  %3991 = vmatpush2.msra.mxu0 0.0
  %3992 = vmatprep.subr.mxu0 0.0
  %3993 = vmatpush2.msra.mxu0 0.0
  %3994 = vmatprep.subr.mxu0 0.0
  %3995 = vmatpush2.msra.mxu0 0.0
  %3996 = vmatprep.subr.mxu0 0.0
  %3997 = vmatpush2.msra.mxu0 0.0
  %3998 = vmatprep.subr.mxu0 0.0
  %3999 = vmatpush2.msra.mxu0 0.0
  %4000 = vmatprep.subr.mxu0 0.0
  %4001 = vmatpush2.msra.mxu0 0.0
  %4002 = vmatprep.subr.mxu0 0.0
  %4003 = vmatpush2.msra.mxu0 0.0
  %4004 = vmatprep.subr.mxu0 0.0
  %4005 = vmatpush2.msra.mxu0 0.0
  %4006 = vmatprep.subr.mxu0 0.0
  %4007 = vmatpush2.msra.mxu0 0.0
  %4008 = vmatprep.subr.mxu0 0.0
  %4009 = vmatpush2.msra.mxu0 0.0
  %4010 = vmatprep.subr.mxu0 0.0
  %4011 = vmatpush2.msra.mxu0 0.0
  %4012 = vmatprep.subr.mxu0 0.0
  %4013 = vmatpush2.msra.mxu0 0.0
  %4014 = vmatprep.subr.mxu0 0.0
  %4015 = vmatpush2.msra.mxu0 0.0
  %4016 = vmatprep.subr.mxu0 0.0
  %4017 = vmatpush2.msra.mxu0 0.0
  %4018 = vmatprep.subr.mxu0 0.0
  %4019 = vmatpush2.msra.mxu0 0.0
  %4020 = vmatprep.mubr.f32.mxu0 0.0
  %4021 = vmatmul.mubr.f32.gmra.mxu0 %v3950
  %v4022 = vpop.f32.mrf.mxu0
  %v4023 = vadd.f32 0.0, %v4022
  %v4024 = vpop.f32.mrf.mxu0
  %v4025 = vadd.f32 0.0, %v4024
  %4026 = vmatprep.mubr.f32.mxu0 0.0
  %4027 = vmatmul.mubr.f32.gmra.mxu0 %v3952
  %v4028 = vpop.f32.mrf.mxu0
  %v4029 = vadd.f32 0.0, %v4028
  %v4030 = vpop.f32.mrf.mxu0
  %v4031 = vadd.f32 0.0, %v4030
  %4032 = vmatprep.mubr.f32.mxu0 0.0
  %4033 = vmatmul.mubr.f32.gmra.mxu0 %v3954
  %v4034 = vpop.f32.mrf.mxu0
  %v4035 = vadd.f32 0.0, %v4034
  %v4036 = vpop.f32.mrf.mxu0
  %v4037 = vadd.f32 0.0, %v4036
  %4038 = vdwg.mxu0
  %v4039 = vadd.f32 %v3936, %v4023
  %v4040 = vadd.f32 %v3937, %v4025
  %v4041 = vadd.f32 %v3938, %v4029
  %v4042 = vadd.f32 %v3939, %v4031
  %v4043 = vadd.f32 %v3940, %v4035
  %v4044 = vadd.f32 %v3941, %v4037
  %v4045 = vrot.slane %v3652, 4
  %v4046 = vrot.slane %v3653, 4
  %v4047 = vsel %vm135, %v4045, %v4046
  %v4048 = vrot.slane %v3654, 4
  %v4049 = vsel %vm135, %v4046, %v4048
  %v4050 = vrot.slane %v3655, 4
  %v4051 = vsel %vm135, %v4048, %v4050
  %v4052 = vsel %vm128, %v4047, 0
  %v4054 = vsel %vm128, %v4049, 0
  %v4056 = vsel %vm128, %v4051, 0
  %4058 = vmatprep.subr.mxu0 0.0
  %4059 = vmatpush1.msra.mxu0 0.0
  %4060 = vmatprep.subr.mxu0 0.0
  %4061 = vmatpush1.msra.mxu0 0.0
  %4062 = vmatprep.subr.mxu0 0.0
  %4063 = vmatpush1.msra.mxu0 0.0
  %4064 = vmatprep.subr.mxu0 0.0
  %4065 = vmatpush1.msra.mxu0 0.0
  %4066 = vmatprep.subr.mxu0 0.0
  %4067 = vmatpush1.msra.mxu0 0.0
  %4068 = vmatprep.subr.mxu0 0.0
  %4069 = vmatpush1.msra.mxu0 0.0
  %4070 = vmatprep.subr.mxu0 0.0
  %4071 = vmatpush1.msra.mxu0 0.0
  %4072 = vmatprep.subr.mxu0 0.0
  %4073 = vmatpush1.msra.mxu0 0.0
  %4074 = vmatprep.subr.mxu0 0.0
  %4075 = vmatpush1.msra.mxu0 0.0
  %4076 = vmatprep.subr.mxu0 0.0
  %4077 = vmatpush1.msra.mxu0 0.0
  %4078 = vmatprep.subr.mxu0 0.0
  %4079 = vmatpush1.msra.mxu0 0.0
  %4080 = vmatprep.subr.mxu0 0.0
  %4081 = vmatpush1.msra.mxu0 0.0
  %4082 = vmatprep.subr.mxu0 %v581
  %4083 = vmatpush1.msra.mxu0 %v578
  %4084 = vmatprep.subr.mxu0 %v561
  %4085 = vmatpush1.msra.mxu0 %v560
  %4086 = vmatprep.subr.mxu0 %v559
  %4087 = vmatpush1.msra.mxu0 %v558
  %4088 = vmatprep.subr.mxu0 %v557
  %4089 = vmatpush1.msra.mxu0 %v556
  %4090 = vmatprep.subr.mxu0 0.0
  %4091 = vmatpush2.msra.mxu0 0.0
  %4092 = vmatprep.subr.mxu0 0.0
  %4093 = vmatpush2.msra.mxu0 0.0
  %4094 = vmatprep.subr.mxu0 0.0
  %4095 = vmatpush2.msra.mxu0 0.0
  %4096 = vmatprep.subr.mxu0 0.0
  %4097 = vmatpush2.msra.mxu0 0.0
  %4098 = vmatprep.subr.mxu0 0.0
  %4099 = vmatpush2.msra.mxu0 0.0
  %4100 = vmatprep.subr.mxu0 0.0
  %4101 = vmatpush2.msra.mxu0 0.0
  %4102 = vmatprep.subr.mxu0 0.0
  %4103 = vmatpush2.msra.mxu0 0.0
  %4104 = vmatprep.subr.mxu0 0.0
  %4105 = vmatpush2.msra.mxu0 0.0
  %4106 = vmatprep.subr.mxu0 0.0
  %4107 = vmatpush2.msra.mxu0 0.0
  %4108 = vmatprep.subr.mxu0 0.0
  %4109 = vmatpush2.msra.mxu0 0.0
  %4110 = vmatprep.subr.mxu0 0.0
  %4111 = vmatpush2.msra.mxu0 0.0
  %4112 = vmatprep.subr.mxu0 0.0
  %4113 = vmatpush2.msra.mxu0 0.0
  %4114 = vmatprep.subr.mxu0 0.0
  %4115 = vmatpush2.msra.mxu0 0.0
  %4116 = vmatprep.subr.mxu0 0.0
  %4117 = vmatpush2.msra.mxu0 0.0
  %4118 = vmatprep.subr.mxu0 0.0
  %4119 = vmatpush2.msra.mxu0 0.0
  %4120 = vmatprep.subr.mxu0 0.0
  %4121 = vmatpush2.msra.mxu0 0.0
  %4122 = vmatprep.mubr.f32.mxu0 0.0
  %4123 = vmatmul.mubr.f32.gmra.mxu0 %v4052
  %v4124 = vpop.f32.mrf.mxu0
  %v4125 = vadd.f32 0.0, %v4124
  %v4126 = vpop.f32.mrf.mxu0
  %v4127 = vadd.f32 0.0, %v4126
  %4128 = vmatprep.mubr.f32.mxu0 0.0
  %4129 = vmatmul.mubr.f32.gmra.mxu0 %v4054
  %v4130 = vpop.f32.mrf.mxu0
  %v4131 = vadd.f32 0.0, %v4130
  %v4132 = vpop.f32.mrf.mxu0
  %v4133 = vadd.f32 0.0, %v4132
  %4134 = vmatprep.mubr.f32.mxu0 0.0
  %4135 = vmatmul.mubr.f32.gmra.mxu0 %v4056
  %v4136 = vpop.f32.mrf.mxu0
  %v4137 = vadd.f32 0.0, %v4136
  %v4138 = vpop.f32.mrf.mxu0
  %v4139 = vadd.f32 0.0, %v4138
  %4140 = vdwg.mxu0
  %v4141 = vadd.f32 %v4039, %v4125
  %v4142 = vadd.f32 %v4040, %v4127
  %v4143 = vadd.f32 %v4041, %v4131
  %v4144 = vadd.f32 %v4042, %v4133
  %v4145 = vadd.f32 %v4043, %v4137
  %v4146 = vadd.f32 %v4044, %v4139
  %v4147 = vrot.slane %v3652, 5
  %v4148 = vrot.slane %v3653, 5
  %v4149 = vsel %vm681, %v4147, %v4148
  %v4150 = vrot.slane %v3654, 5
  %v4151 = vsel %vm681, %v4148, %v4150
  %v4152 = vrot.slane %v3655, 5
  %v4153 = vsel %vm681, %v4150, %v4152
  %v4154 = vsel %vm128, %v4149, 0
  %v4156 = vsel %vm128, %v4151, 0
  %v4158 = vsel %vm128, %v4153, 0
  %4160 = vmatprep.subr.mxu0 0.0
  %4161 = vmatpush1.msra.mxu0 0.0
  %4162 = vmatprep.subr.mxu0 0.0
  %4163 = vmatpush1.msra.mxu0 0.0
  %4164 = vmatprep.subr.mxu0 0.0
  %4165 = vmatpush1.msra.mxu0 0.0
  %4166 = vmatprep.subr.mxu0 0.0
  %4167 = vmatpush1.msra.mxu0 0.0
  %4168 = vmatprep.subr.mxu0 0.0
  %4169 = vmatpush1.msra.mxu0 0.0
  %4170 = vmatprep.subr.mxu0 0.0
  %4171 = vmatpush1.msra.mxu0 0.0
  %4172 = vmatprep.subr.mxu0 0.0
  %4173 = vmatpush1.msra.mxu0 0.0
  %4174 = vmatprep.subr.mxu0 0.0
  %4175 = vmatpush1.msra.mxu0 0.0
  %4176 = vmatprep.subr.mxu0 0.0
  %4177 = vmatpush1.msra.mxu0 0.0
  %4178 = vmatprep.subr.mxu0 0.0
  %4179 = vmatpush1.msra.mxu0 0.0
  %4180 = vmatprep.subr.mxu0 0.0
  %4181 = vmatpush1.msra.mxu0 0.0
  %4182 = vmatprep.subr.mxu0 0.0
  %4183 = vmatpush1.msra.mxu0 0.0
  %4184 = vmatprep.subr.mxu0 %v699
  %4185 = vmatpush1.msra.mxu0 %v696
  %4186 = vmatprep.subr.mxu0 %v678
  %4187 = vmatpush1.msra.mxu0 %v677
  %4188 = vmatprep.subr.mxu0 %v676
  %4189 = vmatpush1.msra.mxu0 %v675
  %4190 = vmatprep.subr.mxu0 %v674
  %4191 = vmatpush1.msra.mxu0 %v673
  %4192 = vmatprep.subr.mxu0 0.0
  %4193 = vmatpush2.msra.mxu0 0.0
  %4194 = vmatprep.subr.mxu0 0.0
  %4195 = vmatpush2.msra.mxu0 0.0
  %4196 = vmatprep.subr.mxu0 0.0
  %4197 = vmatpush2.msra.mxu0 0.0
  %4198 = vmatprep.subr.mxu0 0.0
  %4199 = vmatpush2.msra.mxu0 0.0
  %4200 = vmatprep.subr.mxu0 0.0
  %4201 = vmatpush2.msra.mxu0 0.0
  %4202 = vmatprep.subr.mxu0 0.0
  %4203 = vmatpush2.msra.mxu0 0.0
  %4204 = vmatprep.subr.mxu0 0.0
  %4205 = vmatpush2.msra.mxu0 0.0
  %4206 = vmatprep.subr.mxu0 0.0
  %4207 = vmatpush2.msra.mxu0 0.0
  %4208 = vmatprep.subr.mxu0 0.0
  %4209 = vmatpush2.msra.mxu0 0.0
  %4210 = vmatprep.subr.mxu0 0.0
  %4211 = vmatpush2.msra.mxu0 0.0
  %4212 = vmatprep.subr.mxu0 0.0
  %4213 = vmatpush2.msra.mxu0 0.0
  %4214 = vmatprep.subr.mxu0 0.0
  %4215 = vmatpush2.msra.mxu0 0.0
  %4216 = vmatprep.subr.mxu0 0.0
  %4217 = vmatpush2.msra.mxu0 0.0
  %4218 = vmatprep.subr.mxu0 0.0
  %4219 = vmatpush2.msra.mxu0 0.0
  %4220 = vmatprep.subr.mxu0 0.0
  %4221 = vmatpush2.msra.mxu0 0.0
  %4222 = vmatprep.subr.mxu0 0.0
  %4223 = vmatpush2.msra.mxu0 0.0
  %4224 = vmatprep.mubr.f32.mxu0 0.0
  %4225 = vmatmul.mubr.f32.gmra.mxu0 %v4154
  %v4226 = vpop.f32.mrf.mxu0
  %v4227 = vadd.f32 0.0, %v4226
  %v4228 = vpop.f32.mrf.mxu0
  %v4229 = vadd.f32 0.0, %v4228
  %4230 = vmatprep.mubr.f32.mxu0 0.0
  %4231 = vmatmul.mubr.f32.gmra.mxu0 %v4156
  %v4232 = vpop.f32.mrf.mxu0
  %v4233 = vadd.f32 0.0, %v4232
  %v4234 = vpop.f32.mrf.mxu0
  %v4235 = vadd.f32 0.0, %v4234
  %4236 = vmatprep.mubr.f32.mxu0 0.0
  %4237 = vmatmul.mubr.f32.gmra.mxu0 %v4158
  %v4238 = vpop.f32.mrf.mxu0
  %v4239 = vadd.f32 0.0, %v4238
  %v4240 = vpop.f32.mrf.mxu0
  %v4241 = vadd.f32 0.0, %v4240
  %4242 = vdwg.mxu0
  %v4243 = vadd.f32 %v4141, %v4227
  %v4244 = vadd.f32 %v4142, %v4229
  %v4245 = vadd.f32 %v4143, %v4233
  %v4246 = vadd.f32 %v4144, %v4235
  %v4247 = vadd.f32 %v4145, %v4239
  %v4248 = vadd.f32 %v4146, %v4241
  %v4249 = vrot.slane %v3652, 6
  %v4250 = vrot.slane %v3653, 6
  %v4251 = vsel %vm799, %v4249, %v4250
  %v4252 = vrot.slane %v3654, 6
  %v4253 = vsel %vm799, %v4250, %v4252
  %v4254 = vrot.slane %v3655, 6
  %v4255 = vsel %vm799, %v4252, %v4254
  %v4256 = vsel %vm128, %v4251, 0
  %v4258 = vsel %vm128, %v4253, 0
  %v4260 = vsel %vm128, %v4255, 0
  %4262 = vmatprep.subr.mxu0 0.0
  %4263 = vmatpush1.msra.mxu0 0.0
  %4264 = vmatprep.subr.mxu0 0.0
  %4265 = vmatpush1.msra.mxu0 0.0
  %4266 = vmatprep.subr.mxu0 0.0
  %4267 = vmatpush1.msra.mxu0 0.0
  %4268 = vmatprep.subr.mxu0 0.0
  %4269 = vmatpush1.msra.mxu0 0.0
  %4270 = vmatprep.subr.mxu0 0.0
  %4271 = vmatpush1.msra.mxu0 0.0
  %4272 = vmatprep.subr.mxu0 0.0
  %4273 = vmatpush1.msra.mxu0 0.0
  %4274 = vmatprep.subr.mxu0 0.0
  %4275 = vmatpush1.msra.mxu0 0.0
  %4276 = vmatprep.subr.mxu0 0.0
  %4277 = vmatpush1.msra.mxu0 0.0
  %4278 = vmatprep.subr.mxu0 0.0
  %4279 = vmatpush1.msra.mxu0 0.0
  %4280 = vmatprep.subr.mxu0 0.0
  %4281 = vmatpush1.msra.mxu0 0.0
  %4282 = vmatprep.subr.mxu0 0.0
  %4283 = vmatpush1.msra.mxu0 0.0
  %4284 = vmatprep.subr.mxu0 0.0
  %4285 = vmatpush1.msra.mxu0 0.0
  %4286 = vmatprep.subr.mxu0 %v817
  %4287 = vmatpush1.msra.mxu0 %v814
  %4288 = vmatprep.subr.mxu0 %v796
  %4289 = vmatpush1.msra.mxu0 %v795
  %4290 = vmatprep.subr.mxu0 %v794
  %4291 = vmatpush1.msra.mxu0 %v793
  %4292 = vmatprep.subr.mxu0 %v792
  %4293 = vmatpush1.msra.mxu0 %v791
  %4294 = vmatprep.subr.mxu0 0.0
  %4295 = vmatpush2.msra.mxu0 0.0
  %4296 = vmatprep.subr.mxu0 0.0
  %4297 = vmatpush2.msra.mxu0 0.0
  %4298 = vmatprep.subr.mxu0 0.0
  %4299 = vmatpush2.msra.mxu0 0.0
  %4300 = vmatprep.subr.mxu0 0.0
  %4301 = vmatpush2.msra.mxu0 0.0
  %4302 = vmatprep.subr.mxu0 0.0
  %4303 = vmatpush2.msra.mxu0 0.0
  %4304 = vmatprep.subr.mxu0 0.0
  %4305 = vmatpush2.msra.mxu0 0.0
  %4306 = vmatprep.subr.mxu0 0.0
  %4307 = vmatpush2.msra.mxu0 0.0
  %4308 = vmatprep.subr.mxu0 0.0
  %4309 = vmatpush2.msra.mxu0 0.0
  %4310 = vmatprep.subr.mxu0 0.0
  %4311 = vmatpush2.msra.mxu0 0.0
  %4312 = vmatprep.subr.mxu0 0.0
  %4313 = vmatpush2.msra.mxu0 0.0
  %4314 = vmatprep.subr.mxu0 0.0
  %4315 = vmatpush2.msra.mxu0 0.0
  %4316 = vmatprep.subr.mxu0 0.0
  %4317 = vmatpush2.msra.mxu0 0.0
  %4318 = vmatprep.subr.mxu0 0.0
  %4319 = vmatpush2.msra.mxu0 0.0
  %4320 = vmatprep.subr.mxu0 0.0
  %4321 = vmatpush2.msra.mxu0 0.0
  %4322 = vmatprep.subr.mxu0 0.0
  %4323 = vmatpush2.msra.mxu0 0.0
  %4324 = vmatprep.subr.mxu0 0.0
  %4325 = vmatpush2.msra.mxu0 0.0
  %4326 = vmatprep.mubr.f32.mxu0 0.0
  %4327 = vmatmul.mubr.f32.gmra.mxu0 %v4256
  %v4328 = vpop.f32.mrf.mxu0
  %v4329 = vadd.f32 0.0, %v4328
  %v4330 = vpop.f32.mrf.mxu0
  %v4331 = vadd.f32 0.0, %v4330
  %4332 = vmatprep.mubr.f32.mxu0 0.0
  %4333 = vmatmul.mubr.f32.gmra.mxu0 %v4258
  %v4334 = vpop.f32.mrf.mxu0
  %v4335 = vadd.f32 0.0, %v4334
  %v4336 = vpop.f32.mrf.mxu0
  %v4337 = vadd.f32 0.0, %v4336
  %4338 = vmatprep.mubr.f32.mxu0 0.0
  %4339 = vmatmul.mubr.f32.gmra.mxu0 %v4260
  %v4340 = vpop.f32.mrf.mxu0
  %v4341 = vadd.f32 0.0, %v4340
  %v4342 = vpop.f32.mrf.mxu0
  %v4343 = vadd.f32 0.0, %v4342
  %4344 = vdwg.mxu0
  %v4345 = vadd.f32 %v4243, %v4329
  %v4346 = vadd.f32 %v4244, %v4331
  %v4347 = vadd.f32 %v4245, %v4335
  %v4348 = vadd.f32 %v4246, %v4337
  %v4349 = vadd.f32 %v4247, %v4341
  %v4350 = vadd.f32 %v4248, %v4343
  %v4351 = vadd.f32 %v4345, %v913
  %v4352 = vadd.f32 %v4346, %v917
  %v4353 = vadd.f32 %v4347, %v913
  %v4354 = vadd.f32 %v4348, %v917
  %v4355 = vadd.f32 %v4349, %v913
  %v4356 = vadd.f32 %v4350, %v917
  %v4358 = vsel %vm329, %v4355, 0
  %v4361 = vsel %vm329, %v4356, 0
  %4363 = vmatprep.subr.mxu0 0.0
  %4364 = vmatpush1.msra.mxu0 0.0
  %4365 = vmatprep.subr.mxu0 0.0
  %4366 = vmatpush1.msra.mxu0 0.0
  %4367 = vmatprep.subr.mxu0 0.0
  %4368 = vmatpush1.msra.mxu0 0.0
  %4369 = vmatprep.subr.mxu0 0.0
  %4370 = vmatpush1.msra.mxu0 0.0
  %4371 = vmatprep.subr.mxu0 0.0
  %4372 = vmatpush1.msra.mxu0 0.0
  %4373 = vmatprep.subr.mxu0 0.0
  %4374 = vmatpush1.msra.mxu0 0.0
  %4375 = vmatprep.subr.mxu0 0.0
  %4376 = vmatpush1.msra.mxu0 0.0
  %4377 = vmatprep.subr.mxu0 0.0
  %4378 = vmatpush1.msra.mxu0 0.0
  %4379 = vmatprep.subr.mxu0 0.0
  %4380 = vmatpush1.msra.mxu0 0.0
  %4381 = vmatprep.subr.mxu0 0.0
  %4382 = vmatpush1.msra.mxu0 0.0
  %4383 = vmatprep.subr.mxu0 0.0
  %4384 = vmatpush1.msra.mxu0 0.0
  %4385 = vmatprep.subr.mxu0 0.0
  %4386 = vmatpush1.msra.mxu0 0.0
  %4387 = vmatprep.subr.mxu0 0.0
  %4388 = vmatpush1.msra.mxu0 0.0
  %4389 = vmatprep.subr.mxu0 %v4361
  %4390 = vmatpush1.msra.mxu0 %v4358
  %4391 = vmatprep.subr.mxu0 %v4354
  %4392 = vmatpush1.msra.mxu0 %v4353
  %4393 = vmatprep.subr.mxu0 %v4352
  %4394 = vmatpush1.msra.mxu0 %v4351
  %4395 = vmatprep.subr.mxu0 0.0
  %4396 = vmatpush2.msra.mxu0 0.0
  %4397 = vmatprep.subr.mxu0 0.0
  %4398 = vmatpush2.msra.mxu0 0.0
  %4399 = vmatprep.subr.mxu0 0.0
  %4400 = vmatpush2.msra.mxu0 0.0
  %4401 = vmatprep.subr.mxu0 0.0
  %4402 = vmatpush2.msra.mxu0 0.0
  %4403 = vmatprep.subr.mxu0 0.0
  %4404 = vmatpush2.msra.mxu0 0.0
  %4405 = vmatprep.subr.mxu0 0.0
  %4406 = vmatpush2.msra.mxu0 0.0
  %4407 = vmatprep.subr.mxu0 0.0
  %4408 = vmatpush2.msra.mxu0 0.0
  %4409 = vmatprep.subr.mxu0 0.0
  %4410 = vmatpush2.msra.mxu0 0.0
  %4411 = vmatprep.subr.mxu0 0.0
  %4412 = vmatpush2.msra.mxu0 0.0
  %4413 = vmatprep.subr.mxu0 0.0
  %4414 = vmatpush2.msra.mxu0 0.0
  %4415 = vmatprep.subr.mxu0 0.0
  %4416 = vmatpush2.msra.mxu0 0.0
  %4417 = vmatprep.subr.mxu0 0.0
  %4418 = vmatpush2.msra.mxu0 0.0
  %4419 = vmatprep.subr.mxu0 0.0
  %4420 = vmatpush2.msra.mxu0 0.0
  %4421 = vmatprep.subr.mxu0 0.0
  %4422 = vmatpush2.msra.mxu0 0.0
  %4423 = vmatprep.subr.mxu0 0.0
  %4424 = vmatpush2.msra.mxu0 0.0
  %4425 = vmatprep.subr.mxu0 0.0
  %4426 = vmatpush2.msra.mxu0 0.0
  %4427 = vmatprep.mubr.f32.mxu0 0.0
  %4428 = vmatmul.mubr.f32.gmra.mxu0 %v930
  %v4429 = vpop.f32.mrf.mxu0
  %v4430 = vadd.f32 0.0, %v4429
  %v4431 = vpop.f32.mrf.mxu0
  %v4432 = vadd.f32 0.0, %v4431
  %4433 = vmatprep.mubr.f32.mxu0 0.0
  %4434 = vmatmul.mubr.f32.gmra.mxu0 %v933
  %v4435 = vpop.f32.mrf.mxu0
  %v4436 = vadd.f32 0.0, %v4435
  %v4437 = vpop.f32.mrf.mxu0
  %v4438 = vadd.f32 0.0, %v4437
  %4439 = vdwg.mxu0
  %4440 = vmatprep.subr.mxu0 0.0
  %4441 = vmatpush1.msra.mxu0 0.0
  %4442 = vmatprep.subr.mxu0 0.0
  %4443 = vmatpush1.msra.mxu0 0.0
  %4444 = vmatprep.subr.mxu0 0.0
  %4445 = vmatpush1.msra.mxu0 0.0
  %4446 = vmatprep.subr.mxu0 0.0
  %4447 = vmatpush1.msra.mxu0 0.0
  %4448 = vmatprep.subr.mxu0 0.0
  %4449 = vmatpush1.msra.mxu0 0.0
  %4450 = vmatprep.subr.mxu0 0.0
  %4451 = vmatpush1.msra.mxu0 0.0
  %4452 = vmatprep.subr.mxu0 0.0
  %4453 = vmatpush1.msra.mxu0 0.0
  %4454 = vmatprep.subr.mxu0 0.0
  %4455 = vmatpush1.msra.mxu0 0.0
  %4456 = vmatprep.subr.mxu0 0.0
  %4457 = vmatpush1.msra.mxu0 0.0
  %4458 = vmatprep.subr.mxu0 0.0
  %4459 = vmatpush1.msra.mxu0 0.0
  %4460 = vmatprep.subr.mxu0 0.0
  %4461 = vmatpush1.msra.mxu0 0.0
  %4462 = vmatprep.subr.mxu0 0.0
  %4463 = vmatpush1.msra.mxu0 0.0
  %4464 = vmatprep.subr.mxu0 0.0
  %4465 = vmatpush1.msra.mxu0 0.0
  %4466 = vmatprep.subr.mxu0 %v4361
  %4467 = vmatpush1.msra.mxu0 %v4358
  %4468 = vmatprep.subr.mxu0 %v4354
  %4469 = vmatpush1.msra.mxu0 %v4353
  %4470 = vmatprep.subr.mxu0 %v4352
  %4471 = vmatpush1.msra.mxu0 %v4351
  %4472 = vmatprep.subr.mxu0 0.0
  %4473 = vmatpush2.msra.mxu0 0.0
  %4474 = vmatprep.subr.mxu0 0.0
  %4475 = vmatpush2.msra.mxu0 0.0
  %4476 = vmatprep.subr.mxu0 0.0
  %4477 = vmatpush2.msra.mxu0 0.0
  %4478 = vmatprep.subr.mxu0 0.0
  %4479 = vmatpush2.msra.mxu0 0.0
  %4480 = vmatprep.subr.mxu0 0.0
  %4481 = vmatpush2.msra.mxu0 0.0
  %4482 = vmatprep.subr.mxu0 0.0
  %4483 = vmatpush2.msra.mxu0 0.0
  %4484 = vmatprep.subr.mxu0 0.0
  %4485 = vmatpush2.msra.mxu0 0.0
  %4486 = vmatprep.subr.mxu0 0.0
  %4487 = vmatpush2.msra.mxu0 0.0
  %4488 = vmatprep.subr.mxu0 0.0
  %4489 = vmatpush2.msra.mxu0 0.0
  %4490 = vmatprep.subr.mxu0 0.0
  %4491 = vmatpush2.msra.mxu0 0.0
  %4492 = vmatprep.subr.mxu0 0.0
  %4493 = vmatpush2.msra.mxu0 0.0
  %4494 = vmatprep.subr.mxu0 0.0
  %4495 = vmatpush2.msra.mxu0 0.0
  %4496 = vmatprep.subr.mxu0 0.0
  %4497 = vmatpush2.msra.mxu0 0.0
  %4498 = vmatprep.subr.mxu0 0.0
  %4499 = vmatpush2.msra.mxu0 0.0
  %4500 = vmatprep.subr.mxu0 0.0
  %4501 = vmatpush2.msra.mxu0 0.0
  %4502 = vmatprep.subr.mxu0 0.0
  %4503 = vmatpush2.msra.mxu0 0.0
  %4504 = vmatprep.mubr.f32.mxu0 0.0
  %4505 = vmatmul.mubr.f32.gmra.mxu0 %v1021
  %v4506 = vpop.f32.mrf.mxu0
  %v4507 = vadd.f32 0.0, %v4506
  %v4508 = vpop.f32.mrf.mxu0
  %v4509 = vadd.f32 0.0, %v4508
  %4510 = vmatprep.mubr.f32.mxu0 0.0
  %4511 = vmatmul.mubr.f32.gmra.mxu0 %v1024
  %v4512 = vpop.f32.mrf.mxu0
  %v4513 = vadd.f32 0.0, %v4512
  %v4514 = vpop.f32.mrf.mxu0
  %v4515 = vadd.f32 0.0, %v4514
  %4516 = vdwg.mxu0
  %v4517 = vmax.f32 %v4430, %v4507
  %v4518 = vmax.f32 %v4432, %v4509
  %v4519 = vmax.f32 %v4436, %v4513
  %v4520 = vmax.f32 %v4438, %v4515
  %v4522 = vsel %vm1129, %v4518, 0
  %v4525 = vsel %vm1129, %v4520, 0
  %4527 = vmatprep.subr.mxu0 0.0
  %4528 = vmatpush1.msra.mxu0 %v1122
  %4529 = vmatprep.subr.mxu0 0.0
  %4530 = vmatpush1.msra.mxu0 %v1121
  %4531 = vmatprep.subr.mxu0 0.0
  %4532 = vmatpush1.msra.mxu0 %v1120
  %4533 = vmatprep.subr.mxu0 0.0
  %4534 = vmatpush1.msra.mxu0 %v1119
  %4535 = vmatprep.subr.mxu0 0.0
  %4536 = vmatpush1.msra.mxu0 %v1118
  %4537 = vmatprep.subr.mxu0 0.0
  %4538 = vmatpush1.msra.mxu0 %v1117
  %4539 = vmatprep.subr.mxu0 0.0
  %4540 = vmatpush1.msra.mxu0 %v1116
  %4541 = vmatprep.subr.mxu0 0.0
  %4542 = vmatpush1.msra.mxu0 %v1115
  %4543 = vmatprep.subr.mxu0 0.0
  %4544 = vmatpush1.msra.mxu0 %v1114
  %4545 = vmatprep.subr.mxu0 0.0
  %4546 = vmatpush1.msra.mxu0 %v1113
  %4547 = vmatprep.subr.mxu0 0.0
  %4548 = vmatpush1.msra.mxu0 %v1112
  %4549 = vmatprep.subr.mxu0 0.0
  %4550 = vmatpush1.msra.mxu0 %v1111
  %4551 = vmatprep.subr.mxu0 0.0
  %4552 = vmatpush1.msra.mxu0 %v1110
  %4553 = vmatprep.subr.mxu0 0.0
  %4554 = vmatpush1.msra.mxu0 %v1109
  %4555 = vmatprep.subr.mxu0 0.0
  %4556 = vmatpush1.msra.mxu0 %v1108
  %4557 = vmatprep.subr.mxu0 0.0
  %4558 = vmatpush1.msra.mxu0 %v1107
  %4559 = vmatprep.subr.mxu0 0.0
  %4560 = vmatpush2.msra.mxu0 0.0
  %4561 = vmatprep.subr.mxu0 0.0
  %4562 = vmatpush2.msra.mxu0 0.0
  %4563 = vmatprep.subr.mxu0 0.0
  %4564 = vmatpush2.msra.mxu0 0.0
  %4565 = vmatprep.subr.mxu0 0.0
  %4566 = vmatpush2.msra.mxu0 0.0
  %4567 = vmatprep.subr.mxu0 0.0
  %4568 = vmatpush2.msra.mxu0 0.0
  %4569 = vmatprep.subr.mxu0 0.0
  %4570 = vmatpush2.msra.mxu0 0.0
  %4571 = vmatprep.subr.mxu0 0.0
  %4572 = vmatpush2.msra.mxu0 0.0
  %4573 = vmatprep.subr.mxu0 0.0
  %4574 = vmatpush2.msra.mxu0 0.0
  %4575 = vmatprep.subr.mxu0 0.0
  %4576 = vmatpush2.msra.mxu0 0.0
  %4577 = vmatprep.subr.mxu0 0.0
  %4578 = vmatpush2.msra.mxu0 0.0
  %4579 = vmatprep.subr.mxu0 0.0
  %4580 = vmatpush2.msra.mxu0 %v1128
  %4581 = vmatprep.subr.mxu0 0.0
  %4582 = vmatpush2.msra.mxu0 %v1127
  %4583 = vmatprep.subr.mxu0 0.0
  %4584 = vmatpush2.msra.mxu0 %v1126
  %4585 = vmatprep.subr.mxu0 0.0
  %4586 = vmatpush2.msra.mxu0 %v1125
  %4587 = vmatprep.subr.mxu0 0.0
  %4588 = vmatpush2.msra.mxu0 %v1124
  %4589 = vmatprep.subr.mxu0 0.0
  %4590 = vmatpush2.msra.mxu0 %v1123
  %4591 = vmatprep.mubr.f32.mxu0 %v4522
  %4592 = vmatmul.mubr.f32.gmra.mxu0 %v4517
  %v4593 = vpop.f32.mrf.mxu0
  %v4594 = vadd.f32 0.0, %v4593
  %v4595 = vpop.f32.mrf.mxu0
  %4596 = vmatprep.mubr.f32.mxu0 %v4525
  %4597 = vmatmul.mubr.f32.gmra.mxu0 %v4519
  %v4598 = vpop.f32.mrf.mxu0
  %v4599 = vadd.f32 0.0, %v4598
  %v4600 = vpop.f32.mrf.mxu0
  %4601 = vdwg.mxu0
  %4602 = vmatprep.subr.mxu0 0.0
  %4603 = vmatpush1.msra.mxu0 %v1226
  %4604 = vmatprep.subr.mxu0 0.0
  %4605 = vmatpush1.msra.mxu0 %v1225
  %4606 = vmatprep.subr.mxu0 0.0
  %4607 = vmatpush1.msra.mxu0 %v1224
  %4608 = vmatprep.subr.mxu0 0.0
  %4609 = vmatpush1.msra.mxu0 %v1223
  %4610 = vmatprep.subr.mxu0 0.0
  %4611 = vmatpush1.msra.mxu0 %v1222
  %4612 = vmatprep.subr.mxu0 0.0
  %4613 = vmatpush1.msra.mxu0 %v1221
  %4614 = vmatprep.subr.mxu0 0.0
  %4615 = vmatpush1.msra.mxu0 %v1220
  %4616 = vmatprep.subr.mxu0 0.0
  %4617 = vmatpush1.msra.mxu0 %v1219
  %4618 = vmatprep.subr.mxu0 0.0
  %4619 = vmatpush1.msra.mxu0 %v1218
  %4620 = vmatprep.subr.mxu0 0.0
  %4621 = vmatpush1.msra.mxu0 %v1217
  %4622 = vmatprep.subr.mxu0 0.0
  %4623 = vmatpush1.msra.mxu0 %v1216
  %4624 = vmatprep.subr.mxu0 0.0
  %4625 = vmatpush1.msra.mxu0 %v1215
  %4626 = vmatprep.subr.mxu0 0.0
  %4627 = vmatpush1.msra.mxu0 %v1214
  %4628 = vmatprep.subr.mxu0 0.0
  %4629 = vmatpush1.msra.mxu0 %v1213
  %4630 = vmatprep.subr.mxu0 0.0
  %4631 = vmatpush1.msra.mxu0 %v1212
  %4632 = vmatprep.subr.mxu0 0.0
  %4633 = vmatpush1.msra.mxu0 %v1211
  %4634 = vmatprep.subr.mxu0 0.0
  %4635 = vmatpush2.msra.mxu0 0.0
  %4636 = vmatprep.subr.mxu0 0.0
  %4637 = vmatpush2.msra.mxu0 0.0
  %4638 = vmatprep.subr.mxu0 0.0
  %4639 = vmatpush2.msra.mxu0 0.0
  %4640 = vmatprep.subr.mxu0 0.0
  %4641 = vmatpush2.msra.mxu0 0.0
  %4642 = vmatprep.subr.mxu0 0.0
  %4643 = vmatpush2.msra.mxu0 0.0
  %4644 = vmatprep.subr.mxu0 0.0
  %4645 = vmatpush2.msra.mxu0 0.0
  %4646 = vmatprep.subr.mxu0 0.0
  %4647 = vmatpush2.msra.mxu0 0.0
  %4648 = vmatprep.subr.mxu0 0.0
  %4649 = vmatpush2.msra.mxu0 0.0
  %4650 = vmatprep.subr.mxu0 0.0
  %4651 = vmatpush2.msra.mxu0 0.0
  %4652 = vmatprep.subr.mxu0 0.0
  %4653 = vmatpush2.msra.mxu0 0.0
  %4654 = vmatprep.subr.mxu0 0.0
  %4655 = vmatpush2.msra.mxu0 %v1232
  %4656 = vmatprep.subr.mxu0 0.0
  %4657 = vmatpush2.msra.mxu0 %v1231
  %4658 = vmatprep.subr.mxu0 0.0
  %4659 = vmatpush2.msra.mxu0 %v1230
  %4660 = vmatprep.subr.mxu0 0.0
  %4661 = vmatpush2.msra.mxu0 %v1229
  %4662 = vmatprep.subr.mxu0 0.0
  %4663 = vmatpush2.msra.mxu0 %v1228
  %4664 = vmatprep.subr.mxu0 0.0
  %4665 = vmatpush2.msra.mxu0 %v1227
  %4666 = vmatprep.mubr.f32.mxu0 %v4522
  %4667 = vmatmul.mubr.f32.gmra.mxu0 %v4517
  %v4668 = vpop.f32.mrf.mxu0
  %v4669 = vadd.f32 0.0, %v4668
  %v4670 = vpop.f32.mrf.mxu0
  %4671 = vmatprep.mubr.f32.mxu0 %v4525
  %4672 = vmatmul.mubr.f32.gmra.mxu0 %v4519
  %v4673 = vpop.f32.mrf.mxu0
  %v4674 = vadd.f32 0.0, %v4673
  %v4675 = vpop.f32.mrf.mxu0
  %4676 = vdwg.mxu0
  %v4677 = vmax.f32 %v4594, %v4669
  %v4678 = vmax.f32 %v4599, %v4674
  %v4679 = vmax.f32 %v4677, 0.0
  %v4680 = vmax.f32 %v4678, 0.0
  %v4682 = vrot.slane %v4679, 1
  %v4683 = vsel %vm1337, %v4682, 0
  %4685 = vmatprep.subr.mxu0 0.0
  %4686 = vmatpush1.msra.mxu0 0.0
  %4687 = vmatprep.subr.mxu0 0.0
  %4688 = vmatpush1.msra.mxu0 0.0
  %4689 = vmatprep.subr.mxu0 0.0
  %4690 = vmatpush1.msra.mxu0 0.0
  %4691 = vmatprep.subr.mxu0 0.0
  %4692 = vmatpush1.msra.mxu0 0.0
  %4693 = vmatprep.subr.mxu0 0.0
  %4694 = vmatpush1.msra.mxu0 0.0
  %4695 = vmatprep.subr.mxu0 0.0
  %4696 = vmatpush1.msra.mxu0 %v1334
  %4697 = vmatprep.subr.mxu0 0.0
  %4698 = vmatpush1.msra.mxu0 %v1333
  %4699 = vmatprep.subr.mxu0 0.0
  %4700 = vmatpush1.msra.mxu0 %v1332
  %4701 = vmatprep.subr.mxu0 0.0
  %4702 = vmatpush1.msra.mxu0 %v1331
  %4703 = vmatprep.subr.mxu0 0.0
  %4704 = vmatpush1.msra.mxu0 %v1330
  %4705 = vmatprep.subr.mxu0 0.0
  %4706 = vmatpush1.msra.mxu0 %v1329
  %4707 = vmatprep.subr.mxu0 0.0
  %4708 = vmatpush1.msra.mxu0 %v1328
  %4709 = vmatprep.subr.mxu0 0.0
  %4710 = vmatpush1.msra.mxu0 %v1327
  %4711 = vmatprep.subr.mxu0 0.0
  %4712 = vmatpush1.msra.mxu0 %v1326
  %4713 = vmatprep.subr.mxu0 0.0
  %4714 = vmatpush1.msra.mxu0 %v1325
  %4715 = vmatprep.subr.mxu0 0.0
  %4716 = vmatpush1.msra.mxu0 %v1324
  %4717 = vmatprep.subr.mxu0 0.0
  %4718 = vmatpush2.msra.mxu0 0.0
  %4719 = vmatprep.subr.mxu0 0.0
  %4720 = vmatpush2.msra.mxu0 0.0
  %4721 = vmatprep.subr.mxu0 0.0
  %4722 = vmatpush2.msra.mxu0 0.0
  %4723 = vmatprep.subr.mxu0 0.0
  %4724 = vmatpush2.msra.mxu0 0.0
  %4725 = vmatprep.subr.mxu0 0.0
  %4726 = vmatpush2.msra.mxu0 0.0
  %4727 = vmatprep.subr.mxu0 0.0
  %4728 = vmatpush2.msra.mxu0 0.0
  %4729 = vmatprep.subr.mxu0 0.0
  %4730 = vmatpush2.msra.mxu0 0.0
  %4731 = vmatprep.subr.mxu0 0.0
  %4732 = vmatpush2.msra.mxu0 0.0
  %4733 = vmatprep.subr.mxu0 0.0
  %4734 = vmatpush2.msra.mxu0 0.0
  %4735 = vmatprep.subr.mxu0 0.0
  %4736 = vmatpush2.msra.mxu0 0.0
  %4737 = vmatprep.subr.mxu0 0.0
  %4738 = vmatpush2.msra.mxu0 0.0
  %4739 = vmatprep.subr.mxu0 0.0
  %4740 = vmatpush2.msra.mxu0 0.0
  %4741 = vmatprep.subr.mxu0 0.0
  %4742 = vmatpush2.msra.mxu0 0.0
  %4743 = vmatprep.subr.mxu0 0.0
  %4744 = vmatpush2.msra.mxu0 0.0
  %4745 = vmatprep.subr.mxu0 0.0
  %4746 = vmatpush2.msra.mxu0 0.0
  %4747 = vmatprep.subr.mxu0 0.0
  %4748 = vmatpush2.msra.mxu0 0.0
  %4749 = vmatprep.mubr.f32.mxu0 0.0
  %4750 = vmatmul.mubr.f32.gmra.mxu0 %v4683
  %v4751 = vpop.f32.mrf.mxu0
  %v4752 = vadd.f32 0.0, %v4751
  %v4753 = vpop.f32.mrf.mxu0
  %4754 = vdwg.mxu0
  %v4755 = vsel %vm1337, %v4679, 0
  %4757 = vmatprep.subr.mxu0 0.0
  %4758 = vmatpush1.msra.mxu0 0.0
  %4759 = vmatprep.subr.mxu0 0.0
  %4760 = vmatpush1.msra.mxu0 0.0
  %4761 = vmatprep.subr.mxu0 0.0
  %4762 = vmatpush1.msra.mxu0 0.0
  %4763 = vmatprep.subr.mxu0 0.0
  %4764 = vmatpush1.msra.mxu0 0.0
  %4765 = vmatprep.subr.mxu0 0.0
  %4766 = vmatpush1.msra.mxu0 0.0
  %4767 = vmatprep.subr.mxu0 0.0
  %4768 = vmatpush1.msra.mxu0 %v1322
  %4769 = vmatprep.subr.mxu0 0.0
  %4770 = vmatpush1.msra.mxu0 %v1321
  %4771 = vmatprep.subr.mxu0 0.0
  %4772 = vmatpush1.msra.mxu0 %v1320
  %4773 = vmatprep.subr.mxu0 0.0
  %4774 = vmatpush1.msra.mxu0 %v1319
  %4775 = vmatprep.subr.mxu0 0.0
  %4776 = vmatpush1.msra.mxu0 %v1318
  %4777 = vmatprep.subr.mxu0 0.0
  %4778 = vmatpush1.msra.mxu0 %v1317
  %4779 = vmatprep.subr.mxu0 0.0
  %4780 = vmatpush1.msra.mxu0 %v1316
  %4781 = vmatprep.subr.mxu0 0.0
  %4782 = vmatpush1.msra.mxu0 %v1315
  %4783 = vmatprep.subr.mxu0 0.0
  %4784 = vmatpush1.msra.mxu0 %v1314
  %4785 = vmatprep.subr.mxu0 0.0
  %4786 = vmatpush1.msra.mxu0 %v1313
  %4787 = vmatprep.subr.mxu0 0.0
  %4788 = vmatpush1.msra.mxu0 %v1312
  %4789 = vmatprep.subr.mxu0 0.0
  %4790 = vmatpush2.msra.mxu0 0.0
  %4791 = vmatprep.subr.mxu0 0.0
  %4792 = vmatpush2.msra.mxu0 0.0
  %4793 = vmatprep.subr.mxu0 0.0
  %4794 = vmatpush2.msra.mxu0 0.0
  %4795 = vmatprep.subr.mxu0 0.0
  %4796 = vmatpush2.msra.mxu0 0.0
  %4797 = vmatprep.subr.mxu0 0.0
  %4798 = vmatpush2.msra.mxu0 0.0
  %4799 = vmatprep.subr.mxu0 0.0
  %4800 = vmatpush2.msra.mxu0 0.0
  %4801 = vmatprep.subr.mxu0 0.0
  %4802 = vmatpush2.msra.mxu0 0.0
  %4803 = vmatprep.subr.mxu0 0.0
  %4804 = vmatpush2.msra.mxu0 0.0
  %4805 = vmatprep.subr.mxu0 0.0
  %4806 = vmatpush2.msra.mxu0 0.0
  %4807 = vmatprep.subr.mxu0 0.0
  %4808 = vmatpush2.msra.mxu0 0.0
  %4809 = vmatprep.subr.mxu0 0.0
  %4810 = vmatpush2.msra.mxu0 0.0
  %4811 = vmatprep.subr.mxu0 0.0
  %4812 = vmatpush2.msra.mxu0 0.0
  %4813 = vmatprep.subr.mxu0 0.0
  %4814 = vmatpush2.msra.mxu0 0.0
  %4815 = vmatprep.subr.mxu0 0.0
  %4816 = vmatpush2.msra.mxu0 0.0
  %4817 = vmatprep.subr.mxu0 0.0
  %4818 = vmatpush2.msra.mxu0 0.0
  %4819 = vmatprep.subr.mxu0 0.0
  %4820 = vmatpush2.msra.mxu0 0.0
  %4821 = vmatprep.mubr.f32.mxu0 0.0
  %4822 = vmatmul.mubr.f32.gmra.mxu0 %v4755
  %v4823 = vpop.f32.mrf.mxu0
  %v4824 = vadd.f32 %v4752, %v4823
  %v4825 = vpop.f32.mrf.mxu0
  %4826 = vdwg.mxu0
  %v4828 = vrot.slane %v4679, 2
  %v4829 = vrot.slane %v4680, 2
  %v4830 = vsel %vm329, %v4828, %v4829
  %v4831 = vsel %vm1337, %v4830, 0
  %4833 = vmatprep.subr.mxu0 0.0
  %4834 = vmatpush1.msra.mxu0 0.0
  %4835 = vmatprep.subr.mxu0 0.0
  %4836 = vmatpush1.msra.mxu0 0.0
  %4837 = vmatprep.subr.mxu0 0.0
  %4838 = vmatpush1.msra.mxu0 0.0
  %4839 = vmatprep.subr.mxu0 0.0
  %4840 = vmatpush1.msra.mxu0 0.0
  %4841 = vmatprep.subr.mxu0 0.0
  %4842 = vmatpush1.msra.mxu0 0.0
  %4843 = vmatprep.subr.mxu0 0.0
  %4844 = vmatpush1.msra.mxu0 %v1493
  %4845 = vmatprep.subr.mxu0 0.0
  %4846 = vmatpush1.msra.mxu0 %v1492
  %4847 = vmatprep.subr.mxu0 0.0
  %4848 = vmatpush1.msra.mxu0 %v1491
  %4849 = vmatprep.subr.mxu0 0.0
  %4850 = vmatpush1.msra.mxu0 %v1490
  %4851 = vmatprep.subr.mxu0 0.0
  %4852 = vmatpush1.msra.mxu0 %v1489
  %4853 = vmatprep.subr.mxu0 0.0
  %4854 = vmatpush1.msra.mxu0 %v1488
  %4855 = vmatprep.subr.mxu0 0.0
  %4856 = vmatpush1.msra.mxu0 %v1487
  %4857 = vmatprep.subr.mxu0 0.0
  %4858 = vmatpush1.msra.mxu0 %v1486
  %4859 = vmatprep.subr.mxu0 0.0
  %4860 = vmatpush1.msra.mxu0 %v1485
  %4861 = vmatprep.subr.mxu0 0.0
  %4862 = vmatpush1.msra.mxu0 %v1484
  %4863 = vmatprep.subr.mxu0 0.0
  %4864 = vmatpush1.msra.mxu0 %v1483
  %4865 = vmatprep.subr.mxu0 0.0
  %4866 = vmatpush2.msra.mxu0 0.0
  %4867 = vmatprep.subr.mxu0 0.0
  %4868 = vmatpush2.msra.mxu0 0.0
  %4869 = vmatprep.subr.mxu0 0.0
  %4870 = vmatpush2.msra.mxu0 0.0
  %4871 = vmatprep.subr.mxu0 0.0
  %4872 = vmatpush2.msra.mxu0 0.0
  %4873 = vmatprep.subr.mxu0 0.0
  %4874 = vmatpush2.msra.mxu0 0.0
  %4875 = vmatprep.subr.mxu0 0.0
  %4876 = vmatpush2.msra.mxu0 0.0
  %4877 = vmatprep.subr.mxu0 0.0
  %4878 = vmatpush2.msra.mxu0 0.0
  %4879 = vmatprep.subr.mxu0 0.0
  %4880 = vmatpush2.msra.mxu0 0.0
  %4881 = vmatprep.subr.mxu0 0.0
  %4882 = vmatpush2.msra.mxu0 0.0
  %4883 = vmatprep.subr.mxu0 0.0
  %4884 = vmatpush2.msra.mxu0 0.0
  %4885 = vmatprep.subr.mxu0 0.0
  %4886 = vmatpush2.msra.mxu0 0.0
  %4887 = vmatprep.subr.mxu0 0.0
  %4888 = vmatpush2.msra.mxu0 0.0
  %4889 = vmatprep.subr.mxu0 0.0
  %4890 = vmatpush2.msra.mxu0 0.0
  %4891 = vmatprep.subr.mxu0 0.0
  %4892 = vmatpush2.msra.mxu0 0.0
  %4893 = vmatprep.subr.mxu0 0.0
  %4894 = vmatpush2.msra.mxu0 0.0
  %4895 = vmatprep.subr.mxu0 0.0
  %4896 = vmatpush2.msra.mxu0 0.0
  %4897 = vmatprep.mubr.f32.mxu0 0.0
  %4898 = vmatmul.mubr.f32.gmra.mxu0 %v4831
  %v4899 = vpop.f32.mrf.mxu0
  %v4900 = vadd.f32 0.0, %v4899
  %v4901 = vpop.f32.mrf.mxu0
  %4902 = vdwg.mxu0
  %v4903 = vadd.f32 %v4824, %v4900
  %v4904 = vrot.slane %v4679, 3
  %v4905 = vrot.slane %v4680, 3
  %v4906 = vsel %vm446, %v4904, %v4905
  %v4907 = vsel %vm1337, %v4906, 0
  %4909 = vmatprep.subr.mxu0 0.0
  %4910 = vmatpush1.msra.mxu0 0.0
  %4911 = vmatprep.subr.mxu0 0.0
  %4912 = vmatpush1.msra.mxu0 0.0
  %4913 = vmatprep.subr.mxu0 0.0
  %4914 = vmatpush1.msra.mxu0 0.0
  %4915 = vmatprep.subr.mxu0 0.0
  %4916 = vmatpush1.msra.mxu0 0.0
  %4917 = vmatprep.subr.mxu0 0.0
  %4918 = vmatpush1.msra.mxu0 0.0
  %4919 = vmatprep.subr.mxu0 0.0
  %4920 = vmatpush1.msra.mxu0 %v1582
  %4921 = vmatprep.subr.mxu0 0.0
  %4922 = vmatpush1.msra.mxu0 %v1581
  %4923 = vmatprep.subr.mxu0 0.0
  %4924 = vmatpush1.msra.mxu0 %v1580
  %4925 = vmatprep.subr.mxu0 0.0
  %4926 = vmatpush1.msra.mxu0 %v1579
  %4927 = vmatprep.subr.mxu0 0.0
  %4928 = vmatpush1.msra.mxu0 %v1578
  %4929 = vmatprep.subr.mxu0 0.0
  %4930 = vmatpush1.msra.mxu0 %v1577
  %4931 = vmatprep.subr.mxu0 0.0
  %4932 = vmatpush1.msra.mxu0 %v1576
  %4933 = vmatprep.subr.mxu0 0.0
  %4934 = vmatpush1.msra.mxu0 %v1575
  %4935 = vmatprep.subr.mxu0 0.0
  %4936 = vmatpush1.msra.mxu0 %v1574
  %4937 = vmatprep.subr.mxu0 0.0
  %4938 = vmatpush1.msra.mxu0 %v1573
  %4939 = vmatprep.subr.mxu0 0.0
  %4940 = vmatpush1.msra.mxu0 %v1572
  %4941 = vmatprep.subr.mxu0 0.0
  %4942 = vmatpush2.msra.mxu0 0.0
  %4943 = vmatprep.subr.mxu0 0.0
  %4944 = vmatpush2.msra.mxu0 0.0
  %4945 = vmatprep.subr.mxu0 0.0
  %4946 = vmatpush2.msra.mxu0 0.0
  %4947 = vmatprep.subr.mxu0 0.0
  %4948 = vmatpush2.msra.mxu0 0.0
  %4949 = vmatprep.subr.mxu0 0.0
  %4950 = vmatpush2.msra.mxu0 0.0
  %4951 = vmatprep.subr.mxu0 0.0
  %4952 = vmatpush2.msra.mxu0 0.0
  %4953 = vmatprep.subr.mxu0 0.0
  %4954 = vmatpush2.msra.mxu0 0.0
  %4955 = vmatprep.subr.mxu0 0.0
  %4956 = vmatpush2.msra.mxu0 0.0
  %4957 = vmatprep.subr.mxu0 0.0
  %4958 = vmatpush2.msra.mxu0 0.0
  %4959 = vmatprep.subr.mxu0 0.0
  %4960 = vmatpush2.msra.mxu0 0.0
  %4961 = vmatprep.subr.mxu0 0.0
  %4962 = vmatpush2.msra.mxu0 0.0
  %4963 = vmatprep.subr.mxu0 0.0
  %4964 = vmatpush2.msra.mxu0 0.0
  %4965 = vmatprep.subr.mxu0 0.0
  %4966 = vmatpush2.msra.mxu0 0.0
  %4967 = vmatprep.subr.mxu0 0.0
  %4968 = vmatpush2.msra.mxu0 0.0
  %4969 = vmatprep.subr.mxu0 0.0
  %4970 = vmatpush2.msra.mxu0 0.0
  %4971 = vmatprep.subr.mxu0 0.0
  %4972 = vmatpush2.msra.mxu0 0.0
  %4973 = vmatprep.mubr.f32.mxu0 0.0
  %4974 = vmatmul.mubr.f32.gmra.mxu0 %v4907
  %v4975 = vpop.f32.mrf.mxu0
  %v4976 = vadd.f32 0.0, %v4975
  %v4977 = vpop.f32.mrf.mxu0
  %4978 = vdwg.mxu0
  %v4979 = vadd.f32 %v4903, %v4976
  %v4980 = vrot.slane %v4679, 4
  %v4981 = vrot.slane %v4680, 4
  %v4982 = vsel %vm135, %v4980, %v4981
  %v4983 = vsel %vm1337, %v4982, 0
  %4985 = vmatprep.subr.mxu0 0.0
  %4986 = vmatpush1.msra.mxu0 0.0
  %4987 = vmatprep.subr.mxu0 0.0
  %4988 = vmatpush1.msra.mxu0 0.0
  %4989 = vmatprep.subr.mxu0 0.0
  %4990 = vmatpush1.msra.mxu0 0.0
  %4991 = vmatprep.subr.mxu0 0.0
  %4992 = vmatpush1.msra.mxu0 0.0
  %4993 = vmatprep.subr.mxu0 0.0
  %4994 = vmatpush1.msra.mxu0 0.0
  %4995 = vmatprep.subr.mxu0 0.0
  %4996 = vmatpush1.msra.mxu0 %v1670
  %4997 = vmatprep.subr.mxu0 0.0
  %4998 = vmatpush1.msra.mxu0 %v1669
  %4999 = vmatprep.subr.mxu0 0.0
  %5000 = vmatpush1.msra.mxu0 %v1668
  %5001 = vmatprep.subr.mxu0 0.0
  %5002 = vmatpush1.msra.mxu0 %v1667
  %5003 = vmatprep.subr.mxu0 0.0
  %5004 = vmatpush1.msra.mxu0 %v1666
  %5005 = vmatprep.subr.mxu0 0.0
  %5006 = vmatpush1.msra.mxu0 %v1665
  %5007 = vmatprep.subr.mxu0 0.0
  %5008 = vmatpush1.msra.mxu0 %v1664
  %5009 = vmatprep.subr.mxu0 0.0
  %5010 = vmatpush1.msra.mxu0 %v1663
  %5011 = vmatprep.subr.mxu0 0.0
  %5012 = vmatpush1.msra.mxu0 %v1662
  %5013 = vmatprep.subr.mxu0 0.0
  %5014 = vmatpush1.msra.mxu0 %v1661
  %5015 = vmatprep.subr.mxu0 0.0
  %5016 = vmatpush1.msra.mxu0 %v1660
  %5017 = vmatprep.subr.mxu0 0.0
  %5018 = vmatpush2.msra.mxu0 0.0
  %5019 = vmatprep.subr.mxu0 0.0
  %5020 = vmatpush2.msra.mxu0 0.0
  %5021 = vmatprep.subr.mxu0 0.0
  %5022 = vmatpush2.msra.mxu0 0.0
  %5023 = vmatprep.subr.mxu0 0.0
  %5024 = vmatpush2.msra.mxu0 0.0
  %5025 = vmatprep.subr.mxu0 0.0
  %5026 = vmatpush2.msra.mxu0 0.0
  %5027 = vmatprep.subr.mxu0 0.0
  %5028 = vmatpush2.msra.mxu0 0.0
  %5029 = vmatprep.subr.mxu0 0.0
  %5030 = vmatpush2.msra.mxu0 0.0
  %5031 = vmatprep.subr.mxu0 0.0
  %5032 = vmatpush2.msra.mxu0 0.0
  %5033 = vmatprep.subr.mxu0 0.0
  %5034 = vmatpush2.msra.mxu0 0.0
  %5035 = vmatprep.subr.mxu0 0.0
  %5036 = vmatpush2.msra.mxu0 0.0
  %5037 = vmatprep.subr.mxu0 0.0
  %5038 = vmatpush2.msra.mxu0 0.0
  %5039 = vmatprep.subr.mxu0 0.0
  %5040 = vmatpush2.msra.mxu0 0.0
  %5041 = vmatprep.subr.mxu0 0.0
  %5042 = vmatpush2.msra.mxu0 0.0
  %5043 = vmatprep.subr.mxu0 0.0
  %5044 = vmatpush2.msra.mxu0 0.0
  %5045 = vmatprep.subr.mxu0 0.0
  %5046 = vmatpush2.msra.mxu0 0.0
  %5047 = vmatprep.subr.mxu0 0.0
  %5048 = vmatpush2.msra.mxu0 0.0
  %5049 = vmatprep.mubr.f32.mxu0 0.0
  %5050 = vmatmul.mubr.f32.gmra.mxu0 %v4983
  %v5051 = vpop.f32.mrf.mxu0
  %v5052 = vadd.f32 0.0, %v5051
  %v5053 = vpop.f32.mrf.mxu0
  %5054 = vdwg.mxu0
  %v5055 = vadd.f32 %v4979, %v5052
  %v5056 = vadd.f32 %v5055, %v1752
  %v5058 = vsel %vm122, %v5056, 0
  %5060 = vmatprep.subr.mxu0 0.0
  %5061 = vmatpush1.msra.mxu0 0.0
  %5062 = vmatprep.subr.mxu0 0.0
  %5063 = vmatpush1.msra.mxu0 0.0
  %5064 = vmatprep.subr.mxu0 0.0
  %5065 = vmatpush1.msra.mxu0 0.0
  %5066 = vmatprep.subr.mxu0 0.0
  %5067 = vmatpush1.msra.mxu0 0.0
  %5068 = vmatprep.subr.mxu0 0.0
  %5069 = vmatpush1.msra.mxu0 0.0
  %5070 = vmatprep.subr.mxu0 0.0
  %5071 = vmatpush1.msra.mxu0 0.0
  %5072 = vmatprep.subr.mxu0 0.0
  %5073 = vmatpush1.msra.mxu0 0.0
  %5074 = vmatprep.subr.mxu0 0.0
  %5075 = vmatpush1.msra.mxu0 0.0
  %5076 = vmatprep.subr.mxu0 0.0
  %5077 = vmatpush1.msra.mxu0 0.0
  %5078 = vmatprep.subr.mxu0 0.0
  %5079 = vmatpush1.msra.mxu0 0.0
  %5080 = vmatprep.subr.mxu0 0.0
  %5081 = vmatpush1.msra.mxu0 0.0
  %5082 = vmatprep.subr.mxu0 0.0
  %5083 = vmatpush1.msra.mxu0 0.0
  %5084 = vmatprep.subr.mxu0 0.0
  %5085 = vmatpush1.msra.mxu0 0.0
  %5086 = vmatprep.subr.mxu0 0.0
  %5087 = vmatpush1.msra.mxu0 0.0
  %5088 = vmatprep.subr.mxu0 0.0
  %5089 = vmatpush1.msra.mxu0 0.0
  %5090 = vmatprep.subr.mxu0 0.0
  %5091 = vmatpush1.msra.mxu0 %v5058
  %5092 = vmatprep.subr.mxu0 0.0
  %5093 = vmatpush2.msra.mxu0 0.0
  %5094 = vmatprep.subr.mxu0 0.0
  %5095 = vmatpush2.msra.mxu0 0.0
  %5096 = vmatprep.subr.mxu0 0.0
  %5097 = vmatpush2.msra.mxu0 0.0
  %5098 = vmatprep.subr.mxu0 0.0
  %5099 = vmatpush2.msra.mxu0 0.0
  %5100 = vmatprep.subr.mxu0 0.0
  %5101 = vmatpush2.msra.mxu0 0.0
  %5102 = vmatprep.subr.mxu0 0.0
  %5103 = vmatpush2.msra.mxu0 0.0
  %5104 = vmatprep.subr.mxu0 0.0
  %5105 = vmatpush2.msra.mxu0 0.0
  %5106 = vmatprep.subr.mxu0 0.0
  %5107 = vmatpush2.msra.mxu0 0.0
  %5108 = vmatprep.subr.mxu0 0.0
  %5109 = vmatpush2.msra.mxu0 0.0
  %5110 = vmatprep.subr.mxu0 0.0
  %5111 = vmatpush2.msra.mxu0 0.0
  %5112 = vmatprep.subr.mxu0 0.0
  %5113 = vmatpush2.msra.mxu0 0.0
  %5114 = vmatprep.subr.mxu0 0.0
  %5115 = vmatpush2.msra.mxu0 0.0
  %5116 = vmatprep.subr.mxu0 0.0
  %5117 = vmatpush2.msra.mxu0 0.0
  %5118 = vmatprep.subr.mxu0 0.0
  %5119 = vmatpush2.msra.mxu0 0.0
  %5120 = vmatprep.subr.mxu0 0.0
  %5121 = vmatpush2.msra.mxu0 0.0
  %5122 = vmatprep.subr.mxu0 0.0
  %5123 = vmatpush2.msra.mxu0 0.0
  %5124 = vmatprep.mubr.f32.mxu0 0.0
  %5125 = vmatmul.mubr.f32.gmra.mxu0 %v1758
  %v5126 = vpop.f32.mrf.mxu0
  %v5127 = vadd.f32 0.0, %v5126
  %v5128 = vpop.f32.mrf.mxu0
  %5129 = vdwg.mxu0
  %5130 = vmatprep.subr.mxu0 0.0
  %5131 = vmatpush1.msra.mxu0 0.0
  %5132 = vmatprep.subr.mxu0 0.0
  %5133 = vmatpush1.msra.mxu0 0.0
  %5134 = vmatprep.subr.mxu0 0.0
  %5135 = vmatpush1.msra.mxu0 0.0
  %5136 = vmatprep.subr.mxu0 0.0
  %5137 = vmatpush1.msra.mxu0 0.0
  %5138 = vmatprep.subr.mxu0 0.0
  %5139 = vmatpush1.msra.mxu0 0.0
  %5140 = vmatprep.subr.mxu0 0.0
  %5141 = vmatpush1.msra.mxu0 0.0
  %5142 = vmatprep.subr.mxu0 0.0
  %5143 = vmatpush1.msra.mxu0 0.0
  %5144 = vmatprep.subr.mxu0 0.0
  %5145 = vmatpush1.msra.mxu0 0.0
  %5146 = vmatprep.subr.mxu0 0.0
  %5147 = vmatpush1.msra.mxu0 0.0
  %5148 = vmatprep.subr.mxu0 0.0
  %5149 = vmatpush1.msra.mxu0 0.0
  %5150 = vmatprep.subr.mxu0 0.0
  %5151 = vmatpush1.msra.mxu0 0.0
  %5152 = vmatprep.subr.mxu0 0.0
  %5153 = vmatpush1.msra.mxu0 0.0
  %5154 = vmatprep.subr.mxu0 0.0
  %5155 = vmatpush1.msra.mxu0 0.0
  %5156 = vmatprep.subr.mxu0 0.0
  %5157 = vmatpush1.msra.mxu0 0.0
  %5158 = vmatprep.subr.mxu0 0.0
  %5159 = vmatpush1.msra.mxu0 0.0
  %5160 = vmatprep.subr.mxu0 0.0
  %5161 = vmatpush1.msra.mxu0 %v5058
  %5162 = vmatprep.subr.mxu0 0.0
  %5163 = vmatpush2.msra.mxu0 0.0
  %5164 = vmatprep.subr.mxu0 0.0
  %5165 = vmatpush2.msra.mxu0 0.0
  %5166 = vmatprep.subr.mxu0 0.0
  %5167 = vmatpush2.msra.mxu0 0.0
  %5168 = vmatprep.subr.mxu0 0.0
  %5169 = vmatpush2.msra.mxu0 0.0
  %5170 = vmatprep.subr.mxu0 0.0
  %5171 = vmatpush2.msra.mxu0 0.0
  %5172 = vmatprep.subr.mxu0 0.0
  %5173 = vmatpush2.msra.mxu0 0.0
  %5174 = vmatprep.subr.mxu0 0.0
  %5175 = vmatpush2.msra.mxu0 0.0
  %5176 = vmatprep.subr.mxu0 0.0
  %5177 = vmatpush2.msra.mxu0 0.0
  %5178 = vmatprep.subr.mxu0 0.0
  %5179 = vmatpush2.msra.mxu0 0.0
  %5180 = vmatprep.subr.mxu0 0.0
  %5181 = vmatpush2.msra.mxu0 0.0
  %5182 = vmatprep.subr.mxu0 0.0
  %5183 = vmatpush2.msra.mxu0 0.0
  %5184 = vmatprep.subr.mxu0 0.0
  %5185 = vmatpush2.msra.mxu0 0.0
  %5186 = vmatprep.subr.mxu0 0.0
  %5187 = vmatpush2.msra.mxu0 0.0
  %5188 = vmatprep.subr.mxu0 0.0
  %5189 = vmatpush2.msra.mxu0 0.0
  %5190 = vmatprep.subr.mxu0 0.0
  %5191 = vmatpush2.msra.mxu0 0.0
  %5192 = vmatprep.subr.mxu0 0.0
  %5193 = vmatpush2.msra.mxu0 0.0
  %5194 = vmatprep.mubr.f32.mxu0 0.0
  %5195 = vmatmul.mubr.f32.gmra.mxu0 %v1835
  %v5196 = vpop.f32.mrf.mxu0
  %v5197 = vadd.f32 0.0, %v5196
  %v5198 = vpop.f32.mrf.mxu0
  %5199 = vdwg.mxu0
  %v5200 = vmax.f32 %v5127, %v5197
  %v5202 = vsel %vm1917, %v5200, 0
  %5204 = vmatprep.subr.mxu0 0.0
  %5205 = vmatpush1.msra.mxu0 0.0
  %5206 = vmatprep.subr.mxu0 0.0
  %5207 = vmatpush1.msra.mxu0 0.0
  %5208 = vmatprep.subr.mxu0 0.0
  %5209 = vmatpush1.msra.mxu0 0.0
  %5210 = vmatprep.subr.mxu0 0.0
  %5211 = vmatpush1.msra.mxu0 0.0
  %5212 = vmatprep.subr.mxu0 0.0
  %5213 = vmatpush1.msra.mxu0 0.0
  %5214 = vmatprep.subr.mxu0 0.0
  %5215 = vmatpush1.msra.mxu0 0.0
  %5216 = vmatprep.subr.mxu0 0.0
  %5217 = vmatpush1.msra.mxu0 0.0
  %5218 = vmatprep.subr.mxu0 0.0
  %5219 = vmatpush1.msra.mxu0 %v1922
  %5220 = vmatprep.subr.mxu0 0.0
  %5221 = vmatpush1.msra.mxu0 %v1915
  %5222 = vmatprep.subr.mxu0 0.0
  %5223 = vmatpush1.msra.mxu0 %v1914
  %5224 = vmatprep.subr.mxu0 0.0
  %5225 = vmatpush1.msra.mxu0 %v1913
  %5226 = vmatprep.subr.mxu0 0.0
  %5227 = vmatpush1.msra.mxu0 %v1912
  %5228 = vmatprep.subr.mxu0 0.0
  %5229 = vmatpush1.msra.mxu0 %v1911
  %5230 = vmatprep.subr.mxu0 0.0
  %5231 = vmatpush1.msra.mxu0 %v1910
  %5232 = vmatprep.subr.mxu0 0.0
  %5233 = vmatpush1.msra.mxu0 %v1909
  %5234 = vmatprep.subr.mxu0 0.0
  %5235 = vmatpush1.msra.mxu0 %v1908
  %5236 = vmatprep.subr.mxu0 0.0
  %5237 = vmatpush2.msra.mxu0 0.0
  %5238 = vmatprep.subr.mxu0 0.0
  %5239 = vmatpush2.msra.mxu0 0.0
  %5240 = vmatprep.subr.mxu0 0.0
  %5241 = vmatpush2.msra.mxu0 0.0
  %5242 = vmatprep.subr.mxu0 0.0
  %5243 = vmatpush2.msra.mxu0 0.0
  %5244 = vmatprep.subr.mxu0 0.0
  %5245 = vmatpush2.msra.mxu0 0.0
  %5246 = vmatprep.subr.mxu0 0.0
  %5247 = vmatpush2.msra.mxu0 0.0
  %5248 = vmatprep.subr.mxu0 0.0
  %5249 = vmatpush2.msra.mxu0 0.0
  %5250 = vmatprep.subr.mxu0 0.0
  %5251 = vmatpush2.msra.mxu0 0.0
  %5252 = vmatprep.subr.mxu0 0.0
  %5253 = vmatpush2.msra.mxu0 0.0
  %5254 = vmatprep.subr.mxu0 0.0
  %5255 = vmatpush2.msra.mxu0 0.0
  %5256 = vmatprep.subr.mxu0 0.0
  %5257 = vmatpush2.msra.mxu0 0.0
  %5258 = vmatprep.subr.mxu0 0.0
  %5259 = vmatpush2.msra.mxu0 0.0
  %5260 = vmatprep.subr.mxu0 0.0
  %5261 = vmatpush2.msra.mxu0 0.0
  %5262 = vmatprep.subr.mxu0 0.0
  %5263 = vmatpush2.msra.mxu0 0.0
  %5264 = vmatprep.subr.mxu0 0.0
  %5265 = vmatpush2.msra.mxu0 0.0
  %5266 = vmatprep.subr.mxu0 0.0
  %5267 = vmatpush2.msra.mxu0 0.0
  %5268 = vmatprep.mubr.f32.mxu0 0.0
  %5269 = vmatmul.mubr.f32.gmra.mxu0 %v5202
  %v5270 = vpop.f32.mrf.mxu0
  %v5271 = vadd.f32 0.0, %v5270
  %v5272 = vpop.f32.mrf.mxu0
  %5273 = vdwg.mxu0
  %5274 = vmatprep.subr.mxu0 0.0
  %5275 = vmatpush1.msra.mxu0 0.0
  %5276 = vmatprep.subr.mxu0 0.0
  %5277 = vmatpush1.msra.mxu0 0.0
  %5278 = vmatprep.subr.mxu0 0.0
  %5279 = vmatpush1.msra.mxu0 0.0
  %5280 = vmatprep.subr.mxu0 0.0
  %5281 = vmatpush1.msra.mxu0 0.0
  %5282 = vmatprep.subr.mxu0 0.0
  %5283 = vmatpush1.msra.mxu0 0.0
  %5284 = vmatprep.subr.mxu0 0.0
  %5285 = vmatpush1.msra.mxu0 0.0
  %5286 = vmatprep.subr.mxu0 0.0
  %5287 = vmatpush1.msra.mxu0 0.0
  %5288 = vmatprep.subr.mxu0 0.0
  %5289 = vmatpush1.msra.mxu0 %v2004
  %5290 = vmatprep.subr.mxu0 0.0
  %5291 = vmatpush1.msra.mxu0 %v2001
  %5292 = vmatprep.subr.mxu0 0.0
  %5293 = vmatpush1.msra.mxu0 %v2000
  %5294 = vmatprep.subr.mxu0 0.0
  %5295 = vmatpush1.msra.mxu0 %v1999
  %5296 = vmatprep.subr.mxu0 0.0
  %5297 = vmatpush1.msra.mxu0 %v1998
  %5298 = vmatprep.subr.mxu0 0.0
  %5299 = vmatpush1.msra.mxu0 %v1997
  %5300 = vmatprep.subr.mxu0 0.0
  %5301 = vmatpush1.msra.mxu0 %v1996
  %5302 = vmatprep.subr.mxu0 0.0
  %5303 = vmatpush1.msra.mxu0 %v1995
  %5304 = vmatprep.subr.mxu0 0.0
  %5305 = vmatpush1.msra.mxu0 %v1994
  %5306 = vmatprep.subr.mxu0 0.0
  %5307 = vmatpush2.msra.mxu0 0.0
  %5308 = vmatprep.subr.mxu0 0.0
  %5309 = vmatpush2.msra.mxu0 0.0
  %5310 = vmatprep.subr.mxu0 0.0
  %5311 = vmatpush2.msra.mxu0 0.0
  %5312 = vmatprep.subr.mxu0 0.0
  %5313 = vmatpush2.msra.mxu0 0.0
  %5314 = vmatprep.subr.mxu0 0.0
  %5315 = vmatpush2.msra.mxu0 0.0
  %5316 = vmatprep.subr.mxu0 0.0
  %5317 = vmatpush2.msra.mxu0 0.0
  %5318 = vmatprep.subr.mxu0 0.0
  %5319 = vmatpush2.msra.mxu0 0.0
  %5320 = vmatprep.subr.mxu0 0.0
  %5321 = vmatpush2.msra.mxu0 0.0
  %5322 = vmatprep.subr.mxu0 0.0
  %5323 = vmatpush2.msra.mxu0 0.0
  %5324 = vmatprep.subr.mxu0 0.0
  %5325 = vmatpush2.msra.mxu0 0.0
  %5326 = vmatprep.subr.mxu0 0.0
  %5327 = vmatpush2.msra.mxu0 0.0
  %5328 = vmatprep.subr.mxu0 0.0
  %5329 = vmatpush2.msra.mxu0 0.0
  %5330 = vmatprep.subr.mxu0 0.0
  %5331 = vmatpush2.msra.mxu0 0.0
  %5332 = vmatprep.subr.mxu0 0.0
  %5333 = vmatpush2.msra.mxu0 0.0
  %5334 = vmatprep.subr.mxu0 0.0
  %5335 = vmatpush2.msra.mxu0 0.0
  %5336 = vmatprep.subr.mxu0 0.0
  %5337 = vmatpush2.msra.mxu0 0.0
  %5338 = vmatprep.mubr.f32.mxu0 0.0
  %5339 = vmatmul.mubr.f32.gmra.mxu0 %v5202
  %v5340 = vpop.f32.mrf.mxu0
  %v5341 = vadd.f32 0.0, %v5340
  %v5342 = vpop.f32.mrf.mxu0
  %5343 = vdwg.mxu0
  %v5344 = vmax.f32 %v5271, %v5341
  %v5345 = vmax.f32 %v5344, 0.0
  %v5347 = vrot.slane %v5345, 1
  %v5348 = vsel %vm2089, %v5347, 0
  %5350 = vmatprep.subr.mxu0 0.0
  %5351 = vmatpush1.msra.mxu0 0.0
  %5352 = vmatprep.subr.mxu0 0.0
  %5353 = vmatpush1.msra.mxu0 0.0
  %5354 = vmatprep.subr.mxu0 0.0
  %5355 = vmatpush1.msra.mxu0 0.0
  %5356 = vmatprep.subr.mxu0 0.0
  %5357 = vmatpush1.msra.mxu0 0.0
  %5358 = vmatprep.subr.mxu0 0.0
  %5359 = vmatpush1.msra.mxu0 0.0
  %5360 = vmatprep.subr.mxu0 0.0
  %5361 = vmatpush1.msra.mxu0 0.0
  %5362 = vmatprep.subr.mxu0 0.0
  %5363 = vmatpush1.msra.mxu0 0.0
  %5364 = vmatprep.subr.mxu0 0.0
  %5365 = vmatpush1.msra.mxu0 0.0
  %5366 = vmatprep.subr.mxu0 0.0
  %5367 = vmatpush1.msra.mxu0 0.0
  %5368 = vmatprep.subr.mxu0 0.0
  %5369 = vmatpush1.msra.mxu0 0.0
  %5370 = vmatprep.subr.mxu0 0.0
  %5371 = vmatpush1.msra.mxu0 0.0
  %5372 = vmatprep.subr.mxu0 0.0
  %5373 = vmatpush1.msra.mxu0 0.0
  %5374 = vmatprep.subr.mxu0 0.0
  %5375 = vmatpush1.msra.mxu0 %v2093
  %5376 = vmatprep.subr.mxu0 0.0
  %5377 = vmatpush1.msra.mxu0 %v2085
  %5378 = vmatprep.subr.mxu0 0.0
  %5379 = vmatpush1.msra.mxu0 %v2084
  %5380 = vmatprep.subr.mxu0 0.0
  %5381 = vmatpush1.msra.mxu0 %v2083
  %5382 = vmatprep.subr.mxu0 0.0
  %5383 = vmatpush2.msra.mxu0 0.0
  %5384 = vmatprep.subr.mxu0 0.0
  %5385 = vmatpush2.msra.mxu0 0.0
  %5386 = vmatprep.subr.mxu0 0.0
  %5387 = vmatpush2.msra.mxu0 0.0
  %5388 = vmatprep.subr.mxu0 0.0
  %5389 = vmatpush2.msra.mxu0 0.0
  %5390 = vmatprep.subr.mxu0 0.0
  %5391 = vmatpush2.msra.mxu0 0.0
  %5392 = vmatprep.subr.mxu0 0.0
  %5393 = vmatpush2.msra.mxu0 0.0
  %5394 = vmatprep.subr.mxu0 0.0
  %5395 = vmatpush2.msra.mxu0 0.0
  %5396 = vmatprep.subr.mxu0 0.0
  %5397 = vmatpush2.msra.mxu0 0.0
  %5398 = vmatprep.subr.mxu0 0.0
  %5399 = vmatpush2.msra.mxu0 0.0
  %5400 = vmatprep.subr.mxu0 0.0
  %5401 = vmatpush2.msra.mxu0 0.0
  %5402 = vmatprep.subr.mxu0 0.0
  %5403 = vmatpush2.msra.mxu0 0.0
  %5404 = vmatprep.subr.mxu0 0.0
  %5405 = vmatpush2.msra.mxu0 0.0
  %5406 = vmatprep.subr.mxu0 0.0
  %5407 = vmatpush2.msra.mxu0 0.0
  %5408 = vmatprep.subr.mxu0 0.0
  %5409 = vmatpush2.msra.mxu0 0.0
  %5410 = vmatprep.subr.mxu0 0.0
  %5411 = vmatpush2.msra.mxu0 0.0
  %5412 = vmatprep.subr.mxu0 0.0
  %5413 = vmatpush2.msra.mxu0 0.0
  %5414 = vmatprep.mubr.f32.mxu0 0.0
  %5415 = vmatmul.mubr.f32.gmra.mxu0 %v5348
  %v5416 = vpop.f32.mrf.mxu0
  %v5417 = vadd.f32 0.0, %v5416
  %v5418 = vpop.f32.mrf.mxu0
  %5419 = vdwg.mxu0
  %v5420 = vsel %vm2089, %v5345, 0
  %5422 = vmatprep.subr.mxu0 0.0
  %5423 = vmatpush1.msra.mxu0 0.0
  %5424 = vmatprep.subr.mxu0 0.0
  %5425 = vmatpush1.msra.mxu0 0.0
  %5426 = vmatprep.subr.mxu0 0.0
  %5427 = vmatpush1.msra.mxu0 0.0
  %5428 = vmatprep.subr.mxu0 0.0
  %5429 = vmatpush1.msra.mxu0 0.0
  %5430 = vmatprep.subr.mxu0 0.0
  %5431 = vmatpush1.msra.mxu0 0.0
  %5432 = vmatprep.subr.mxu0 0.0
  %5433 = vmatpush1.msra.mxu0 0.0
  %5434 = vmatprep.subr.mxu0 0.0
  %5435 = vmatpush1.msra.mxu0 0.0
  %5436 = vmatprep.subr.mxu0 0.0
  %5437 = vmatpush1.msra.mxu0 0.0
  %5438 = vmatprep.subr.mxu0 0.0
  %5439 = vmatpush1.msra.mxu0 0.0
  %5440 = vmatprep.subr.mxu0 0.0
  %5441 = vmatpush1.msra.mxu0 0.0
  %5442 = vmatprep.subr.mxu0 0.0
  %5443 = vmatpush1.msra.mxu0 0.0
  %5444 = vmatprep.subr.mxu0 0.0
  %5445 = vmatpush1.msra.mxu0 0.0
  %5446 = vmatprep.subr.mxu0 0.0
  %5447 = vmatpush1.msra.mxu0 %v2168
  %5448 = vmatprep.subr.mxu0 0.0
  %5449 = vmatpush1.msra.mxu0 %v2080
  %5450 = vmatprep.subr.mxu0 0.0
  %5451 = vmatpush1.msra.mxu0 %v2079
  %5452 = vmatprep.subr.mxu0 0.0
  %5453 = vmatpush1.msra.mxu0 %v2078
  %5454 = vmatprep.subr.mxu0 0.0
  %5455 = vmatpush2.msra.mxu0 0.0
  %5456 = vmatprep.subr.mxu0 0.0
  %5457 = vmatpush2.msra.mxu0 0.0
  %5458 = vmatprep.subr.mxu0 0.0
  %5459 = vmatpush2.msra.mxu0 0.0
  %5460 = vmatprep.subr.mxu0 0.0
  %5461 = vmatpush2.msra.mxu0 0.0
  %5462 = vmatprep.subr.mxu0 0.0
  %5463 = vmatpush2.msra.mxu0 0.0
  %5464 = vmatprep.subr.mxu0 0.0
  %5465 = vmatpush2.msra.mxu0 0.0
  %5466 = vmatprep.subr.mxu0 0.0
  %5467 = vmatpush2.msra.mxu0 0.0
  %5468 = vmatprep.subr.mxu0 0.0
  %5469 = vmatpush2.msra.mxu0 0.0
  %5470 = vmatprep.subr.mxu0 0.0
  %5471 = vmatpush2.msra.mxu0 0.0
  %5472 = vmatprep.subr.mxu0 0.0
  %5473 = vmatpush2.msra.mxu0 0.0
  %5474 = vmatprep.subr.mxu0 0.0
  %5475 = vmatpush2.msra.mxu0 0.0
  %5476 = vmatprep.subr.mxu0 0.0
  %5477 = vmatpush2.msra.mxu0 0.0
  %5478 = vmatprep.subr.mxu0 0.0
  %5479 = vmatpush2.msra.mxu0 0.0
  %5480 = vmatprep.subr.mxu0 0.0
  %5481 = vmatpush2.msra.mxu0 0.0
  %5482 = vmatprep.subr.mxu0 0.0
  %5483 = vmatpush2.msra.mxu0 0.0
  %5484 = vmatprep.subr.mxu0 0.0
  %5485 = vmatpush2.msra.mxu0 0.0
  %5486 = vmatprep.mubr.f32.mxu0 0.0
  %5487 = vmatmul.mubr.f32.gmra.mxu0 %v5420
  %v5488 = vpop.f32.mrf.mxu0
  %v5489 = vadd.f32 %v5417, %v5488
  %v5490 = vpop.f32.mrf.mxu0
  %5491 = vdwg.mxu0
  %v5492 = vrot.slane %v5345, 2
  %v5493 = vsel %vm2089, %v5492, 0
  %5495 = vmatprep.subr.mxu0 0.0
  %5496 = vmatpush1.msra.mxu0 0.0
  %5497 = vmatprep.subr.mxu0 0.0
  %5498 = vmatpush1.msra.mxu0 0.0
  %5499 = vmatprep.subr.mxu0 0.0
  %5500 = vmatpush1.msra.mxu0 0.0
  %5501 = vmatprep.subr.mxu0 0.0
  %5502 = vmatpush1.msra.mxu0 0.0
  %5503 = vmatprep.subr.mxu0 0.0
  %5504 = vmatpush1.msra.mxu0 0.0
  %5505 = vmatprep.subr.mxu0 0.0
  %5506 = vmatpush1.msra.mxu0 0.0
  %5507 = vmatprep.subr.mxu0 0.0
  %5508 = vmatpush1.msra.mxu0 0.0
  %5509 = vmatprep.subr.mxu0 0.0
  %5510 = vmatpush1.msra.mxu0 0.0
  %5511 = vmatprep.subr.mxu0 0.0
  %5512 = vmatpush1.msra.mxu0 0.0
  %5513 = vmatprep.subr.mxu0 0.0
  %5514 = vmatpush1.msra.mxu0 0.0
  %5515 = vmatprep.subr.mxu0 0.0
  %5516 = vmatpush1.msra.mxu0 0.0
  %5517 = vmatprep.subr.mxu0 0.0
  %5518 = vmatpush1.msra.mxu0 0.0
  %5519 = vmatprep.subr.mxu0 0.0
  %5520 = vmatpush1.msra.mxu0 %v2249
  %5521 = vmatprep.subr.mxu0 0.0
  %5522 = vmatpush1.msra.mxu0 %v2243
  %5523 = vmatprep.subr.mxu0 0.0
  %5524 = vmatpush1.msra.mxu0 %v2242
  %5525 = vmatprep.subr.mxu0 0.0
  %5526 = vmatpush1.msra.mxu0 %v2241
  %5527 = vmatprep.subr.mxu0 0.0
  %5528 = vmatpush2.msra.mxu0 0.0
  %5529 = vmatprep.subr.mxu0 0.0
  %5530 = vmatpush2.msra.mxu0 0.0
  %5531 = vmatprep.subr.mxu0 0.0
  %5532 = vmatpush2.msra.mxu0 0.0
  %5533 = vmatprep.subr.mxu0 0.0
  %5534 = vmatpush2.msra.mxu0 0.0
  %5535 = vmatprep.subr.mxu0 0.0
  %5536 = vmatpush2.msra.mxu0 0.0
  %5537 = vmatprep.subr.mxu0 0.0
  %5538 = vmatpush2.msra.mxu0 0.0
  %5539 = vmatprep.subr.mxu0 0.0
  %5540 = vmatpush2.msra.mxu0 0.0
  %5541 = vmatprep.subr.mxu0 0.0
  %5542 = vmatpush2.msra.mxu0 0.0
  %5543 = vmatprep.subr.mxu0 0.0
  %5544 = vmatpush2.msra.mxu0 0.0
  %5545 = vmatprep.subr.mxu0 0.0
  %5546 = vmatpush2.msra.mxu0 0.0
  %5547 = vmatprep.subr.mxu0 0.0
  %5548 = vmatpush2.msra.mxu0 0.0
  %5549 = vmatprep.subr.mxu0 0.0
  %5550 = vmatpush2.msra.mxu0 0.0
  %5551 = vmatprep.subr.mxu0 0.0
  %5552 = vmatpush2.msra.mxu0 0.0
  %5553 = vmatprep.subr.mxu0 0.0
  %5554 = vmatpush2.msra.mxu0 0.0
  %5555 = vmatprep.subr.mxu0 0.0
  %5556 = vmatpush2.msra.mxu0 0.0
  %5557 = vmatprep.subr.mxu0 0.0
  %5558 = vmatpush2.msra.mxu0 0.0
  %5559 = vmatprep.mubr.f32.mxu0 0.0
  %5560 = vmatmul.mubr.f32.gmra.mxu0 %v5493
  %v5561 = vpop.f32.mrf.mxu0
  %v5562 = vadd.f32 0.0, %v5561
  %v5563 = vpop.f32.mrf.mxu0
  %5564 = vdwg.mxu0
  %v5565 = vadd.f32 %v5489, %v5562
  %v5566 = vadd.f32 %v5565, %v2322
  %v5567 = vmax.f32 %v5566, 0.0
  %v5569 = vsel %vm2330, %v5567, 0
  %5571 = vmatprep.subr.mxu0 0.0
  %5572 = vmatpush1.msra.mxu0 0.0
  %5573 = vmatprep.subr.mxu0 0.0
  %5574 = vmatpush1.msra.mxu0 0.0
  %5575 = vmatprep.subr.mxu0 0.0
  %5576 = vmatpush1.msra.mxu0 0.0
  %5577 = vmatprep.subr.mxu0 0.0
  %5578 = vmatpush1.msra.mxu0 0.0
  %5579 = vmatprep.subr.mxu0 0.0
  %5580 = vmatpush1.msra.mxu0 0.0
  %5581 = vmatprep.subr.mxu0 0.0
  %5582 = vmatpush1.msra.mxu0 0.0
  %5583 = vmatprep.subr.mxu0 0.0
  %5584 = vmatpush1.msra.mxu0 0.0
  %5585 = vmatprep.subr.mxu0 0.0
  %5586 = vmatpush1.msra.mxu0 0.0
  %5587 = vmatprep.subr.mxu0 0.0
  %5588 = vmatpush1.msra.mxu0 0.0
  %5589 = vmatprep.subr.mxu0 0.0
  %5590 = vmatpush1.msra.mxu0 0.0
  %5591 = vmatprep.subr.mxu0 0.0
  %5592 = vmatpush1.msra.mxu0 0.0
  %5593 = vmatprep.subr.mxu0 0.0
  %5594 = vmatpush1.msra.mxu0 0.0
  %5595 = vmatprep.subr.mxu0 0.0
  %5596 = vmatpush1.msra.mxu0 %v2328
  %5597 = vmatprep.subr.mxu0 0.0
  %5598 = vmatpush1.msra.mxu0 %v2327
  %5599 = vmatprep.subr.mxu0 0.0
  %5600 = vmatpush1.msra.mxu0 %v2326
  %5601 = vmatprep.subr.mxu0 0.0
  %5602 = vmatpush1.msra.mxu0 %v2325
  %5603 = vmatprep.subr.mxu0 0.0
  %5604 = vmatpush2.msra.mxu0 0.0
  %5605 = vmatprep.subr.mxu0 0.0
  %5606 = vmatpush2.msra.mxu0 0.0
  %5607 = vmatprep.subr.mxu0 0.0
  %5608 = vmatpush2.msra.mxu0 0.0
  %5609 = vmatprep.subr.mxu0 0.0
  %5610 = vmatpush2.msra.mxu0 0.0
  %5611 = vmatprep.subr.mxu0 0.0
  %5612 = vmatpush2.msra.mxu0 0.0
  %5613 = vmatprep.subr.mxu0 0.0
  %5614 = vmatpush2.msra.mxu0 0.0
  %5615 = vmatprep.subr.mxu0 0.0
  %5616 = vmatpush2.msra.mxu0 0.0
  %5617 = vmatprep.subr.mxu0 0.0
  %5618 = vmatpush2.msra.mxu0 0.0
  %5619 = vmatprep.subr.mxu0 0.0
  %5620 = vmatpush2.msra.mxu0 0.0
  %5621 = vmatprep.subr.mxu0 0.0
  %5622 = vmatpush2.msra.mxu0 0.0
  %5623 = vmatprep.subr.mxu0 0.0
  %5624 = vmatpush2.msra.mxu0 0.0
  %5625 = vmatprep.subr.mxu0 0.0
  %5626 = vmatpush2.msra.mxu0 0.0
  %5627 = vmatprep.subr.mxu0 0.0
  %5628 = vmatpush2.msra.mxu0 0.0
  %5629 = vmatprep.subr.mxu0 0.0
  %5630 = vmatpush2.msra.mxu0 0.0
  %5631 = vmatprep.subr.mxu0 0.0
  %5632 = vmatpush2.msra.mxu0 0.0
  %5633 = vmatprep.subr.mxu0 0.0
  %5634 = vmatpush2.msra.mxu0 0.0
  %5635 = vmatprep.mubr.f32.mxu0 0.0
  %5636 = vmatmul.mubr.f32.gmra.mxu0 %v5569
  %v5637 = vpop.f32.mrf.mxu0
  %v5638 = vadd.f32 %v2329, %v5637
  %v5639 = vpop.f32.mrf.mxu0
  %5640 = vdwg.mxu0
  %5642 = vset.pattern.permute.xlu0 0
  %5643 = vperm.xlu0 %5642, %v5638
  %v5644 = vpop.permute.xlu0 %5643
  %v5646 = vmul.f32 %v5644, %v2413
  %v5647 = vmul.f32 %v5644, %v2417
  %v5648 = vmul.f32 %v5644, %v2421
  %v5649 = vmul.f32 %v5644, %v2425
  %v5650 = vmul.f32 %v5644, %v2429
  %v5651 = vmul.f32 %v5644, %v2433
  %v5652 = vmul.f32 %v5644, %v2437
  %5653 = vset.pattern.permute.xlu0 1
  %5654 = vperm.xlu0 %5653, %v5638
  %v5655 = vpop.permute.xlu0 %5654
  %v5657 = vmul.f32 %v5655, %v2460
  %v5658 = vmul.f32 %v5655, %v2464
  %v5659 = vmul.f32 %v5655, %v2468
  %v5660 = vmul.f32 %v5655, %v2472
  %v5661 = vmul.f32 %v5655, %v2476
  %v5662 = vmul.f32 %v5655, %v2480
  %v5663 = vmul.f32 %v5655, %v2484
  %v5664 = vadd.f32 %v5646, %v5657
  %v5665 = vadd.f32 %v5647, %v5658
  %v5666 = vadd.f32 %v5648, %v5659
  %v5667 = vadd.f32 %v5649, %v5660
  %v5668 = vadd.f32 %v5650, %v5661
  %v5669 = vadd.f32 %v5651, %v5662
  %v5670 = vadd.f32 %v5652, %v5663
  %5671 = vset.pattern.permute.xlu0 2
  %5672 = vperm.xlu0 %5671, %v5638
  %v5673 = vpop.permute.xlu0 %5672
  %v5675 = vadd.f32 %v5664, %v5673
  %v5676 = vadd.f32 %v5665, %v5673
  %v5677 = vadd.f32 %v5666, %v5673
  %v5678 = vadd.f32 %v5667, %v5673
  %v5679 = vadd.f32 %v5668, %v5673
  %v5680 = vadd.f32 %v5669, %v5673
  %v5681 = vadd.f32 %v5670, %v5673
  %5682 = vset.pattern.permute.xlu0 3
  %5683 = vperm.xlu0 %5682, %v5638
  %v5684 = vpop.permute.xlu0 %5683
  %v5686 = vmul.f32 %v5684, %v2413
  %v5687 = vmul.f32 %v5684, %v2417
  %v5688 = vmul.f32 %v5684, %v2421
  %v5689 = vmul.f32 %v5684, %v2425
  %v5690 = vmul.f32 %v5684, %v2429
  %v5691 = vmul.f32 %v5684, %v2433
  %v5692 = vmul.f32 %v5684, %v2437
  %5693 = vset.pattern.permute.xlu0 4
  %5694 = vperm.xlu0 %5693, %v5638
  %v5695 = vpop.permute.xlu0 %5694
  %v5697 = vmul.f32 %v5695, %v2460
  %v5698 = vmul.f32 %v5695, %v2464
  %v5699 = vmul.f32 %v5695, %v2468
  %v5700 = vmul.f32 %v5695, %v2472
  %v5701 = vmul.f32 %v5695, %v2476
  %v5702 = vmul.f32 %v5695, %v2480
  %v5703 = vmul.f32 %v5695, %v2484
  %v5704 = vadd.f32 %v5686, %v5697
  %v5705 = vadd.f32 %v5687, %v5698
  %v5706 = vadd.f32 %v5688, %v5699
  %v5707 = vadd.f32 %v5689, %v5700
  %v5708 = vadd.f32 %v5690, %v5701
  %v5709 = vadd.f32 %v5691, %v5702
  %v5710 = vadd.f32 %v5692, %v5703
  %5711 = vset.pattern.permute.xlu0 5
  %5712 = vperm.xlu0 %5711, %v5638
  %v5713 = vpop.permute.xlu0 %5712
  %v5715 = vadd.f32 %v5704, %v5713
  %v5716 = vadd.f32 %v5705, %v5713
  %v5717 = vadd.f32 %v5706, %v5713
  %v5718 = vadd.f32 %v5707, %v5713
  %v5719 = vadd.f32 %v5708, %v5713
  %v5720 = vadd.f32 %v5709, %v5713
  %v5721 = vadd.f32 %v5710, %v5713
  %v5722 = vadd.f32 %v5675, 1.0
  %v5723 = vadd.f32 %v5676, 1.0
  %v5724 = vadd.f32 %v5677, 1.0
  %v5725 = vadd.f32 %v5678, 1.0
  %v5726 = vadd.f32 %v5679, 1.0
  %v5727 = vadd.f32 %v5680, 1.0
  %v5728 = vadd.f32 %v5681, 1.0
  %v5729 = vmul.f32 %v5722, 28.0
  %v5730 = vmul.f32 %v5723, 28.0
  %v5731 = vmul.f32 %v5724, 28.0
  %v5732 = vmul.f32 %v5725, 28.0
  %v5733 = vmul.f32 %v5726, 28.0
  %v5734 = vmul.f32 %v5727, 28.0
  %v5735 = vmul.f32 %v5728, 28.0
  %v5736 = vsub.f32 %v5729, 1.0
  %v5737 = vsub.f32 %v5730, 1.0
  %v5738 = vsub.f32 %v5731, 1.0
  %v5739 = vsub.f32 %v5732, 1.0
  %v5740 = vsub.f32 %v5733, 1.0
  %v5741 = vsub.f32 %v5734, 1.0
  %v5742 = vsub.f32 %v5735, 1.0
  %v5743 = vmul.f32 %v5736, 0.5
  %v5744 = vmul.f32 %v5737, 0.5
  %v5745 = vmul.f32 %v5738, 0.5
  %v5746 = vmul.f32 %v5739, 0.5
  %v5747 = vmul.f32 %v5740, 0.5
  %v5748 = vmul.f32 %v5741, 0.5
  %v5749 = vmul.f32 %v5742, 0.5
  %v5750 = vadd.f32 %v5715, 1.0
  %v5751 = vadd.f32 %v5716, 1.0
  %v5752 = vadd.f32 %v5717, 1.0
  %v5753 = vadd.f32 %v5718, 1.0
  %v5754 = vadd.f32 %v5719, 1.0
  %v5755 = vadd.f32 %v5720, 1.0
  %v5756 = vadd.f32 %v5721, 1.0
  %v5757 = vmul.f32 %v5750, 28.0
  %v5758 = vmul.f32 %v5751, 28.0
  %v5759 = vmul.f32 %v5752, 28.0
  %v5760 = vmul.f32 %v5753, 28.0
  %v5761 = vmul.f32 %v5754, 28.0
  %v5762 = vmul.f32 %v5755, 28.0
  %v5763 = vmul.f32 %v5756, 28.0
  %v5764 = vsub.f32 %v5757, 1.0
  %v5765 = vsub.f32 %v5758, 1.0
  %v5766 = vsub.f32 %v5759, 1.0
  %v5767 = vsub.f32 %v5760, 1.0
  %v5768 = vsub.f32 %v5761, 1.0
  %v5769 = vsub.f32 %v5762, 1.0
  %v5770 = vsub.f32 %v5763, 1.0
  %v5771 = vmul.f32 %v5764, 0.5
  %v5772 = vmul.f32 %v5765, 0.5
  %v5773 = vmul.f32 %v5766, 0.5
  %v5774 = vmul.f32 %v5767, 0.5
  %v5775 = vmul.f32 %v5768, 0.5
  %v5776 = vmul.f32 %v5769, 0.5
  %v5777 = vmul.f32 %v5770, 0.5
  %v5778 = vfloor.f32 %v5743
  %v5779 = vfloor.f32 %v5744
  %v5780 = vfloor.f32 %v5745
  %v5781 = vfloor.f32 %v5746
  %v5782 = vfloor.f32 %v5747
  %v5783 = vfloor.f32 %v5748
  %v5784 = vfloor.f32 %v5749
  %v5785 = vfloor.f32 %v5771
  %v5786 = vfloor.f32 %v5772
  %v5787 = vfloor.f32 %v5773
  %v5788 = vfloor.f32 %v5774
  %v5789 = vfloor.f32 %v5775
  %v5790 = vfloor.f32 %v5776
  %v5791 = vfloor.f32 %v5777
  %v5792 = vsub.f32 %v5743, %v5778
  %v5793 = vsub.f32 %v5744, %v5779
  %v5794 = vsub.f32 %v5745, %v5780
  %v5795 = vsub.f32 %v5746, %v5781
  %v5796 = vsub.f32 %v5747, %v5782
  %v5797 = vsub.f32 %v5748, %v5783
  %v5798 = vsub.f32 %v5749, %v5784
  %v5799 = vsub.f32 %v5771, %v5785
  %v5800 = vsub.f32 %v5772, %v5786
  %v5801 = vsub.f32 %v5773, %v5787
  %v5802 = vsub.f32 %v5774, %v5788
  %v5803 = vsub.f32 %v5775, %v5789
  %v5804 = vsub.f32 %v5776, %v5790
  %v5805 = vsub.f32 %v5777, %v5791
  %v5806 = vsub.f32 1.0, %v5792
  %v5807 = vsub.f32 1.0, %v5793
  %v5808 = vsub.f32 1.0, %v5794
  %v5809 = vsub.f32 1.0, %v5795
  %v5810 = vsub.f32 1.0, %v5796
  %v5811 = vsub.f32 1.0, %v5797
  %v5812 = vsub.f32 1.0, %v5798
  %v5813 = vsub.f32 1.0, %v5799
  %v5814 = vsub.f32 1.0, %v5800
  %v5815 = vsub.f32 1.0, %v5801
  %v5816 = vsub.f32 1.0, %v5802
  %v5817 = vsub.f32 1.0, %v5803
  %v5818 = vsub.f32 1.0, %v5804
  %v5819 = vsub.f32 1.0, %v5805
  %v5820 = vlaneseq
  %v5821 = vshrl.u32 %v5820, 7
  %v5822 = vsub.s32 0, %v5821
  %v5823 = vrot.slane %v5778, %v5822
  %v5824 = vlaneseq
  %v5825 = vshrl.u32 %v5824, 7
  %v5826 = vsub.s32 0, %v5825
  %v5827 = vrot.slane %v5779, %v5826
  %v5828 = vlaneseq
  %v5829 = vshrl.u32 %v5828, 7
  %v5830 = vsub.s32 0, %v5829
  %v5831 = vrot.slane %v5780, %v5830
  %v5832 = vlaneseq
  %v5833 = vshrl.u32 %v5832, 7
  %v5834 = vsub.s32 0, %v5833
  %v5835 = vrot.slane %v5781, %v5834
  %v5836 = vlaneseq
  %v5837 = vshrl.u32 %v5836, 7
  %v5838 = vsub.s32 0, %v5837
  %v5839 = vrot.slane %v5782, %v5838
  %v5840 = vlaneseq
  %v5841 = vshrl.u32 %v5840, 7
  %v5842 = vsub.s32 0, %v5841
  %v5843 = vrot.slane %v5783, %v5842
  %v5844 = vlaneseq
  %v5845 = vshrl.u32 %v5844, 7
  %v5846 = vsub.s32 0, %v5845
  %v5847 = vrot.slane %v5784, %v5846
  %vm5848 = vcmp.eq.f32.partialorder %v70, %v5823
  %vm5849 = vcmp.eq.f32.partialorder %v71, %v5827
  %vm5850 = vcmp.eq.f32.partialorder %v72, %v5831
  %vm5851 = vcmp.eq.f32.partialorder %v73, %v5835
  %vm5852 = vcmp.eq.f32.partialorder %v74, %v5839
  %vm5853 = vcmp.eq.f32.partialorder %v75, %v5843
  %vm5854 = vcmp.eq.f32.partialorder %v76, %v5847
  %vm5855 = vcmp.eq.f32.partialorder %v77, %v5823
  %vm5856 = vcmp.eq.f32.partialorder %v78, %v5827
  %vm5857 = vcmp.eq.f32.partialorder %v79, %v5831
  %vm5858 = vcmp.eq.f32.partialorder %v80, %v5835
  %vm5859 = vcmp.eq.f32.partialorder %v81, %v5839
  %vm5860 = vcmp.eq.f32.partialorder %v82, %v5843
  %vm5861 = vcmp.eq.f32.partialorder %v83, %v5847
  %vm5862 = vcmp.eq.f32.partialorder %v84, %v5823
  %vm5863 = vcmp.eq.f32.partialorder %v85, %v5827
  %vm5864 = vcmp.eq.f32.partialorder %v86, %v5831
  %vm5865 = vcmp.eq.f32.partialorder %v87, %v5835
  %vm5866 = vcmp.eq.f32.partialorder %v88, %v5839
  %vm5867 = vcmp.eq.f32.partialorder %v89, %v5843
  %vm5868 = vcmp.eq.f32.partialorder %v90, %v5847
  %vm5869 = vcmp.eq.f32.partialorder %v91, %v5823
  %vm5870 = vcmp.eq.f32.partialorder %v92, %v5827
  %vm5871 = vcmp.eq.f32.partialorder %v93, %v5831
  %vm5872 = vcmp.eq.f32.partialorder %v94, %v5835
  %vm5873 = vcmp.eq.f32.partialorder %v95, %v5839
  %vm5874 = vcmp.eq.f32.partialorder %v96, %v5843
  %vm5875 = vcmp.eq.f32.partialorder %v97, %v5847
  %v5876 = vlaneseq
  %v5877 = vshrl.u32 %v5876, 7
  %v5878 = vsub.s32 0, %v5877
  %v5879 = vrot.slane %v5806, %v5878
  %v5880 = vlaneseq
  %v5881 = vshrl.u32 %v5880, 7
  %v5882 = vsub.s32 0, %v5881
  %v5883 = vrot.slane %v5807, %v5882
  %v5884 = vlaneseq
  %v5885 = vshrl.u32 %v5884, 7
  %v5886 = vsub.s32 0, %v5885
  %v5887 = vrot.slane %v5808, %v5886
  %v5888 = vlaneseq
  %v5889 = vshrl.u32 %v5888, 7
  %v5890 = vsub.s32 0, %v5889
  %v5891 = vrot.slane %v5809, %v5890
  %v5892 = vlaneseq
  %v5893 = vshrl.u32 %v5892, 7
  %v5894 = vsub.s32 0, %v5893
  %v5895 = vrot.slane %v5810, %v5894
  %v5896 = vlaneseq
  %v5897 = vshrl.u32 %v5896, 7
  %v5898 = vsub.s32 0, %v5897
  %v5899 = vrot.slane %v5811, %v5898
  %v5900 = vlaneseq
  %v5901 = vshrl.u32 %v5900, 7
  %v5902 = vsub.s32 0, %v5901
  %v5903 = vrot.slane %v5812, %v5902
  %v5904 = vsel %vm5848, %v5879, 0.0
  %v5905 = vsel %vm5849, %v5883, 0.0
  %v5906 = vsel %vm5850, %v5887, 0.0
  %v5907 = vsel %vm5851, %v5891, 0.0
  %v5908 = vsel %vm5852, %v5895, 0.0
  %v5909 = vsel %vm5853, %v5899, 0.0
  %v5910 = vsel %vm5854, %v5903, 0.0
  %v5911 = vsel %vm5855, %v5879, 0.0
  %v5912 = vsel %vm5856, %v5883, 0.0
  %v5913 = vsel %vm5857, %v5887, 0.0
  %v5914 = vsel %vm5858, %v5891, 0.0
  %v5915 = vsel %vm5859, %v5895, 0.0
  %v5916 = vsel %vm5860, %v5899, 0.0
  %v5917 = vsel %vm5861, %v5903, 0.0
  %v5918 = vsel %vm5862, %v5879, 0.0
  %v5919 = vsel %vm5863, %v5883, 0.0
  %v5920 = vsel %vm5864, %v5887, 0.0
  %v5921 = vsel %vm5865, %v5891, 0.0
  %v5922 = vsel %vm5866, %v5895, 0.0
  %v5923 = vsel %vm5867, %v5899, 0.0
  %v5924 = vsel %vm5868, %v5903, 0.0
  %v5925 = vsel %vm5869, %v5879, 0.0
  %v5926 = vsel %vm5870, %v5883, 0.0
  %v5927 = vsel %vm5871, %v5887, 0.0
  %v5928 = vsel %vm5872, %v5891, 0.0
  %v5929 = vsel %vm5873, %v5895, 0.0
  %v5930 = vsel %vm5874, %v5899, 0.0
  %v5931 = vsel %vm5875, %v5903, 0.0
  %v5932 = vadd.f32 %v5778, 1.0
  %v5933 = vadd.f32 %v5779, 1.0
  %v5934 = vadd.f32 %v5780, 1.0
  %v5935 = vadd.f32 %v5781, 1.0
  %v5936 = vadd.f32 %v5782, 1.0
  %v5937 = vadd.f32 %v5783, 1.0
  %v5938 = vadd.f32 %v5784, 1.0
  %v5939 = vlaneseq
  %v5940 = vshrl.u32 %v5939, 7
  %v5941 = vsub.s32 0, %v5940
  %v5942 = vrot.slane %v5932, %v5941
  %v5943 = vlaneseq
  %v5944 = vshrl.u32 %v5943, 7
  %v5945 = vsub.s32 0, %v5944
  %v5946 = vrot.slane %v5933, %v5945
  %v5947 = vlaneseq
  %v5948 = vshrl.u32 %v5947, 7
  %v5949 = vsub.s32 0, %v5948
  %v5950 = vrot.slane %v5934, %v5949
  %v5951 = vlaneseq
  %v5952 = vshrl.u32 %v5951, 7
  %v5953 = vsub.s32 0, %v5952
  %v5954 = vrot.slane %v5935, %v5953
  %v5955 = vlaneseq
  %v5956 = vshrl.u32 %v5955, 7
  %v5957 = vsub.s32 0, %v5956
  %v5958 = vrot.slane %v5936, %v5957
  %v5959 = vlaneseq
  %v5960 = vshrl.u32 %v5959, 7
  %v5961 = vsub.s32 0, %v5960
  %v5962 = vrot.slane %v5937, %v5961
  %v5963 = vlaneseq
  %v5964 = vshrl.u32 %v5963, 7
  %v5965 = vsub.s32 0, %v5964
  %v5966 = vrot.slane %v5938, %v5965
  %vm5967 = vcmp.eq.f32.partialorder %v70, %v5942
  %vm5968 = vcmp.eq.f32.partialorder %v71, %v5946
  %vm5969 = vcmp.eq.f32.partialorder %v72, %v5950
  %vm5970 = vcmp.eq.f32.partialorder %v73, %v5954
  %vm5971 = vcmp.eq.f32.partialorder %v74, %v5958
  %vm5972 = vcmp.eq.f32.partialorder %v75, %v5962
  %vm5973 = vcmp.eq.f32.partialorder %v76, %v5966
  %vm5974 = vcmp.eq.f32.partialorder %v77, %v5942
  %vm5975 = vcmp.eq.f32.partialorder %v78, %v5946
  %vm5976 = vcmp.eq.f32.partialorder %v79, %v5950
  %vm5977 = vcmp.eq.f32.partialorder %v80, %v5954
  %vm5978 = vcmp.eq.f32.partialorder %v81, %v5958
  %vm5979 = vcmp.eq.f32.partialorder %v82, %v5962
  %vm5980 = vcmp.eq.f32.partialorder %v83, %v5966
  %vm5981 = vcmp.eq.f32.partialorder %v84, %v5942
  %vm5982 = vcmp.eq.f32.partialorder %v85, %v5946
  %vm5983 = vcmp.eq.f32.partialorder %v86, %v5950
  %vm5984 = vcmp.eq.f32.partialorder %v87, %v5954
  %vm5985 = vcmp.eq.f32.partialorder %v88, %v5958
  %vm5986 = vcmp.eq.f32.partialorder %v89, %v5962
  %vm5987 = vcmp.eq.f32.partialorder %v90, %v5966
  %vm5988 = vcmp.eq.f32.partialorder %v91, %v5942
  %vm5989 = vcmp.eq.f32.partialorder %v92, %v5946
  %vm5990 = vcmp.eq.f32.partialorder %v93, %v5950
  %vm5991 = vcmp.eq.f32.partialorder %v94, %v5954
  %vm5992 = vcmp.eq.f32.partialorder %v95, %v5958
  %vm5993 = vcmp.eq.f32.partialorder %v96, %v5962
  %vm5994 = vcmp.eq.f32.partialorder %v97, %v5966
  %v5995 = vlaneseq
  %v5996 = vshrl.u32 %v5995, 7
  %v5997 = vsub.s32 0, %v5996
  %v5998 = vrot.slane %v5792, %v5997
  %v5999 = vlaneseq
  %v6000 = vshrl.u32 %v5999, 7
  %v6001 = vsub.s32 0, %v6000
  %v6002 = vrot.slane %v5793, %v6001
  %v6003 = vlaneseq
  %v6004 = vshrl.u32 %v6003, 7
  %v6005 = vsub.s32 0, %v6004
  %v6006 = vrot.slane %v5794, %v6005
  %v6007 = vlaneseq
  %v6008 = vshrl.u32 %v6007, 7
  %v6009 = vsub.s32 0, %v6008
  %v6010 = vrot.slane %v5795, %v6009
  %v6011 = vlaneseq
  %v6012 = vshrl.u32 %v6011, 7
  %v6013 = vsub.s32 0, %v6012
  %v6014 = vrot.slane %v5796, %v6013
  %v6015 = vlaneseq
  %v6016 = vshrl.u32 %v6015, 7
  %v6017 = vsub.s32 0, %v6016
  %v6018 = vrot.slane %v5797, %v6017
  %v6019 = vlaneseq
  %v6020 = vshrl.u32 %v6019, 7
  %v6021 = vsub.s32 0, %v6020
  %v6022 = vrot.slane %v5798, %v6021
  %v6023 = vsel %vm5967, %v5998, 0.0
  %v6024 = vsel %vm5968, %v6002, 0.0
  %v6025 = vsel %vm5969, %v6006, 0.0
  %v6026 = vsel %vm5970, %v6010, 0.0
  %v6027 = vsel %vm5971, %v6014, 0.0
  %v6028 = vsel %vm5972, %v6018, 0.0
  %v6029 = vsel %vm5973, %v6022, 0.0
  %v6030 = vsel %vm5974, %v5998, 0.0
  %v6031 = vsel %vm5975, %v6002, 0.0
  %v6032 = vsel %vm5976, %v6006, 0.0
  %v6033 = vsel %vm5977, %v6010, 0.0
  %v6034 = vsel %vm5978, %v6014, 0.0
  %v6035 = vsel %vm5979, %v6018, 0.0
  %v6036 = vsel %vm5980, %v6022, 0.0
  %v6037 = vsel %vm5981, %v5998, 0.0
  %v6038 = vsel %vm5982, %v6002, 0.0
  %v6039 = vsel %vm5983, %v6006, 0.0
  %v6040 = vsel %vm5984, %v6010, 0.0
  %v6041 = vsel %vm5985, %v6014, 0.0
  %v6042 = vsel %vm5986, %v6018, 0.0
  %v6043 = vsel %vm5987, %v6022, 0.0
  %v6044 = vsel %vm5988, %v5998, 0.0
  %v6045 = vsel %vm5989, %v6002, 0.0
  %v6046 = vsel %vm5990, %v6006, 0.0
  %v6047 = vsel %vm5991, %v6010, 0.0
  %v6048 = vsel %vm5992, %v6014, 0.0
  %v6049 = vsel %vm5993, %v6018, 0.0
  %v6050 = vsel %vm5994, %v6022, 0.0
  %v6051 = vadd.f32 %v5904, %v6023
  %v6052 = vadd.f32 %v5905, %v6024
  %v6053 = vadd.f32 %v5906, %v6025
  %v6054 = vadd.f32 %v5907, %v6026
  %v6055 = vadd.f32 %v5908, %v6027
  %v6056 = vadd.f32 %v5909, %v6028
  %v6057 = vadd.f32 %v5910, %v6029
  %v6058 = vadd.f32 %v5911, %v6030
  %v6059 = vadd.f32 %v5912, %v6031
  %v6060 = vadd.f32 %v5913, %v6032
  %v6061 = vadd.f32 %v5914, %v6033
  %v6062 = vadd.f32 %v5915, %v6034
  %v6063 = vadd.f32 %v5916, %v6035
  %v6064 = vadd.f32 %v5917, %v6036
  %v6065 = vadd.f32 %v5918, %v6037
  %v6066 = vadd.f32 %v5919, %v6038
  %v6067 = vadd.f32 %v5920, %v6039
  %v6068 = vadd.f32 %v5921, %v6040
  %v6069 = vadd.f32 %v5922, %v6041
  %v6070 = vadd.f32 %v5923, %v6042
  %v6071 = vadd.f32 %v5924, %v6043
  %v6072 = vadd.f32 %v5925, %v6044
  %v6073 = vadd.f32 %v5926, %v6045
  %v6074 = vadd.f32 %v5927, %v6046
  %v6075 = vadd.f32 %v5928, %v6047
  %v6076 = vadd.f32 %v5929, %v6048
  %v6077 = vadd.f32 %v5930, %v6049
  %v6078 = vadd.f32 %v5931, %v6050
  %v6079 = vsel %vm128, %v3655, 0
  %v6082 = vsel %vm135, %v6072, 0
  %v6085 = vsel %vm135, %v6073, 0
  %v6088 = vsel %vm135, %v6074, 0
  %v6091 = vsel %vm135, %v6075, 0
  %v6094 = vsel %vm135, %v6076, 0
  %v6097 = vsel %vm135, %v6077, 0
  %v6100 = vsel %vm135, %v6078, 0
  %6102 = vmatprep.subr.mxu0 0.0
  %6103 = vmatpush1.msra.mxu0 0.0
  %6104 = vmatprep.subr.mxu0 0.0
  %6105 = vmatpush1.msra.mxu0 0.0
  %6106 = vmatprep.subr.mxu0 0.0
  %6107 = vmatpush1.msra.mxu0 0.0
  %6108 = vmatprep.subr.mxu0 0.0
  %6109 = vmatpush1.msra.mxu0 0.0
  %6110 = vmatprep.subr.mxu0 0.0
  %6111 = vmatpush1.msra.mxu0 0.0
  %6112 = vmatprep.subr.mxu0 0.0
  %6113 = vmatpush1.msra.mxu0 0.0
  %6114 = vmatprep.subr.mxu0 0.0
  %6115 = vmatpush1.msra.mxu0 0.0
  %6116 = vmatprep.subr.mxu0 0.0
  %6117 = vmatpush1.msra.mxu0 0.0
  %6118 = vmatprep.subr.mxu0 0.0
  %6119 = vmatpush1.msra.mxu0 0.0
  %6120 = vmatprep.subr.mxu0 0.0
  %6121 = vmatpush1.msra.mxu0 0.0
  %6122 = vmatprep.subr.mxu0 0.0
  %6123 = vmatpush1.msra.mxu0 0.0
  %6124 = vmatprep.subr.mxu0 0.0
  %6125 = vmatpush1.msra.mxu0 0.0
  %6126 = vmatprep.subr.mxu0 %v6085
  %6127 = vmatpush1.msra.mxu0 %v6082
  %6128 = vmatprep.subr.mxu0 %v6066
  %6129 = vmatpush1.msra.mxu0 %v6065
  %6130 = vmatprep.subr.mxu0 %v6059
  %6131 = vmatpush1.msra.mxu0 %v6058
  %6132 = vmatprep.subr.mxu0 %v6052
  %6133 = vmatpush1.msra.mxu0 %v6051
  %6134 = vmatprep.subr.mxu0 0.0
  %6135 = vmatpush2.msra.mxu0 0.0
  %6136 = vmatprep.subr.mxu0 0.0
  %6137 = vmatpush2.msra.mxu0 0.0
  %6138 = vmatprep.subr.mxu0 0.0
  %6139 = vmatpush2.msra.mxu0 0.0
  %6140 = vmatprep.subr.mxu0 0.0
  %6141 = vmatpush2.msra.mxu0 0.0
  %6142 = vmatprep.subr.mxu0 0.0
  %6143 = vmatpush2.msra.mxu0 0.0
  %6144 = vmatprep.subr.mxu0 0.0
  %6145 = vmatpush2.msra.mxu0 0.0
  %6146 = vmatprep.subr.mxu0 0.0
  %6147 = vmatpush2.msra.mxu0 0.0
  %6148 = vmatprep.subr.mxu0 0.0
  %6149 = vmatpush2.msra.mxu0 0.0
  %6150 = vmatprep.subr.mxu0 0.0
  %6151 = vmatpush2.msra.mxu0 0.0
  %6152 = vmatprep.subr.mxu0 0.0
  %6153 = vmatpush2.msra.mxu0 0.0
  %6154 = vmatprep.subr.mxu0 0.0
  %6155 = vmatpush2.msra.mxu0 0.0
  %6156 = vmatprep.subr.mxu0 0.0
  %6157 = vmatpush2.msra.mxu0 0.0
  %6158 = vmatprep.subr.mxu0 0.0
  %6159 = vmatpush2.msra.mxu0 0.0
  %6160 = vmatprep.subr.mxu0 0.0
  %6161 = vmatpush2.msra.mxu0 0.0
  %6162 = vmatprep.subr.mxu0 0.0
  %6163 = vmatpush2.msra.mxu0 0.0
  %6164 = vmatprep.subr.mxu0 0.0
  %6165 = vmatpush2.msra.mxu0 0.0
  %6166 = vmatprep.mubr.f32.mxu0 0.0
  %6167 = vmatmul.mubr.f32.gmra.mxu0 %v3753
  %v6168 = vpop.f32.mrf.mxu0
  %v6169 = vadd.f32 0.0, %v6168
  %v6170 = vpop.f32.mrf.mxu0
  %v6171 = vadd.f32 0.0, %v6170
  %6172 = vmatprep.mubr.f32.mxu0 0.0
  %6173 = vmatmul.mubr.f32.gmra.mxu0 %v3755
  %v6174 = vpop.f32.mrf.mxu0
  %v6175 = vadd.f32 0.0, %v6174
  %v6176 = vpop.f32.mrf.mxu0
  %v6177 = vadd.f32 0.0, %v6176
  %6178 = vmatprep.mubr.f32.mxu0 0.0
  %6179 = vmatmul.mubr.f32.gmra.mxu0 %v3757
  %v6180 = vpop.f32.mrf.mxu0
  %v6181 = vadd.f32 0.0, %v6180
  %v6182 = vpop.f32.mrf.mxu0
  %v6183 = vadd.f32 0.0, %v6182
  %6184 = vmatprep.mubr.f32.mxu0 0.0
  %6185 = vmatmul.mubr.f32.gmra.mxu0 %v6079
  %v6186 = vpop.f32.mrf.mxu0
  %v6187 = vadd.f32 0.0, %v6186
  %v6188 = vpop.f32.mrf.mxu0
  %v6189 = vadd.f32 0.0, %v6188
  %6190 = vdwg.mxu0
  %6191 = vmatprep.subr.mxu0 0.0
  %6192 = vmatpush1.msra.mxu0 0.0
  %6193 = vmatprep.subr.mxu0 0.0
  %6194 = vmatpush1.msra.mxu0 0.0
  %6195 = vmatprep.subr.mxu0 0.0
  %6196 = vmatpush1.msra.mxu0 0.0
  %6197 = vmatprep.subr.mxu0 0.0
  %6198 = vmatpush1.msra.mxu0 0.0
  %6199 = vmatprep.subr.mxu0 0.0
  %6200 = vmatpush1.msra.mxu0 0.0
  %6201 = vmatprep.subr.mxu0 0.0
  %6202 = vmatpush1.msra.mxu0 0.0
  %6203 = vmatprep.subr.mxu0 0.0
  %6204 = vmatpush1.msra.mxu0 0.0
  %6205 = vmatprep.subr.mxu0 0.0
  %6206 = vmatpush1.msra.mxu0 0.0
  %6207 = vmatprep.subr.mxu0 0.0
  %6208 = vmatpush1.msra.mxu0 0.0
  %6209 = vmatprep.subr.mxu0 0.0
  %6210 = vmatpush1.msra.mxu0 0.0
  %6211 = vmatprep.subr.mxu0 0.0
  %6212 = vmatpush1.msra.mxu0 0.0
  %6213 = vmatprep.subr.mxu0 0.0
  %6214 = vmatpush1.msra.mxu0 0.0
  %6215 = vmatprep.subr.mxu0 %v6091
  %6216 = vmatpush1.msra.mxu0 %v6088
  %6217 = vmatprep.subr.mxu0 %v6068
  %6218 = vmatpush1.msra.mxu0 %v6067
  %6219 = vmatprep.subr.mxu0 %v6061
  %6220 = vmatpush1.msra.mxu0 %v6060
  %6221 = vmatprep.subr.mxu0 %v6054
  %6222 = vmatpush1.msra.mxu0 %v6053
  %6223 = vmatprep.subr.mxu0 0.0
  %6224 = vmatpush2.msra.mxu0 0.0
  %6225 = vmatprep.subr.mxu0 0.0
  %6226 = vmatpush2.msra.mxu0 0.0
  %6227 = vmatprep.subr.mxu0 0.0
  %6228 = vmatpush2.msra.mxu0 0.0
  %6229 = vmatprep.subr.mxu0 0.0
  %6230 = vmatpush2.msra.mxu0 0.0
  %6231 = vmatprep.subr.mxu0 0.0
  %6232 = vmatpush2.msra.mxu0 0.0
  %6233 = vmatprep.subr.mxu0 0.0
  %6234 = vmatpush2.msra.mxu0 0.0
  %6235 = vmatprep.subr.mxu0 0.0
  %6236 = vmatpush2.msra.mxu0 0.0
  %6237 = vmatprep.subr.mxu0 0.0
  %6238 = vmatpush2.msra.mxu0 0.0
  %6239 = vmatprep.subr.mxu0 0.0
  %6240 = vmatpush2.msra.mxu0 0.0
  %6241 = vmatprep.subr.mxu0 0.0
  %6242 = vmatpush2.msra.mxu0 0.0
  %6243 = vmatprep.subr.mxu0 0.0
  %6244 = vmatpush2.msra.mxu0 0.0
  %6245 = vmatprep.subr.mxu0 0.0
  %6246 = vmatpush2.msra.mxu0 0.0
  %6247 = vmatprep.subr.mxu0 0.0
  %6248 = vmatpush2.msra.mxu0 0.0
  %6249 = vmatprep.subr.mxu0 0.0
  %6250 = vmatpush2.msra.mxu0 0.0
  %6251 = vmatprep.subr.mxu0 0.0
  %6252 = vmatpush2.msra.mxu0 0.0
  %6253 = vmatprep.subr.mxu0 0.0
  %6254 = vmatpush2.msra.mxu0 0.0
  %6255 = vmatprep.mubr.f32.mxu0 0.0
  %6256 = vmatmul.mubr.f32.gmra.mxu0 %v3753
  %v6257 = vpop.f32.mrf.mxu0
  %v6258 = vadd.f32 0.0, %v6257
  %v6259 = vpop.f32.mrf.mxu0
  %v6260 = vadd.f32 0.0, %v6259
  %6261 = vmatprep.mubr.f32.mxu0 0.0
  %6262 = vmatmul.mubr.f32.gmra.mxu0 %v3755
  %v6263 = vpop.f32.mrf.mxu0
  %v6264 = vadd.f32 0.0, %v6263
  %v6265 = vpop.f32.mrf.mxu0
  %v6266 = vadd.f32 0.0, %v6265
  %6267 = vmatprep.mubr.f32.mxu0 0.0
  %6268 = vmatmul.mubr.f32.gmra.mxu0 %v3757
  %v6269 = vpop.f32.mrf.mxu0
  %v6270 = vadd.f32 0.0, %v6269
  %v6271 = vpop.f32.mrf.mxu0
  %v6272 = vadd.f32 0.0, %v6271
  %6273 = vmatprep.mubr.f32.mxu0 0.0
  %6274 = vmatmul.mubr.f32.gmra.mxu0 %v6079
  %v6275 = vpop.f32.mrf.mxu0
  %v6276 = vadd.f32 0.0, %v6275
  %v6277 = vpop.f32.mrf.mxu0
  %v6278 = vadd.f32 0.0, %v6277
  %6279 = vdwg.mxu0
  %6280 = vmatprep.subr.mxu0 0.0
  %6281 = vmatpush1.msra.mxu0 0.0
  %6282 = vmatprep.subr.mxu0 0.0
  %6283 = vmatpush1.msra.mxu0 0.0
  %6284 = vmatprep.subr.mxu0 0.0
  %6285 = vmatpush1.msra.mxu0 0.0
  %6286 = vmatprep.subr.mxu0 0.0
  %6287 = vmatpush1.msra.mxu0 0.0
  %6288 = vmatprep.subr.mxu0 0.0
  %6289 = vmatpush1.msra.mxu0 0.0
  %6290 = vmatprep.subr.mxu0 0.0
  %6291 = vmatpush1.msra.mxu0 0.0
  %6292 = vmatprep.subr.mxu0 0.0
  %6293 = vmatpush1.msra.mxu0 0.0
  %6294 = vmatprep.subr.mxu0 0.0
  %6295 = vmatpush1.msra.mxu0 0.0
  %6296 = vmatprep.subr.mxu0 0.0
  %6297 = vmatpush1.msra.mxu0 0.0
  %6298 = vmatprep.subr.mxu0 0.0
  %6299 = vmatpush1.msra.mxu0 0.0
  %6300 = vmatprep.subr.mxu0 0.0
  %6301 = vmatpush1.msra.mxu0 0.0
  %6302 = vmatprep.subr.mxu0 0.0
  %6303 = vmatpush1.msra.mxu0 0.0
  %6304 = vmatprep.subr.mxu0 %v6097
  %6305 = vmatpush1.msra.mxu0 %v6094
  %6306 = vmatprep.subr.mxu0 %v6070
  %6307 = vmatpush1.msra.mxu0 %v6069
  %6308 = vmatprep.subr.mxu0 %v6063
  %6309 = vmatpush1.msra.mxu0 %v6062
  %6310 = vmatprep.subr.mxu0 %v6056
  %6311 = vmatpush1.msra.mxu0 %v6055
  %6312 = vmatprep.subr.mxu0 0.0
  %6313 = vmatpush2.msra.mxu0 0.0
  %6314 = vmatprep.subr.mxu0 0.0
  %6315 = vmatpush2.msra.mxu0 0.0
  %6316 = vmatprep.subr.mxu0 0.0
  %6317 = vmatpush2.msra.mxu0 0.0
  %6318 = vmatprep.subr.mxu0 0.0
  %6319 = vmatpush2.msra.mxu0 0.0
  %6320 = vmatprep.subr.mxu0 0.0
  %6321 = vmatpush2.msra.mxu0 0.0
  %6322 = vmatprep.subr.mxu0 0.0
  %6323 = vmatpush2.msra.mxu0 0.0
  %6324 = vmatprep.subr.mxu0 0.0
  %6325 = vmatpush2.msra.mxu0 0.0
  %6326 = vmatprep.subr.mxu0 0.0
  %6327 = vmatpush2.msra.mxu0 0.0
  %6328 = vmatprep.subr.mxu0 0.0
  %6329 = vmatpush2.msra.mxu0 0.0
  %6330 = vmatprep.subr.mxu0 0.0
  %6331 = vmatpush2.msra.mxu0 0.0
  %6332 = vmatprep.subr.mxu0 0.0
  %6333 = vmatpush2.msra.mxu0 0.0
  %6334 = vmatprep.subr.mxu0 0.0
  %6335 = vmatpush2.msra.mxu0 0.0
  %6336 = vmatprep.subr.mxu0 0.0
  %6337 = vmatpush2.msra.mxu0 0.0
  %6338 = vmatprep.subr.mxu0 0.0
  %6339 = vmatpush2.msra.mxu0 0.0
  %6340 = vmatprep.subr.mxu0 0.0
  %6341 = vmatpush2.msra.mxu0 0.0
  %6342 = vmatprep.subr.mxu0 0.0
  %6343 = vmatpush2.msra.mxu0 0.0
  %6344 = vmatprep.mubr.f32.mxu0 0.0
  %6345 = vmatmul.mubr.f32.gmra.mxu0 %v3753
  %v6346 = vpop.f32.mrf.mxu0
  %v6347 = vadd.f32 0.0, %v6346
  %v6348 = vpop.f32.mrf.mxu0
  %v6349 = vadd.f32 0.0, %v6348
  %6350 = vmatprep.mubr.f32.mxu0 0.0
  %6351 = vmatmul.mubr.f32.gmra.mxu0 %v3755
  %v6352 = vpop.f32.mrf.mxu0
  %v6353 = vadd.f32 0.0, %v6352
  %v6354 = vpop.f32.mrf.mxu0
  %v6355 = vadd.f32 0.0, %v6354
  %6356 = vmatprep.mubr.f32.mxu0 0.0
  %6357 = vmatmul.mubr.f32.gmra.mxu0 %v3757
  %v6358 = vpop.f32.mrf.mxu0
  %v6359 = vadd.f32 0.0, %v6358
  %v6360 = vpop.f32.mrf.mxu0
  %v6361 = vadd.f32 0.0, %v6360
  %6362 = vmatprep.mubr.f32.mxu0 0.0
  %6363 = vmatmul.mubr.f32.gmra.mxu0 %v6079
  %v6364 = vpop.f32.mrf.mxu0
  %v6365 = vadd.f32 0.0, %v6364
  %v6366 = vpop.f32.mrf.mxu0
  %v6367 = vadd.f32 0.0, %v6366
  %6368 = vdwg.mxu0
  %6369 = vmatprep.subr.mxu0 0.0
  %6370 = vmatpush1.msra.mxu0 0.0
  %6371 = vmatprep.subr.mxu0 0.0
  %6372 = vmatpush1.msra.mxu0 0.0
  %6373 = vmatprep.subr.mxu0 0.0
  %6374 = vmatpush1.msra.mxu0 0.0
  %6375 = vmatprep.subr.mxu0 0.0
  %6376 = vmatpush1.msra.mxu0 0.0
  %6377 = vmatprep.subr.mxu0 0.0
  %6378 = vmatpush1.msra.mxu0 0.0
  %6379 = vmatprep.subr.mxu0 0.0
  %6380 = vmatpush1.msra.mxu0 0.0
  %6381 = vmatprep.subr.mxu0 0.0
  %6382 = vmatpush1.msra.mxu0 0.0
  %6383 = vmatprep.subr.mxu0 0.0
  %6384 = vmatpush1.msra.mxu0 0.0
  %6385 = vmatprep.subr.mxu0 0.0
  %6386 = vmatpush1.msra.mxu0 0.0
  %6387 = vmatprep.subr.mxu0 0.0
  %6388 = vmatpush1.msra.mxu0 0.0
  %6389 = vmatprep.subr.mxu0 0.0
  %6390 = vmatpush1.msra.mxu0 0.0
  %6391 = vmatprep.subr.mxu0 0.0
  %6392 = vmatpush1.msra.mxu0 0.0
  %6393 = vmatprep.subr.mxu0 0.0
  %6394 = vmatpush1.msra.mxu0 %v6100
  %6395 = vmatprep.subr.mxu0 0.0
  %6396 = vmatpush1.msra.mxu0 %v6071
  %6397 = vmatprep.subr.mxu0 0.0
  %6398 = vmatpush1.msra.mxu0 %v6064
  %6399 = vmatprep.subr.mxu0 0.0
  %6400 = vmatpush1.msra.mxu0 %v6057
  %6401 = vmatprep.subr.mxu0 0.0
  %6402 = vmatpush2.msra.mxu0 0.0
  %6403 = vmatprep.subr.mxu0 0.0
  %6404 = vmatpush2.msra.mxu0 0.0
  %6405 = vmatprep.subr.mxu0 0.0
  %6406 = vmatpush2.msra.mxu0 0.0
  %6407 = vmatprep.subr.mxu0 0.0
  %6408 = vmatpush2.msra.mxu0 0.0
  %6409 = vmatprep.subr.mxu0 0.0
  %6410 = vmatpush2.msra.mxu0 0.0
  %6411 = vmatprep.subr.mxu0 0.0
  %6412 = vmatpush2.msra.mxu0 0.0
  %6413 = vmatprep.subr.mxu0 0.0
  %6414 = vmatpush2.msra.mxu0 0.0
  %6415 = vmatprep.subr.mxu0 0.0
  %6416 = vmatpush2.msra.mxu0 0.0
  %6417 = vmatprep.subr.mxu0 0.0
  %6418 = vmatpush2.msra.mxu0 0.0
  %6419 = vmatprep.subr.mxu0 0.0
  %6420 = vmatpush2.msra.mxu0 0.0
  %6421 = vmatprep.subr.mxu0 0.0
  %6422 = vmatpush2.msra.mxu0 0.0
  %6423 = vmatprep.subr.mxu0 0.0
  %6424 = vmatpush2.msra.mxu0 0.0
  %6425 = vmatprep.subr.mxu0 0.0
  %6426 = vmatpush2.msra.mxu0 0.0
  %6427 = vmatprep.subr.mxu0 0.0
  %6428 = vmatpush2.msra.mxu0 0.0
  %6429 = vmatprep.subr.mxu0 0.0
  %6430 = vmatpush2.msra.mxu0 0.0
  %6431 = vmatprep.subr.mxu0 0.0
  %6432 = vmatpush2.msra.mxu0 0.0
  %6433 = vmatprep.mubr.f32.mxu0 0.0
  %6434 = vmatmul.mubr.f32.gmra.mxu0 %v3753
  %v6435 = vpop.f32.mrf.mxu0
  %v6436 = vadd.f32 0.0, %v6435
  %v6437 = vpop.f32.mrf.mxu0
  %6438 = vmatprep.mubr.f32.mxu0 0.0
  %6439 = vmatmul.mubr.f32.gmra.mxu0 %v3755
  %v6440 = vpop.f32.mrf.mxu0
  %v6441 = vadd.f32 0.0, %v6440
  %v6442 = vpop.f32.mrf.mxu0
  %6443 = vmatprep.mubr.f32.mxu0 0.0
  %6444 = vmatmul.mubr.f32.gmra.mxu0 %v3757
  %v6445 = vpop.f32.mrf.mxu0
  %v6446 = vadd.f32 0.0, %v6445
  %v6447 = vpop.f32.mrf.mxu0
  %6448 = vmatprep.mubr.f32.mxu0 0.0
  %6449 = vmatmul.mubr.f32.gmra.mxu0 %v6079
  %v6450 = vpop.f32.mrf.mxu0
  %v6451 = vadd.f32 0.0, %v6450
  %v6452 = vpop.f32.mrf.mxu0
  %6453 = vdwg.mxu0
  %v6454 = vlaneseq
  %v6455 = vshrl.u32 %v6454, 7
  %v6456 = vsub.s32 0, %v6455
  %v6457 = vrot.slane %v5785, %v6456
  %v6458 = vlaneseq
  %v6459 = vshrl.u32 %v6458, 7
  %v6460 = vsub.s32 0, %v6459
  %v6461 = vrot.slane %v5786, %v6460
  %v6462 = vlaneseq
  %v6463 = vshrl.u32 %v6462, 7
  %v6464 = vsub.s32 0, %v6463
  %v6465 = vrot.slane %v5787, %v6464
  %v6466 = vlaneseq
  %v6467 = vshrl.u32 %v6466, 7
  %v6468 = vsub.s32 0, %v6467
  %v6469 = vrot.slane %v5788, %v6468
  %v6470 = vlaneseq
  %v6471 = vshrl.u32 %v6470, 7
  %v6472 = vsub.s32 0, %v6471
  %v6473 = vrot.slane %v5789, %v6472
  %v6474 = vlaneseq
  %v6475 = vshrl.u32 %v6474, 7
  %v6476 = vsub.s32 0, %v6475
  %v6477 = vrot.slane %v5790, %v6476
  %v6478 = vlaneseq
  %v6479 = vshrl.u32 %v6478, 7
  %v6480 = vsub.s32 0, %v6479
  %v6481 = vrot.slane %v5791, %v6480
  %vm6482 = vcmp.eq.f32.partialorder %v70, %v6457
  %vm6483 = vcmp.eq.f32.partialorder %v71, %v6461
  %vm6484 = vcmp.eq.f32.partialorder %v72, %v6465
  %vm6485 = vcmp.eq.f32.partialorder %v73, %v6469
  %vm6486 = vcmp.eq.f32.partialorder %v74, %v6473
  %vm6487 = vcmp.eq.f32.partialorder %v75, %v6477
  %vm6488 = vcmp.eq.f32.partialorder %v76, %v6481
  %vm6489 = vcmp.eq.f32.partialorder %v77, %v6457
  %vm6490 = vcmp.eq.f32.partialorder %v78, %v6461
  %vm6491 = vcmp.eq.f32.partialorder %v79, %v6465
  %vm6492 = vcmp.eq.f32.partialorder %v80, %v6469
  %vm6493 = vcmp.eq.f32.partialorder %v81, %v6473
  %vm6494 = vcmp.eq.f32.partialorder %v82, %v6477
  %vm6495 = vcmp.eq.f32.partialorder %v83, %v6481
  %vm6496 = vcmp.eq.f32.partialorder %v84, %v6457
  %vm6497 = vcmp.eq.f32.partialorder %v85, %v6461
  %vm6498 = vcmp.eq.f32.partialorder %v86, %v6465
  %vm6499 = vcmp.eq.f32.partialorder %v87, %v6469
  %vm6500 = vcmp.eq.f32.partialorder %v88, %v6473
  %vm6501 = vcmp.eq.f32.partialorder %v89, %v6477
  %vm6502 = vcmp.eq.f32.partialorder %v90, %v6481
  %vm6503 = vcmp.eq.f32.partialorder %v91, %v6457
  %vm6504 = vcmp.eq.f32.partialorder %v92, %v6461
  %vm6505 = vcmp.eq.f32.partialorder %v93, %v6465
  %vm6506 = vcmp.eq.f32.partialorder %v94, %v6469
  %vm6507 = vcmp.eq.f32.partialorder %v95, %v6473
  %vm6508 = vcmp.eq.f32.partialorder %v96, %v6477
  %vm6509 = vcmp.eq.f32.partialorder %v97, %v6481
  %v6510 = vlaneseq
  %v6511 = vshrl.u32 %v6510, 7
  %v6512 = vsub.s32 0, %v6511
  %v6513 = vrot.slane %v5813, %v6512
  %v6514 = vlaneseq
  %v6515 = vshrl.u32 %v6514, 7
  %v6516 = vsub.s32 0, %v6515
  %v6517 = vrot.slane %v5814, %v6516
  %v6518 = vlaneseq
  %v6519 = vshrl.u32 %v6518, 7
  %v6520 = vsub.s32 0, %v6519
  %v6521 = vrot.slane %v5815, %v6520
  %v6522 = vlaneseq
  %v6523 = vshrl.u32 %v6522, 7
  %v6524 = vsub.s32 0, %v6523
  %v6525 = vrot.slane %v5816, %v6524
  %v6526 = vlaneseq
  %v6527 = vshrl.u32 %v6526, 7
  %v6528 = vsub.s32 0, %v6527
  %v6529 = vrot.slane %v5817, %v6528
  %v6530 = vlaneseq
  %v6531 = vshrl.u32 %v6530, 7
  %v6532 = vsub.s32 0, %v6531
  %v6533 = vrot.slane %v5818, %v6532
  %v6534 = vlaneseq
  %v6535 = vshrl.u32 %v6534, 7
  %v6536 = vsub.s32 0, %v6535
  %v6537 = vrot.slane %v5819, %v6536
  %v6538 = vsel %vm6482, %v6513, 0.0
  %v6539 = vsel %vm6483, %v6517, 0.0
  %v6540 = vsel %vm6484, %v6521, 0.0
  %v6541 = vsel %vm6485, %v6525, 0.0
  %v6542 = vsel %vm6486, %v6529, 0.0
  %v6543 = vsel %vm6487, %v6533, 0.0
  %v6544 = vsel %vm6488, %v6537, 0.0
  %v6545 = vsel %vm6489, %v6513, 0.0
  %v6546 = vsel %vm6490, %v6517, 0.0
  %v6547 = vsel %vm6491, %v6521, 0.0
  %v6548 = vsel %vm6492, %v6525, 0.0
  %v6549 = vsel %vm6493, %v6529, 0.0
  %v6550 = vsel %vm6494, %v6533, 0.0
  %v6551 = vsel %vm6495, %v6537, 0.0
  %v6552 = vsel %vm6496, %v6513, 0.0
  %v6553 = vsel %vm6497, %v6517, 0.0
  %v6554 = vsel %vm6498, %v6521, 0.0
  %v6555 = vsel %vm6499, %v6525, 0.0
  %v6556 = vsel %vm6500, %v6529, 0.0
  %v6557 = vsel %vm6501, %v6533, 0.0
  %v6558 = vsel %vm6502, %v6537, 0.0
  %v6559 = vsel %vm6503, %v6513, 0.0
  %v6560 = vsel %vm6504, %v6517, 0.0
  %v6561 = vsel %vm6505, %v6521, 0.0
  %v6562 = vsel %vm6506, %v6525, 0.0
  %v6563 = vsel %vm6507, %v6529, 0.0
  %v6564 = vsel %vm6508, %v6533, 0.0
  %v6565 = vsel %vm6509, %v6537, 0.0
  %v6566 = vadd.f32 %v5785, 1.0
  %v6567 = vadd.f32 %v5786, 1.0
  %v6568 = vadd.f32 %v5787, 1.0
  %v6569 = vadd.f32 %v5788, 1.0
  %v6570 = vadd.f32 %v5789, 1.0
  %v6571 = vadd.f32 %v5790, 1.0
  %v6572 = vadd.f32 %v5791, 1.0
  %v6573 = vlaneseq
  %v6574 = vshrl.u32 %v6573, 7
  %v6575 = vsub.s32 0, %v6574
  %v6576 = vrot.slane %v6566, %v6575
  %v6577 = vlaneseq
  %v6578 = vshrl.u32 %v6577, 7
  %v6579 = vsub.s32 0, %v6578
  %v6580 = vrot.slane %v6567, %v6579
  %v6581 = vlaneseq
  %v6582 = vshrl.u32 %v6581, 7
  %v6583 = vsub.s32 0, %v6582
  %v6584 = vrot.slane %v6568, %v6583
  %v6585 = vlaneseq
  %v6586 = vshrl.u32 %v6585, 7
  %v6587 = vsub.s32 0, %v6586
  %v6588 = vrot.slane %v6569, %v6587
  %v6589 = vlaneseq
  %v6590 = vshrl.u32 %v6589, 7
  %v6591 = vsub.s32 0, %v6590
  %v6592 = vrot.slane %v6570, %v6591
  %v6593 = vlaneseq
  %v6594 = vshrl.u32 %v6593, 7
  %v6595 = vsub.s32 0, %v6594
  %v6596 = vrot.slane %v6571, %v6595
  %v6597 = vlaneseq
  %v6598 = vshrl.u32 %v6597, 7
  %v6599 = vsub.s32 0, %v6598
  %v6600 = vrot.slane %v6572, %v6599
  %vm6601 = vcmp.eq.f32.partialorder %v70, %v6576
  %vm6602 = vcmp.eq.f32.partialorder %v71, %v6580
  %vm6603 = vcmp.eq.f32.partialorder %v72, %v6584
  %vm6604 = vcmp.eq.f32.partialorder %v73, %v6588
  %vm6605 = vcmp.eq.f32.partialorder %v74, %v6592
  %vm6606 = vcmp.eq.f32.partialorder %v75, %v6596
  %vm6607 = vcmp.eq.f32.partialorder %v76, %v6600
  %vm6608 = vcmp.eq.f32.partialorder %v77, %v6576
  %vm6609 = vcmp.eq.f32.partialorder %v78, %v6580
  %vm6610 = vcmp.eq.f32.partialorder %v79, %v6584
  %vm6611 = vcmp.eq.f32.partialorder %v80, %v6588
  %vm6612 = vcmp.eq.f32.partialorder %v81, %v6592
  %vm6613 = vcmp.eq.f32.partialorder %v82, %v6596
  %vm6614 = vcmp.eq.f32.partialorder %v83, %v6600
  %vm6615 = vcmp.eq.f32.partialorder %v84, %v6576
  %vm6616 = vcmp.eq.f32.partialorder %v85, %v6580
  %vm6617 = vcmp.eq.f32.partialorder %v86, %v6584
  %vm6618 = vcmp.eq.f32.partialorder %v87, %v6588
  %vm6619 = vcmp.eq.f32.partialorder %v88, %v6592
  %vm6620 = vcmp.eq.f32.partialorder %v89, %v6596
  %vm6621 = vcmp.eq.f32.partialorder %v90, %v6600
  %vm6622 = vcmp.eq.f32.partialorder %v91, %v6576
  %vm6623 = vcmp.eq.f32.partialorder %v92, %v6580
  %vm6624 = vcmp.eq.f32.partialorder %v93, %v6584
  %vm6625 = vcmp.eq.f32.partialorder %v94, %v6588
  %vm6626 = vcmp.eq.f32.partialorder %v95, %v6592
  %vm6627 = vcmp.eq.f32.partialorder %v96, %v6596
  %vm6628 = vcmp.eq.f32.partialorder %v97, %v6600
  %v6629 = vlaneseq
  %v6630 = vshrl.u32 %v6629, 7
  %v6631 = vsub.s32 0, %v6630
  %v6632 = vrot.slane %v5799, %v6631
  %v6633 = vlaneseq
  %v6634 = vshrl.u32 %v6633, 7
  %v6635 = vsub.s32 0, %v6634
  %v6636 = vrot.slane %v5800, %v6635
  %v6637 = vlaneseq
  %v6638 = vshrl.u32 %v6637, 7
  %v6639 = vsub.s32 0, %v6638
  %v6640 = vrot.slane %v5801, %v6639
  %v6641 = vlaneseq
  %v6642 = vshrl.u32 %v6641, 7
  %v6643 = vsub.s32 0, %v6642
  %v6644 = vrot.slane %v5802, %v6643
  %v6645 = vlaneseq
  %v6646 = vshrl.u32 %v6645, 7
  %v6647 = vsub.s32 0, %v6646
  %v6648 = vrot.slane %v5803, %v6647
  %v6649 = vlaneseq
  %v6650 = vshrl.u32 %v6649, 7
  %v6651 = vsub.s32 0, %v6650
  %v6652 = vrot.slane %v5804, %v6651
  %v6653 = vlaneseq
  %v6654 = vshrl.u32 %v6653, 7
  %v6655 = vsub.s32 0, %v6654
  %v6656 = vrot.slane %v5805, %v6655
  %v6657 = vsel %vm6601, %v6632, 0.0
  %v6658 = vsel %vm6602, %v6636, 0.0
  %v6659 = vsel %vm6603, %v6640, 0.0
  %v6660 = vsel %vm6604, %v6644, 0.0
  %v6661 = vsel %vm6605, %v6648, 0.0
  %v6662 = vsel %vm6606, %v6652, 0.0
  %v6663 = vsel %vm6607, %v6656, 0.0
  %v6664 = vsel %vm6608, %v6632, 0.0
  %v6665 = vsel %vm6609, %v6636, 0.0
  %v6666 = vsel %vm6610, %v6640, 0.0
  %v6667 = vsel %vm6611, %v6644, 0.0
  %v6668 = vsel %vm6612, %v6648, 0.0
  %v6669 = vsel %vm6613, %v6652, 0.0
  %v6670 = vsel %vm6614, %v6656, 0.0
  %v6671 = vsel %vm6615, %v6632, 0.0
  %v6672 = vsel %vm6616, %v6636, 0.0
  %v6673 = vsel %vm6617, %v6640, 0.0
  %v6674 = vsel %vm6618, %v6644, 0.0
  %v6675 = vsel %vm6619, %v6648, 0.0
  %v6676 = vsel %vm6620, %v6652, 0.0
  %v6677 = vsel %vm6621, %v6656, 0.0
  %v6678 = vsel %vm6622, %v6632, 0.0
  %v6679 = vsel %vm6623, %v6636, 0.0
  %v6680 = vsel %vm6624, %v6640, 0.0
  %v6681 = vsel %vm6625, %v6644, 0.0
  %v6682 = vsel %vm6626, %v6648, 0.0
  %v6683 = vsel %vm6627, %v6652, 0.0
  %v6684 = vsel %vm6628, %v6656, 0.0
  %v6685 = vadd.f32 %v6538, %v6657
  %v6686 = vadd.f32 %v6539, %v6658
  %v6687 = vadd.f32 %v6540, %v6659
  %v6688 = vadd.f32 %v6541, %v6660
  %v6689 = vadd.f32 %v6542, %v6661
  %v6690 = vadd.f32 %v6543, %v6662
  %v6691 = vadd.f32 %v6544, %v6663
  %v6692 = vadd.f32 %v6545, %v6664
  %v6693 = vadd.f32 %v6546, %v6665
  %v6694 = vadd.f32 %v6547, %v6666
  %v6695 = vadd.f32 %v6548, %v6667
  %v6696 = vadd.f32 %v6549, %v6668
  %v6697 = vadd.f32 %v6550, %v6669
  %v6698 = vadd.f32 %v6551, %v6670
  %v6699 = vadd.f32 %v6552, %v6671
  %v6700 = vadd.f32 %v6553, %v6672
  %v6701 = vadd.f32 %v6554, %v6673
  %v6702 = vadd.f32 %v6555, %v6674
  %v6703 = vadd.f32 %v6556, %v6675
  %v6704 = vadd.f32 %v6557, %v6676
  %v6705 = vadd.f32 %v6558, %v6677
  %v6706 = vadd.f32 %v6559, %v6678
  %v6707 = vadd.f32 %v6560, %v6679
  %v6708 = vadd.f32 %v6561, %v6680
  %v6709 = vadd.f32 %v6562, %v6681
  %v6710 = vadd.f32 %v6563, %v6682
  %v6711 = vadd.f32 %v6564, %v6683
  %v6712 = vadd.f32 %v6565, %v6684
  %v6713 = vmul.f32 %v6169, %v6685
  %v6714 = vmul.f32 %v6171, %v6686
  %v6715 = vmul.f32 %v6258, %v6687
  %v6716 = vmul.f32 %v6260, %v6688
  %v6717 = vmul.f32 %v6347, %v6689
  %v6718 = vmul.f32 %v6349, %v6690
  %v6719 = vmul.f32 %v6436, %v6691
  %v6720 = vmul.f32 %v6175, %v6692
  %v6721 = vmul.f32 %v6177, %v6693
  %v6722 = vmul.f32 %v6264, %v6694
  %v6723 = vmul.f32 %v6266, %v6695
  %v6724 = vmul.f32 %v6353, %v6696
  %v6725 = vmul.f32 %v6355, %v6697
  %v6726 = vmul.f32 %v6441, %v6698
  %v6727 = vmul.f32 %v6181, %v6699
  %v6728 = vmul.f32 %v6183, %v6700
  %v6729 = vmul.f32 %v6270, %v6701
  %v6730 = vmul.f32 %v6272, %v6702
  %v6731 = vmul.f32 %v6359, %v6703
  %v6732 = vmul.f32 %v6361, %v6704
  %v6733 = vmul.f32 %v6446, %v6705
  %v6734 = vmul.f32 %v6187, %v6706
  %v6735 = vmul.f32 %v6189, %v6707
  %v6736 = vmul.f32 %v6276, %v6708
  %v6737 = vmul.f32 %v6278, %v6709
  %v6738 = vmul.f32 %v6365, %v6710
  %v6739 = vmul.f32 %v6367, %v6711
  %v6740 = vmul.f32 %v6451, %v6712
  %v6741 = vadd.f32 %v6713, %v6720
  %v6742 = vadd.f32 %v6741, %v6727
  %v6743 = vsel %vm135, %v6734, 0.0
  %v6744 = vadd.f32 %v6742, %v6743
  %v6745 = vrot.slane %v6744, 4
  %v6746 = vadd.f32 %v6744, %v6745
  %v6747 = vrot.slane %v6746, 2
  %v6748 = vadd.f32 %v6746, %v6747
  %v6749 = vrot.slane %v6748, 1
  %v6750 = vadd.f32 %v6748, %v6749
  %v6751 = vadd.f32 %v6714, %v6721
  %v6752 = vadd.f32 %v6751, %v6728
  %v6753 = vsel %vm135, %v6735, 0.0
  %v6754 = vadd.f32 %v6752, %v6753
  %v6755 = vrot.slane %v6754, 4
  %v6756 = vadd.f32 %v6754, %v6755
  %v6757 = vrot.slane %v6756, 2
  %v6758 = vadd.f32 %v6756, %v6757
  %v6759 = vrot.slane %v6758, 1
  %v6760 = vadd.f32 %v6758, %v6759
  %v6761 = vadd.f32 %v6715, %v6722
  %v6762 = vadd.f32 %v6761, %v6729
  %v6763 = vsel %vm135, %v6736, 0.0
  %v6764 = vadd.f32 %v6762, %v6763
  %v6765 = vrot.slane %v6764, 4
  %v6766 = vadd.f32 %v6764, %v6765
  %v6767 = vrot.slane %v6766, 2
  %v6768 = vadd.f32 %v6766, %v6767
  %v6769 = vrot.slane %v6768, 1
  %v6770 = vadd.f32 %v6768, %v6769
  %v6771 = vadd.f32 %v6716, %v6723
  %v6772 = vadd.f32 %v6771, %v6730
  %v6773 = vsel %vm135, %v6737, 0.0
  %v6774 = vadd.f32 %v6772, %v6773
  %v6775 = vrot.slane %v6774, 4
  %v6776 = vadd.f32 %v6774, %v6775
  %v6777 = vrot.slane %v6776, 2
  %v6778 = vadd.f32 %v6776, %v6777
  %v6779 = vrot.slane %v6778, 1
  %v6780 = vadd.f32 %v6778, %v6779
  %v6781 = vadd.f32 %v6717, %v6724
  %v6782 = vadd.f32 %v6781, %v6731
  %v6783 = vsel %vm135, %v6738, 0.0
  %v6784 = vadd.f32 %v6782, %v6783
  %v6785 = vrot.slane %v6784, 4
  %v6786 = vadd.f32 %v6784, %v6785
  %v6787 = vrot.slane %v6786, 2
  %v6788 = vadd.f32 %v6786, %v6787
  %v6789 = vrot.slane %v6788, 1
  %v6790 = vadd.f32 %v6788, %v6789
  %v6791 = vadd.f32 %v6718, %v6725
  %v6792 = vadd.f32 %v6791, %v6732
  %v6793 = vsel %vm135, %v6739, 0.0
  %v6794 = vadd.f32 %v6792, %v6793
  %v6795 = vrot.slane %v6794, 4
  %v6796 = vadd.f32 %v6794, %v6795
  %v6797 = vrot.slane %v6796, 2
  %v6798 = vadd.f32 %v6796, %v6797
  %v6799 = vrot.slane %v6798, 1
  %v6800 = vadd.f32 %v6798, %v6799
  %v6801 = vsel %vm3636, %v6719, 0.0
  %v6802 = vsel %vm3636, %v6726, 0.0
  %v6803 = vadd.f32 %v6801, %v6802
  %v6804 = vsel %vm3636, %v6733, 0.0
  %v6805 = vadd.f32 %v6803, %v6804
  %v6806 = vsel %vm3642, %v6740, 0.0
  %v6807 = vadd.f32 %v6805, %v6806
  %v6808 = vrot.slane %v6807, 4
  %v6809 = vadd.f32 %v6807, %v6808
  %v6810 = vrot.slane %v6809, 2
  %v6811 = vadd.f32 %v6809, %v6810
  %v6812 = vrot.slane %v6811, 1
  %v6813 = vadd.f32 %v6811, %v6812
  %vm6814 = vcmask 1040384
  %v6815 = vsel %vm6814, %v3585, %v6750
  %v6816 = vsel %vm6814, %v3595, %v6760
  %v6817 = vsel %vm6814, %v3605, %v6770
  %v6818 = vsel %vm6814, %v3615, %v6780
  %v6819 = vsel %vm6814, %v3625, %v6790
  %v6820 = vsel %vm6814, %v3635, %v6800
  %v6821 = vsel %vm6814, %v3650, %v6813
  %v6829 = vcombine.low %v6815, %v6816
  %v6830 = vcombine.low %v6817, %v6818
  %v6832 = vunpack.c.l.s4 1983009808
  %v6833 = vunpack.c.0.s8 %v6832
  %v6834 = vlaneseq
  %v6835 = vshrl.u32 %v6834, 7
  %v6836 = vsub.s32 %v6833, %v6835
  %v6837 = vrot.slane %v6829, %v6836
  %v6839 = vunpack.c.l.s4 1983009808
  %v6840 = vunpack.c.0.s8 %v6839
  %v6841 = vlaneseq
  %v6842 = vshrl.u32 %v6841, 7
  %v6843 = vsub.s32 %v6840, %v6842
  %v6844 = vrot.slane %v6830, %v6843
  %v6845 = vcombine.low %v6837, %v6844
  %v6846 = vcombine.low %v6819, %v6820
  %v6848 = vunpack.c.l.s4 1983009808
  %v6849 = vunpack.c.0.s8 %v6848
  %v6850 = vlaneseq
  %v6851 = vshrl.u32 %v6850, 7
  %v6852 = vsub.s32 %v6849, %v6851
  %v6853 = vrot.slane %v6846, %v6852
  %v6855 = vunpack.c.l.s4 1983009808
  %v6856 = vunpack.c.0.s8 %v6855
  %v6857 = vlaneseq
  %v6858 = vshrl.u32 %v6857, 7
  %v6859 = vsub.s32 %v6856, %v6858
  %v6860 = vrot.slane %v6821, %v6859
  %v6861 = vcombine.low %v6853, %v6860
  %6864 = vst [vmem:[%s20] sm:$0xff] %v6845
  %vm6865 = vcmask 1043458
  %vm6866 = vmor %vm6865, %vm799
  %vm6867 = vcmask 128004
  %vm6868 = vmor %vm6867, %vm6866
  %6869 = vst.msk [vmem:[%s20 + $0x8] sm:$0x3f] %vm6868, %v6861
  %vm6870 = vcmask 239616
  %6871 = vst.msk [vmem:[%s21] sm:$0x7] %vm6870, %v2077
  %6872 = vst.msk [vmem:[%s21 + $0x4] sm:$0x7] %vm6870, %v5345
  %v6873 = vrot.slane %v5638, 7
  %v6875 = vsel %vm6814, %v2401, %v6873
  %vm6876 = vcmask 41984
  %6877 = vst.msk [vmem:[%s22] sm:$0x3] %vm6876, %v6875
  // Predicated region
  $region82: #{stn_forward.1} parent=0 // pred_check
    _
  $region83: #{stn_forward.1} parent=0 // pred_check_branch
    %6879 = sbr.rel (0) target = $region85
  $region84: #{stn_forward.1} parent=0 // pred_region
    _
  $region85: #{stn_forward.1} parent=0 // pred_fallthru
    _
  // Predicated region
  $region86: #{stn_forward.1} parent=0 // pred_check
    _
  $region87: #{stn_forward.1} parent=0 // pred_check_branch
    %6881 = sbr.rel (0) target = $region89
  $region88: #{stn_forward.1} parent=0 // pred_region
    _
  $region89: #{stn_forward.1} parent=0 // pred_fallthru
    _
  // Predicated region
  $region90: #{stn_forward.1} parent=0 // pred_check
    _
  $region91: #{stn_forward.1} parent=0 // pred_check_branch
    %6883 = sbr.rel (0) target = $region93
  $region92: #{stn_forward.1} parent=0 // pred_region
    _
  $region93: #{stn_forward.1} parent=0 // pred_fallthru
    _
  // Predicated region
  $region94: #{stn_forward.1} parent=0 // pred_check
    _
  $region95: #{stn_forward.1} parent=0 // pred_check_branch
    %6885 = sbr.rel (0) target = $region97
  $region96: #{stn_forward.1} parent=0 // pred_region
    _
  $region97: #{stn_forward.1} parent=0 // pred_fallthru
    _
  // Predicated region
  $region98: #{stn_forward.1} parent=0 // pred_check
    _
  $region99: #{stn_forward.1} parent=0 // pred_check_branch
    %6887 = sbr.rel (0) target = $region101
  $region100: #{stn_forward.1} parent=0 // pred_region
    _
  $region101: #{stn_forward.1} parent=0 // pred_fallthru
    _
  // Predicated region
  $region102: #{stn_forward.1} parent=0 // pred_check
    _
  $region103: #{stn_forward.1} parent=0 // pred_check_branch
    %6889 = sbr.rel (0) target = $region105
  $region104: #{stn_forward.1} parent=0 // pred_region
    _
  $region105: #{stn_forward.1} parent=0 // pred_fallthru
    _

</llo_original>
